<compile_context>
chip_gen: v6e
topology: v6e:2x2x1
jax: 0.10.0
libtpu: 0.0.40
codegen_flags: <defaults>
</compile_context>

<pallas_src>
import jax
import jax.numpy as jnp
from jax.experimental import pallas as pl
from jax.experimental.pallas import tpu as pltpu

KH = KW = 5      # LeNet5 conv kernel size
PAD1 = 2         # conv1 padding
C1, C2 = 6, 16   # conv channel counts


# ---------------------------------------------------------------------------
# Fused Pallas kernel (one grid step == TILE_B samples, laid out along lanes)
# ---------------------------------------------------------------------------
def _make_kernel(W, tile_b):
    """Build the fused kernel for input width W and batch tile tile_b."""
    B = tile_b
    w1 = W                    # conv1 output width (pad=2, k=5)
    w1p = w1 // 2             # after pool1
    w2 = w1p - KW + 1         # conv2 output width (pad=0)
    w2p = w2 // 2             # after pool2

    def kernel(x_ref, L1_ref, b1_ref, R1_ref, L2_ref, b2_ref, R2_ref,
               Wf1_ref, bf1_ref, Wf2_ref, bf2_ref, Wf3_ref, bf3_ref, out_ref):
        f32 = jnp.float32

        def mm(a, b):
            return jnp.dot(a, b, preferred_element_type=f32)

        def conv_relu(xp, L_ref, b_ref, w_out):
            # xp: (rows_in, (w_out + KW - 1) * B), already zero padded in W.
            # Fused-K conv: stack the KW shifted views along sublanes (static,
            # B-aligned lane slices) and contract once against the
            # pre-concatenated block-Toeplitz weights.
            xcat = jnp.concatenate(
                [xp[:, dj * B:(dj + w_out) * B] for dj in range(KW)], axis=0)
            return jnp.maximum(mm(L_ref[...], xcat) + b_ref[...], 0.0)

        def pool2x2(y, R_ref, w_in):
            # W-half: max of two 128-aligned lane slices per output column.
            a = jnp.concatenate(
                [jnp.maximum(y[:, (2 * ow) * B:(2 * ow + 1) * B],
                             y[:, (2 * ow + 1) * B:(2 * ow + 2) * B])
                 for ow in range(w_in // 2)], axis=1)
            # H-half: tiny batch-independent 0/1 row-selection matmuls.
            return jnp.maximum(mm(R_ref[0], a), mm(R_ref[1], a))

        x = x_ref[0]                                   # (Cin*H, (W+4)*B)
        y = conv_relu(x, L1_ref, b1_ref, w1)           # (C1*H,   W*B)
        y = pool2x2(y, R1_ref, w1)                     # (C1*H/2, (W/2)*B)
        y = conv_relu(y, L2_ref, b2_ref, w2)           # (C2*h2,  w2*B)
        y = pool2x2(y, R2_ref, w2)                     # (C2*h2p, w2p*B)

        # Flatten: stack the w2p lane blocks along sublanes (order matches the
        # fc1 weight re-ordering done at prep time), then 3 batched GEMMs.
        ycat = jnp.concatenate([y[:, j * B:(j + 1) * B] for j in range(w2p)],
                               axis=0)                                  # (flat, B)
        h = jnp.maximum(mm(Wf1_ref[...], ycat) + bf1_ref[...], 0.0)     # (120, B)
        h = jnp.maximum(mm(Wf2_ref[...], h) + bf2_ref[...], 0.0)        # (84, B)
        h = mm(Wf3_ref[...], h) + bf3_ref[...]                          # (c_out, B)
        out_ref[0] = h.astype(out_ref.dtype)

    return kernel


# ---------------------------------------------------------------------------
# One-time parameter preparation (outside the per-call jit)
# ---------------------------------------------------------------------------
def _conv_as_lcat(w, b, c_in, h_in, pad):
    """(c_out, c_in, kh, kw) conv -> fused-K block-Toeplitz weights.

    With the activation laid out as (c_in*h_in, w*B) (w-major lanes), the conv
    equals  L_cat @ concat_dj(X shifted by dj along w)  (+ bias).  L_cat is the
    column concatenation over dj of matrices encoding the channel+row
    contraction and the H zero padding.
    """
    c_out, c_in_w, kh, kw = w.shape
    assert c_in_w == c_in
    h_out = h_in + 2 * pad - kh + 1
    oh = jnp.arange(h_out)
    hh = jnp.arange(h_in)
    di = hh[None, :] + pad - oh[:, None]                  # kernel row for (oh, hi)
    valid = ((di >= 0) & (di < kh)).astype(w.dtype)       # encodes H zero padding
    di_c = jnp.clip(di, 0, kh - 1)                        # keep coupled with `valid`
    Ls = []
    for dj in range(kw):
        wg = w[:, :, :, dj][:, :, di_c] * valid[None, None]   # (c_out,c_in,h_out,h_in)
        Ls.append(wg.transpose(0, 2, 1, 3).reshape(c_out * h_out, c_in * h_in))
    L_cat = jnp.concatenate(Ls, axis=1)                   # (c_out*h_out, kw*c_in*h_in)
    bias = jnp.repeat(b, h_out)[:, None]                  # (c_out*h_out, 1)
    return L_cat, bias, h_out


def _row_pool_selector(c, h_in, dtype=jnp.float32):
    """0/1 selectors implementing the H-half of MaxPool2d(2) on a (c*h, w*B) layout."""
    assert h_in % 2 == 0
    h_out = h_in // 2
    r = jnp.arange(c * h_out)
    src = (r // h_out) * h_in + 2 * (r % h_out)           # even row of each pair
    col = jnp.arange(c * h_in)
    return jnp.stack([(src[:, None] == col[None, :]).astype(dtype),
                      ((src + 1)[:, None] == col[None, :]).astype(dtype)])


def prepare_lenet5_params(params, c_in=1, H=32, W=16):
    assert H % 4 == 0 and W % 4 == 0
    assert (H // 2 - KW + 1) % 2 == 0 and (W // 2 - KW + 1) % 2 == 0

    L1, b1, h1 = _conv_as_lcat(params["conv1_w"], params["conv1_b"], c_in, H, pad=PAD1)
    R1 = _row_pool_selector(C1, h1)
    h1p, w1p = h1 // 2, W // 2
    L2, b2, h2 = _conv_as_lcat(params["conv2_w"], params["conv2_b"], C1, h1p, pad=0)
    R2 = _row_pool_selector(C2, h2)
    h2p, w2p = h2 // 2, (w1p - KW + 1) // 2

    fc1_w = params["fc1_w"]                               # torch (out, in) layout
    assert fc1_w.shape[1] == C2 * h2p * w2p
    # Fold torch's NCHW flatten (idx = (c*h2p + h)*w2p + w) into the sublane
    # order produced by the kernel's lane-block stacking (w-major blocks).
    Wf1 = jnp.concatenate([fc1_w[:, j::w2p] for j in range(w2p)], axis=1)

    return {
        "L1": L1, "b1": b1, "R1": R1,
        "L2": L2, "b2": b2, "R2": R2,
        "Wf1": Wf1, "bf1": params["fc1_b"][:, None],
        "Wf2": params["fc2_w"], "bf2": params["fc2_b"][:, None],
        "Wf3": params["fc3_w"], "bf3": params["fc3_b"][:, None],
    }


# ---------------------------------------------------------------------------
# pallas_call wrapper (the whole forward pass = one kernel)
# ---------------------------------------------------------------------------
def lenet5_forward(x, kp, *, tile_b=128):
    N, Cin, H, W = x.shape
    assert kp["L1"].shape[1] == KW * Cin * H, "prepared params do not match input"
    B = tile_b
    c_out = kp["Wf3"].shape[0]

    # Pad the batch to a multiple of TILE_B and lay it out along lanes,
    # w-major (lane = w*TILE_B + b), with conv1's W zero padding pre-applied.
    n_pad = (-N) % B
    if n_pad:
        x = jnp.concatenate([x, jnp.zeros((n_pad,) + x.shape[1:], x.dtype)], axis=0)
    n_tiles = (N + n_pad) // B
    xt = x.astype(jnp.float32).reshape(n_tiles, B, Cin * H, W)
    xt = xt.transpose(0, 2, 3, 1)                           # (t, Cin*H, W, B)
    xt = jnp.pad(xt, ((0, 0), (0, 0), (PAD1, PAD1), (0, 0)))
    wp = W + 2 * PAD1
    xt = xt.reshape(n_tiles, Cin * H, wp * B)

    order = ["L1", "b1", "R1", "L2", "b2", "R2",
             "Wf1", "bf1", "Wf2", "bf2", "Wf3", "bf3"]
    ws = [kp[k] for k in order]

    def full_spec(a):
        nd = a.ndim
        return pl.BlockSpec(a.shape, lambda t, _nd=nd: (0,) * _nd)

    out = pl.pallas_call(
        _make_kernel(W, B),
        out_shape=jax.ShapeDtypeStruct((n_tiles, c_out, B), jnp.float32),
        grid=(n_tiles,),
        in_specs=[pl.BlockSpec((1, Cin * H, wp * B), lambda t: (t, 0, 0))]
                 + [full_spec(a) for a in ws],
        out_specs=pl.BlockSpec((1, c_out, B), lambda t: (t, 0, 0)),
        compiler_params=pltpu.CompilerParams(dimension_semantics=("parallel",)),
    )(xt, *ws)

    # Lane-dense (c_out, TILE_B) blocks back to (N, c_out); drop batch padding.
    return out.transpose(0, 2, 1).reshape(n_tiles * B, c_out)[:N]


# ---------------------------------------------------------------------------
# Parameter init (kaiming_normal fan_in / relu: std = sqrt(2/fan_in), bias 0)
# ---------------------------------------------------------------------------
def init_params(key, c_in=1, c_out=10, H=32, W=16):
    ks = jax.random.split(key, 5)
    flat = 16 * (H // 4 - 2) * (W // 4 - 2)

    def kaiming(k, shape, fan_in):
        return (jax.random.normal(k, shape, jnp.float32)
                * jnp.sqrt(2.0 / fan_in).astype(jnp.float32))

    return {
        "conv1_w": kaiming(ks[0], (6, c_in, 5, 5), c_in * 5 * 5),
        "conv1_b": jnp.zeros((6,), jnp.float32),
        "conv2_w": kaiming(ks[1], (16, 6, 5, 5), 6 * 5 * 5),
        "conv2_b": jnp.zeros((16,), jnp.float32),
        "fc1_w": kaiming(ks[2], (120, flat), flat),   # torch Linear layout (out, in)
        "fc1_b": jnp.zeros((120,), jnp.float32),
        "fc2_w": kaiming(ks[3], (84, 120), 120),
        "fc2_b": jnp.zeros((84,), jnp.float32),
        "fc3_w": kaiming(ks[4], (c_out, 84), 84),
        "fc3_b": jnp.zeros((c_out,), jnp.float32),
    }


# ---------------------------------------------------------------------------
# Pure-JAX reference (mirrors torch LeNet5.forward), at HIGHEST precision
# ---------------------------------------------------------------------------
def lenet5_reference(x, params):
    prec = jax.lax.Precision.HIGHEST

    def conv(x, w, b, pad):
        y = jax.lax.conv_general_dilated(
            x, w, window_strides=(1, 1), padding=[(pad, pad), (pad, pad)],
            dimension_numbers=("NCHW", "OIHW", "NCHW"), precision=prec)
        return jax.nn.relu(y + b[None, :, None, None])

    def pool(x):
        n, c, h, w = x.shape
        return x.reshape(n, c, h // 2, 2, w // 2, 2).max(axis=(3, 5))

    def lin(x, w, b):
        return jnp.dot(x, w.T, precision=prec) + b

    x = pool(conv(x, params["conv1_w"], params["conv1_b"], 2))
    x = pool(conv(x, params["conv2_w"], params["conv2_b"], 0))
    x = x.reshape(x.shape[0], -1)
    x = jax.nn.relu(lin(x, params["fc1_w"], params["fc1_b"]))
    x = jax.nn.relu(lin(x, params["fc2_w"], params["fc2_b"]))
    return lin(x, params["fc3_w"], params["fc3_b"])


if __name__ == "__main__":
    key = jax.random.PRNGKey(0)
    k_param, k_x = jax.random.split(key)

    batch, c_in, c_out, H, W = 2, 1, 10, 32, 16
    params = init_params(k_param, c_in=c_in, c_out=c_out, H=H, W=W)
    x = jax.random.normal(k_x, (batch, c_in, H, W), jnp.float32)

    kparams = prepare_lenet5_params(params, c_in=c_in, H=H, W=W)   # one-time prep
    fwd = jax.jit(lenet5_forward)
    out = jax.block_until_ready(fwd(x, kparams))
    assert out.shape == (batch, c_out), out.shape

    ref = lenet5_reference(x, params)
    err = float(jnp.max(jnp.abs(out - ref)))
    assert jnp.allclose(out, ref, rtol=2e-4, atol=2e-4), \
        f"mismatch vs reference: {err}"
    print("KERNEL_OK")
</pallas_src>

<mosaic_0001>
module attributes {stable_mosaic.version = 11 : i64} {
  func.func @kernel(%arg0: i32, %arg1: memref<1x32x2560xf32, #tpu.memory_space<vmem>>, %arg2: memref<192x160xf32, #tpu.memory_space<vmem>>, %arg3: memref<192x1xf32, #tpu.memory_space<vmem>>, %arg4: memref<2x96x192xf32, #tpu.memory_space<vmem>>, %arg5: memref<192x480xf32, #tpu.memory_space<vmem>>, %arg6: memref<192x1xf32, #tpu.memory_space<vmem>>, %arg7: memref<2x96x192xf32, #tpu.memory_space<vmem>>, %arg8: memref<120x192xf32, #tpu.memory_space<vmem>>, %arg9: memref<120x1xf32, #tpu.memory_space<vmem>>, %arg10: memref<84x120xf32, #tpu.memory_space<vmem>>, %arg11: memref<84x1xf32, #tpu.memory_space<vmem>>, %arg12: memref<10x84xf32, #tpu.memory_space<vmem>>, %arg13: memref<10x1xf32, #tpu.memory_space<vmem>>, %arg14: memref<1x10x128xf32, #tpu.memory_space<vmem>>) attributes {dimension_semantics = [#tpu.dimension_semantics<parallel>], iteration_bounds = array<i64: 1>, scalar_prefetch = 0 : i64, scratch_operands = 0 : i64, tpu.core_type = #tpu.core_type<tc>, window_params = [{transform_indices = @transform_0, window_bounds = array<i64: 1, 32, 2560>}, {pipeline_mode = #tpu.pipeline_mode<synchronous>, transform_indices = @transform_1, window_bounds = array<i64: 192, 160>}, {pipeline_mode = #tpu.pipeline_mode<synchronous>, transform_indices = @transform_2, window_bounds = array<i64: 192, 1>}, {pipeline_mode = #tpu.pipeline_mode<synchronous>, transform_indices = @transform_3, window_bounds = array<i64: 2, 96, 192>}, {pipeline_mode = #tpu.pipeline_mode<synchronous>, transform_indices = @transform_4, window_bounds = array<i64: 192, 480>}, {pipeline_mode = #tpu.pipeline_mode<synchronous>, transform_indices = @transform_5, window_bounds = array<i64: 192, 1>}, {pipeline_mode = #tpu.pipeline_mode<synchronous>, transform_indices = @transform_6, window_bounds = array<i64: 2, 96, 192>}, {pipeline_mode = #tpu.pipeline_mode<synchronous>, transform_indices = @transform_7, window_bounds = array<i64: 120, 192>}, {pipeline_mode = #tpu.pipeline_mode<synchronous>, transform_indices = @transform_8, window_bounds = array<i64: 120, 1>}, {pipeline_mode = #tpu.pipeline_mode<synchronous>, transform_indices = @transform_9, window_bounds = array<i64: 84, 120>}, {pipeline_mode = #tpu.pipeline_mode<synchronous>, transform_indices = @transform_10, window_bounds = array<i64: 84, 1>}, {pipeline_mode = #tpu.pipeline_mode<synchronous>, transform_indices = @transform_11, window_bounds = array<i64: 10, 84>}, {pipeline_mode = #tpu.pipeline_mode<synchronous>, transform_indices = @transform_12, window_bounds = array<i64: 10, 1>}, {transform_indices = @transform_13, window_bounds = array<i64: 1, 10, 128>}]} {
    %c0 = arith.constant 0 : index
    %c0_0 = arith.constant 0 : index
    %c0_1 = arith.constant 0 : index
    %0 = vector.load %arg1[%c0, %c0_0, %c0_1] : memref<1x32x2560xf32, #tpu.memory_space<vmem>>, vector<1x32x2560xf32>
    %1 = vector.shape_cast %0 : vector<1x32x2560xf32> to vector<32x2560xf32>
    %2 = vector.extract_strided_slice %1 {offsets = [0, 0], sizes = [32, 2048], strides = [1, 1]} : vector<32x2560xf32> to vector<32x2048xf32>
    %3 = vector.extract_strided_slice %1 {offsets = [0, 128], sizes = [32, 2048], strides = [1, 1]} : vector<32x2560xf32> to vector<32x2048xf32>
    %4 = vector.extract_strided_slice %1 {offsets = [0, 256], sizes = [32, 2048], strides = [1, 1]} : vector<32x2560xf32> to vector<32x2048xf32>
    %5 = vector.extract_strided_slice %1 {offsets = [0, 384], sizes = [32, 2048], strides = [1, 1]} : vector<32x2560xf32> to vector<32x2048xf32>
    %6 = vector.extract_strided_slice %1 {offsets = [0, 512], sizes = [32, 2048], strides = [1, 1]} : vector<32x2560xf32> to vector<32x2048xf32>
    %7 = tpu.concatenate %2, %3, %4, %5, %6 in 0 : vector<32x2048xf32>, vector<32x2048xf32>, vector<32x2048xf32>, vector<32x2048xf32>, vector<32x2048xf32> -> vector<160x2048xf32>
    %c0_2 = arith.constant 0 : index
    %c0_3 = arith.constant 0 : index
    %8 = vector.load %arg2[%c0_2, %c0_3] : memref<192x160xf32, #tpu.memory_space<vmem>>, vector<192x160xf32>
    %cst = arith.constant dense<0.000000e+00> : vector<192x2048xf32>
    %9 = tpu.matmul %8, %7, %cst {dimension_numbers = #tpu.dot_dimension_numbers<[1], [0], [0], [1], [0, 0, 1, 1], [], []>} : vector<192x160xf32>, vector<160x2048xf32>, vector<192x2048xf32> -> vector<192x2048xf32>
    %c0_4 = arith.constant 0 : index
    %c0_5 = arith.constant 0 : index
    %10 = vector.load %arg3[%c0_4, %c0_5] : memref<192x1xf32, #tpu.memory_space<vmem>>, vector<192x1xf32>
    %11 = vector.broadcast %10 : vector<192x1xf32> to vector<192x2048xf32>
    %12 = arith.addf %9, %11 : vector<192x2048xf32>
    %cst_6 = arith.constant 0.000000e+00 : f32
    %13 = vector.broadcast %cst_6 : f32 to vector<192x2048xf32>
    %14 = arith.maximumf %12, %13 : vector<192x2048xf32>
    %15 = vector.extract_strided_slice %14 {offsets = [0, 0], sizes = [192, 128], strides = [1, 1]} : vector<192x2048xf32> to vector<192x128xf32>
    %16 = vector.extract_strided_slice %14 {offsets = [0, 128], sizes = [192, 128], strides = [1, 1]} : vector<192x2048xf32> to vector<192x128xf32>
    %17 = arith.maximumf %15, %16 : vector<192x128xf32>
    %18 = vector.extract_strided_slice %14 {offsets = [0, 256], sizes = [192, 128], strides = [1, 1]} : vector<192x2048xf32> to vector<192x128xf32>
    %19 = vector.extract_strided_slice %14 {offsets = [0, 384], sizes = [192, 128], strides = [1, 1]} : vector<192x2048xf32> to vector<192x128xf32>
    %20 = arith.maximumf %18, %19 : vector<192x128xf32>
    %21 = vector.extract_strided_slice %14 {offsets = [0, 512], sizes = [192, 128], strides = [1, 1]} : vector<192x2048xf32> to vector<192x128xf32>
    %22 = vector.extract_strided_slice %14 {offsets = [0, 640], sizes = [192, 128], strides = [1, 1]} : vector<192x2048xf32> to vector<192x128xf32>
    %23 = arith.maximumf %21, %22 : vector<192x128xf32>
    %24 = vector.extract_strided_slice %14 {offsets = [0, 768], sizes = [192, 128], strides = [1, 1]} : vector<192x2048xf32> to vector<192x128xf32>
    %25 = vector.extract_strided_slice %14 {offsets = [0, 896], sizes = [192, 128], strides = [1, 1]} : vector<192x2048xf32> to vector<192x128xf32>
    %26 = arith.maximumf %24, %25 : vector<192x128xf32>
    %27 = vector.extract_strided_slice %14 {offsets = [0, 1024], sizes = [192, 128], strides = [1, 1]} : vector<192x2048xf32> to vector<192x128xf32>
    %28 = vector.extract_strided_slice %14 {offsets = [0, 1152], sizes = [192, 128], strides = [1, 1]} : vector<192x2048xf32> to vector<192x128xf32>
    %29 = arith.maximumf %27, %28 : vector<192x128xf32>
    %30 = vector.extract_strided_slice %14 {offsets = [0, 1280], sizes = [192, 128], strides = [1, 1]} : vector<192x2048xf32> to vector<192x128xf32>
    %31 = vector.extract_strided_slice %14 {offsets = [0, 1408], sizes = [192, 128], strides = [1, 1]} : vector<192x2048xf32> to vector<192x128xf32>
    %32 = arith.maximumf %30, %31 : vector<192x128xf32>
    %33 = vector.extract_strided_slice %14 {offsets = [0, 1536], sizes = [192, 128], strides = [1, 1]} : vector<192x2048xf32> to vector<192x128xf32>
    %34 = vector.extract_strided_slice %14 {offsets = [0, 1664], sizes = [192, 128], strides = [1, 1]} : vector<192x2048xf32> to vector<192x128xf32>
    %35 = arith.maximumf %33, %34 : vector<192x128xf32>
    %36 = vector.extract_strided_slice %14 {offsets = [0, 1792], sizes = [192, 128], strides = [1, 1]} : vector<192x2048xf32> to vector<192x128xf32>
    %37 = vector.extract_strided_slice %14 {offsets = [0, 1920], sizes = [192, 128], strides = [1, 1]} : vector<192x2048xf32> to vector<192x128xf32>
    %38 = arith.maximumf %36, %37 : vector<192x128xf32>
    %39 = tpu.concatenate %17, %20, %23, %26, %29, %32, %35, %38 in 1 : vector<192x128xf32>, vector<192x128xf32>, vector<192x128xf32>, vector<192x128xf32>, vector<192x128xf32>, vector<192x128xf32>, vector<192x128xf32>, vector<192x128xf32> -> vector<192x1024xf32>
    %c0_7 = arith.constant 0 : index
    %c0_8 = arith.constant 0 : index
    %c0_9 = arith.constant 0 : index
    %40 = vector.load %arg4[%c0_7, %c0_8, %c0_9] : memref<2x96x192xf32, #tpu.memory_space<vmem>>, vector<1x96x192xf32>
    %41 = vector.shape_cast %40 : vector<1x96x192xf32> to vector<96x192xf32>
    %cst_10 = arith.constant dense<0.000000e+00> : vector<96x1024xf32>
    %42 = tpu.matmul %41, %39, %cst_10 {dimension_numbers = #tpu.dot_dimension_numbers<[1], [0], [0], [1], [0, 0, 1, 1], [], []>} : vector<96x192xf32>, vector<192x1024xf32>, vector<96x1024xf32> -> vector<96x1024xf32>
    %c1 = arith.constant 1 : index
    %c0_11 = arith.constant 0 : index
    %c0_12 = arith.constant 0 : index
    %43 = vector.load %arg4[%c1, %c0_11, %c0_12] : memref<2x96x192xf32, #tpu.memory_space<vmem>>, vector<1x96x192xf32>
    %44 = vector.shape_cast %43 : vector<1x96x192xf32> to vector<96x192xf32>
    %cst_13 = arith.constant dense<0.000000e+00> : vector<96x1024xf32>
    %45 = tpu.matmul %44, %39, %cst_13 {dimension_numbers = #tpu.dot_dimension_numbers<[1], [0], [0], [1], [0, 0, 1, 1], [], []>} : vector<96x192xf32>, vector<192x1024xf32>, vector<96x1024xf32> -> vector<96x1024xf32>
    %46 = arith.maximumf %42, %45 : vector<96x1024xf32>
    %47 = vector.extract_strided_slice %46 {offsets = [0, 0], sizes = [96, 512], strides = [1, 1]} : vector<96x1024xf32> to vector<96x512xf32>
    %48 = vector.extract_strided_slice %46 {offsets = [0, 128], sizes = [96, 512], strides = [1, 1]} : vector<96x1024xf32> to vector<96x512xf32>
    %49 = vector.extract_strided_slice %46 {offsets = [0, 256], sizes = [96, 512], strides = [1, 1]} : vector<96x1024xf32> to vector<96x512xf32>
    %50 = vector.extract_strided_slice %46 {offsets = [0, 384], sizes = [96, 512], strides = [1, 1]} : vector<96x1024xf32> to vector<96x512xf32>
    %51 = vector.extract_strided_slice %46 {offsets = [0, 512], sizes = [96, 512], strides = [1, 1]} : vector<96x1024xf32> to vector<96x512xf32>
    %52 = tpu.concatenate %47, %48, %49, %50, %51 in 0 : vector<96x512xf32>, vector<96x512xf32>, vector<96x512xf32>, vector<96x512xf32>, vector<96x512xf32> -> vector<480x512xf32>
    %c0_14 = arith.constant 0 : index
    %c0_15 = arith.constant 0 : index
    %53 = vector.load %arg5[%c0_14, %c0_15] : memref<192x480xf32, #tpu.memory_space<vmem>>, vector<192x480xf32>
    %cst_16 = arith.constant dense<0.000000e+00> : vector<192x512xf32>
    %54 = tpu.matmul %53, %52, %cst_16 {dimension_numbers = #tpu.dot_dimension_numbers<[1], [0], [0], [1], [0, 0, 1, 1], [], []>} : vector<192x480xf32>, vector<480x512xf32>, vector<192x512xf32> -> vector<192x512xf32>
    %c0_17 = arith.constant 0 : index
    %c0_18 = arith.constant 0 : index
    %55 = vector.load %arg6[%c0_17, %c0_18] : memref<192x1xf32, #tpu.memory_space<vmem>>, vector<192x1xf32>
    %56 = vector.broadcast %55 : vector<192x1xf32> to vector<192x512xf32>
    %57 = arith.addf %54, %56 : vector<192x512xf32>
    %cst_19 = arith.constant 0.000000e+00 : f32
    %58 = vector.broadcast %cst_19 : f32 to vector<192x512xf32>
    %59 = arith.maximumf %57, %58 : vector<192x512xf32>
    %60 = vector.extract_strided_slice %59 {offsets = [0, 0], sizes = [192, 128], strides = [1, 1]} : vector<192x512xf32> to vector<192x128xf32>
    %61 = vector.extract_strided_slice %59 {offsets = [0, 128], sizes = [192, 128], strides = [1, 1]} : vector<192x512xf32> to vector<192x128xf32>
    %62 = arith.maximumf %60, %61 : vector<192x128xf32>
    %63 = vector.extract_strided_slice %59 {offsets = [0, 256], sizes = [192, 128], strides = [1, 1]} : vector<192x512xf32> to vector<192x128xf32>
    %64 = vector.extract_strided_slice %59 {offsets = [0, 384], sizes = [192, 128], strides = [1, 1]} : vector<192x512xf32> to vector<192x128xf32>
    %65 = arith.maximumf %63, %64 : vector<192x128xf32>
    %66 = tpu.concatenate %62, %65 in 1 : vector<192x128xf32>, vector<192x128xf32> -> vector<192x256xf32>
    %c0_20 = arith.constant 0 : index
    %c0_21 = arith.constant 0 : index
    %c0_22 = arith.constant 0 : index
    %67 = vector.load %arg7[%c0_20, %c0_21, %c0_22] : memref<2x96x192xf32, #tpu.memory_space<vmem>>, vector<1x96x192xf32>
    %68 = vector.shape_cast %67 : vector<1x96x192xf32> to vector<96x192xf32>
    %cst_23 = arith.constant dense<0.000000e+00> : vector<96x256xf32>
    %69 = tpu.matmul %68, %66, %cst_23 {dimension_numbers = #tpu.dot_dimension_numbers<[1], [0], [0], [1], [0, 0, 1, 1], [], []>} : vector<96x192xf32>, vector<192x256xf32>, vector<96x256xf32> -> vector<96x256xf32>
    %c1_24 = arith.constant 1 : index
    %c0_25 = arith.constant 0 : index
    %c0_26 = arith.constant 0 : index
    %70 = vector.load %arg7[%c1_24, %c0_25, %c0_26] : memref<2x96x192xf32, #tpu.memory_space<vmem>>, vector<1x96x192xf32>
    %71 = vector.shape_cast %70 : vector<1x96x192xf32> to vector<96x192xf32>
    %cst_27 = arith.constant dense<0.000000e+00> : vector<96x256xf32>
    %72 = tpu.matmul %71, %66, %cst_27 {dimension_numbers = #tpu.dot_dimension_numbers<[1], [0], [0], [1], [0, 0, 1, 1], [], []>} : vector<96x192xf32>, vector<192x256xf32>, vector<96x256xf32> -> vector<96x256xf32>
    %73 = arith.maximumf %69, %72 : vector<96x256xf32>
    %74 = vector.extract_strided_slice %73 {offsets = [0, 0], sizes = [96, 128], strides = [1, 1]} : vector<96x256xf32> to vector<96x128xf32>
    %75 = vector.extract_strided_slice %73 {offsets = [0, 128], sizes = [96, 128], strides = [1, 1]} : vector<96x256xf32> to vector<96x128xf32>
    %76 = tpu.concatenate %74, %75 in 0 : vector<96x128xf32>, vector<96x128xf32> -> vector<192x128xf32>
    %c0_28 = arith.constant 0 : index
    %c0_29 = arith.constant 0 : index
    %77 = vector.load %arg8[%c0_28, %c0_29] : memref<120x192xf32, #tpu.memory_space<vmem>>, vector<120x192xf32>
    %cst_30 = arith.constant dense<0.000000e+00> : vector<120x128xf32>
    %78 = tpu.matmul %77, %76, %cst_30 {dimension_numbers = #tpu.dot_dimension_numbers<[1], [0], [0], [1], [0, 0, 1, 1], [], []>} : vector<120x192xf32>, vector<192x128xf32>, vector<120x128xf32> -> vector<120x128xf32>
    %c0_31 = arith.constant 0 : index
    %c0_32 = arith.constant 0 : index
    %79 = vector.load %arg9[%c0_31, %c0_32] : memref<120x1xf32, #tpu.memory_space<vmem>>, vector<120x1xf32>
    %80 = vector.broadcast %79 : vector<120x1xf32> to vector<120x128xf32>
    %81 = arith.addf %78, %80 : vector<120x128xf32>
    %cst_33 = arith.constant 0.000000e+00 : f32
    %82 = vector.broadcast %cst_33 : f32 to vector<120x128xf32>
    %83 = arith.maximumf %81, %82 : vector<120x128xf32>
    %c0_34 = arith.constant 0 : index
    %c0_35 = arith.constant 0 : index
    %84 = vector.load %arg10[%c0_34, %c0_35] : memref<84x120xf32, #tpu.memory_space<vmem>>, vector<84x120xf32>
    %cst_36 = arith.constant dense<0.000000e+00> : vector<84x128xf32>
    %85 = tpu.matmul %84, %83, %cst_36 {dimension_numbers = #tpu.dot_dimension_numbers<[1], [0], [0], [1], [0, 0, 1, 1], [], []>} : vector<84x120xf32>, vector<120x128xf32>, vector<84x128xf32> -> vector<84x128xf32>
    %c0_37 = arith.constant 0 : index
    %c0_38 = arith.constant 0 : index
    %86 = vector.load %arg11[%c0_37, %c0_38] : memref<84x1xf32, #tpu.memory_space<vmem>>, vector<84x1xf32>
    %87 = vector.broadcast %86 : vector<84x1xf32> to vector<84x128xf32>
    %88 = arith.addf %85, %87 : vector<84x128xf32>
    %cst_39 = arith.constant 0.000000e+00 : f32
    %89 = vector.broadcast %cst_39 : f32 to vector<84x128xf32>
    %90 = arith.maximumf %88, %89 : vector<84x128xf32>
    %c0_40 = arith.constant 0 : index
    %c0_41 = arith.constant 0 : index
    %91 = vector.load %arg12[%c0_40, %c0_41] : memref<10x84xf32, #tpu.memory_space<vmem>>, vector<10x84xf32>
    %cst_42 = arith.constant dense<0.000000e+00> : vector<10x128xf32>
    %92 = tpu.matmul %91, %90, %cst_42 {dimension_numbers = #tpu.dot_dimension_numbers<[1], [0], [0], [1], [0, 0, 1, 1], [], []>} : vector<10x84xf32>, vector<84x128xf32>, vector<10x128xf32> -> vector<10x128xf32>
    %c0_43 = arith.constant 0 : index
    %c0_44 = arith.constant 0 : index
    %93 = vector.load %arg13[%c0_43, %c0_44] : memref<10x1xf32, #tpu.memory_space<vmem>>, vector<10x1xf32>
    %94 = vector.broadcast %93 : vector<10x1xf32> to vector<10x128xf32>
    %95 = arith.addf %92, %94 : vector<10x128xf32>
    %c0_45 = arith.constant 0 : index
    %c0_46 = arith.constant 0 : index
    %c0_47 = arith.constant 0 : index
    %96 = vector.load %arg14[%c0_45, %c0_46, %c0_47] : memref<1x10x128xf32, #tpu.memory_space<vmem>>, vector<1x10x128xf32>
    %97 = vector.shape_cast %96 : vector<1x10x128xf32> to vector<10x128xf32>
    %98 = vector.shape_cast %95 : vector<10x128xf32> to vector<1x10x128xf32>
    tpu.vector_store %arg14[%c0_45, %c0_46, %c0_47], %98 {strides = array<i32>} : memref<1x10x128xf32, #tpu.memory_space<vmem>>, vector<1x10x128xf32>,
    return
  }
  func.func @transform_0(%arg0: i32) -> (i32, i32, i32) {
    %c0_i32 = arith.constant 0 : i32
    %c0_i32_0 = arith.constant 0 : i32
    %c0_i32_1 = arith.constant 0 : i32
    return %arg0, %c0_i32, %c0_i32_0 : i32, i32, i32
  }
  func.func @transform_1(%arg0: i32) -> (i32, i32) {
    %c0_i32 = arith.constant 0 : i32
    %c0_i32_0 = arith.constant 0 : i32
    %c0_i32_1 = arith.constant 0 : i32
    return %c0_i32, %c0_i32_0 : i32, i32
  }
  func.func @transform_2(%arg0: i32) -> (i32, i32) {
    %c0_i32 = arith.constant 0 : i32
    %c0_i32_0 = arith.constant 0 : i32
    %c0_i32_1 = arith.constant 0 : i32
    return %c0_i32, %c0_i32_0 : i32, i32
  }
  func.func @transform_3(%arg0: i32) -> (i32, i32, i32) {
    %c0_i32 = arith.constant 0 : i32
    %c0_i32_0 = arith.constant 0 : i32
    %c0_i32_1 = arith.constant 0 : i32
    %c0_i32_2 = arith.constant 0 : i32
    return %c0_i32, %c0_i32_0, %c0_i32_1 : i32, i32, i32
  }
  func.func @transform_4(%arg0: i32) -> (i32, i32) {
    %c0_i32 = arith.constant 0 : i32
    %c0_i32_0 = arith.constant 0 : i32
    %c0_i32_1 = arith.constant 0 : i32
    return %c0_i32, %c0_i32_0 : i32, i32
  }
  func.func @transform_5(%arg0: i32) -> (i32, i32) {
    %c0_i32 = arith.constant 0 : i32
    %c0_i32_0 = arith.constant 0 : i32
    %c0_i32_1 = arith.constant 0 : i32
    return %c0_i32, %c0_i32_0 : i32, i32
  }
  func.func @transform_6(%arg0: i32) -> (i32, i32, i32) {
    %c0_i32 = arith.constant 0 : i32
    %c0_i32_0 = arith.constant 0 : i32
    %c0_i32_1 = arith.constant 0 : i32
    %c0_i32_2 = arith.constant 0 : i32
    return %c0_i32, %c0_i32_0, %c0_i32_1 : i32, i32, i32
  }
  func.func @transform_7(%arg0: i32) -> (i32, i32) {
    %c0_i32 = arith.constant 0 : i32
    %c0_i32_0 = arith.constant 0 : i32
    %c0_i32_1 = arith.constant 0 : i32
    return %c0_i32, %c0_i32_0 : i32, i32
  }
  func.func @transform_8(%arg0: i32) -> (i32, i32) {
    %c0_i32 = arith.constant 0 : i32
    %c0_i32_0 = arith.constant 0 : i32
    %c0_i32_1 = arith.constant 0 : i32
    return %c0_i32, %c0_i32_0 : i32, i32
  }
  func.func @transform_9(%arg0: i32) -> (i32, i32) {
    %c0_i32 = arith.constant 0 : i32
    %c0_i32_0 = arith.constant 0 : i32
    %c0_i32_1 = arith.constant 0 : i32
    return %c0_i32, %c0_i32_0 : i32, i32
  }
  func.func @transform_10(%arg0: i32) -> (i32, i32) {
    %c0_i32 = arith.constant 0 : i32
    %c0_i32_0 = arith.constant 0 : i32
    %c0_i32_1 = arith.constant 0 : i32
    return %c0_i32, %c0_i32_0 : i32, i32
  }
  func.func @transform_11(%arg0: i32) -> (i32, i32) {
    %c0_i32 = arith.constant 0 : i32
    %c0_i32_0 = arith.constant 0 : i32
    %c0_i32_1 = arith.constant 0 : i32
    return %c0_i32, %c0_i32_0 : i32, i32
  }
  func.func @transform_12(%arg0: i32) -> (i32, i32) {
    %c0_i32 = arith.constant 0 : i32
    %c0_i32_0 = arith.constant 0 : i32
    %c0_i32_1 = arith.constant 0 : i32
    return %c0_i32, %c0_i32_0 : i32, i32
  }
  func.func @transform_13(%arg0: i32) -> (i32, i32, i32) {
    %c0_i32 = arith.constant 0 : i32
    %c0_i32_0 = arith.constant 0 : i32
    %c0_i32_1 = arith.constant 0 : i32
    return %arg0, %c0_i32, %c0_i32_0 : i32, i32, i32
  }
}

</mosaic_0001>

<llo_original>
// kernel: lenet5_forward.1
$region0: #{lenet5_forward.1}
  #allocation0 [shape = 'u32[]', space=smem, size = 0x4, offset = 0x4, fixed_abs, tag = 'smem constant byte address 0x4 - core index']
  #allocation1 [shape = 'u32[144,128]{1,0:T(1,128)}', space=vmem, size = 0x12000, scoped, tag = 'internal scratch']
  %s0 = inlined_call_operand.vmem [shape: f32[1,32,2560], index: 0, kind: input, shape index: {}]
  %s1 = inlined_call_operand.vmem [shape: f32[192,160], index: 1, kind: input, shape index: {}]
  %s2 = inlined_call_operand.vmem [shape: f32[192,1], index: 2, kind: input, shape index: {}]
  %s3 = inlined_call_operand.vmem [shape: f32[2,96,192], index: 3, kind: input, shape index: {}]
  %s4 = inlined_call_operand.vmem [shape: f32[192,480], index: 4, kind: input, shape index: {}]
  %s5 = inlined_call_operand.vmem [shape: f32[192,1], index: 5, kind: input, shape index: {}]
  %s6 = inlined_call_operand.vmem [shape: f32[2,96,192], index: 6, kind: input, shape index: {}]
  %s7 = inlined_call_operand.vmem [shape: f32[120,192], index: 7, kind: input, shape index: {}]
  %s8 = inlined_call_operand.vmem [shape: f32[120,1], index: 8, kind: input, shape index: {}]
  %s9 = inlined_call_operand.vmem [shape: f32[84,120], index: 9, kind: input, shape index: {}]
  %s10 = inlined_call_operand.vmem [shape: f32[84,1], index: 10, kind: input, shape index: {}]
  %s11 = inlined_call_operand.vmem [shape: f32[10,84], index: 11, kind: input, shape index: {}]
  %s12 = inlined_call_operand.vmem [shape: f32[10,1], index: 12, kind: input, shape index: {}]
  %s13 = inlined_call_operand.vmem [shape: f32[1,10,128], index: 13, kind: output, shape index: {}]
  %s14 = sld [smem:[#allocation0]]
  $region62: #{lenet5_forward.1} parent=0
    _
  %s16 = ssub.s32 1, %s14
  %s17 = scalar_select 0, %s16, %s14
  // Predicated region
  $region2: #{lenet5_forward.1} parent=0 // pred_check
    _
  $region3: #{lenet5_forward.1} parent=0 // pred_check_branch
    %19 = sbr.rel (0) target = $region5
  $region4: #{lenet5_forward.1} parent=0 // pred_region
    _
  $region5: #{lenet5_forward.1} parent=0 // pred_fallthru
    _
  // Predicated region
  $region6: #{lenet5_forward.1} parent=0 // pred_check
    _
  $region7: #{lenet5_forward.1} parent=0 // pred_check_branch
    %21 = sbr.rel (0) target = $region9
  $region8: #{lenet5_forward.1} parent=0 // pred_region
    _
  $region9: #{lenet5_forward.1} parent=0 // pred_fallthru
    _
  // Predicated region
  $region10: #{lenet5_forward.1} parent=0 // pred_check
    _
  $region11: #{lenet5_forward.1} parent=0 // pred_check_branch
    %23 = sbr.rel (0) target = $region13
  $region12: #{lenet5_forward.1} parent=0 // pred_region
    _
  $region13: #{lenet5_forward.1} parent=0 // pred_fallthru
    _
  // Predicated region
  $region14: #{lenet5_forward.1} parent=0 // pred_check
    _
  $region15: #{lenet5_forward.1} parent=0 // pred_check_branch
    %25 = sbr.rel (0) target = $region17
  $region16: #{lenet5_forward.1} parent=0 // pred_region
    _
  $region17: #{lenet5_forward.1} parent=0 // pred_fallthru
    _
  // Predicated region
  $region18: #{lenet5_forward.1} parent=0 // pred_check
    _
  $region19: #{lenet5_forward.1} parent=0 // pred_check_branch
    %27 = sbr.rel (0) target = $region21
  $region20: #{lenet5_forward.1} parent=0 // pred_region
    _
  $region21: #{lenet5_forward.1} parent=0 // pred_fallthru
    _
  // Predicated region
  $region22: #{lenet5_forward.1} parent=0 // pred_check
    _
  $region23: #{lenet5_forward.1} parent=0 // pred_check_branch
    %29 = sbr.rel (0) target = $region25
  $region24: #{lenet5_forward.1} parent=0 // pred_region
    _
  $region25: #{lenet5_forward.1} parent=0 // pred_fallthru
    _
  // Predicated region
  $region26: #{lenet5_forward.1} parent=0 // pred_check
    _
  $region27: #{lenet5_forward.1} parent=0 // pred_check_branch
    %31 = sbr.rel (0) target = $region29
  $region28: #{lenet5_forward.1} parent=0 // pred_region
    _
  $region29: #{lenet5_forward.1} parent=0 // pred_fallthru
    _
  // Predicated region
  $region30: #{lenet5_forward.1} parent=0 // pred_check
    _
  $region31: #{lenet5_forward.1} parent=0 // pred_check_branch
    %33 = sbr.rel (0) target = $region33
  $region32: #{lenet5_forward.1} parent=0 // pred_region
    _
  $region33: #{lenet5_forward.1} parent=0 // pred_fallthru
    _
  // Predicated region
  $region34: #{lenet5_forward.1} parent=0 // pred_check
    _
  $region35: #{lenet5_forward.1} parent=0 // pred_check_branch
    %35 = sbr.rel (0) target = $region37
  $region36: #{lenet5_forward.1} parent=0 // pred_region
    _
  $region37: #{lenet5_forward.1} parent=0 // pred_fallthru
    _
  // Predicated region
  $region38: #{lenet5_forward.1} parent=0 // pred_check
    _
  $region39: #{lenet5_forward.1} parent=0 // pred_check_branch
    %37 = sbr.rel (0) target = $region41
  $region40: #{lenet5_forward.1} parent=0 // pred_region
    _
  $region41: #{lenet5_forward.1} parent=0 // pred_fallthru
    _
  // Predicated region
  $region42: #{lenet5_forward.1} parent=0 // pred_check
    _
  $region43: #{lenet5_forward.1} parent=0 // pred_check_branch
    %39 = sbr.rel (0) target = $region45
  $region44: #{lenet5_forward.1} parent=0 // pred_region
    _
  $region45: #{lenet5_forward.1} parent=0 // pred_fallthru
    _
  // Predicated region
  $region46: #{lenet5_forward.1} parent=0 // pred_check
    _
  $region47: #{lenet5_forward.1} parent=0 // pred_check_branch
    %41 = sbr.rel (0) target = $region49
  $region48: #{lenet5_forward.1} parent=0 // pred_region
    _
  $region49: #{lenet5_forward.1} parent=0 // pred_fallthru
    _
  // Predicated region
  $region50: #{lenet5_forward.1} parent=0 // pred_check
    _
  $region51: #{lenet5_forward.1} parent=0 // pred_check_branch
    %43 = sbr.rel (0) target = $region53
  $region52: #{lenet5_forward.1} parent=0 // pred_region
    _
  $region53: #{lenet5_forward.1} parent=0 // pred_fallthru
    _
  %v44 = vld [vmem:[%s0] sm:$0xff]
  %v45 = vld [vmem:[%s0 + $0x8] sm:$0xff]
  %v46 = vld [vmem:[%s0 + $0x10] sm:$0xff]
  %v47 = vld [vmem:[%s0 + $0x18] sm:$0xff]
  %v48 = vld [vmem:[%s0 + $0x20] sm:$0xff]
  %v49 = vld [vmem:[%s0 + $0x28] sm:$0xff]
  %v50 = vld [vmem:[%s0 + $0x30] sm:$0xff]
  %v51 = vld [vmem:[%s0 + $0x38] sm:$0xff]
  %v52 = vld [vmem:[%s0 + $0x40] sm:$0xff]
  %v53 = vld [vmem:[%s0 + $0x48] sm:$0xff]
  %v54 = vld [vmem:[%s0 + $0x50] sm:$0xff]
  %v55 = vld [vmem:[%s0 + $0x58] sm:$0xff]
  %v56 = vld [vmem:[%s0 + $0x60] sm:$0xff]
  %v57 = vld [vmem:[%s0 + $0x68] sm:$0xff]
  %v58 = vld [vmem:[%s0 + $0x70] sm:$0xff]
  %v59 = vld [vmem:[%s0 + $0x78] sm:$0xff]
  %v60 = vld [vmem:[%s0 + $0x80] sm:$0xff]
  %v61 = vld [vmem:[%s0 + $0x88] sm:$0xff]
  %v62 = vld [vmem:[%s0 + $0x90] sm:$0xff]
  %v63 = vld [vmem:[%s0 + $0x98] sm:$0xff]
  %v64 = vld [vmem:[%s0 + $0xa0] sm:$0xff]
  %v65 = vld [vmem:[%s0 + $0xa8] sm:$0xff]
  %v66 = vld [vmem:[%s0 + $0xb0] sm:$0xff]
  %v67 = vld [vmem:[%s0 + $0xb8] sm:$0xff]
  %v68 = vld [vmem:[%s0 + $0xc0] sm:$0xff]
  %v69 = vld [vmem:[%s0 + $0xc8] sm:$0xff]
  %v70 = vld [vmem:[%s0 + $0xd0] sm:$0xff]
  %v71 = vld [vmem:[%s0 + $0xd8] sm:$0xff]
  %v72 = vld [vmem:[%s0 + $0xe0] sm:$0xff]
  %v73 = vld [vmem:[%s0 + $0xe8] sm:$0xff]
  %v74 = vld [vmem:[%s0 + $0xf0] sm:$0xff]
  %v75 = vld [vmem:[%s0 + $0xf8] sm:$0xff]
  %v76 = vld [vmem:[%s0 + $0x100] sm:$0xff]
  %v77 = vld [vmem:[%s0 + $0x108] sm:$0xff]
  %v78 = vld [vmem:[%s0 + $0x110] sm:$0xff]
  %v79 = vld [vmem:[%s0 + $0x118] sm:$0xff]
  %v80 = vld [vmem:[%s0 + $0x120] sm:$0xff]
  %v81 = vld [vmem:[%s0 + $0x128] sm:$0xff]
  %v82 = vld [vmem:[%s0 + $0x130] sm:$0xff]
  %v83 = vld [vmem:[%s0 + $0x138] sm:$0xff]
  %v84 = vld [vmem:[%s0 + $0x140] sm:$0xff]
  %v85 = vld [vmem:[%s0 + $0x148] sm:$0xff]
  %v86 = vld [vmem:[%s0 + $0x150] sm:$0xff]
  %v87 = vld [vmem:[%s0 + $0x158] sm:$0xff]
  %v88 = vld [vmem:[%s0 + $0x160] sm:$0xff]
  %v89 = vld [vmem:[%s0 + $0x168] sm:$0xff]
  %v90 = vld [vmem:[%s0 + $0x170] sm:$0xff]
  %v91 = vld [vmem:[%s0 + $0x178] sm:$0xff]
  %v92 = vld [vmem:[%s0 + $0x180] sm:$0xff]
  %v93 = vld [vmem:[%s0 + $0x188] sm:$0xff]
  %v94 = vld [vmem:[%s0 + $0x190] sm:$0xff]
  %v95 = vld [vmem:[%s0 + $0x198] sm:$0xff]
  %v96 = vld [vmem:[%s0 + $0x1a0] sm:$0xff]
  %v97 = vld [vmem:[%s0 + $0x1a8] sm:$0xff]
  %v98 = vld [vmem:[%s0 + $0x1b0] sm:$0xff]
  %v99 = vld [vmem:[%s0 + $0x1b8] sm:$0xff]
  %v100 = vld [vmem:[%s0 + $0x1c0] sm:$0xff]
  %v101 = vld [vmem:[%s0 + $0x1c8] sm:$0xff]
  %v102 = vld [vmem:[%s0 + $0x1d0] sm:$0xff]
  %v103 = vld [vmem:[%s0 + $0x1d8] sm:$0xff]
  %v104 = vld [vmem:[%s0 + $0x1e0] sm:$0xff]
  %v105 = vld [vmem:[%s0 + $0x1e8] sm:$0xff]
  %v106 = vld [vmem:[%s0 + $0x1f0] sm:$0xff]
  %v107 = vld [vmem:[%s0 + $0x1f8] sm:$0xff]
  %v108 = vld [vmem:[%s0 + $0x200] sm:$0xff]
  %v109 = vld [vmem:[%s0 + $0x208] sm:$0xff]
  %v110 = vld [vmem:[%s0 + $0x210] sm:$0xff]
  %v111 = vld [vmem:[%s0 + $0x218] sm:$0xff]
  %v112 = vld [vmem:[%s0 + $0x220] sm:$0xff]
  %v113 = vld [vmem:[%s0 + $0x228] sm:$0xff]
  %v114 = vld [vmem:[%s0 + $0x230] sm:$0xff]
  %v115 = vld [vmem:[%s0 + $0x238] sm:$0xff]
  %v116 = vld [vmem:[%s0 + $0x240] sm:$0xff]
  %v117 = vld [vmem:[%s0 + $0x248] sm:$0xff]
  %v118 = vld [vmem:[%s0 + $0x250] sm:$0xff]
  %v119 = vld [vmem:[%s0 + $0x258] sm:$0xff]
  %v120 = vld [vmem:[%s0 + $0x260] sm:$0xff]
  %v121 = vld [vmem:[%s0 + $0x268] sm:$0xff]
  %v122 = vld [vmem:[%s0 + $0x270] sm:$0xff]
  %v123 = vld [vmem:[%s0 + $0x278] sm:$0xff]
  %v124 = vld [vmem:[%s1] sm:$0xff]
  %v125 = vld [vmem:[%s1 + $0x8] sm:$0xff]
  %v126 = vld [vmem:[%s1 + $0x10] sm:$0xff]
  %v127 = vld [vmem:[%s1 + $0x18] sm:$0xff]
  %v128 = vld [vmem:[%s1 + $0x20] sm:$0xff]
  %v129 = vld [vmem:[%s1 + $0x28] sm:$0xff]
  %v130 = vld [vmem:[%s1 + $0x30] sm:$0xff]
  %v131 = vld [vmem:[%s1 + $0x38] sm:$0xff]
  %v132 = vld [vmem:[%s1 + $0x40] sm:$0xff]
  %v133 = vld [vmem:[%s1 + $0x48] sm:$0xff]
  %v134 = vld [vmem:[%s1 + $0x50] sm:$0xff]
  %v135 = vld [vmem:[%s1 + $0x58] sm:$0xff]
  %v136 = vld [vmem:[%s1 + $0x60] sm:$0xff]
  %v137 = vld [vmem:[%s1 + $0x68] sm:$0xff]
  %v138 = vld [vmem:[%s1 + $0x70] sm:$0xff]
  %v139 = vld [vmem:[%s1 + $0x78] sm:$0xff]
  %v140 = vld [vmem:[%s1 + $0x80] sm:$0xff]
  %v141 = vld [vmem:[%s1 + $0x88] sm:$0xff]
  %v142 = vld [vmem:[%s1 + $0x90] sm:$0xff]
  %v143 = vld [vmem:[%s1 + $0x98] sm:$0xff]
  %v144 = vld [vmem:[%s1 + $0xa0] sm:$0xff]
  %v145 = vld [vmem:[%s1 + $0xa8] sm:$0xff]
  %v146 = vld [vmem:[%s1 + $0xb0] sm:$0xff]
  %v147 = vld [vmem:[%s1 + $0xb8] sm:$0xff]
  %v148 = vld [vmem:[%s1 + $0xc0] sm:$0xff]
  %v149 = vld [vmem:[%s1 + $0xc8] sm:$0xff]
  %v150 = vld [vmem:[%s1 + $0xd0] sm:$0xff]
  %v151 = vld [vmem:[%s1 + $0xd8] sm:$0xff]
  %v152 = vld [vmem:[%s1 + $0xe0] sm:$0xff]
  %v153 = vld [vmem:[%s1 + $0xe8] sm:$0xff]
  %v154 = vld [vmem:[%s1 + $0xf0] sm:$0xff]
  %v155 = vld [vmem:[%s1 + $0xf8] sm:$0xff]
  %v156 = vld [vmem:[%s1 + $0x100] sm:$0xff]
  %v157 = vld [vmem:[%s1 + $0x108] sm:$0xff]
  %v158 = vld [vmem:[%s1 + $0x110] sm:$0xff]
  %v159 = vld [vmem:[%s1 + $0x118] sm:$0xff]
  %v160 = vld [vmem:[%s1 + $0x120] sm:$0xff]
  %v161 = vld [vmem:[%s1 + $0x128] sm:$0xff]
  %v162 = vld [vmem:[%s1 + $0x130] sm:$0xff]
  %v163 = vld [vmem:[%s1 + $0x138] sm:$0xff]
  %v164 = vld [vmem:[%s1 + $0x140] sm:$0xff]
  %v165 = vld [vmem:[%s1 + $0x148] sm:$0xff]
  %v166 = vld [vmem:[%s1 + $0x150] sm:$0xff]
  %v167 = vld [vmem:[%s1 + $0x158] sm:$0xff]
  %v168 = vld [vmem:[%s1 + $0x160] sm:$0xff]
  %v169 = vld [vmem:[%s1 + $0x168] sm:$0xff]
  %v170 = vld [vmem:[%s1 + $0x170] sm:$0xff]
  %v171 = vld [vmem:[%s1 + $0x178] sm:$0xff]
  %v172 = vld [vmem:[%s2] sm:$0xff]
  %v173 = vld [vmem:[%s2 + $0x8] sm:$0xff]
  %v174 = vld [vmem:[%s2 + $0x10] sm:$0xff]
  %v175 = vld [vmem:[%s2 + $0x18] sm:$0xff]
  %v176 = vld [vmem:[%s2 + $0x20] sm:$0xff]
  %v177 = vld [vmem:[%s2 + $0x28] sm:$0xff]
  %v178 = vld [vmem:[%s2 + $0x30] sm:$0xff]
  %v179 = vld [vmem:[%s2 + $0x38] sm:$0xff]
  %v180 = vld [vmem:[%s2 + $0x40] sm:$0xff]
  %v181 = vld [vmem:[%s2 + $0x48] sm:$0xff]
  %v182 = vld [vmem:[%s2 + $0x50] sm:$0xff]
  %v183 = vld [vmem:[%s2 + $0x58] sm:$0xff]
  %v184 = vld [vmem:[%s2 + $0x60] sm:$0xff]
  %v185 = vld [vmem:[%s2 + $0x68] sm:$0xff]
  %v186 = vld [vmem:[%s2 + $0x70] sm:$0xff]
  %v187 = vld [vmem:[%s2 + $0x78] sm:$0xff]
  %v188 = vld [vmem:[%s2 + $0x80] sm:$0xff]
  %v189 = vld [vmem:[%s2 + $0x88] sm:$0xff]
  %v190 = vld [vmem:[%s2 + $0x90] sm:$0xff]
  %v191 = vld [vmem:[%s2 + $0x98] sm:$0xff]
  %v192 = vld [vmem:[%s2 + $0xa0] sm:$0xff]
  %v193 = vld [vmem:[%s2 + $0xa8] sm:$0xff]
  %v194 = vld [vmem:[%s2 + $0xb0] sm:$0xff]
  %v195 = vld [vmem:[%s2 + $0xb8] sm:$0xff]
  %197 = vset.pattern.permute.xlu0 0
  %198 = vperm.xlu0 %197, %v172
  %v199 = vpop.permute.xlu0 %198
  %202 = vset.pattern.permute.xlu0 0
  %203 = vperm.xlu0 %202, %v173
  %v204 = vpop.permute.xlu0 %203
  %207 = vset.pattern.permute.xlu0 0
  %208 = vperm.xlu0 %207, %v174
  %v209 = vpop.permute.xlu0 %208
  %212 = vset.pattern.permute.xlu0 0
  %213 = vperm.xlu0 %212, %v175
  %v214 = vpop.permute.xlu0 %213
  %217 = vset.pattern.permute.xlu0 0
  %218 = vperm.xlu0 %217, %v176
  %v219 = vpop.permute.xlu0 %218
  %222 = vset.pattern.permute.xlu0 0
  %223 = vperm.xlu0 %222, %v177
  %v224 = vpop.permute.xlu0 %223
  %227 = vset.pattern.permute.xlu0 0
  %228 = vperm.xlu0 %227, %v178
  %v229 = vpop.permute.xlu0 %228
  %232 = vset.pattern.permute.xlu0 0
  %233 = vperm.xlu0 %232, %v179
  %v234 = vpop.permute.xlu0 %233
  %237 = vset.pattern.permute.xlu0 0
  %238 = vperm.xlu0 %237, %v180
  %v239 = vpop.permute.xlu0 %238
  %242 = vset.pattern.permute.xlu0 0
  %243 = vperm.xlu0 %242, %v181
  %v244 = vpop.permute.xlu0 %243
  %247 = vset.pattern.permute.xlu0 0
  %248 = vperm.xlu0 %247, %v182
  %v249 = vpop.permute.xlu0 %248
  %252 = vset.pattern.permute.xlu0 0
  %253 = vperm.xlu0 %252, %v183
  %v254 = vpop.permute.xlu0 %253
  %257 = vset.pattern.permute.xlu0 0
  %258 = vperm.xlu0 %257, %v184
  %v259 = vpop.permute.xlu0 %258
  %262 = vset.pattern.permute.xlu0 0
  %263 = vperm.xlu0 %262, %v185
  %v264 = vpop.permute.xlu0 %263
  %267 = vset.pattern.permute.xlu0 0
  %268 = vperm.xlu0 %267, %v186
  %v269 = vpop.permute.xlu0 %268
  %272 = vset.pattern.permute.xlu0 0
  %273 = vperm.xlu0 %272, %v187
  %v274 = vpop.permute.xlu0 %273
  %277 = vset.pattern.permute.xlu0 0
  %278 = vperm.xlu0 %277, %v188
  %v279 = vpop.permute.xlu0 %278
  %282 = vset.pattern.permute.xlu0 0
  %283 = vperm.xlu0 %282, %v189
  %v284 = vpop.permute.xlu0 %283
  %287 = vset.pattern.permute.xlu0 0
  %288 = vperm.xlu0 %287, %v190
  %v289 = vpop.permute.xlu0 %288
  %292 = vset.pattern.permute.xlu0 0
  %293 = vperm.xlu0 %292, %v191
  %v294 = vpop.permute.xlu0 %293
  %297 = vset.pattern.permute.xlu0 0
  %298 = vperm.xlu0 %297, %v192
  %v299 = vpop.permute.xlu0 %298
  %302 = vset.pattern.permute.xlu0 0
  %303 = vperm.xlu0 %302, %v193
  %v304 = vpop.permute.xlu0 %303
  %307 = vset.pattern.permute.xlu0 0
  %308 = vperm.xlu0 %307, %v194
  %v309 = vpop.permute.xlu0 %308
  %312 = vset.pattern.permute.xlu0 0
  %313 = vperm.xlu0 %312, %v195
  %v314 = vpop.permute.xlu0 %313
  %vm316 = vcmask 261120
  %v318 = vsel %vm316, %v125, 0
  %v321 = vsel %vm316, %v127, 0
  %v324 = vsel %vm316, %v129, 0
  %v327 = vsel %vm316, %v131, 0
  %v330 = vsel %vm316, %v133, 0
  %v333 = vsel %vm316, %v135, 0
  %v336 = vsel %vm316, %v137, 0
  %v339 = vsel %vm316, %v139, 0
  %v342 = vsel %vm316, %v141, 0
  %v345 = vsel %vm316, %v143, 0
  %v348 = vsel %vm316, %v145, 0
  %v351 = vsel %vm316, %v147, 0
  %v354 = vsel %vm316, %v149, 0
  %v357 = vsel %vm316, %v151, 0
  %v360 = vsel %vm316, %v153, 0
  %v363 = vsel %vm316, %v155, 0
  %v366 = vsel %vm316, %v157, 0
  %v369 = vsel %vm316, %v159, 0
  %v372 = vsel %vm316, %v161, 0
  %v375 = vsel %vm316, %v163, 0
  %v378 = vsel %vm316, %v165, 0
  %v381 = vsel %vm316, %v167, 0
  %v384 = vsel %vm316, %v169, 0
  %v387 = vsel %vm316, %v171, 0
  %389 = vmatprep.subr.mxu0 %v108
  %390 = vmatpush1.msra.mxu0 %v107
  %391 = vmatprep.subr.mxu0 %v88
  %392 = vmatpush1.msra.mxu0 %v87
  %393 = vmatprep.subr.mxu0 %v68
  %394 = vmatpush1.msra.mxu0 %v67
  %395 = vmatprep.subr.mxu0 %v48
  %396 = vmatpush1.msra.mxu0 %v47
  %397 = vmatprep.subr.mxu0 %v107
  %398 = vmatpush1.msra.mxu0 %v106
  %399 = vmatprep.subr.mxu0 %v87
  %400 = vmatpush1.msra.mxu0 %v86
  %401 = vmatprep.subr.mxu0 %v67
  %402 = vmatpush1.msra.mxu0 %v66
  %403 = vmatprep.subr.mxu0 %v47
  %404 = vmatpush1.msra.mxu0 %v46
  %405 = vmatprep.subr.mxu0 %v106
  %406 = vmatpush1.msra.mxu0 %v105
  %407 = vmatprep.subr.mxu0 %v86
  %408 = vmatpush1.msra.mxu0 %v85
  %409 = vmatprep.subr.mxu0 %v66
  %410 = vmatpush1.msra.mxu0 %v65
  %411 = vmatprep.subr.mxu0 %v46
  %412 = vmatpush1.msra.mxu0 %v45
  %413 = vmatprep.subr.mxu0 %v105
  %414 = vmatpush1.msra.mxu0 %v104
  %415 = vmatprep.subr.mxu0 %v85
  %416 = vmatpush1.msra.mxu0 %v84
  %417 = vmatprep.subr.mxu0 %v65
  %418 = vmatpush1.msra.mxu0 %v64
  %419 = vmatprep.subr.mxu0 %v45
  %420 = vmatpush1.msra.mxu0 %v44
  %421 = vmatprep.subr.mxu0 0.0
  %422 = vmatpush2.msra.mxu0 0.0
  %423 = vmatprep.subr.mxu0 0.0
  %424 = vmatpush2.msra.mxu0 0.0
  %425 = vmatprep.subr.mxu0 0.0
  %426 = vmatpush2.msra.mxu0 0.0
  %427 = vmatprep.subr.mxu0 0.0
  %428 = vmatpush2.msra.mxu0 0.0
  %429 = vmatprep.subr.mxu0 0.0
  %430 = vmatpush2.msra.mxu0 0.0
  %431 = vmatprep.subr.mxu0 0.0
  %432 = vmatpush2.msra.mxu0 0.0
  %433 = vmatprep.subr.mxu0 0.0
  %434 = vmatpush2.msra.mxu0 0.0
  %435 = vmatprep.subr.mxu0 0.0
  %436 = vmatpush2.msra.mxu0 0.0
  %437 = vmatprep.subr.mxu0 0.0
  %438 = vmatpush2.msra.mxu0 0.0
  %439 = vmatprep.subr.mxu0 0.0
  %440 = vmatpush2.msra.mxu0 0.0
  %441 = vmatprep.subr.mxu0 0.0
  %442 = vmatpush2.msra.mxu0 0.0
  %443 = vmatprep.subr.mxu0 0.0
  %444 = vmatpush2.msra.mxu0 0.0
  %445 = vmatprep.subr.mxu0 %v109
  %446 = vmatpush2.msra.mxu0 %v108
  %447 = vmatprep.subr.mxu0 %v89
  %448 = vmatpush2.msra.mxu0 %v88
  %449 = vmatprep.subr.mxu0 %v69
  %450 = vmatpush2.msra.mxu0 %v68
  %451 = vmatprep.subr.mxu0 %v49
  %452 = vmatpush2.msra.mxu0 %v48
  %453 = vmatprep.mubr.f32.mxu0 %v318
  %454 = vmatmul.mubr.f32.gmra.mxu0 %v124
  %v455 = vpop.f32.mrf.mxu0
  %v456 = vadd.f32 %v199, %v455
  %v457 = vpop.f32.mrf.mxu0
  %v458 = vadd.f32 %v199, %v457
  %459 = vmatprep.mubr.f32.mxu0 %v321
  %460 = vmatmul.mubr.f32.gmra.mxu0 %v126
  %v461 = vpop.f32.mrf.mxu0
  %v462 = vadd.f32 %v204, %v461
  %v463 = vpop.f32.mrf.mxu0
  %v464 = vadd.f32 %v204, %v463
  %465 = vmatprep.mubr.f32.mxu0 %v324
  %466 = vmatmul.mubr.f32.gmra.mxu0 %v128
  %v467 = vpop.f32.mrf.mxu0
  %v468 = vadd.f32 %v209, %v467
  %v469 = vpop.f32.mrf.mxu0
  %v470 = vadd.f32 %v209, %v469
  %471 = vmatprep.mubr.f32.mxu0 %v327
  %472 = vmatmul.mubr.f32.gmra.mxu0 %v130
  %v473 = vpop.f32.mrf.mxu0
  %v474 = vadd.f32 %v214, %v473
  %v475 = vpop.f32.mrf.mxu0
  %v476 = vadd.f32 %v214, %v475
  %477 = vmatprep.mubr.f32.mxu0 %v330
  %478 = vmatmul.mubr.f32.gmra.mxu0 %v132
  %v479 = vpop.f32.mrf.mxu0
  %v480 = vadd.f32 %v219, %v479
  %v481 = vpop.f32.mrf.mxu0
  %v482 = vadd.f32 %v219, %v481
  %483 = vmatprep.mubr.f32.mxu0 %v333
  %484 = vmatmul.mubr.f32.gmra.mxu0 %v134
  %v485 = vpop.f32.mrf.mxu0
  %v486 = vadd.f32 %v224, %v485
  %v487 = vpop.f32.mrf.mxu0
  %v488 = vadd.f32 %v224, %v487
  %489 = vmatprep.mubr.f32.mxu0 %v336
  %490 = vmatmul.mubr.f32.gmra.mxu0 %v136
  %v491 = vpop.f32.mrf.mxu0
  %v492 = vadd.f32 %v229, %v491
  %v493 = vpop.f32.mrf.mxu0
  %v494 = vadd.f32 %v229, %v493
  %495 = vmatprep.mubr.f32.mxu0 %v339
  %496 = vmatmul.mubr.f32.gmra.mxu0 %v138
  %v497 = vpop.f32.mrf.mxu0
  %v498 = vadd.f32 %v234, %v497
  %v499 = vpop.f32.mrf.mxu0
  %v500 = vadd.f32 %v234, %v499
  %501 = vmatprep.mubr.f32.mxu0 %v342
  %502 = vmatmul.mubr.f32.gmra.mxu0 %v140
  %v503 = vpop.f32.mrf.mxu0
  %v504 = vadd.f32 %v239, %v503
  %v505 = vpop.f32.mrf.mxu0
  %v506 = vadd.f32 %v239, %v505
  %507 = vmatprep.mubr.f32.mxu0 %v345
  %508 = vmatmul.mubr.f32.gmra.mxu0 %v142
  %v509 = vpop.f32.mrf.mxu0
  %v510 = vadd.f32 %v244, %v509
  %v511 = vpop.f32.mrf.mxu0
  %v512 = vadd.f32 %v244, %v511
  %513 = vmatprep.mubr.f32.mxu0 %v348
  %514 = vmatmul.mubr.f32.gmra.mxu0 %v144
  %v515 = vpop.f32.mrf.mxu0
  %v516 = vadd.f32 %v249, %v515
  %v517 = vpop.f32.mrf.mxu0
  %v518 = vadd.f32 %v249, %v517
  %519 = vmatprep.mubr.f32.mxu0 %v351
  %520 = vmatmul.mubr.f32.gmra.mxu0 %v146
  %v521 = vpop.f32.mrf.mxu0
  %v522 = vadd.f32 %v254, %v521
  %v523 = vpop.f32.mrf.mxu0
  %v524 = vadd.f32 %v254, %v523
  %525 = vmatprep.mubr.f32.mxu0 %v354
  %526 = vmatmul.mubr.f32.gmra.mxu0 %v148
  %v527 = vpop.f32.mrf.mxu0
  %v528 = vadd.f32 %v259, %v527
  %v529 = vpop.f32.mrf.mxu0
  %v530 = vadd.f32 %v259, %v529
  %531 = vmatprep.mubr.f32.mxu0 %v357
  %532 = vmatmul.mubr.f32.gmra.mxu0 %v150
  %v533 = vpop.f32.mrf.mxu0
  %v534 = vadd.f32 %v264, %v533
  %v535 = vpop.f32.mrf.mxu0
  %v536 = vadd.f32 %v264, %v535
  %537 = vmatprep.mubr.f32.mxu0 %v360
  %538 = vmatmul.mubr.f32.gmra.mxu0 %v152
  %v539 = vpop.f32.mrf.mxu0
  %v540 = vadd.f32 %v269, %v539
  %v541 = vpop.f32.mrf.mxu0
  %v542 = vadd.f32 %v269, %v541
  %543 = vmatprep.mubr.f32.mxu0 %v363
  %544 = vmatmul.mubr.f32.gmra.mxu0 %v154
  %v545 = vpop.f32.mrf.mxu0
  %v546 = vadd.f32 %v274, %v545
  %v547 = vpop.f32.mrf.mxu0
  %v548 = vadd.f32 %v274, %v547
  %549 = vmatprep.mubr.f32.mxu0 %v366
  %550 = vmatmul.mubr.f32.gmra.mxu0 %v156
  %v551 = vpop.f32.mrf.mxu0
  %v552 = vadd.f32 %v279, %v551
  %v553 = vpop.f32.mrf.mxu0
  %v554 = vadd.f32 %v279, %v553
  %555 = vmatprep.mubr.f32.mxu0 %v369
  %556 = vmatmul.mubr.f32.gmra.mxu0 %v158
  %v557 = vpop.f32.mrf.mxu0
  %v558 = vadd.f32 %v284, %v557
  %v559 = vpop.f32.mrf.mxu0
  %v560 = vadd.f32 %v284, %v559
  %561 = vmatprep.mubr.f32.mxu0 %v372
  %562 = vmatmul.mubr.f32.gmra.mxu0 %v160
  %v563 = vpop.f32.mrf.mxu0
  %v564 = vadd.f32 %v289, %v563
  %v565 = vpop.f32.mrf.mxu0
  %v566 = vadd.f32 %v289, %v565
  %567 = vmatprep.mubr.f32.mxu0 %v375
  %568 = vmatmul.mubr.f32.gmra.mxu0 %v162
  %v569 = vpop.f32.mrf.mxu0
  %v570 = vadd.f32 %v294, %v569
  %v571 = vpop.f32.mrf.mxu0
  %v572 = vadd.f32 %v294, %v571
  %573 = vmatprep.mubr.f32.mxu0 %v378
  %574 = vmatmul.mubr.f32.gmra.mxu0 %v164
  %v575 = vpop.f32.mrf.mxu0
  %v576 = vadd.f32 %v299, %v575
  %v577 = vpop.f32.mrf.mxu0
  %v578 = vadd.f32 %v299, %v577
  %579 = vmatprep.mubr.f32.mxu0 %v381
  %580 = vmatmul.mubr.f32.gmra.mxu0 %v166
  %v581 = vpop.f32.mrf.mxu0
  %v582 = vadd.f32 %v304, %v581
  %v583 = vpop.f32.mrf.mxu0
  %v584 = vadd.f32 %v304, %v583
  %585 = vmatprep.mubr.f32.mxu0 %v384
  %586 = vmatmul.mubr.f32.gmra.mxu0 %v168
  %v587 = vpop.f32.mrf.mxu0
  %v588 = vadd.f32 %v309, %v587
  %v589 = vpop.f32.mrf.mxu0
  %v590 = vadd.f32 %v309, %v589
  %591 = vmatprep.mubr.f32.mxu0 %v387
  %592 = vmatmul.mubr.f32.gmra.mxu0 %v170
  %v593 = vpop.f32.mrf.mxu0
  %v594 = vadd.f32 %v314, %v593
  %v595 = vpop.f32.mrf.mxu0
  %v596 = vadd.f32 %v314, %v595
  %597 = vdwg.mxu0
  %598 = vmatprep.subr.mxu0 %v110
  %599 = vmatpush1.msra.mxu0 %v109
  %600 = vmatprep.subr.mxu0 %v90
  %601 = vmatpush1.msra.mxu0 %v89
  %602 = vmatprep.subr.mxu0 %v70
  %603 = vmatpush1.msra.mxu0 %v69
  %604 = vmatprep.subr.mxu0 %v50
  %605 = vmatpush1.msra.mxu0 %v49
  %606 = vmatprep.subr.mxu0 %v109
  %607 = vmatpush1.msra.mxu0 %v108
  %608 = vmatprep.subr.mxu0 %v89
  %609 = vmatpush1.msra.mxu0 %v88
  %610 = vmatprep.subr.mxu0 %v69
  %611 = vmatpush1.msra.mxu0 %v68
  %612 = vmatprep.subr.mxu0 %v49
  %613 = vmatpush1.msra.mxu0 %v48
  %614 = vmatprep.subr.mxu0 %v108
  %615 = vmatpush1.msra.mxu0 %v107
  %616 = vmatprep.subr.mxu0 %v88
  %617 = vmatpush1.msra.mxu0 %v87
  %618 = vmatprep.subr.mxu0 %v68
  %619 = vmatpush1.msra.mxu0 %v67
  %620 = vmatprep.subr.mxu0 %v48
  %621 = vmatpush1.msra.mxu0 %v47
  %622 = vmatprep.subr.mxu0 %v107
  %623 = vmatpush1.msra.mxu0 %v106
  %624 = vmatprep.subr.mxu0 %v87
  %625 = vmatpush1.msra.mxu0 %v86
  %626 = vmatprep.subr.mxu0 %v67
  %627 = vmatpush1.msra.mxu0 %v66
  %628 = vmatprep.subr.mxu0 %v47
  %629 = vmatpush1.msra.mxu0 %v46
  %630 = vmatprep.subr.mxu0 0.0
  %631 = vmatpush2.msra.mxu0 0.0
  %632 = vmatprep.subr.mxu0 0.0
  %633 = vmatpush2.msra.mxu0 0.0
  %634 = vmatprep.subr.mxu0 0.0
  %635 = vmatpush2.msra.mxu0 0.0
  %636 = vmatprep.subr.mxu0 0.0
  %637 = vmatpush2.msra.mxu0 0.0
  %638 = vmatprep.subr.mxu0 0.0
  %639 = vmatpush2.msra.mxu0 0.0
  %640 = vmatprep.subr.mxu0 0.0
  %641 = vmatpush2.msra.mxu0 0.0
  %642 = vmatprep.subr.mxu0 0.0
  %643 = vmatpush2.msra.mxu0 0.0
  %644 = vmatprep.subr.mxu0 0.0
  %645 = vmatpush2.msra.mxu0 0.0
  %646 = vmatprep.subr.mxu0 0.0
  %647 = vmatpush2.msra.mxu0 0.0
  %648 = vmatprep.subr.mxu0 0.0
  %649 = vmatpush2.msra.mxu0 0.0
  %650 = vmatprep.subr.mxu0 0.0
  %651 = vmatpush2.msra.mxu0 0.0
  %652 = vmatprep.subr.mxu0 0.0
  %653 = vmatpush2.msra.mxu0 0.0
  %654 = vmatprep.subr.mxu0 %v111
  %655 = vmatpush2.msra.mxu0 %v110
  %656 = vmatprep.subr.mxu0 %v91
  %657 = vmatpush2.msra.mxu0 %v90
  %658 = vmatprep.subr.mxu0 %v71
  %659 = vmatpush2.msra.mxu0 %v70
  %660 = vmatprep.subr.mxu0 %v51
  %661 = vmatpush2.msra.mxu0 %v50
  %662 = vmatprep.mubr.f32.mxu0 %v318
  %663 = vmatmul.mubr.f32.gmra.mxu0 %v124
  %v664 = vpop.f32.mrf.mxu0
  %v665 = vadd.f32 %v199, %v664
  %v666 = vpop.f32.mrf.mxu0
  %v667 = vadd.f32 %v199, %v666
  %668 = vmatprep.mubr.f32.mxu0 %v321
  %669 = vmatmul.mubr.f32.gmra.mxu0 %v126
  %v670 = vpop.f32.mrf.mxu0
  %v671 = vadd.f32 %v204, %v670
  %v672 = vpop.f32.mrf.mxu0
  %v673 = vadd.f32 %v204, %v672
  %674 = vmatprep.mubr.f32.mxu0 %v324
  %675 = vmatmul.mubr.f32.gmra.mxu0 %v128
  %v676 = vpop.f32.mrf.mxu0
  %v677 = vadd.f32 %v209, %v676
  %v678 = vpop.f32.mrf.mxu0
  %v679 = vadd.f32 %v209, %v678
  %680 = vmatprep.mubr.f32.mxu0 %v327
  %681 = vmatmul.mubr.f32.gmra.mxu0 %v130
  %v682 = vpop.f32.mrf.mxu0
  %v683 = vadd.f32 %v214, %v682
  %v684 = vpop.f32.mrf.mxu0
  %v685 = vadd.f32 %v214, %v684
  %686 = vmatprep.mubr.f32.mxu0 %v330
  %687 = vmatmul.mubr.f32.gmra.mxu0 %v132
  %v688 = vpop.f32.mrf.mxu0
  %v689 = vadd.f32 %v219, %v688
  %v690 = vpop.f32.mrf.mxu0
  %v691 = vadd.f32 %v219, %v690
  %692 = vmatprep.mubr.f32.mxu0 %v333
  %693 = vmatmul.mubr.f32.gmra.mxu0 %v134
  %v694 = vpop.f32.mrf.mxu0
  %v695 = vadd.f32 %v224, %v694
  %v696 = vpop.f32.mrf.mxu0
  %v697 = vadd.f32 %v224, %v696
  %698 = vmatprep.mubr.f32.mxu0 %v336
  %699 = vmatmul.mubr.f32.gmra.mxu0 %v136
  %v700 = vpop.f32.mrf.mxu0
  %v701 = vadd.f32 %v229, %v700
  %v702 = vpop.f32.mrf.mxu0
  %v703 = vadd.f32 %v229, %v702
  %704 = vmatprep.mubr.f32.mxu0 %v339
  %705 = vmatmul.mubr.f32.gmra.mxu0 %v138
  %v706 = vpop.f32.mrf.mxu0
  %v707 = vadd.f32 %v234, %v706
  %v708 = vpop.f32.mrf.mxu0
  %v709 = vadd.f32 %v234, %v708
  %710 = vmatprep.mubr.f32.mxu0 %v342
  %711 = vmatmul.mubr.f32.gmra.mxu0 %v140
  %v712 = vpop.f32.mrf.mxu0
  %v713 = vadd.f32 %v239, %v712
  %v714 = vpop.f32.mrf.mxu0
  %v715 = vadd.f32 %v239, %v714
  %716 = vmatprep.mubr.f32.mxu0 %v345
  %717 = vmatmul.mubr.f32.gmra.mxu0 %v142
  %v718 = vpop.f32.mrf.mxu0
  %v719 = vadd.f32 %v244, %v718
  %v720 = vpop.f32.mrf.mxu0
  %v721 = vadd.f32 %v244, %v720
  %722 = vmatprep.mubr.f32.mxu0 %v348
  %723 = vmatmul.mubr.f32.gmra.mxu0 %v144
  %v724 = vpop.f32.mrf.mxu0
  %v725 = vadd.f32 %v249, %v724
  %v726 = vpop.f32.mrf.mxu0
  %v727 = vadd.f32 %v249, %v726
  %728 = vmatprep.mubr.f32.mxu0 %v351
  %729 = vmatmul.mubr.f32.gmra.mxu0 %v146
  %v730 = vpop.f32.mrf.mxu0
  %v731 = vadd.f32 %v254, %v730
  %v732 = vpop.f32.mrf.mxu0
  %v733 = vadd.f32 %v254, %v732
  %734 = vmatprep.mubr.f32.mxu0 %v354
  %735 = vmatmul.mubr.f32.gmra.mxu0 %v148
  %v736 = vpop.f32.mrf.mxu0
  %v737 = vadd.f32 %v259, %v736
  %v738 = vpop.f32.mrf.mxu0
  %v739 = vadd.f32 %v259, %v738
  %740 = vmatprep.mubr.f32.mxu0 %v357
  %741 = vmatmul.mubr.f32.gmra.mxu0 %v150
  %v742 = vpop.f32.mrf.mxu0
  %v743 = vadd.f32 %v264, %v742
  %v744 = vpop.f32.mrf.mxu0
  %v745 = vadd.f32 %v264, %v744
  %746 = vmatprep.mubr.f32.mxu0 %v360
  %747 = vmatmul.mubr.f32.gmra.mxu0 %v152
  %v748 = vpop.f32.mrf.mxu0
  %v749 = vadd.f32 %v269, %v748
  %v750 = vpop.f32.mrf.mxu0
  %v751 = vadd.f32 %v269, %v750
  %752 = vmatprep.mubr.f32.mxu0 %v363
  %753 = vmatmul.mubr.f32.gmra.mxu0 %v154
  %v754 = vpop.f32.mrf.mxu0
  %v755 = vadd.f32 %v274, %v754
  %v756 = vpop.f32.mrf.mxu0
  %v757 = vadd.f32 %v274, %v756
  %758 = vmatprep.mubr.f32.mxu0 %v366
  %759 = vmatmul.mubr.f32.gmra.mxu0 %v156
  %v760 = vpop.f32.mrf.mxu0
  %v761 = vadd.f32 %v279, %v760
  %v762 = vpop.f32.mrf.mxu0
  %v763 = vadd.f32 %v279, %v762
  %764 = vmatprep.mubr.f32.mxu0 %v369
  %765 = vmatmul.mubr.f32.gmra.mxu0 %v158
  %v766 = vpop.f32.mrf.mxu0
  %v767 = vadd.f32 %v284, %v766
  %v768 = vpop.f32.mrf.mxu0
  %v769 = vadd.f32 %v284, %v768
  %770 = vmatprep.mubr.f32.mxu0 %v372
  %771 = vmatmul.mubr.f32.gmra.mxu0 %v160
  %v772 = vpop.f32.mrf.mxu0
  %v773 = vadd.f32 %v289, %v772
  %v774 = vpop.f32.mrf.mxu0
  %v775 = vadd.f32 %v289, %v774
  %776 = vmatprep.mubr.f32.mxu0 %v375
  %777 = vmatmul.mubr.f32.gmra.mxu0 %v162
  %v778 = vpop.f32.mrf.mxu0
  %v779 = vadd.f32 %v294, %v778
  %v780 = vpop.f32.mrf.mxu0
  %v781 = vadd.f32 %v294, %v780
  %782 = vmatprep.mubr.f32.mxu0 %v378
  %783 = vmatmul.mubr.f32.gmra.mxu0 %v164
  %v784 = vpop.f32.mrf.mxu0
  %v785 = vadd.f32 %v299, %v784
  %v786 = vpop.f32.mrf.mxu0
  %v787 = vadd.f32 %v299, %v786
  %788 = vmatprep.mubr.f32.mxu0 %v381
  %789 = vmatmul.mubr.f32.gmra.mxu0 %v166
  %v790 = vpop.f32.mrf.mxu0
  %v791 = vadd.f32 %v304, %v790
  %v792 = vpop.f32.mrf.mxu0
  %v793 = vadd.f32 %v304, %v792
  %794 = vmatprep.mubr.f32.mxu0 %v384
  %795 = vmatmul.mubr.f32.gmra.mxu0 %v168
  %v796 = vpop.f32.mrf.mxu0
  %v797 = vadd.f32 %v309, %v796
  %v798 = vpop.f32.mrf.mxu0
  %v799 = vadd.f32 %v309, %v798
  %800 = vmatprep.mubr.f32.mxu0 %v387
  %801 = vmatmul.mubr.f32.gmra.mxu0 %v170
  %v802 = vpop.f32.mrf.mxu0
  %v803 = vadd.f32 %v314, %v802
  %v804 = vpop.f32.mrf.mxu0
  %v805 = vadd.f32 %v314, %v804
  %806 = vdwg.mxu0
  %807 = vmatprep.subr.mxu0 %v112
  %808 = vmatpush1.msra.mxu0 %v111
  %809 = vmatprep.subr.mxu0 %v92
  %810 = vmatpush1.msra.mxu0 %v91
  %811 = vmatprep.subr.mxu0 %v72
  %812 = vmatpush1.msra.mxu0 %v71
  %813 = vmatprep.subr.mxu0 %v52
  %814 = vmatpush1.msra.mxu0 %v51
  %815 = vmatprep.subr.mxu0 %v111
  %816 = vmatpush1.msra.mxu0 %v110
  %817 = vmatprep.subr.mxu0 %v91
  %818 = vmatpush1.msra.mxu0 %v90
  %819 = vmatprep.subr.mxu0 %v71
  %820 = vmatpush1.msra.mxu0 %v70
  %821 = vmatprep.subr.mxu0 %v51
  %822 = vmatpush1.msra.mxu0 %v50
  %823 = vmatprep.subr.mxu0 %v110
  %824 = vmatpush1.msra.mxu0 %v109
  %825 = vmatprep.subr.mxu0 %v90
  %826 = vmatpush1.msra.mxu0 %v89
  %827 = vmatprep.subr.mxu0 %v70
  %828 = vmatpush1.msra.mxu0 %v69
  %829 = vmatprep.subr.mxu0 %v50
  %830 = vmatpush1.msra.mxu0 %v49
  %831 = vmatprep.subr.mxu0 %v109
  %832 = vmatpush1.msra.mxu0 %v108
  %833 = vmatprep.subr.mxu0 %v89
  %834 = vmatpush1.msra.mxu0 %v88
  %835 = vmatprep.subr.mxu0 %v69
  %836 = vmatpush1.msra.mxu0 %v68
  %837 = vmatprep.subr.mxu0 %v49
  %838 = vmatpush1.msra.mxu0 %v48
  %839 = vmatprep.subr.mxu0 0.0
  %840 = vmatpush2.msra.mxu0 0.0
  %841 = vmatprep.subr.mxu0 0.0
  %842 = vmatpush2.msra.mxu0 0.0
  %843 = vmatprep.subr.mxu0 0.0
  %844 = vmatpush2.msra.mxu0 0.0
  %845 = vmatprep.subr.mxu0 0.0
  %846 = vmatpush2.msra.mxu0 0.0
  %847 = vmatprep.subr.mxu0 0.0
  %848 = vmatpush2.msra.mxu0 0.0
  %849 = vmatprep.subr.mxu0 0.0
  %850 = vmatpush2.msra.mxu0 0.0
  %851 = vmatprep.subr.mxu0 0.0
  %852 = vmatpush2.msra.mxu0 0.0
  %853 = vmatprep.subr.mxu0 0.0
  %854 = vmatpush2.msra.mxu0 0.0
  %855 = vmatprep.subr.mxu0 0.0
  %856 = vmatpush2.msra.mxu0 0.0
  %857 = vmatprep.subr.mxu0 0.0
  %858 = vmatpush2.msra.mxu0 0.0
  %859 = vmatprep.subr.mxu0 0.0
  %860 = vmatpush2.msra.mxu0 0.0
  %861 = vmatprep.subr.mxu0 0.0
  %862 = vmatpush2.msra.mxu0 0.0
  %863 = vmatprep.subr.mxu0 %v113
  %864 = vmatpush2.msra.mxu0 %v112
  %865 = vmatprep.subr.mxu0 %v93
  %866 = vmatpush2.msra.mxu0 %v92
  %867 = vmatprep.subr.mxu0 %v73
  %868 = vmatpush2.msra.mxu0 %v72
  %869 = vmatprep.subr.mxu0 %v53
  %870 = vmatpush2.msra.mxu0 %v52
  %871 = vmatprep.mubr.f32.mxu0 %v318
  %872 = vmatmul.mubr.f32.gmra.mxu0 %v124
  %v873 = vpop.f32.mrf.mxu0
  %v874 = vadd.f32 %v199, %v873
  %v875 = vpop.f32.mrf.mxu0
  %v876 = vadd.f32 %v199, %v875
  %877 = vmatprep.mubr.f32.mxu0 %v321
  %878 = vmatmul.mubr.f32.gmra.mxu0 %v126
  %v879 = vpop.f32.mrf.mxu0
  %v880 = vadd.f32 %v204, %v879
  %v881 = vpop.f32.mrf.mxu0
  %v882 = vadd.f32 %v204, %v881
  %883 = vmatprep.mubr.f32.mxu0 %v324
  %884 = vmatmul.mubr.f32.gmra.mxu0 %v128
  %v885 = vpop.f32.mrf.mxu0
  %v886 = vadd.f32 %v209, %v885
  %v887 = vpop.f32.mrf.mxu0
  %v888 = vadd.f32 %v209, %v887
  %889 = vmatprep.mubr.f32.mxu0 %v327
  %890 = vmatmul.mubr.f32.gmra.mxu0 %v130
  %v891 = vpop.f32.mrf.mxu0
  %v892 = vadd.f32 %v214, %v891
  %v893 = vpop.f32.mrf.mxu0
  %v894 = vadd.f32 %v214, %v893
  %895 = vmatprep.mubr.f32.mxu0 %v330
  %896 = vmatmul.mubr.f32.gmra.mxu0 %v132
  %v897 = vpop.f32.mrf.mxu0
  %v898 = vadd.f32 %v219, %v897
  %v899 = vpop.f32.mrf.mxu0
  %v900 = vadd.f32 %v219, %v899
  %901 = vmatprep.mubr.f32.mxu0 %v333
  %902 = vmatmul.mubr.f32.gmra.mxu0 %v134
  %v903 = vpop.f32.mrf.mxu0
  %v904 = vadd.f32 %v224, %v903
  %v905 = vpop.f32.mrf.mxu0
  %v906 = vadd.f32 %v224, %v905
  %907 = vmatprep.mubr.f32.mxu0 %v336
  %908 = vmatmul.mubr.f32.gmra.mxu0 %v136
  %v909 = vpop.f32.mrf.mxu0
  %v910 = vadd.f32 %v229, %v909
  %v911 = vpop.f32.mrf.mxu0
  %v912 = vadd.f32 %v229, %v911
  %913 = vmatprep.mubr.f32.mxu0 %v339
  %914 = vmatmul.mubr.f32.gmra.mxu0 %v138
  %v915 = vpop.f32.mrf.mxu0
  %v916 = vadd.f32 %v234, %v915
  %v917 = vpop.f32.mrf.mxu0
  %v918 = vadd.f32 %v234, %v917
  %919 = vmatprep.mubr.f32.mxu0 %v342
  %920 = vmatmul.mubr.f32.gmra.mxu0 %v140
  %v921 = vpop.f32.mrf.mxu0
  %v922 = vadd.f32 %v239, %v921
  %v923 = vpop.f32.mrf.mxu0
  %v924 = vadd.f32 %v239, %v923
  %925 = vmatprep.mubr.f32.mxu0 %v345
  %926 = vmatmul.mubr.f32.gmra.mxu0 %v142
  %v927 = vpop.f32.mrf.mxu0
  %v928 = vadd.f32 %v244, %v927
  %v929 = vpop.f32.mrf.mxu0
  %v930 = vadd.f32 %v244, %v929
  %931 = vmatprep.mubr.f32.mxu0 %v348
  %932 = vmatmul.mubr.f32.gmra.mxu0 %v144
  %v933 = vpop.f32.mrf.mxu0
  %v934 = vadd.f32 %v249, %v933
  %v935 = vpop.f32.mrf.mxu0
  %v936 = vadd.f32 %v249, %v935
  %937 = vmatprep.mubr.f32.mxu0 %v351
  %938 = vmatmul.mubr.f32.gmra.mxu0 %v146
  %v939 = vpop.f32.mrf.mxu0
  %v940 = vadd.f32 %v254, %v939
  %v941 = vpop.f32.mrf.mxu0
  %v942 = vadd.f32 %v254, %v941
  %943 = vmatprep.mubr.f32.mxu0 %v354
  %944 = vmatmul.mubr.f32.gmra.mxu0 %v148
  %v945 = vpop.f32.mrf.mxu0
  %v946 = vadd.f32 %v259, %v945
  %v947 = vpop.f32.mrf.mxu0
  %v948 = vadd.f32 %v259, %v947
  %949 = vmatprep.mubr.f32.mxu0 %v357
  %950 = vmatmul.mubr.f32.gmra.mxu0 %v150
  %v951 = vpop.f32.mrf.mxu0
  %v952 = vadd.f32 %v264, %v951
  %v953 = vpop.f32.mrf.mxu0
  %v954 = vadd.f32 %v264, %v953
  %955 = vmatprep.mubr.f32.mxu0 %v360
  %956 = vmatmul.mubr.f32.gmra.mxu0 %v152
  %v957 = vpop.f32.mrf.mxu0
  %v958 = vadd.f32 %v269, %v957
  %v959 = vpop.f32.mrf.mxu0
  %v960 = vadd.f32 %v269, %v959
  %961 = vmatprep.mubr.f32.mxu0 %v363
  %962 = vmatmul.mubr.f32.gmra.mxu0 %v154
  %v963 = vpop.f32.mrf.mxu0
  %v964 = vadd.f32 %v274, %v963
  %v965 = vpop.f32.mrf.mxu0
  %v966 = vadd.f32 %v274, %v965
  %967 = vmatprep.mubr.f32.mxu0 %v366
  %968 = vmatmul.mubr.f32.gmra.mxu0 %v156
  %v969 = vpop.f32.mrf.mxu0
  %v970 = vadd.f32 %v279, %v969
  %v971 = vpop.f32.mrf.mxu0
  %v972 = vadd.f32 %v279, %v971
  %973 = vmatprep.mubr.f32.mxu0 %v369
  %974 = vmatmul.mubr.f32.gmra.mxu0 %v158
  %v975 = vpop.f32.mrf.mxu0
  %v976 = vadd.f32 %v284, %v975
  %v977 = vpop.f32.mrf.mxu0
  %v978 = vadd.f32 %v284, %v977
  %979 = vmatprep.mubr.f32.mxu0 %v372
  %980 = vmatmul.mubr.f32.gmra.mxu0 %v160
  %v981 = vpop.f32.mrf.mxu0
  %v982 = vadd.f32 %v289, %v981
  %v983 = vpop.f32.mrf.mxu0
  %v984 = vadd.f32 %v289, %v983
  %985 = vmatprep.mubr.f32.mxu0 %v375
  %986 = vmatmul.mubr.f32.gmra.mxu0 %v162
  %v987 = vpop.f32.mrf.mxu0
  %v988 = vadd.f32 %v294, %v987
  %v989 = vpop.f32.mrf.mxu0
  %v990 = vadd.f32 %v294, %v989
  %991 = vmatprep.mubr.f32.mxu0 %v378
  %992 = vmatmul.mubr.f32.gmra.mxu0 %v164
  %v993 = vpop.f32.mrf.mxu0
  %v994 = vadd.f32 %v299, %v993
  %v995 = vpop.f32.mrf.mxu0
  %v996 = vadd.f32 %v299, %v995
  %997 = vmatprep.mubr.f32.mxu0 %v381
  %998 = vmatmul.mubr.f32.gmra.mxu0 %v166
  %v999 = vpop.f32.mrf.mxu0
  %v1000 = vadd.f32 %v304, %v999
  %v1001 = vpop.f32.mrf.mxu0
  %v1002 = vadd.f32 %v304, %v1001
  %1003 = vmatprep.mubr.f32.mxu0 %v384
  %1004 = vmatmul.mubr.f32.gmra.mxu0 %v168
  %v1005 = vpop.f32.mrf.mxu0
  %v1006 = vadd.f32 %v309, %v1005
  %v1007 = vpop.f32.mrf.mxu0
  %v1008 = vadd.f32 %v309, %v1007
  %1009 = vmatprep.mubr.f32.mxu0 %v387
  %1010 = vmatmul.mubr.f32.gmra.mxu0 %v170
  %v1011 = vpop.f32.mrf.mxu0
  %v1012 = vadd.f32 %v314, %v1011
  %v1013 = vpop.f32.mrf.mxu0
  %v1014 = vadd.f32 %v314, %v1013
  %1015 = vdwg.mxu0
  %1016 = vmatprep.subr.mxu0 %v114
  %1017 = vmatpush1.msra.mxu0 %v113
  %1018 = vmatprep.subr.mxu0 %v94
  %1019 = vmatpush1.msra.mxu0 %v93
  %1020 = vmatprep.subr.mxu0 %v74
  %1021 = vmatpush1.msra.mxu0 %v73
  %1022 = vmatprep.subr.mxu0 %v54
  %1023 = vmatpush1.msra.mxu0 %v53
  %1024 = vmatprep.subr.mxu0 %v113
  %1025 = vmatpush1.msra.mxu0 %v112
  %1026 = vmatprep.subr.mxu0 %v93
  %1027 = vmatpush1.msra.mxu0 %v92
  %1028 = vmatprep.subr.mxu0 %v73
  %1029 = vmatpush1.msra.mxu0 %v72
  %1030 = vmatprep.subr.mxu0 %v53
  %1031 = vmatpush1.msra.mxu0 %v52
  %1032 = vmatprep.subr.mxu0 %v112
  %1033 = vmatpush1.msra.mxu0 %v111
  %1034 = vmatprep.subr.mxu0 %v92
  %1035 = vmatpush1.msra.mxu0 %v91
  %1036 = vmatprep.subr.mxu0 %v72
  %1037 = vmatpush1.msra.mxu0 %v71
  %1038 = vmatprep.subr.mxu0 %v52
  %1039 = vmatpush1.msra.mxu0 %v51
  %1040 = vmatprep.subr.mxu0 %v111
  %1041 = vmatpush1.msra.mxu0 %v110
  %1042 = vmatprep.subr.mxu0 %v91
  %1043 = vmatpush1.msra.mxu0 %v90
  %1044 = vmatprep.subr.mxu0 %v71
  %1045 = vmatpush1.msra.mxu0 %v70
  %1046 = vmatprep.subr.mxu0 %v51
  %1047 = vmatpush1.msra.mxu0 %v50
  %1048 = vmatprep.subr.mxu0 0.0
  %1049 = vmatpush2.msra.mxu0 0.0
  %1050 = vmatprep.subr.mxu0 0.0
  %1051 = vmatpush2.msra.mxu0 0.0
  %1052 = vmatprep.subr.mxu0 0.0
  %1053 = vmatpush2.msra.mxu0 0.0
  %1054 = vmatprep.subr.mxu0 0.0
  %1055 = vmatpush2.msra.mxu0 0.0
  %1056 = vmatprep.subr.mxu0 0.0
  %1057 = vmatpush2.msra.mxu0 0.0
  %1058 = vmatprep.subr.mxu0 0.0
  %1059 = vmatpush2.msra.mxu0 0.0
  %1060 = vmatprep.subr.mxu0 0.0
  %1061 = vmatpush2.msra.mxu0 0.0
  %1062 = vmatprep.subr.mxu0 0.0
  %1063 = vmatpush2.msra.mxu0 0.0
  %1064 = vmatprep.subr.mxu0 0.0
  %1065 = vmatpush2.msra.mxu0 0.0
  %1066 = vmatprep.subr.mxu0 0.0
  %1067 = vmatpush2.msra.mxu0 0.0
  %1068 = vmatprep.subr.mxu0 0.0
  %1069 = vmatpush2.msra.mxu0 0.0
  %1070 = vmatprep.subr.mxu0 0.0
  %1071 = vmatpush2.msra.mxu0 0.0
  %1072 = vmatprep.subr.mxu0 %v115
  %1073 = vmatpush2.msra.mxu0 %v114
  %1074 = vmatprep.subr.mxu0 %v95
  %1075 = vmatpush2.msra.mxu0 %v94
  %1076 = vmatprep.subr.mxu0 %v75
  %1077 = vmatpush2.msra.mxu0 %v74
  %1078 = vmatprep.subr.mxu0 %v55
  %1079 = vmatpush2.msra.mxu0 %v54
  %1080 = vmatprep.mubr.f32.mxu0 %v318
  %1081 = vmatmul.mubr.f32.gmra.mxu0 %v124
  %v1082 = vpop.f32.mrf.mxu0
  %v1083 = vadd.f32 %v199, %v1082
  %v1084 = vpop.f32.mrf.mxu0
  %v1085 = vadd.f32 %v199, %v1084
  %1086 = vmatprep.mubr.f32.mxu0 %v321
  %1087 = vmatmul.mubr.f32.gmra.mxu0 %v126
  %v1088 = vpop.f32.mrf.mxu0
  %v1089 = vadd.f32 %v204, %v1088
  %v1090 = vpop.f32.mrf.mxu0
  %v1091 = vadd.f32 %v204, %v1090
  %1092 = vmatprep.mubr.f32.mxu0 %v324
  %1093 = vmatmul.mubr.f32.gmra.mxu0 %v128
  %v1094 = vpop.f32.mrf.mxu0
  %v1095 = vadd.f32 %v209, %v1094
  %v1096 = vpop.f32.mrf.mxu0
  %v1097 = vadd.f32 %v209, %v1096
  %1098 = vmatprep.mubr.f32.mxu0 %v327
  %1099 = vmatmul.mubr.f32.gmra.mxu0 %v130
  %v1100 = vpop.f32.mrf.mxu0
  %v1101 = vadd.f32 %v214, %v1100
  %v1102 = vpop.f32.mrf.mxu0
  %v1103 = vadd.f32 %v214, %v1102
  %1104 = vmatprep.mubr.f32.mxu0 %v330
  %1105 = vmatmul.mubr.f32.gmra.mxu0 %v132
  %v1106 = vpop.f32.mrf.mxu0
  %v1107 = vadd.f32 %v219, %v1106
  %v1108 = vpop.f32.mrf.mxu0
  %v1109 = vadd.f32 %v219, %v1108
  %1110 = vmatprep.mubr.f32.mxu0 %v333
  %1111 = vmatmul.mubr.f32.gmra.mxu0 %v134
  %v1112 = vpop.f32.mrf.mxu0
  %v1113 = vadd.f32 %v224, %v1112
  %v1114 = vpop.f32.mrf.mxu0
  %v1115 = vadd.f32 %v224, %v1114
  %1116 = vmatprep.mubr.f32.mxu0 %v336
  %1117 = vmatmul.mubr.f32.gmra.mxu0 %v136
  %v1118 = vpop.f32.mrf.mxu0
  %v1119 = vadd.f32 %v229, %v1118
  %v1120 = vpop.f32.mrf.mxu0
  %v1121 = vadd.f32 %v229, %v1120
  %1122 = vmatprep.mubr.f32.mxu0 %v339
  %1123 = vmatmul.mubr.f32.gmra.mxu0 %v138
  %v1124 = vpop.f32.mrf.mxu0
  %v1125 = vadd.f32 %v234, %v1124
  %v1126 = vpop.f32.mrf.mxu0
  %v1127 = vadd.f32 %v234, %v1126
  %1128 = vmatprep.mubr.f32.mxu0 %v342
  %1129 = vmatmul.mubr.f32.gmra.mxu0 %v140
  %v1130 = vpop.f32.mrf.mxu0
  %v1131 = vadd.f32 %v239, %v1130
  %v1132 = vpop.f32.mrf.mxu0
  %v1133 = vadd.f32 %v239, %v1132
  %1134 = vmatprep.mubr.f32.mxu0 %v345
  %1135 = vmatmul.mubr.f32.gmra.mxu0 %v142
  %v1136 = vpop.f32.mrf.mxu0
  %v1137 = vadd.f32 %v244, %v1136
  %v1138 = vpop.f32.mrf.mxu0
  %v1139 = vadd.f32 %v244, %v1138
  %1140 = vmatprep.mubr.f32.mxu0 %v348
  %1141 = vmatmul.mubr.f32.gmra.mxu0 %v144
  %v1142 = vpop.f32.mrf.mxu0
  %v1143 = vadd.f32 %v249, %v1142
  %v1144 = vpop.f32.mrf.mxu0
  %v1145 = vadd.f32 %v249, %v1144
  %1146 = vmatprep.mubr.f32.mxu0 %v351
  %1147 = vmatmul.mubr.f32.gmra.mxu0 %v146
  %v1148 = vpop.f32.mrf.mxu0
  %v1149 = vadd.f32 %v254, %v1148
  %v1150 = vpop.f32.mrf.mxu0
  %v1151 = vadd.f32 %v254, %v1150
  %1152 = vmatprep.mubr.f32.mxu0 %v354
  %1153 = vmatmul.mubr.f32.gmra.mxu0 %v148
  %v1154 = vpop.f32.mrf.mxu0
  %v1155 = vadd.f32 %v259, %v1154
  %v1156 = vpop.f32.mrf.mxu0
  %v1157 = vadd.f32 %v259, %v1156
  %1158 = vmatprep.mubr.f32.mxu0 %v357
  %1159 = vmatmul.mubr.f32.gmra.mxu0 %v150
  %v1160 = vpop.f32.mrf.mxu0
  %v1161 = vadd.f32 %v264, %v1160
  %v1162 = vpop.f32.mrf.mxu0
  %v1163 = vadd.f32 %v264, %v1162
  %1164 = vmatprep.mubr.f32.mxu0 %v360
  %1165 = vmatmul.mubr.f32.gmra.mxu0 %v152
  %v1166 = vpop.f32.mrf.mxu0
  %v1167 = vadd.f32 %v269, %v1166
  %v1168 = vpop.f32.mrf.mxu0
  %v1169 = vadd.f32 %v269, %v1168
  %1170 = vmatprep.mubr.f32.mxu0 %v363
  %1171 = vmatmul.mubr.f32.gmra.mxu0 %v154
  %v1172 = vpop.f32.mrf.mxu0
  %v1173 = vadd.f32 %v274, %v1172
  %v1174 = vpop.f32.mrf.mxu0
  %v1175 = vadd.f32 %v274, %v1174
  %1176 = vmatprep.mubr.f32.mxu0 %v366
  %1177 = vmatmul.mubr.f32.gmra.mxu0 %v156
  %v1178 = vpop.f32.mrf.mxu0
  %v1179 = vadd.f32 %v279, %v1178
  %v1180 = vpop.f32.mrf.mxu0
  %v1181 = vadd.f32 %v279, %v1180
  %1182 = vmatprep.mubr.f32.mxu0 %v369
  %1183 = vmatmul.mubr.f32.gmra.mxu0 %v158
  %v1184 = vpop.f32.mrf.mxu0
  %v1185 = vadd.f32 %v284, %v1184
  %v1186 = vpop.f32.mrf.mxu0
  %v1187 = vadd.f32 %v284, %v1186
  %1188 = vmatprep.mubr.f32.mxu0 %v372
  %1189 = vmatmul.mubr.f32.gmra.mxu0 %v160
  %v1190 = vpop.f32.mrf.mxu0
  %v1191 = vadd.f32 %v289, %v1190
  %v1192 = vpop.f32.mrf.mxu0
  %v1193 = vadd.f32 %v289, %v1192
  %1194 = vmatprep.mubr.f32.mxu0 %v375
  %1195 = vmatmul.mubr.f32.gmra.mxu0 %v162
  %v1196 = vpop.f32.mrf.mxu0
  %v1197 = vadd.f32 %v294, %v1196
  %v1198 = vpop.f32.mrf.mxu0
  %v1199 = vadd.f32 %v294, %v1198
  %1200 = vmatprep.mubr.f32.mxu0 %v378
  %1201 = vmatmul.mubr.f32.gmra.mxu0 %v164
  %v1202 = vpop.f32.mrf.mxu0
  %v1203 = vadd.f32 %v299, %v1202
  %v1204 = vpop.f32.mrf.mxu0
  %v1205 = vadd.f32 %v299, %v1204
  %1206 = vmatprep.mubr.f32.mxu0 %v381
  %1207 = vmatmul.mubr.f32.gmra.mxu0 %v166
  %v1208 = vpop.f32.mrf.mxu0
  %v1209 = vadd.f32 %v304, %v1208
  %v1210 = vpop.f32.mrf.mxu0
  %v1211 = vadd.f32 %v304, %v1210
  %1212 = vmatprep.mubr.f32.mxu0 %v384
  %1213 = vmatmul.mubr.f32.gmra.mxu0 %v168
  %v1214 = vpop.f32.mrf.mxu0
  %v1215 = vadd.f32 %v309, %v1214
  %v1216 = vpop.f32.mrf.mxu0
  %v1217 = vadd.f32 %v309, %v1216
  %1218 = vmatprep.mubr.f32.mxu0 %v387
  %1219 = vmatmul.mubr.f32.gmra.mxu0 %v170
  %v1220 = vpop.f32.mrf.mxu0
  %v1221 = vadd.f32 %v314, %v1220
  %v1222 = vpop.f32.mrf.mxu0
  %v1223 = vadd.f32 %v314, %v1222
  %1224 = vdwg.mxu0
  %1225 = vmatprep.subr.mxu0 %v116
  %1226 = vmatpush1.msra.mxu0 %v115
  %1227 = vmatprep.subr.mxu0 %v96
  %1228 = vmatpush1.msra.mxu0 %v95
  %1229 = vmatprep.subr.mxu0 %v76
  %1230 = vmatpush1.msra.mxu0 %v75
  %1231 = vmatprep.subr.mxu0 %v56
  %1232 = vmatpush1.msra.mxu0 %v55
  %1233 = vmatprep.subr.mxu0 %v115
  %1234 = vmatpush1.msra.mxu0 %v114
  %1235 = vmatprep.subr.mxu0 %v95
  %1236 = vmatpush1.msra.mxu0 %v94
  %1237 = vmatprep.subr.mxu0 %v75
  %1238 = vmatpush1.msra.mxu0 %v74
  %1239 = vmatprep.subr.mxu0 %v55
  %1240 = vmatpush1.msra.mxu0 %v54
  %1241 = vmatprep.subr.mxu0 %v114
  %1242 = vmatpush1.msra.mxu0 %v113
  %1243 = vmatprep.subr.mxu0 %v94
  %1244 = vmatpush1.msra.mxu0 %v93
  %1245 = vmatprep.subr.mxu0 %v74
  %1246 = vmatpush1.msra.mxu0 %v73
  %1247 = vmatprep.subr.mxu0 %v54
  %1248 = vmatpush1.msra.mxu0 %v53
  %1249 = vmatprep.subr.mxu0 %v113
  %1250 = vmatpush1.msra.mxu0 %v112
  %1251 = vmatprep.subr.mxu0 %v93
  %1252 = vmatpush1.msra.mxu0 %v92
  %1253 = vmatprep.subr.mxu0 %v73
  %1254 = vmatpush1.msra.mxu0 %v72
  %1255 = vmatprep.subr.mxu0 %v53
  %1256 = vmatpush1.msra.mxu0 %v52
  %1257 = vmatprep.subr.mxu0 0.0
  %1258 = vmatpush2.msra.mxu0 0.0
  %1259 = vmatprep.subr.mxu0 0.0
  %1260 = vmatpush2.msra.mxu0 0.0
  %1261 = vmatprep.subr.mxu0 0.0
  %1262 = vmatpush2.msra.mxu0 0.0
  %1263 = vmatprep.subr.mxu0 0.0
  %1264 = vmatpush2.msra.mxu0 0.0
  %1265 = vmatprep.subr.mxu0 0.0
  %1266 = vmatpush2.msra.mxu0 0.0
  %1267 = vmatprep.subr.mxu0 0.0
  %1268 = vmatpush2.msra.mxu0 0.0
  %1269 = vmatprep.subr.mxu0 0.0
  %1270 = vmatpush2.msra.mxu0 0.0
  %1271 = vmatprep.subr.mxu0 0.0
  %1272 = vmatpush2.msra.mxu0 0.0
  %1273 = vmatprep.subr.mxu0 0.0
  %1274 = vmatpush2.msra.mxu0 0.0
  %1275 = vmatprep.subr.mxu0 0.0
  %1276 = vmatpush2.msra.mxu0 0.0
  %1277 = vmatprep.subr.mxu0 0.0
  %1278 = vmatpush2.msra.mxu0 0.0
  %1279 = vmatprep.subr.mxu0 0.0
  %1280 = vmatpush2.msra.mxu0 0.0
  %1281 = vmatprep.subr.mxu0 %v117
  %1282 = vmatpush2.msra.mxu0 %v116
  %1283 = vmatprep.subr.mxu0 %v97
  %1284 = vmatpush2.msra.mxu0 %v96
  %1285 = vmatprep.subr.mxu0 %v77
  %1286 = vmatpush2.msra.mxu0 %v76
  %1287 = vmatprep.subr.mxu0 %v57
  %1288 = vmatpush2.msra.mxu0 %v56
  %1289 = vmatprep.mubr.f32.mxu0 %v318
  %1290 = vmatmul.mubr.f32.gmra.mxu0 %v124
  %v1291 = vpop.f32.mrf.mxu0
  %v1292 = vadd.f32 %v199, %v1291
  %v1293 = vpop.f32.mrf.mxu0
  %v1294 = vadd.f32 %v199, %v1293
  %1295 = vmatprep.mubr.f32.mxu0 %v321
  %1296 = vmatmul.mubr.f32.gmra.mxu0 %v126
  %v1297 = vpop.f32.mrf.mxu0
  %v1298 = vadd.f32 %v204, %v1297
  %v1299 = vpop.f32.mrf.mxu0
  %v1300 = vadd.f32 %v204, %v1299
  %1301 = vmatprep.mubr.f32.mxu0 %v324
  %1302 = vmatmul.mubr.f32.gmra.mxu0 %v128
  %v1303 = vpop.f32.mrf.mxu0
  %v1304 = vadd.f32 %v209, %v1303
  %v1305 = vpop.f32.mrf.mxu0
  %v1306 = vadd.f32 %v209, %v1305
  %1307 = vmatprep.mubr.f32.mxu0 %v327
  %1308 = vmatmul.mubr.f32.gmra.mxu0 %v130
  %v1309 = vpop.f32.mrf.mxu0
  %v1310 = vadd.f32 %v214, %v1309
  %v1311 = vpop.f32.mrf.mxu0
  %v1312 = vadd.f32 %v214, %v1311
  %1313 = vmatprep.mubr.f32.mxu0 %v330
  %1314 = vmatmul.mubr.f32.gmra.mxu0 %v132
  %v1315 = vpop.f32.mrf.mxu0
  %v1316 = vadd.f32 %v219, %v1315
  %v1317 = vpop.f32.mrf.mxu0
  %v1318 = vadd.f32 %v219, %v1317
  %1319 = vmatprep.mubr.f32.mxu0 %v333
  %1320 = vmatmul.mubr.f32.gmra.mxu0 %v134
  %v1321 = vpop.f32.mrf.mxu0
  %v1322 = vadd.f32 %v224, %v1321
  %v1323 = vpop.f32.mrf.mxu0
  %v1324 = vadd.f32 %v224, %v1323
  %1325 = vmatprep.mubr.f32.mxu0 %v336
  %1326 = vmatmul.mubr.f32.gmra.mxu0 %v136
  %v1327 = vpop.f32.mrf.mxu0
  %v1328 = vadd.f32 %v229, %v1327
  %v1329 = vpop.f32.mrf.mxu0
  %v1330 = vadd.f32 %v229, %v1329
  %1331 = vmatprep.mubr.f32.mxu0 %v339
  %1332 = vmatmul.mubr.f32.gmra.mxu0 %v138
  %v1333 = vpop.f32.mrf.mxu0
  %v1334 = vadd.f32 %v234, %v1333
  %v1335 = vpop.f32.mrf.mxu0
  %v1336 = vadd.f32 %v234, %v1335
  %1337 = vmatprep.mubr.f32.mxu0 %v342
  %1338 = vmatmul.mubr.f32.gmra.mxu0 %v140
  %v1339 = vpop.f32.mrf.mxu0
  %v1340 = vadd.f32 %v239, %v1339
  %v1341 = vpop.f32.mrf.mxu0
  %v1342 = vadd.f32 %v239, %v1341
  %1343 = vmatprep.mubr.f32.mxu0 %v345
  %1344 = vmatmul.mubr.f32.gmra.mxu0 %v142
  %v1345 = vpop.f32.mrf.mxu0
  %v1346 = vadd.f32 %v244, %v1345
  %v1347 = vpop.f32.mrf.mxu0
  %v1348 = vadd.f32 %v244, %v1347
  %1349 = vmatprep.mubr.f32.mxu0 %v348
  %1350 = vmatmul.mubr.f32.gmra.mxu0 %v144
  %v1351 = vpop.f32.mrf.mxu0
  %v1352 = vadd.f32 %v249, %v1351
  %v1353 = vpop.f32.mrf.mxu0
  %v1354 = vadd.f32 %v249, %v1353
  %1355 = vmatprep.mubr.f32.mxu0 %v351
  %1356 = vmatmul.mubr.f32.gmra.mxu0 %v146
  %v1357 = vpop.f32.mrf.mxu0
  %v1358 = vadd.f32 %v254, %v1357
  %v1359 = vpop.f32.mrf.mxu0
  %v1360 = vadd.f32 %v254, %v1359
  %1361 = vmatprep.mubr.f32.mxu0 %v354
  %1362 = vmatmul.mubr.f32.gmra.mxu0 %v148
  %v1363 = vpop.f32.mrf.mxu0
  %v1364 = vadd.f32 %v259, %v1363
  %v1365 = vpop.f32.mrf.mxu0
  %v1366 = vadd.f32 %v259, %v1365
  %1367 = vmatprep.mubr.f32.mxu0 %v357
  %1368 = vmatmul.mubr.f32.gmra.mxu0 %v150
  %v1369 = vpop.f32.mrf.mxu0
  %v1370 = vadd.f32 %v264, %v1369
  %v1371 = vpop.f32.mrf.mxu0
  %v1372 = vadd.f32 %v264, %v1371
  %1373 = vmatprep.mubr.f32.mxu0 %v360
  %1374 = vmatmul.mubr.f32.gmra.mxu0 %v152
  %v1375 = vpop.f32.mrf.mxu0
  %v1376 = vadd.f32 %v269, %v1375
  %v1377 = vpop.f32.mrf.mxu0
  %v1378 = vadd.f32 %v269, %v1377
  %1379 = vmatprep.mubr.f32.mxu0 %v363
  %1380 = vmatmul.mubr.f32.gmra.mxu0 %v154
  %v1381 = vpop.f32.mrf.mxu0
  %v1382 = vadd.f32 %v274, %v1381
  %v1383 = vpop.f32.mrf.mxu0
  %v1384 = vadd.f32 %v274, %v1383
  %1385 = vmatprep.mubr.f32.mxu0 %v366
  %1386 = vmatmul.mubr.f32.gmra.mxu0 %v156
  %v1387 = vpop.f32.mrf.mxu0
  %v1388 = vadd.f32 %v279, %v1387
  %v1389 = vpop.f32.mrf.mxu0
  %v1390 = vadd.f32 %v279, %v1389
  %1391 = vmatprep.mubr.f32.mxu0 %v369
  %1392 = vmatmul.mubr.f32.gmra.mxu0 %v158
  %v1393 = vpop.f32.mrf.mxu0
  %v1394 = vadd.f32 %v284, %v1393
  %v1395 = vpop.f32.mrf.mxu0
  %v1396 = vadd.f32 %v284, %v1395
  %1397 = vmatprep.mubr.f32.mxu0 %v372
  %1398 = vmatmul.mubr.f32.gmra.mxu0 %v160
  %v1399 = vpop.f32.mrf.mxu0
  %v1400 = vadd.f32 %v289, %v1399
  %v1401 = vpop.f32.mrf.mxu0
  %v1402 = vadd.f32 %v289, %v1401
  %1403 = vmatprep.mubr.f32.mxu0 %v375
  %1404 = vmatmul.mubr.f32.gmra.mxu0 %v162
  %v1405 = vpop.f32.mrf.mxu0
  %v1406 = vadd.f32 %v294, %v1405
  %v1407 = vpop.f32.mrf.mxu0
  %v1408 = vadd.f32 %v294, %v1407
  %1409 = vmatprep.mubr.f32.mxu0 %v378
  %1410 = vmatmul.mubr.f32.gmra.mxu0 %v164
  %v1411 = vpop.f32.mrf.mxu0
  %v1412 = vadd.f32 %v299, %v1411
  %v1413 = vpop.f32.mrf.mxu0
  %v1414 = vadd.f32 %v299, %v1413
  %1415 = vmatprep.mubr.f32.mxu0 %v381
  %1416 = vmatmul.mubr.f32.gmra.mxu0 %v166
  %v1417 = vpop.f32.mrf.mxu0
  %v1418 = vadd.f32 %v304, %v1417
  %v1419 = vpop.f32.mrf.mxu0
  %v1420 = vadd.f32 %v304, %v1419
  %1421 = vmatprep.mubr.f32.mxu0 %v384
  %1422 = vmatmul.mubr.f32.gmra.mxu0 %v168
  %v1423 = vpop.f32.mrf.mxu0
  %v1424 = vadd.f32 %v309, %v1423
  %v1425 = vpop.f32.mrf.mxu0
  %v1426 = vadd.f32 %v309, %v1425
  %1427 = vmatprep.mubr.f32.mxu0 %v387
  %1428 = vmatmul.mubr.f32.gmra.mxu0 %v170
  %v1429 = vpop.f32.mrf.mxu0
  %v1430 = vadd.f32 %v314, %v1429
  %v1431 = vpop.f32.mrf.mxu0
  %v1432 = vadd.f32 %v314, %v1431
  %1433 = vdwg.mxu0
  %1434 = vmatprep.subr.mxu0 %v118
  %1435 = vmatpush1.msra.mxu0 %v117
  %1436 = vmatprep.subr.mxu0 %v98
  %1437 = vmatpush1.msra.mxu0 %v97
  %1438 = vmatprep.subr.mxu0 %v78
  %1439 = vmatpush1.msra.mxu0 %v77
  %1440 = vmatprep.subr.mxu0 %v58
  %1441 = vmatpush1.msra.mxu0 %v57
  %1442 = vmatprep.subr.mxu0 %v117
  %1443 = vmatpush1.msra.mxu0 %v116
  %1444 = vmatprep.subr.mxu0 %v97
  %1445 = vmatpush1.msra.mxu0 %v96
  %1446 = vmatprep.subr.mxu0 %v77
  %1447 = vmatpush1.msra.mxu0 %v76
  %1448 = vmatprep.subr.mxu0 %v57
  %1449 = vmatpush1.msra.mxu0 %v56
  %1450 = vmatprep.subr.mxu0 %v116
  %1451 = vmatpush1.msra.mxu0 %v115
  %1452 = vmatprep.subr.mxu0 %v96
  %1453 = vmatpush1.msra.mxu0 %v95
  %1454 = vmatprep.subr.mxu0 %v76
  %1455 = vmatpush1.msra.mxu0 %v75
  %1456 = vmatprep.subr.mxu0 %v56
  %1457 = vmatpush1.msra.mxu0 %v55
  %1458 = vmatprep.subr.mxu0 %v115
  %1459 = vmatpush1.msra.mxu0 %v114
  %1460 = vmatprep.subr.mxu0 %v95
  %1461 = vmatpush1.msra.mxu0 %v94
  %1462 = vmatprep.subr.mxu0 %v75
  %1463 = vmatpush1.msra.mxu0 %v74
  %1464 = vmatprep.subr.mxu0 %v55
  %1465 = vmatpush1.msra.mxu0 %v54
  %1466 = vmatprep.subr.mxu0 0.0
  %1467 = vmatpush2.msra.mxu0 0.0
  %1468 = vmatprep.subr.mxu0 0.0
  %1469 = vmatpush2.msra.mxu0 0.0
  %1470 = vmatprep.subr.mxu0 0.0
  %1471 = vmatpush2.msra.mxu0 0.0
  %1472 = vmatprep.subr.mxu0 0.0
  %1473 = vmatpush2.msra.mxu0 0.0
  %1474 = vmatprep.subr.mxu0 0.0
  %1475 = vmatpush2.msra.mxu0 0.0
  %1476 = vmatprep.subr.mxu0 0.0
  %1477 = vmatpush2.msra.mxu0 0.0
  %1478 = vmatprep.subr.mxu0 0.0
  %1479 = vmatpush2.msra.mxu0 0.0
  %1480 = vmatprep.subr.mxu0 0.0
  %1481 = vmatpush2.msra.mxu0 0.0
  %1482 = vmatprep.subr.mxu0 0.0
  %1483 = vmatpush2.msra.mxu0 0.0
  %1484 = vmatprep.subr.mxu0 0.0
  %1485 = vmatpush2.msra.mxu0 0.0
  %1486 = vmatprep.subr.mxu0 0.0
  %1487 = vmatpush2.msra.mxu0 0.0
  %1488 = vmatprep.subr.mxu0 0.0
  %1489 = vmatpush2.msra.mxu0 0.0
  %1490 = vmatprep.subr.mxu0 %v119
  %1491 = vmatpush2.msra.mxu0 %v118
  %1492 = vmatprep.subr.mxu0 %v99
  %1493 = vmatpush2.msra.mxu0 %v98
  %1494 = vmatprep.subr.mxu0 %v79
  %1495 = vmatpush2.msra.mxu0 %v78
  %1496 = vmatprep.subr.mxu0 %v59
  %1497 = vmatpush2.msra.mxu0 %v58
  %1498 = vmatprep.mubr.f32.mxu0 %v318
  %1499 = vmatmul.mubr.f32.gmra.mxu0 %v124
  %v1500 = vpop.f32.mrf.mxu0
  %v1501 = vadd.f32 %v199, %v1500
  %v1502 = vpop.f32.mrf.mxu0
  %v1503 = vadd.f32 %v199, %v1502
  %1504 = vmatprep.mubr.f32.mxu0 %v321
  %1505 = vmatmul.mubr.f32.gmra.mxu0 %v126
  %v1506 = vpop.f32.mrf.mxu0
  %v1507 = vadd.f32 %v204, %v1506
  %v1508 = vpop.f32.mrf.mxu0
  %v1509 = vadd.f32 %v204, %v1508
  %1510 = vmatprep.mubr.f32.mxu0 %v324
  %1511 = vmatmul.mubr.f32.gmra.mxu0 %v128
  %v1512 = vpop.f32.mrf.mxu0
  %v1513 = vadd.f32 %v209, %v1512
  %v1514 = vpop.f32.mrf.mxu0
  %v1515 = vadd.f32 %v209, %v1514
  %1516 = vmatprep.mubr.f32.mxu0 %v327
  %1517 = vmatmul.mubr.f32.gmra.mxu0 %v130
  %v1518 = vpop.f32.mrf.mxu0
  %v1519 = vadd.f32 %v214, %v1518
  %v1520 = vpop.f32.mrf.mxu0
  %v1521 = vadd.f32 %v214, %v1520
  %1522 = vmatprep.mubr.f32.mxu0 %v330
  %1523 = vmatmul.mubr.f32.gmra.mxu0 %v132
  %v1524 = vpop.f32.mrf.mxu0
  %v1525 = vadd.f32 %v219, %v1524
  %v1526 = vpop.f32.mrf.mxu0
  %v1527 = vadd.f32 %v219, %v1526
  %1528 = vmatprep.mubr.f32.mxu0 %v333
  %1529 = vmatmul.mubr.f32.gmra.mxu0 %v134
  %v1530 = vpop.f32.mrf.mxu0
  %v1531 = vadd.f32 %v224, %v1530
  %v1532 = vpop.f32.mrf.mxu0
  %v1533 = vadd.f32 %v224, %v1532
  %1534 = vmatprep.mubr.f32.mxu0 %v336
  %1535 = vmatmul.mubr.f32.gmra.mxu0 %v136
  %v1536 = vpop.f32.mrf.mxu0
  %v1537 = vadd.f32 %v229, %v1536
  %v1538 = vpop.f32.mrf.mxu0
  %v1539 = vadd.f32 %v229, %v1538
  %1540 = vmatprep.mubr.f32.mxu0 %v339
  %1541 = vmatmul.mubr.f32.gmra.mxu0 %v138
  %v1542 = vpop.f32.mrf.mxu0
  %v1543 = vadd.f32 %v234, %v1542
  %v1544 = vpop.f32.mrf.mxu0
  %v1545 = vadd.f32 %v234, %v1544
  %1546 = vmatprep.mubr.f32.mxu0 %v342
  %1547 = vmatmul.mubr.f32.gmra.mxu0 %v140
  %v1548 = vpop.f32.mrf.mxu0
  %v1549 = vadd.f32 %v239, %v1548
  %v1550 = vpop.f32.mrf.mxu0
  %v1551 = vadd.f32 %v239, %v1550
  %1552 = vmatprep.mubr.f32.mxu0 %v345
  %1553 = vmatmul.mubr.f32.gmra.mxu0 %v142
  %v1554 = vpop.f32.mrf.mxu0
  %v1555 = vadd.f32 %v244, %v1554
  %v1556 = vpop.f32.mrf.mxu0
  %v1557 = vadd.f32 %v244, %v1556
  %1558 = vmatprep.mubr.f32.mxu0 %v348
  %1559 = vmatmul.mubr.f32.gmra.mxu0 %v144
  %v1560 = vpop.f32.mrf.mxu0
  %v1561 = vadd.f32 %v249, %v1560
  %v1562 = vpop.f32.mrf.mxu0
  %v1563 = vadd.f32 %v249, %v1562
  %1564 = vmatprep.mubr.f32.mxu0 %v351
  %1565 = vmatmul.mubr.f32.gmra.mxu0 %v146
  %v1566 = vpop.f32.mrf.mxu0
  %v1567 = vadd.f32 %v254, %v1566
  %v1568 = vpop.f32.mrf.mxu0
  %v1569 = vadd.f32 %v254, %v1568
  %1570 = vmatprep.mubr.f32.mxu0 %v354
  %1571 = vmatmul.mubr.f32.gmra.mxu0 %v148
  %v1572 = vpop.f32.mrf.mxu0
  %v1573 = vadd.f32 %v259, %v1572
  %v1574 = vpop.f32.mrf.mxu0
  %v1575 = vadd.f32 %v259, %v1574
  %1576 = vmatprep.mubr.f32.mxu0 %v357
  %1577 = vmatmul.mubr.f32.gmra.mxu0 %v150
  %v1578 = vpop.f32.mrf.mxu0
  %v1579 = vadd.f32 %v264, %v1578
  %v1580 = vpop.f32.mrf.mxu0
  %v1581 = vadd.f32 %v264, %v1580
  %1582 = vmatprep.mubr.f32.mxu0 %v360
  %1583 = vmatmul.mubr.f32.gmra.mxu0 %v152
  %v1584 = vpop.f32.mrf.mxu0
  %v1585 = vadd.f32 %v269, %v1584
  %v1586 = vpop.f32.mrf.mxu0
  %v1587 = vadd.f32 %v269, %v1586
  %1588 = vmatprep.mubr.f32.mxu0 %v363
  %1589 = vmatmul.mubr.f32.gmra.mxu0 %v154
  %v1590 = vpop.f32.mrf.mxu0
  %v1591 = vadd.f32 %v274, %v1590
  %v1592 = vpop.f32.mrf.mxu0
  %v1593 = vadd.f32 %v274, %v1592
  %1594 = vmatprep.mubr.f32.mxu0 %v366
  %1595 = vmatmul.mubr.f32.gmra.mxu0 %v156
  %v1596 = vpop.f32.mrf.mxu0
  %v1597 = vadd.f32 %v279, %v1596
  %v1598 = vpop.f32.mrf.mxu0
  %v1599 = vadd.f32 %v279, %v1598
  %1600 = vmatprep.mubr.f32.mxu0 %v369
  %1601 = vmatmul.mubr.f32.gmra.mxu0 %v158
  %v1602 = vpop.f32.mrf.mxu0
  %v1603 = vadd.f32 %v284, %v1602
  %v1604 = vpop.f32.mrf.mxu0
  %v1605 = vadd.f32 %v284, %v1604
  %1606 = vmatprep.mubr.f32.mxu0 %v372
  %1607 = vmatmul.mubr.f32.gmra.mxu0 %v160
  %v1608 = vpop.f32.mrf.mxu0
  %v1609 = vadd.f32 %v289, %v1608
  %v1610 = vpop.f32.mrf.mxu0
  %v1611 = vadd.f32 %v289, %v1610
  %1612 = vmatprep.mubr.f32.mxu0 %v375
  %1613 = vmatmul.mubr.f32.gmra.mxu0 %v162
  %v1614 = vpop.f32.mrf.mxu0
  %v1615 = vadd.f32 %v294, %v1614
  %v1616 = vpop.f32.mrf.mxu0
  %v1617 = vadd.f32 %v294, %v1616
  %1618 = vmatprep.mubr.f32.mxu0 %v378
  %1619 = vmatmul.mubr.f32.gmra.mxu0 %v164
  %v1620 = vpop.f32.mrf.mxu0
  %v1621 = vadd.f32 %v299, %v1620
  %v1622 = vpop.f32.mrf.mxu0
  %v1623 = vadd.f32 %v299, %v1622
  %1624 = vmatprep.mubr.f32.mxu0 %v381
  %1625 = vmatmul.mubr.f32.gmra.mxu0 %v166
  %v1626 = vpop.f32.mrf.mxu0
  %v1627 = vadd.f32 %v304, %v1626
  %v1628 = vpop.f32.mrf.mxu0
  %v1629 = vadd.f32 %v304, %v1628
  %1630 = vmatprep.mubr.f32.mxu0 %v384
  %1631 = vmatmul.mubr.f32.gmra.mxu0 %v168
  %v1632 = vpop.f32.mrf.mxu0
  %v1633 = vadd.f32 %v309, %v1632
  %v1634 = vpop.f32.mrf.mxu0
  %v1635 = vadd.f32 %v309, %v1634
  %1636 = vmatprep.mubr.f32.mxu0 %v387
  %1637 = vmatmul.mubr.f32.gmra.mxu0 %v170
  %v1638 = vpop.f32.mrf.mxu0
  %v1639 = vadd.f32 %v314, %v1638
  %v1640 = vpop.f32.mrf.mxu0
  %v1641 = vadd.f32 %v314, %v1640
  %1642 = vdwg.mxu0
  %1643 = vmatprep.subr.mxu0 %v120
  %1644 = vmatpush1.msra.mxu0 %v119
  %1645 = vmatprep.subr.mxu0 %v100
  %1646 = vmatpush1.msra.mxu0 %v99
  %1647 = vmatprep.subr.mxu0 %v80
  %1648 = vmatpush1.msra.mxu0 %v79
  %1649 = vmatprep.subr.mxu0 %v60
  %1650 = vmatpush1.msra.mxu0 %v59
  %1651 = vmatprep.subr.mxu0 %v119
  %1652 = vmatpush1.msra.mxu0 %v118
  %1653 = vmatprep.subr.mxu0 %v99
  %1654 = vmatpush1.msra.mxu0 %v98
  %1655 = vmatprep.subr.mxu0 %v79
  %1656 = vmatpush1.msra.mxu0 %v78
  %1657 = vmatprep.subr.mxu0 %v59
  %1658 = vmatpush1.msra.mxu0 %v58
  %1659 = vmatprep.subr.mxu0 %v118
  %1660 = vmatpush1.msra.mxu0 %v117
  %1661 = vmatprep.subr.mxu0 %v98
  %1662 = vmatpush1.msra.mxu0 %v97
  %1663 = vmatprep.subr.mxu0 %v78
  %1664 = vmatpush1.msra.mxu0 %v77
  %1665 = vmatprep.subr.mxu0 %v58
  %1666 = vmatpush1.msra.mxu0 %v57
  %1667 = vmatprep.subr.mxu0 %v117
  %1668 = vmatpush1.msra.mxu0 %v116
  %1669 = vmatprep.subr.mxu0 %v97
  %1670 = vmatpush1.msra.mxu0 %v96
  %1671 = vmatprep.subr.mxu0 %v77
  %1672 = vmatpush1.msra.mxu0 %v76
  %1673 = vmatprep.subr.mxu0 %v57
  %1674 = vmatpush1.msra.mxu0 %v56
  %1675 = vmatprep.subr.mxu0 0.0
  %1676 = vmatpush2.msra.mxu0 0.0
  %1677 = vmatprep.subr.mxu0 0.0
  %1678 = vmatpush2.msra.mxu0 0.0
  %1679 = vmatprep.subr.mxu0 0.0
  %1680 = vmatpush2.msra.mxu0 0.0
  %1681 = vmatprep.subr.mxu0 0.0
  %1682 = vmatpush2.msra.mxu0 0.0
  %1683 = vmatprep.subr.mxu0 0.0
  %1684 = vmatpush2.msra.mxu0 0.0
  %1685 = vmatprep.subr.mxu0 0.0
  %1686 = vmatpush2.msra.mxu0 0.0
  %1687 = vmatprep.subr.mxu0 0.0
  %1688 = vmatpush2.msra.mxu0 0.0
  %1689 = vmatprep.subr.mxu0 0.0
  %1690 = vmatpush2.msra.mxu0 0.0
  %1691 = vmatprep.subr.mxu0 0.0
  %1692 = vmatpush2.msra.mxu0 0.0
  %1693 = vmatprep.subr.mxu0 0.0
  %1694 = vmatpush2.msra.mxu0 0.0
  %1695 = vmatprep.subr.mxu0 0.0
  %1696 = vmatpush2.msra.mxu0 0.0
  %1697 = vmatprep.subr.mxu0 0.0
  %1698 = vmatpush2.msra.mxu0 0.0
  %1699 = vmatprep.subr.mxu0 %v121
  %1700 = vmatpush2.msra.mxu0 %v120
  %1701 = vmatprep.subr.mxu0 %v101
  %1702 = vmatpush2.msra.mxu0 %v100
  %1703 = vmatprep.subr.mxu0 %v81
  %1704 = vmatpush2.msra.mxu0 %v80
  %1705 = vmatprep.subr.mxu0 %v61
  %1706 = vmatpush2.msra.mxu0 %v60
  %1707 = vmatprep.mubr.f32.mxu0 %v318
  %1708 = vmatmul.mubr.f32.gmra.mxu0 %v124
  %v1709 = vpop.f32.mrf.mxu0
  %v1710 = vadd.f32 %v199, %v1709
  %v1711 = vpop.f32.mrf.mxu0
  %v1712 = vadd.f32 %v199, %v1711
  %1713 = vmatprep.mubr.f32.mxu0 %v321
  %1714 = vmatmul.mubr.f32.gmra.mxu0 %v126
  %v1715 = vpop.f32.mrf.mxu0
  %v1716 = vadd.f32 %v204, %v1715
  %v1717 = vpop.f32.mrf.mxu0
  %v1718 = vadd.f32 %v204, %v1717
  %1719 = vmatprep.mubr.f32.mxu0 %v324
  %1720 = vmatmul.mubr.f32.gmra.mxu0 %v128
  %v1721 = vpop.f32.mrf.mxu0
  %v1722 = vadd.f32 %v209, %v1721
  %v1723 = vpop.f32.mrf.mxu0
  %v1724 = vadd.f32 %v209, %v1723
  %1725 = vmatprep.mubr.f32.mxu0 %v327
  %1726 = vmatmul.mubr.f32.gmra.mxu0 %v130
  %v1727 = vpop.f32.mrf.mxu0
  %v1728 = vadd.f32 %v214, %v1727
  %v1729 = vpop.f32.mrf.mxu0
  %v1730 = vadd.f32 %v214, %v1729
  %1731 = vmatprep.mubr.f32.mxu0 %v330
  %1732 = vmatmul.mubr.f32.gmra.mxu0 %v132
  %v1733 = vpop.f32.mrf.mxu0
  %v1734 = vadd.f32 %v219, %v1733
  %v1735 = vpop.f32.mrf.mxu0
  %v1736 = vadd.f32 %v219, %v1735
  %1737 = vmatprep.mubr.f32.mxu0 %v333
  %1738 = vmatmul.mubr.f32.gmra.mxu0 %v134
  %v1739 = vpop.f32.mrf.mxu0
  %v1740 = vadd.f32 %v224, %v1739
  %v1741 = vpop.f32.mrf.mxu0
  %v1742 = vadd.f32 %v224, %v1741
  %1743 = vmatprep.mubr.f32.mxu0 %v336
  %1744 = vmatmul.mubr.f32.gmra.mxu0 %v136
  %v1745 = vpop.f32.mrf.mxu0
  %v1746 = vadd.f32 %v229, %v1745
  %v1747 = vpop.f32.mrf.mxu0
  %v1748 = vadd.f32 %v229, %v1747
  %1749 = vmatprep.mubr.f32.mxu0 %v339
  %1750 = vmatmul.mubr.f32.gmra.mxu0 %v138
  %v1751 = vpop.f32.mrf.mxu0
  %v1752 = vadd.f32 %v234, %v1751
  %v1753 = vpop.f32.mrf.mxu0
  %v1754 = vadd.f32 %v234, %v1753
  %1755 = vmatprep.mubr.f32.mxu0 %v342
  %1756 = vmatmul.mubr.f32.gmra.mxu0 %v140
  %v1757 = vpop.f32.mrf.mxu0
  %v1758 = vadd.f32 %v239, %v1757
  %v1759 = vpop.f32.mrf.mxu0
  %v1760 = vadd.f32 %v239, %v1759
  %1761 = vmatprep.mubr.f32.mxu0 %v345
  %1762 = vmatmul.mubr.f32.gmra.mxu0 %v142
  %v1763 = vpop.f32.mrf.mxu0
  %v1764 = vadd.f32 %v244, %v1763
  %v1765 = vpop.f32.mrf.mxu0
  %v1766 = vadd.f32 %v244, %v1765
  %1767 = vmatprep.mubr.f32.mxu0 %v348
  %1768 = vmatmul.mubr.f32.gmra.mxu0 %v144
  %v1769 = vpop.f32.mrf.mxu0
  %v1770 = vadd.f32 %v249, %v1769
  %v1771 = vpop.f32.mrf.mxu0
  %v1772 = vadd.f32 %v249, %v1771
  %1773 = vmatprep.mubr.f32.mxu0 %v351
  %1774 = vmatmul.mubr.f32.gmra.mxu0 %v146
  %v1775 = vpop.f32.mrf.mxu0
  %v1776 = vadd.f32 %v254, %v1775
  %v1777 = vpop.f32.mrf.mxu0
  %v1778 = vadd.f32 %v254, %v1777
  %1779 = vmatprep.mubr.f32.mxu0 %v354
  %1780 = vmatmul.mubr.f32.gmra.mxu0 %v148
  %v1781 = vpop.f32.mrf.mxu0
  %v1782 = vadd.f32 %v259, %v1781
  %v1783 = vpop.f32.mrf.mxu0
  %v1784 = vadd.f32 %v259, %v1783
  %1785 = vmatprep.mubr.f32.mxu0 %v357
  %1786 = vmatmul.mubr.f32.gmra.mxu0 %v150
  %v1787 = vpop.f32.mrf.mxu0
  %v1788 = vadd.f32 %v264, %v1787
  %v1789 = vpop.f32.mrf.mxu0
  %v1790 = vadd.f32 %v264, %v1789
  %1791 = vmatprep.mubr.f32.mxu0 %v360
  %1792 = vmatmul.mubr.f32.gmra.mxu0 %v152
  %v1793 = vpop.f32.mrf.mxu0
  %v1794 = vadd.f32 %v269, %v1793
  %v1795 = vpop.f32.mrf.mxu0
  %v1796 = vadd.f32 %v269, %v1795
  %1797 = vmatprep.mubr.f32.mxu0 %v363
  %1798 = vmatmul.mubr.f32.gmra.mxu0 %v154
  %v1799 = vpop.f32.mrf.mxu0
  %v1800 = vadd.f32 %v274, %v1799
  %v1801 = vpop.f32.mrf.mxu0
  %v1802 = vadd.f32 %v274, %v1801
  %1803 = vmatprep.mubr.f32.mxu0 %v366
  %1804 = vmatmul.mubr.f32.gmra.mxu0 %v156
  %v1805 = vpop.f32.mrf.mxu0
  %v1806 = vadd.f32 %v279, %v1805
  %v1807 = vpop.f32.mrf.mxu0
  %v1808 = vadd.f32 %v279, %v1807
  %1809 = vmatprep.mubr.f32.mxu0 %v369
  %1810 = vmatmul.mubr.f32.gmra.mxu0 %v158
  %v1811 = vpop.f32.mrf.mxu0
  %v1812 = vadd.f32 %v284, %v1811
  %v1813 = vpop.f32.mrf.mxu0
  %v1814 = vadd.f32 %v284, %v1813
  %1815 = vmatprep.mubr.f32.mxu0 %v372
  %1816 = vmatmul.mubr.f32.gmra.mxu0 %v160
  %v1817 = vpop.f32.mrf.mxu0
  %v1818 = vadd.f32 %v289, %v1817
  %v1819 = vpop.f32.mrf.mxu0
  %v1820 = vadd.f32 %v289, %v1819
  %1821 = vmatprep.mubr.f32.mxu0 %v375
  %1822 = vmatmul.mubr.f32.gmra.mxu0 %v162
  %v1823 = vpop.f32.mrf.mxu0
  %v1824 = vadd.f32 %v294, %v1823
  %v1825 = vpop.f32.mrf.mxu0
  %v1826 = vadd.f32 %v294, %v1825
  %1827 = vmatprep.mubr.f32.mxu0 %v378
  %1828 = vmatmul.mubr.f32.gmra.mxu0 %v164
  %v1829 = vpop.f32.mrf.mxu0
  %v1830 = vadd.f32 %v299, %v1829
  %v1831 = vpop.f32.mrf.mxu0
  %v1832 = vadd.f32 %v299, %v1831
  %1833 = vmatprep.mubr.f32.mxu0 %v381
  %1834 = vmatmul.mubr.f32.gmra.mxu0 %v166
  %v1835 = vpop.f32.mrf.mxu0
  %v1836 = vadd.f32 %v304, %v1835
  %v1837 = vpop.f32.mrf.mxu0
  %v1838 = vadd.f32 %v304, %v1837
  %1839 = vmatprep.mubr.f32.mxu0 %v384
  %1840 = vmatmul.mubr.f32.gmra.mxu0 %v168
  %v1841 = vpop.f32.mrf.mxu0
  %v1842 = vadd.f32 %v309, %v1841
  %v1843 = vpop.f32.mrf.mxu0
  %v1844 = vadd.f32 %v309, %v1843
  %1845 = vmatprep.mubr.f32.mxu0 %v387
  %1846 = vmatmul.mubr.f32.gmra.mxu0 %v170
  %v1847 = vpop.f32.mrf.mxu0
  %v1848 = vadd.f32 %v314, %v1847
  %v1849 = vpop.f32.mrf.mxu0
  %v1850 = vadd.f32 %v314, %v1849
  %1851 = vdwg.mxu0
  %1852 = vmatprep.subr.mxu0 %v122
  %1853 = vmatpush1.msra.mxu0 %v121
  %1854 = vmatprep.subr.mxu0 %v102
  %1855 = vmatpush1.msra.mxu0 %v101
  %1856 = vmatprep.subr.mxu0 %v82
  %1857 = vmatpush1.msra.mxu0 %v81
  %1858 = vmatprep.subr.mxu0 %v62
  %1859 = vmatpush1.msra.mxu0 %v61
  %1860 = vmatprep.subr.mxu0 %v121
  %1861 = vmatpush1.msra.mxu0 %v120
  %1862 = vmatprep.subr.mxu0 %v101
  %1863 = vmatpush1.msra.mxu0 %v100
  %1864 = vmatprep.subr.mxu0 %v81
  %1865 = vmatpush1.msra.mxu0 %v80
  %1866 = vmatprep.subr.mxu0 %v61
  %1867 = vmatpush1.msra.mxu0 %v60
  %1868 = vmatprep.subr.mxu0 %v120
  %1869 = vmatpush1.msra.mxu0 %v119
  %1870 = vmatprep.subr.mxu0 %v100
  %1871 = vmatpush1.msra.mxu0 %v99
  %1872 = vmatprep.subr.mxu0 %v80
  %1873 = vmatpush1.msra.mxu0 %v79
  %1874 = vmatprep.subr.mxu0 %v60
  %1875 = vmatpush1.msra.mxu0 %v59
  %1876 = vmatprep.subr.mxu0 %v119
  %1877 = vmatpush1.msra.mxu0 %v118
  %1878 = vmatprep.subr.mxu0 %v99
  %1879 = vmatpush1.msra.mxu0 %v98
  %1880 = vmatprep.subr.mxu0 %v79
  %1881 = vmatpush1.msra.mxu0 %v78
  %1882 = vmatprep.subr.mxu0 %v59
  %1883 = vmatpush1.msra.mxu0 %v58
  %1884 = vmatprep.subr.mxu0 0.0
  %1885 = vmatpush2.msra.mxu0 0.0
  %1886 = vmatprep.subr.mxu0 0.0
  %1887 = vmatpush2.msra.mxu0 0.0
  %1888 = vmatprep.subr.mxu0 0.0
  %1889 = vmatpush2.msra.mxu0 0.0
  %1890 = vmatprep.subr.mxu0 0.0
  %1891 = vmatpush2.msra.mxu0 0.0
  %1892 = vmatprep.subr.mxu0 0.0
  %1893 = vmatpush2.msra.mxu0 0.0
  %1894 = vmatprep.subr.mxu0 0.0
  %1895 = vmatpush2.msra.mxu0 0.0
  %1896 = vmatprep.subr.mxu0 0.0
  %1897 = vmatpush2.msra.mxu0 0.0
  %1898 = vmatprep.subr.mxu0 0.0
  %1899 = vmatpush2.msra.mxu0 0.0
  %1900 = vmatprep.subr.mxu0 0.0
  %1901 = vmatpush2.msra.mxu0 0.0
  %1902 = vmatprep.subr.mxu0 0.0
  %1903 = vmatpush2.msra.mxu0 0.0
  %1904 = vmatprep.subr.mxu0 0.0
  %1905 = vmatpush2.msra.mxu0 0.0
  %1906 = vmatprep.subr.mxu0 0.0
  %1907 = vmatpush2.msra.mxu0 0.0
  %1908 = vmatprep.subr.mxu0 %v123
  %1909 = vmatpush2.msra.mxu0 %v122
  %1910 = vmatprep.subr.mxu0 %v103
  %1911 = vmatpush2.msra.mxu0 %v102
  %1912 = vmatprep.subr.mxu0 %v83
  %1913 = vmatpush2.msra.mxu0 %v82
  %1914 = vmatprep.subr.mxu0 %v63
  %1915 = vmatpush2.msra.mxu0 %v62
  %1916 = vmatprep.mubr.f32.mxu0 %v318
  %1917 = vmatmul.mubr.f32.gmra.mxu0 %v124
  %v1918 = vpop.f32.mrf.mxu0
  %v1919 = vadd.f32 %v199, %v1918
  %v1920 = vpop.f32.mrf.mxu0
  %v1921 = vadd.f32 %v199, %v1920
  %1922 = vmatprep.mubr.f32.mxu0 %v321
  %1923 = vmatmul.mubr.f32.gmra.mxu0 %v126
  %v1924 = vpop.f32.mrf.mxu0
  %v1925 = vadd.f32 %v204, %v1924
  %v1926 = vpop.f32.mrf.mxu0
  %v1927 = vadd.f32 %v204, %v1926
  %1928 = vmatprep.mubr.f32.mxu0 %v324
  %1929 = vmatmul.mubr.f32.gmra.mxu0 %v128
  %v1930 = vpop.f32.mrf.mxu0
  %v1931 = vadd.f32 %v209, %v1930
  %v1932 = vpop.f32.mrf.mxu0
  %v1933 = vadd.f32 %v209, %v1932
  %1934 = vmatprep.mubr.f32.mxu0 %v327
  %1935 = vmatmul.mubr.f32.gmra.mxu0 %v130
  %v1936 = vpop.f32.mrf.mxu0
  %v1937 = vadd.f32 %v214, %v1936
  %v1938 = vpop.f32.mrf.mxu0
  %v1939 = vadd.f32 %v214, %v1938
  %1940 = vmatprep.mubr.f32.mxu0 %v330
  %1941 = vmatmul.mubr.f32.gmra.mxu0 %v132
  %v1942 = vpop.f32.mrf.mxu0
  %v1943 = vadd.f32 %v219, %v1942
  %v1944 = vpop.f32.mrf.mxu0
  %v1945 = vadd.f32 %v219, %v1944
  %1946 = vmatprep.mubr.f32.mxu0 %v333
  %1947 = vmatmul.mubr.f32.gmra.mxu0 %v134
  %v1948 = vpop.f32.mrf.mxu0
  %v1949 = vadd.f32 %v224, %v1948
  %v1950 = vpop.f32.mrf.mxu0
  %v1951 = vadd.f32 %v224, %v1950
  %1952 = vmatprep.mubr.f32.mxu0 %v336
  %1953 = vmatmul.mubr.f32.gmra.mxu0 %v136
  %v1954 = vpop.f32.mrf.mxu0
  %v1955 = vadd.f32 %v229, %v1954
  %v1956 = vpop.f32.mrf.mxu0
  %v1957 = vadd.f32 %v229, %v1956
  %1958 = vmatprep.mubr.f32.mxu0 %v339
  %1959 = vmatmul.mubr.f32.gmra.mxu0 %v138
  %v1960 = vpop.f32.mrf.mxu0
  %v1961 = vadd.f32 %v234, %v1960
  %v1962 = vpop.f32.mrf.mxu0
  %v1963 = vadd.f32 %v234, %v1962
  %1964 = vmatprep.mubr.f32.mxu0 %v342
  %1965 = vmatmul.mubr.f32.gmra.mxu0 %v140
  %v1966 = vpop.f32.mrf.mxu0
  %v1967 = vadd.f32 %v239, %v1966
  %v1968 = vpop.f32.mrf.mxu0
  %v1969 = vadd.f32 %v239, %v1968
  %1970 = vmatprep.mubr.f32.mxu0 %v345
  %1971 = vmatmul.mubr.f32.gmra.mxu0 %v142
  %v1972 = vpop.f32.mrf.mxu0
  %v1973 = vadd.f32 %v244, %v1972
  %v1974 = vpop.f32.mrf.mxu0
  %v1975 = vadd.f32 %v244, %v1974
  %1976 = vmatprep.mubr.f32.mxu0 %v348
  %1977 = vmatmul.mubr.f32.gmra.mxu0 %v144
  %v1978 = vpop.f32.mrf.mxu0
  %v1979 = vadd.f32 %v249, %v1978
  %v1980 = vpop.f32.mrf.mxu0
  %v1981 = vadd.f32 %v249, %v1980
  %1982 = vmatprep.mubr.f32.mxu0 %v351
  %1983 = vmatmul.mubr.f32.gmra.mxu0 %v146
  %v1984 = vpop.f32.mrf.mxu0
  %v1985 = vadd.f32 %v254, %v1984
  %v1986 = vpop.f32.mrf.mxu0
  %v1987 = vadd.f32 %v254, %v1986
  %1988 = vmatprep.mubr.f32.mxu0 %v354
  %1989 = vmatmul.mubr.f32.gmra.mxu0 %v148
  %v1990 = vpop.f32.mrf.mxu0
  %v1991 = vadd.f32 %v259, %v1990
  %v1992 = vpop.f32.mrf.mxu0
  %v1993 = vadd.f32 %v259, %v1992
  %1994 = vmatprep.mubr.f32.mxu0 %v357
  %1995 = vmatmul.mubr.f32.gmra.mxu0 %v150
  %v1996 = vpop.f32.mrf.mxu0
  %v1997 = vadd.f32 %v264, %v1996
  %v1998 = vpop.f32.mrf.mxu0
  %v1999 = vadd.f32 %v264, %v1998
  %2000 = vmatprep.mubr.f32.mxu0 %v360
  %2001 = vmatmul.mubr.f32.gmra.mxu0 %v152
  %v2002 = vpop.f32.mrf.mxu0
  %v2003 = vadd.f32 %v269, %v2002
  %v2004 = vpop.f32.mrf.mxu0
  %v2005 = vadd.f32 %v269, %v2004
  %2006 = vmatprep.mubr.f32.mxu0 %v363
  %2007 = vmatmul.mubr.f32.gmra.mxu0 %v154
  %v2008 = vpop.f32.mrf.mxu0
  %v2009 = vadd.f32 %v274, %v2008
  %v2010 = vpop.f32.mrf.mxu0
  %v2011 = vadd.f32 %v274, %v2010
  %2012 = vmatprep.mubr.f32.mxu0 %v366
  %2013 = vmatmul.mubr.f32.gmra.mxu0 %v156
  %v2014 = vpop.f32.mrf.mxu0
  %v2015 = vadd.f32 %v279, %v2014
  %v2016 = vpop.f32.mrf.mxu0
  %v2017 = vadd.f32 %v279, %v2016
  %2018 = vmatprep.mubr.f32.mxu0 %v369
  %2019 = vmatmul.mubr.f32.gmra.mxu0 %v158
  %v2020 = vpop.f32.mrf.mxu0
  %v2021 = vadd.f32 %v284, %v2020
  %v2022 = vpop.f32.mrf.mxu0
  %v2023 = vadd.f32 %v284, %v2022
  %2024 = vmatprep.mubr.f32.mxu0 %v372
  %2025 = vmatmul.mubr.f32.gmra.mxu0 %v160
  %v2026 = vpop.f32.mrf.mxu0
  %v2027 = vadd.f32 %v289, %v2026
  %v2028 = vpop.f32.mrf.mxu0
  %v2029 = vadd.f32 %v289, %v2028
  %2030 = vmatprep.mubr.f32.mxu0 %v375
  %2031 = vmatmul.mubr.f32.gmra.mxu0 %v162
  %v2032 = vpop.f32.mrf.mxu0
  %v2033 = vadd.f32 %v294, %v2032
  %v2034 = vpop.f32.mrf.mxu0
  %v2035 = vadd.f32 %v294, %v2034
  %2036 = vmatprep.mubr.f32.mxu0 %v378
  %2037 = vmatmul.mubr.f32.gmra.mxu0 %v164
  %v2038 = vpop.f32.mrf.mxu0
  %v2039 = vadd.f32 %v299, %v2038
  %v2040 = vpop.f32.mrf.mxu0
  %v2041 = vadd.f32 %v299, %v2040
  %2042 = vmatprep.mubr.f32.mxu0 %v381
  %2043 = vmatmul.mubr.f32.gmra.mxu0 %v166
  %v2044 = vpop.f32.mrf.mxu0
  %v2045 = vadd.f32 %v304, %v2044
  %v2046 = vpop.f32.mrf.mxu0
  %v2047 = vadd.f32 %v304, %v2046
  %2048 = vmatprep.mubr.f32.mxu0 %v384
  %2049 = vmatmul.mubr.f32.gmra.mxu0 %v168
  %v2050 = vpop.f32.mrf.mxu0
  %v2051 = vadd.f32 %v309, %v2050
  %v2052 = vpop.f32.mrf.mxu0
  %v2053 = vadd.f32 %v309, %v2052
  %2054 = vmatprep.mubr.f32.mxu0 %v387
  %2055 = vmatmul.mubr.f32.gmra.mxu0 %v170
  %v2056 = vpop.f32.mrf.mxu0
  %v2057 = vadd.f32 %v314, %v2056
  %v2058 = vpop.f32.mrf.mxu0
  %v2059 = vadd.f32 %v314, %v2058
  %2060 = vdwg.mxu0
  %v2061 = vmax.f32 %v456, 0.0
  %v2062 = vmax.f32 %v458, 0.0
  %v2063 = vmax.f32 %v665, 0.0
  %v2064 = vmax.f32 %v667, 0.0
  %v2065 = vmax.f32 %v874, 0.0
  %v2066 = vmax.f32 %v876, 0.0
  %v2067 = vmax.f32 %v1083, 0.0
  %v2068 = vmax.f32 %v1085, 0.0
  %v2069 = vmax.f32 %v1292, 0.0
  %v2070 = vmax.f32 %v1294, 0.0
  %v2071 = vmax.f32 %v1501, 0.0
  %v2072 = vmax.f32 %v1503, 0.0
  %v2073 = vmax.f32 %v1710, 0.0
  %v2074 = vmax.f32 %v1712, 0.0
  %v2075 = vmax.f32 %v1919, 0.0
  %v2076 = vmax.f32 %v1921, 0.0
  %v2077 = vmax.f32 %v462, 0.0
  %v2078 = vmax.f32 %v464, 0.0
  %v2079 = vmax.f32 %v671, 0.0
  %v2080 = vmax.f32 %v673, 0.0
  %v2081 = vmax.f32 %v880, 0.0
  %v2082 = vmax.f32 %v882, 0.0
  %v2083 = vmax.f32 %v1089, 0.0
  %v2084 = vmax.f32 %v1091, 0.0
  %v2085 = vmax.f32 %v1298, 0.0
  %v2086 = vmax.f32 %v1300, 0.0
  %v2087 = vmax.f32 %v1507, 0.0
  %v2088 = vmax.f32 %v1509, 0.0
  %v2089 = vmax.f32 %v1716, 0.0
  %v2090 = vmax.f32 %v1718, 0.0
  %v2091 = vmax.f32 %v1925, 0.0
  %v2092 = vmax.f32 %v1927, 0.0
  %v2093 = vmax.f32 %v468, 0.0
  %v2094 = vmax.f32 %v470, 0.0
  %v2095 = vmax.f32 %v677, 0.0
  %v2096 = vmax.f32 %v679, 0.0
  %v2097 = vmax.f32 %v886, 0.0
  %v2098 = vmax.f32 %v888, 0.0
  %v2099 = vmax.f32 %v1095, 0.0
  %v2100 = vmax.f32 %v1097, 0.0
  %v2101 = vmax.f32 %v1304, 0.0
  %v2102 = vmax.f32 %v1306, 0.0
  %v2103 = vmax.f32 %v1513, 0.0
  %v2104 = vmax.f32 %v1515, 0.0
  %v2105 = vmax.f32 %v1722, 0.0
  %v2106 = vmax.f32 %v1724, 0.0
  %v2107 = vmax.f32 %v1931, 0.0
  %v2108 = vmax.f32 %v1933, 0.0
  %v2109 = vmax.f32 %v474, 0.0
  %v2110 = vmax.f32 %v476, 0.0
  %v2111 = vmax.f32 %v683, 0.0
  %v2112 = vmax.f32 %v685, 0.0
  %v2113 = vmax.f32 %v892, 0.0
  %v2114 = vmax.f32 %v894, 0.0
  %v2115 = vmax.f32 %v1101, 0.0
  %v2116 = vmax.f32 %v1103, 0.0
  %v2117 = vmax.f32 %v1310, 0.0
  %v2118 = vmax.f32 %v1312, 0.0
  %v2119 = vmax.f32 %v1519, 0.0
  %v2120 = vmax.f32 %v1521, 0.0
  %v2121 = vmax.f32 %v1728, 0.0
  %v2122 = vmax.f32 %v1730, 0.0
  %v2123 = vmax.f32 %v1937, 0.0
  %v2124 = vmax.f32 %v1939, 0.0
  %v2125 = vmax.f32 %v480, 0.0
  %v2126 = vmax.f32 %v482, 0.0
  %v2127 = vmax.f32 %v689, 0.0
  %v2128 = vmax.f32 %v691, 0.0
  %v2129 = vmax.f32 %v898, 0.0
  %v2130 = vmax.f32 %v900, 0.0
  %v2131 = vmax.f32 %v1107, 0.0
  %v2132 = vmax.f32 %v1109, 0.0
  %v2133 = vmax.f32 %v1316, 0.0
  %v2134 = vmax.f32 %v1318, 0.0
  %v2135 = vmax.f32 %v1525, 0.0
  %v2136 = vmax.f32 %v1527, 0.0
  %v2137 = vmax.f32 %v1734, 0.0
  %v2138 = vmax.f32 %v1736, 0.0
  %v2139 = vmax.f32 %v1943, 0.0
  %v2140 = vmax.f32 %v1945, 0.0
  %v2141 = vmax.f32 %v486, 0.0
  %v2142 = vmax.f32 %v488, 0.0
  %v2143 = vmax.f32 %v695, 0.0
  %v2144 = vmax.f32 %v697, 0.0
  %v2145 = vmax.f32 %v904, 0.0
  %v2146 = vmax.f32 %v906, 0.0
  %v2147 = vmax.f32 %v1113, 0.0
  %v2148 = vmax.f32 %v1115, 0.0
  %v2149 = vmax.f32 %v1322, 0.0
  %v2150 = vmax.f32 %v1324, 0.0
  %v2151 = vmax.f32 %v1531, 0.0
  %v2152 = vmax.f32 %v1533, 0.0
  %v2153 = vmax.f32 %v1740, 0.0
  %v2154 = vmax.f32 %v1742, 0.0
  %v2155 = vmax.f32 %v1949, 0.0
  %v2156 = vmax.f32 %v1951, 0.0
  %v2157 = vmax.f32 %v492, 0.0
  %v2158 = vmax.f32 %v494, 0.0
  %v2159 = vmax.f32 %v701, 0.0
  %v2160 = vmax.f32 %v703, 0.0
  %v2161 = vmax.f32 %v910, 0.0
  %v2162 = vmax.f32 %v912, 0.0
  %v2163 = vmax.f32 %v1119, 0.0
  %v2164 = vmax.f32 %v1121, 0.0
  %v2165 = vmax.f32 %v1328, 0.0
  %v2166 = vmax.f32 %v1330, 0.0
  %v2167 = vmax.f32 %v1537, 0.0
  %v2168 = vmax.f32 %v1539, 0.0
  %v2169 = vmax.f32 %v1746, 0.0
  %v2170 = vmax.f32 %v1748, 0.0
  %v2171 = vmax.f32 %v1955, 0.0
  %v2172 = vmax.f32 %v1957, 0.0
  %v2173 = vmax.f32 %v498, 0.0
  %v2174 = vmax.f32 %v500, 0.0
  %v2175 = vmax.f32 %v707, 0.0
  %v2176 = vmax.f32 %v709, 0.0
  %v2177 = vmax.f32 %v916, 0.0
  %v2178 = vmax.f32 %v918, 0.0
  %v2179 = vmax.f32 %v1125, 0.0
  %v2180 = vmax.f32 %v1127, 0.0
  %v2181 = vmax.f32 %v1334, 0.0
  %v2182 = vmax.f32 %v1336, 0.0
  %v2183 = vmax.f32 %v1543, 0.0
  %v2184 = vmax.f32 %v1545, 0.0
  %v2185 = vmax.f32 %v1752, 0.0
  %v2186 = vmax.f32 %v1754, 0.0
  %v2187 = vmax.f32 %v1961, 0.0
  %v2188 = vmax.f32 %v1963, 0.0
  %v2189 = vmax.f32 %v504, 0.0
  %v2190 = vmax.f32 %v506, 0.0
  %v2191 = vmax.f32 %v713, 0.0
  %v2192 = vmax.f32 %v715, 0.0
  %v2193 = vmax.f32 %v922, 0.0
  %v2194 = vmax.f32 %v924, 0.0
  %v2195 = vmax.f32 %v1131, 0.0
  %v2196 = vmax.f32 %v1133, 0.0
  %v2197 = vmax.f32 %v1340, 0.0
  %v2198 = vmax.f32 %v1342, 0.0
  %v2199 = vmax.f32 %v1549, 0.0
  %v2200 = vmax.f32 %v1551, 0.0
  %v2201 = vmax.f32 %v1758, 0.0
  %v2202 = vmax.f32 %v1760, 0.0
  %v2203 = vmax.f32 %v1967, 0.0
  %v2204 = vmax.f32 %v1969, 0.0
  %v2205 = vmax.f32 %v510, 0.0
  %v2206 = vmax.f32 %v512, 0.0
  %v2207 = vmax.f32 %v719, 0.0
  %v2208 = vmax.f32 %v721, 0.0
  %v2209 = vmax.f32 %v928, 0.0
  %v2210 = vmax.f32 %v930, 0.0
  %v2211 = vmax.f32 %v1137, 0.0
  %v2212 = vmax.f32 %v1139, 0.0
  %v2213 = vmax.f32 %v1346, 0.0
  %v2214 = vmax.f32 %v1348, 0.0
  %v2215 = vmax.f32 %v1555, 0.0
  %v2216 = vmax.f32 %v1557, 0.0
  %v2217 = vmax.f32 %v1764, 0.0
  %v2218 = vmax.f32 %v1766, 0.0
  %v2219 = vmax.f32 %v1973, 0.0
  %v2220 = vmax.f32 %v1975, 0.0
  %v2221 = vmax.f32 %v516, 0.0
  %v2222 = vmax.f32 %v518, 0.0
  %v2223 = vmax.f32 %v725, 0.0
  %v2224 = vmax.f32 %v727, 0.0
  %v2225 = vmax.f32 %v934, 0.0
  %v2226 = vmax.f32 %v936, 0.0
  %v2227 = vmax.f32 %v1143, 0.0
  %v2228 = vmax.f32 %v1145, 0.0
  %v2229 = vmax.f32 %v1352, 0.0
  %v2230 = vmax.f32 %v1354, 0.0
  %v2231 = vmax.f32 %v1561, 0.0
  %v2232 = vmax.f32 %v1563, 0.0
  %v2233 = vmax.f32 %v1770, 0.0
  %v2234 = vmax.f32 %v1772, 0.0
  %v2235 = vmax.f32 %v1979, 0.0
  %v2236 = vmax.f32 %v1981, 0.0
  %v2237 = vmax.f32 %v522, 0.0
  %v2238 = vmax.f32 %v524, 0.0
  %v2239 = vmax.f32 %v731, 0.0
  %v2240 = vmax.f32 %v733, 0.0
  %v2241 = vmax.f32 %v940, 0.0
  %v2242 = vmax.f32 %v942, 0.0
  %v2243 = vmax.f32 %v1149, 0.0
  %v2244 = vmax.f32 %v1151, 0.0
  %v2245 = vmax.f32 %v1358, 0.0
  %v2246 = vmax.f32 %v1360, 0.0
  %v2247 = vmax.f32 %v1567, 0.0
  %v2248 = vmax.f32 %v1569, 0.0
  %v2249 = vmax.f32 %v1776, 0.0
  %v2250 = vmax.f32 %v1778, 0.0
  %v2251 = vmax.f32 %v1985, 0.0
  %v2252 = vmax.f32 %v1987, 0.0
  %v2253 = vmax.f32 %v528, 0.0
  %v2254 = vmax.f32 %v530, 0.0
  %v2255 = vmax.f32 %v737, 0.0
  %v2256 = vmax.f32 %v739, 0.0
  %v2257 = vmax.f32 %v946, 0.0
  %v2258 = vmax.f32 %v948, 0.0
  %v2259 = vmax.f32 %v1155, 0.0
  %v2260 = vmax.f32 %v1157, 0.0
  %v2261 = vmax.f32 %v1364, 0.0
  %v2262 = vmax.f32 %v1366, 0.0
  %v2263 = vmax.f32 %v1573, 0.0
  %v2264 = vmax.f32 %v1575, 0.0
  %v2265 = vmax.f32 %v1782, 0.0
  %v2266 = vmax.f32 %v1784, 0.0
  %v2267 = vmax.f32 %v1991, 0.0
  %v2268 = vmax.f32 %v1993, 0.0
  %v2269 = vmax.f32 %v534, 0.0
  %v2270 = vmax.f32 %v536, 0.0
  %v2271 = vmax.f32 %v743, 0.0
  %v2272 = vmax.f32 %v745, 0.0
  %v2273 = vmax.f32 %v952, 0.0
  %v2274 = vmax.f32 %v954, 0.0
  %v2275 = vmax.f32 %v1161, 0.0
  %v2276 = vmax.f32 %v1163, 0.0
  %v2277 = vmax.f32 %v1370, 0.0
  %v2278 = vmax.f32 %v1372, 0.0
  %v2279 = vmax.f32 %v1579, 0.0
  %v2280 = vmax.f32 %v1581, 0.0
  %v2281 = vmax.f32 %v1788, 0.0
  %v2282 = vmax.f32 %v1790, 0.0
  %v2283 = vmax.f32 %v1997, 0.0
  %v2284 = vmax.f32 %v1999, 0.0
  %v2285 = vmax.f32 %v540, 0.0
  %v2286 = vmax.f32 %v542, 0.0
  %v2287 = vmax.f32 %v749, 0.0
  %v2288 = vmax.f32 %v751, 0.0
  %v2289 = vmax.f32 %v958, 0.0
  %v2290 = vmax.f32 %v960, 0.0
  %v2291 = vmax.f32 %v1167, 0.0
  %v2292 = vmax.f32 %v1169, 0.0
  %v2293 = vmax.f32 %v1376, 0.0
  %v2294 = vmax.f32 %v1378, 0.0
  %v2295 = vmax.f32 %v1585, 0.0
  %v2296 = vmax.f32 %v1587, 0.0
  %v2297 = vmax.f32 %v1794, 0.0
  %v2298 = vmax.f32 %v1796, 0.0
  %v2299 = vmax.f32 %v2003, 0.0
  %v2300 = vmax.f32 %v2005, 0.0
  %v2301 = vmax.f32 %v546, 0.0
  %v2302 = vmax.f32 %v548, 0.0
  %v2303 = vmax.f32 %v755, 0.0
  %v2304 = vmax.f32 %v757, 0.0
  %v2305 = vmax.f32 %v964, 0.0
  %v2306 = vmax.f32 %v966, 0.0
  %v2307 = vmax.f32 %v1173, 0.0
  %v2308 = vmax.f32 %v1175, 0.0
  %v2309 = vmax.f32 %v1382, 0.0
  %v2310 = vmax.f32 %v1384, 0.0
  %v2311 = vmax.f32 %v1591, 0.0
  %v2312 = vmax.f32 %v1593, 0.0
  %v2313 = vmax.f32 %v1800, 0.0
  %v2314 = vmax.f32 %v1802, 0.0
  %v2315 = vmax.f32 %v2009, 0.0
  %v2316 = vmax.f32 %v2011, 0.0
  %v2317 = vmax.f32 %v552, 0.0
  %v2318 = vmax.f32 %v554, 0.0
  %v2319 = vmax.f32 %v761, 0.0
  %v2320 = vmax.f32 %v763, 0.0
  %v2321 = vmax.f32 %v970, 0.0
  %v2322 = vmax.f32 %v972, 0.0
  %v2323 = vmax.f32 %v1179, 0.0
  %v2324 = vmax.f32 %v1181, 0.0
  %v2325 = vmax.f32 %v1388, 0.0
  %v2326 = vmax.f32 %v1390, 0.0
  %v2327 = vmax.f32 %v1597, 0.0
  %v2328 = vmax.f32 %v1599, 0.0
  %v2329 = vmax.f32 %v1806, 0.0
  %v2330 = vmax.f32 %v1808, 0.0
  %v2331 = vmax.f32 %v2015, 0.0
  %v2332 = vmax.f32 %v2017, 0.0
  %v2333 = vmax.f32 %v558, 0.0
  %v2334 = vmax.f32 %v560, 0.0
  %v2335 = vmax.f32 %v767, 0.0
  %v2336 = vmax.f32 %v769, 0.0
  %v2337 = vmax.f32 %v976, 0.0
  %v2338 = vmax.f32 %v978, 0.0
  %v2339 = vmax.f32 %v1185, 0.0
  %v2340 = vmax.f32 %v1187, 0.0
  %v2341 = vmax.f32 %v1394, 0.0
  %v2342 = vmax.f32 %v1396, 0.0
  %v2343 = vmax.f32 %v1603, 0.0
  %v2344 = vmax.f32 %v1605, 0.0
  %v2345 = vmax.f32 %v1812, 0.0
  %v2346 = vmax.f32 %v1814, 0.0
  %v2347 = vmax.f32 %v2021, 0.0
  %v2348 = vmax.f32 %v2023, 0.0
  %v2349 = vmax.f32 %v564, 0.0
  %v2350 = vmax.f32 %v566, 0.0
  %v2351 = vmax.f32 %v773, 0.0
  %v2352 = vmax.f32 %v775, 0.0
  %v2353 = vmax.f32 %v982, 0.0
  %v2354 = vmax.f32 %v984, 0.0
  %v2355 = vmax.f32 %v1191, 0.0
  %v2356 = vmax.f32 %v1193, 0.0
  %v2357 = vmax.f32 %v1400, 0.0
  %v2358 = vmax.f32 %v1402, 0.0
  %v2359 = vmax.f32 %v1609, 0.0
  %v2360 = vmax.f32 %v1611, 0.0
  %v2361 = vmax.f32 %v1818, 0.0
  %v2362 = vmax.f32 %v1820, 0.0
  %v2363 = vmax.f32 %v2027, 0.0
  %v2364 = vmax.f32 %v2029, 0.0
  %v2365 = vmax.f32 %v570, 0.0
  %v2366 = vmax.f32 %v572, 0.0
  %v2367 = vmax.f32 %v779, 0.0
  %v2368 = vmax.f32 %v781, 0.0
  %v2369 = vmax.f32 %v988, 0.0
  %v2370 = vmax.f32 %v990, 0.0
  %v2371 = vmax.f32 %v1197, 0.0
  %v2372 = vmax.f32 %v1199, 0.0
  %v2373 = vmax.f32 %v1406, 0.0
  %v2374 = vmax.f32 %v1408, 0.0
  %v2375 = vmax.f32 %v1615, 0.0
  %v2376 = vmax.f32 %v1617, 0.0
  %v2377 = vmax.f32 %v1824, 0.0
  %v2378 = vmax.f32 %v1826, 0.0
  %v2379 = vmax.f32 %v2033, 0.0
  %v2380 = vmax.f32 %v2035, 0.0
  %v2381 = vmax.f32 %v576, 0.0
  %v2382 = vmax.f32 %v578, 0.0
  %v2383 = vmax.f32 %v785, 0.0
  %v2384 = vmax.f32 %v787, 0.0
  %v2385 = vmax.f32 %v994, 0.0
  %v2386 = vmax.f32 %v996, 0.0
  %v2387 = vmax.f32 %v1203, 0.0
  %v2388 = vmax.f32 %v1205, 0.0
  %v2389 = vmax.f32 %v1412, 0.0
  %v2390 = vmax.f32 %v1414, 0.0
  %v2391 = vmax.f32 %v1621, 0.0
  %v2392 = vmax.f32 %v1623, 0.0
  %v2393 = vmax.f32 %v1830, 0.0
  %v2394 = vmax.f32 %v1832, 0.0
  %v2395 = vmax.f32 %v2039, 0.0
  %v2396 = vmax.f32 %v2041, 0.0
  %v2397 = vmax.f32 %v582, 0.0
  %v2398 = vmax.f32 %v584, 0.0
  %v2399 = vmax.f32 %v791, 0.0
  %v2400 = vmax.f32 %v793, 0.0
  %v2401 = vmax.f32 %v1000, 0.0
  %v2402 = vmax.f32 %v1002, 0.0
  %v2403 = vmax.f32 %v1209, 0.0
  %v2404 = vmax.f32 %v1211, 0.0
  %v2405 = vmax.f32 %v1418, 0.0
  %v2406 = vmax.f32 %v1420, 0.0
  %v2407 = vmax.f32 %v1627, 0.0
  %v2408 = vmax.f32 %v1629, 0.0
  %v2409 = vmax.f32 %v1836, 0.0
  %v2410 = vmax.f32 %v1838, 0.0
  %v2411 = vmax.f32 %v2045, 0.0
  %v2412 = vmax.f32 %v2047, 0.0
  %v2413 = vmax.f32 %v588, 0.0
  %v2414 = vmax.f32 %v590, 0.0
  %v2415 = vmax.f32 %v797, 0.0
  %v2416 = vmax.f32 %v799, 0.0
  %v2417 = vmax.f32 %v1006, 0.0
  %v2418 = vmax.f32 %v1008, 0.0
  %v2419 = vmax.f32 %v1215, 0.0
  %v2420 = vmax.f32 %v1217, 0.0
  %v2421 = vmax.f32 %v1424, 0.0
  %v2422 = vmax.f32 %v1426, 0.0
  %v2423 = vmax.f32 %v1633, 0.0
  %v2424 = vmax.f32 %v1635, 0.0
  %v2425 = vmax.f32 %v1842, 0.0
  %v2426 = vmax.f32 %v1844, 0.0
  %v2427 = vmax.f32 %v2051, 0.0
  %v2428 = vmax.f32 %v2053, 0.0
  %v2429 = vmax.f32 %v594, 0.0
  %v2430 = vmax.f32 %v596, 0.0
  %v2431 = vmax.f32 %v803, 0.0
  %v2432 = vmax.f32 %v805, 0.0
  %v2433 = vmax.f32 %v1012, 0.0
  %v2434 = vmax.f32 %v1014, 0.0
  %v2435 = vmax.f32 %v1221, 0.0
  %v2436 = vmax.f32 %v1223, 0.0
  %v2437 = vmax.f32 %v1430, 0.0
  %v2438 = vmax.f32 %v1432, 0.0
  %v2439 = vmax.f32 %v1639, 0.0
  %v2440 = vmax.f32 %v1641, 0.0
  %v2441 = vmax.f32 %v1848, 0.0
  %v2442 = vmax.f32 %v1850, 0.0
  %v2443 = vmax.f32 %v2057, 0.0
  %v2444 = vmax.f32 %v2059, 0.0
  %v2445 = vmax.f32 %v2061, %v2062
  %v2446 = vmax.f32 %v2077, %v2078
  %v2447 = vmax.f32 %v2093, %v2094
  %v2448 = vmax.f32 %v2109, %v2110
  %v2449 = vmax.f32 %v2125, %v2126
  %v2450 = vmax.f32 %v2141, %v2142
  %v2451 = vmax.f32 %v2157, %v2158
  %v2452 = vmax.f32 %v2173, %v2174
  %v2453 = vmax.f32 %v2189, %v2190
  %v2454 = vmax.f32 %v2205, %v2206
  %v2455 = vmax.f32 %v2221, %v2222
  %v2456 = vmax.f32 %v2237, %v2238
  %v2457 = vmax.f32 %v2253, %v2254
  %v2458 = vmax.f32 %v2269, %v2270
  %v2459 = vmax.f32 %v2285, %v2286
  %v2460 = vmax.f32 %v2301, %v2302
  %v2461 = vmax.f32 %v2317, %v2318
  %v2462 = vmax.f32 %v2333, %v2334
  %v2463 = vmax.f32 %v2349, %v2350
  %v2464 = vmax.f32 %v2365, %v2366
  %v2465 = vmax.f32 %v2381, %v2382
  %v2466 = vmax.f32 %v2397, %v2398
  %v2467 = vmax.f32 %v2413, %v2414
  %v2468 = vmax.f32 %v2429, %v2430
  %v2469 = vmax.f32 %v2063, %v2064
  %v2470 = vmax.f32 %v2079, %v2080
  %v2471 = vmax.f32 %v2095, %v2096
  %v2472 = vmax.f32 %v2111, %v2112
  %v2473 = vmax.f32 %v2127, %v2128
  %v2474 = vmax.f32 %v2143, %v2144
  %v2475 = vmax.f32 %v2159, %v2160
  %v2476 = vmax.f32 %v2175, %v2176
  %v2477 = vmax.f32 %v2191, %v2192
  %v2478 = vmax.f32 %v2207, %v2208
  %v2479 = vmax.f32 %v2223, %v2224
  %v2480 = vmax.f32 %v2239, %v2240
  %v2481 = vmax.f32 %v2255, %v2256
  %v2482 = vmax.f32 %v2271, %v2272
  %v2483 = vmax.f32 %v2287, %v2288
  %v2484 = vmax.f32 %v2303, %v2304
  %v2485 = vmax.f32 %v2319, %v2320
  %v2486 = vmax.f32 %v2335, %v2336
  %v2487 = vmax.f32 %v2351, %v2352
  %v2488 = vmax.f32 %v2367, %v2368
  %v2489 = vmax.f32 %v2383, %v2384
  %v2490 = vmax.f32 %v2399, %v2400
  %v2491 = vmax.f32 %v2415, %v2416
  %v2492 = vmax.f32 %v2431, %v2432
  %v2493 = vmax.f32 %v2065, %v2066
  %v2494 = vmax.f32 %v2081, %v2082
  %v2495 = vmax.f32 %v2097, %v2098
  %v2496 = vmax.f32 %v2113, %v2114
  %v2497 = vmax.f32 %v2129, %v2130
  %v2498 = vmax.f32 %v2145, %v2146
  %v2499 = vmax.f32 %v2161, %v2162
  %v2500 = vmax.f32 %v2177, %v2178
  %v2501 = vmax.f32 %v2193, %v2194
  %v2502 = vmax.f32 %v2209, %v2210
  %v2503 = vmax.f32 %v2225, %v2226
  %v2504 = vmax.f32 %v2241, %v2242
  %v2505 = vmax.f32 %v2257, %v2258
  %v2506 = vmax.f32 %v2273, %v2274
  %v2507 = vmax.f32 %v2289, %v2290
  %v2508 = vmax.f32 %v2305, %v2306
  %v2509 = vmax.f32 %v2321, %v2322
  %v2510 = vmax.f32 %v2337, %v2338
  %v2511 = vmax.f32 %v2353, %v2354
  %v2512 = vmax.f32 %v2369, %v2370
  %v2513 = vmax.f32 %v2385, %v2386
  %v2514 = vmax.f32 %v2401, %v2402
  %v2515 = vmax.f32 %v2417, %v2418
  %v2516 = vmax.f32 %v2433, %v2434
  %v2517 = vmax.f32 %v2067, %v2068
  %v2518 = vmax.f32 %v2083, %v2084
  %v2519 = vmax.f32 %v2099, %v2100
  %v2520 = vmax.f32 %v2115, %v2116
  %v2521 = vmax.f32 %v2131, %v2132
  %v2522 = vmax.f32 %v2147, %v2148
  %v2523 = vmax.f32 %v2163, %v2164
  %v2524 = vmax.f32 %v2179, %v2180
  %v2525 = vmax.f32 %v2195, %v2196
  %v2526 = vmax.f32 %v2211, %v2212
  %v2527 = vmax.f32 %v2227, %v2228
  %v2528 = vmax.f32 %v2243, %v2244
  %v2529 = vmax.f32 %v2259, %v2260
  %v2530 = vmax.f32 %v2275, %v2276
  %v2531 = vmax.f32 %v2291, %v2292
  %v2532 = vmax.f32 %v2307, %v2308
  %v2533 = vmax.f32 %v2323, %v2324
  %v2534 = vmax.f32 %v2339, %v2340
  %v2535 = vmax.f32 %v2355, %v2356
  %v2536 = vmax.f32 %v2371, %v2372
  %v2537 = vmax.f32 %v2387, %v2388
  %v2538 = vmax.f32 %v2403, %v2404
  %v2539 = vmax.f32 %v2419, %v2420
  %v2540 = vmax.f32 %v2435, %v2436
  %v2541 = vmax.f32 %v2069, %v2070
  %v2542 = vmax.f32 %v2085, %v2086
  %v2543 = vmax.f32 %v2101, %v2102
  %v2544 = vmax.f32 %v2117, %v2118
  %v2545 = vmax.f32 %v2133, %v2134
  %v2546 = vmax.f32 %v2149, %v2150
  %v2547 = vmax.f32 %v2165, %v2166
  %v2548 = vmax.f32 %v2181, %v2182
  %v2549 = vmax.f32 %v2197, %v2198
  %v2550 = vmax.f32 %v2213, %v2214
  %v2551 = vmax.f32 %v2229, %v2230
  %v2552 = vmax.f32 %v2245, %v2246
  %v2553 = vmax.f32 %v2261, %v2262
  %v2554 = vmax.f32 %v2277, %v2278
  %v2555 = vmax.f32 %v2293, %v2294
  %v2556 = vmax.f32 %v2309, %v2310
  %v2557 = vmax.f32 %v2325, %v2326
  %v2558 = vmax.f32 %v2341, %v2342
  %v2559 = vmax.f32 %v2357, %v2358
  %v2560 = vmax.f32 %v2373, %v2374
  %v2561 = vmax.f32 %v2389, %v2390
  %v2562 = vmax.f32 %v2405, %v2406
  %v2563 = vmax.f32 %v2421, %v2422
  %v2564 = vmax.f32 %v2437, %v2438
  %v2565 = vmax.f32 %v2071, %v2072
  %v2566 = vmax.f32 %v2087, %v2088
  %v2567 = vmax.f32 %v2103, %v2104
  %v2568 = vmax.f32 %v2119, %v2120
  %v2569 = vmax.f32 %v2135, %v2136
  %v2570 = vmax.f32 %v2151, %v2152
  %v2571 = vmax.f32 %v2167, %v2168
  %v2572 = vmax.f32 %v2183, %v2184
  %v2573 = vmax.f32 %v2199, %v2200
  %v2574 = vmax.f32 %v2215, %v2216
  %v2575 = vmax.f32 %v2231, %v2232
  %v2576 = vmax.f32 %v2247, %v2248
  %v2577 = vmax.f32 %v2263, %v2264
  %v2578 = vmax.f32 %v2279, %v2280
  %v2579 = vmax.f32 %v2295, %v2296
  %v2580 = vmax.f32 %v2311, %v2312
  %v2581 = vmax.f32 %v2327, %v2328
  %v2582 = vmax.f32 %v2343, %v2344
  %v2583 = vmax.f32 %v2359, %v2360
  %v2584 = vmax.f32 %v2375, %v2376
  %v2585 = vmax.f32 %v2391, %v2392
  %v2586 = vmax.f32 %v2407, %v2408
  %v2587 = vmax.f32 %v2423, %v2424
  %v2588 = vmax.f32 %v2439, %v2440
  %v2589 = vmax.f32 %v2073, %v2074
  %v2590 = vmax.f32 %v2089, %v2090
  %v2591 = vmax.f32 %v2105, %v2106
  %v2592 = vmax.f32 %v2121, %v2122
  %v2593 = vmax.f32 %v2137, %v2138
  %v2594 = vmax.f32 %v2153, %v2154
  %v2595 = vmax.f32 %v2169, %v2170
  %v2596 = vmax.f32 %v2185, %v2186
  %v2597 = vmax.f32 %v2201, %v2202
  %v2598 = vmax.f32 %v2217, %v2218
  %v2599 = vmax.f32 %v2233, %v2234
  %v2600 = vmax.f32 %v2249, %v2250
  %v2601 = vmax.f32 %v2265, %v2266
  %v2602 = vmax.f32 %v2281, %v2282
  %v2603 = vmax.f32 %v2297, %v2298
  %v2604 = vmax.f32 %v2313, %v2314
  %v2605 = vmax.f32 %v2329, %v2330
  %v2606 = vmax.f32 %v2345, %v2346
  %v2607 = vmax.f32 %v2361, %v2362
  %v2608 = vmax.f32 %v2377, %v2378
  %v2609 = vmax.f32 %v2393, %v2394
  %v2610 = vmax.f32 %v2409, %v2410
  %v2611 = vmax.f32 %v2425, %v2426
  %v2612 = vmax.f32 %v2441, %v2442
  %v2613 = vmax.f32 %v2075, %v2076
  %v2614 = vmax.f32 %v2091, %v2092
  %v2615 = vmax.f32 %v2107, %v2108
  %v2616 = vmax.f32 %v2123, %v2124
  %v2617 = vmax.f32 %v2139, %v2140
  %v2618 = vmax.f32 %v2155, %v2156
  %v2619 = vmax.f32 %v2171, %v2172
  %v2620 = vmax.f32 %v2187, %v2188
  %v2621 = vmax.f32 %v2203, %v2204
  %v2622 = vmax.f32 %v2219, %v2220
  %v2623 = vmax.f32 %v2235, %v2236
  %v2624 = vmax.f32 %v2251, %v2252
  %v2625 = vmax.f32 %v2267, %v2268
  %v2626 = vmax.f32 %v2283, %v2284
  %v2627 = vmax.f32 %v2299, %v2300
  %v2628 = vmax.f32 %v2315, %v2316
  %v2629 = vmax.f32 %v2331, %v2332
  %v2630 = vmax.f32 %v2347, %v2348
  %v2631 = vmax.f32 %v2363, %v2364
  %v2632 = vmax.f32 %v2379, %v2380
  %v2633 = vmax.f32 %v2395, %v2396
  %v2634 = vmax.f32 %v2411, %v2412
  %v2635 = vmax.f32 %v2427, %v2428
  %v2636 = vmax.f32 %v2443, %v2444
  %v2637 = vld [vmem:[%s3] sm:$0xff]
  %v2638 = vld [vmem:[%s3 + $0x8] sm:$0xff]
  %v2639 = vld [vmem:[%s3 + $0x10] sm:$0xff]
  %v2640 = vld [vmem:[%s3 + $0x18] sm:$0xff]
  %v2641 = vld [vmem:[%s3 + $0x20] sm:$0xff]
  %v2642 = vld [vmem:[%s3 + $0x28] sm:$0xff]
  %v2643 = vld [vmem:[%s3 + $0x30] sm:$0xff]
  %v2644 = vld [vmem:[%s3 + $0x38] sm:$0xff]
  %v2645 = vld [vmem:[%s3 + $0x40] sm:$0xff]
  %v2646 = vld [vmem:[%s3 + $0x48] sm:$0xff]
  %v2647 = vld [vmem:[%s3 + $0x50] sm:$0xff]
  %v2648 = vld [vmem:[%s3 + $0x58] sm:$0xff]
  %v2649 = vld [vmem:[%s3 + $0x60] sm:$0xff]
  %v2650 = vld [vmem:[%s3 + $0x68] sm:$0xff]
  %v2651 = vld [vmem:[%s3 + $0x70] sm:$0xff]
  %v2652 = vld [vmem:[%s3 + $0x78] sm:$0xff]
  %v2653 = vld [vmem:[%s3 + $0x80] sm:$0xff]
  %v2654 = vld [vmem:[%s3 + $0x88] sm:$0xff]
  %v2655 = vld [vmem:[%s3 + $0x90] sm:$0xff]
  %v2656 = vld [vmem:[%s3 + $0x98] sm:$0xff]
  %v2657 = vld [vmem:[%s3 + $0xa0] sm:$0xff]
  %v2658 = vld [vmem:[%s3 + $0xa8] sm:$0xff]
  %v2659 = vld [vmem:[%s3 + $0xb0] sm:$0xff]
  %v2660 = vld [vmem:[%s3 + $0xb8] sm:$0xff]
  %vm2661 = vcmask 523264
  %v2663 = vsel %vm2661, %v2638, 0
  %v2666 = vsel %vm2661, %v2640, 0
  %v2669 = vsel %vm2661, %v2642, 0
  %v2672 = vsel %vm2661, %v2644, 0
  %v2675 = vsel %vm2661, %v2646, 0
  %v2678 = vsel %vm2661, %v2648, 0
  %v2681 = vsel %vm2661, %v2650, 0
  %v2684 = vsel %vm2661, %v2652, 0
  %v2687 = vsel %vm2661, %v2654, 0
  %v2690 = vsel %vm2661, %v2656, 0
  %v2693 = vsel %vm2661, %v2658, 0
  %v2696 = vsel %vm2661, %v2660, 0
  %2698 = vmatprep.subr.mxu0 %v2484
  %2699 = vmatpush1.msra.mxu0 %v2460
  %2700 = vmatprep.subr.mxu0 %v2483
  %2701 = vmatpush1.msra.mxu0 %v2459
  %2702 = vmatprep.subr.mxu0 %v2482
  %2703 = vmatpush1.msra.mxu0 %v2458
  %2704 = vmatprep.subr.mxu0 %v2481
  %2705 = vmatpush1.msra.mxu0 %v2457
  %2706 = vmatprep.subr.mxu0 %v2480
  %2707 = vmatpush1.msra.mxu0 %v2456
  %2708 = vmatprep.subr.mxu0 %v2479
  %2709 = vmatpush1.msra.mxu0 %v2455
  %2710 = vmatprep.subr.mxu0 %v2478
  %2711 = vmatpush1.msra.mxu0 %v2454
  %2712 = vmatprep.subr.mxu0 %v2477
  %2713 = vmatpush1.msra.mxu0 %v2453
  %2714 = vmatprep.subr.mxu0 %v2476
  %2715 = vmatpush1.msra.mxu0 %v2452
  %2716 = vmatprep.subr.mxu0 %v2475
  %2717 = vmatpush1.msra.mxu0 %v2451
  %2718 = vmatprep.subr.mxu0 %v2474
  %2719 = vmatpush1.msra.mxu0 %v2450
  %2720 = vmatprep.subr.mxu0 %v2473
  %2721 = vmatpush1.msra.mxu0 %v2449
  %2722 = vmatprep.subr.mxu0 %v2472
  %2723 = vmatpush1.msra.mxu0 %v2448
  %2724 = vmatprep.subr.mxu0 %v2471
  %2725 = vmatpush1.msra.mxu0 %v2447
  %2726 = vmatprep.subr.mxu0 %v2470
  %2727 = vmatpush1.msra.mxu0 %v2446
  %2728 = vmatprep.subr.mxu0 %v2469
  %2729 = vmatpush1.msra.mxu0 %v2445
  %2730 = vmatprep.subr.mxu0 0.0
  %2731 = vmatpush2.msra.mxu0 0.0
  %2732 = vmatprep.subr.mxu0 0.0
  %2733 = vmatpush2.msra.mxu0 0.0
  %2734 = vmatprep.subr.mxu0 0.0
  %2735 = vmatpush2.msra.mxu0 0.0
  %2736 = vmatprep.subr.mxu0 0.0
  %2737 = vmatpush2.msra.mxu0 0.0
  %2738 = vmatprep.subr.mxu0 0.0
  %2739 = vmatpush2.msra.mxu0 0.0
  %2740 = vmatprep.subr.mxu0 0.0
  %2741 = vmatpush2.msra.mxu0 0.0
  %2742 = vmatprep.subr.mxu0 0.0
  %2743 = vmatpush2.msra.mxu0 0.0
  %2744 = vmatprep.subr.mxu0 0.0
  %2745 = vmatpush2.msra.mxu0 0.0
  %2746 = vmatprep.subr.mxu0 %v2492
  %2747 = vmatpush2.msra.mxu0 %v2468
  %2748 = vmatprep.subr.mxu0 %v2491
  %2749 = vmatpush2.msra.mxu0 %v2467
  %2750 = vmatprep.subr.mxu0 %v2490
  %2751 = vmatpush2.msra.mxu0 %v2466
  %2752 = vmatprep.subr.mxu0 %v2489
  %2753 = vmatpush2.msra.mxu0 %v2465
  %2754 = vmatprep.subr.mxu0 %v2488
  %2755 = vmatpush2.msra.mxu0 %v2464
  %2756 = vmatprep.subr.mxu0 %v2487
  %2757 = vmatpush2.msra.mxu0 %v2463
  %2758 = vmatprep.subr.mxu0 %v2486
  %2759 = vmatpush2.msra.mxu0 %v2462
  %2760 = vmatprep.subr.mxu0 %v2485
  %2761 = vmatpush2.msra.mxu0 %v2461
  %2762 = vmatprep.mubr.f32.mxu0 %v2663
  %2763 = vmatmul.mubr.f32.gmra.mxu0 %v2637
  %v2764 = vpop.f32.mrf.mxu0
  %v2765 = vadd.f32 0.0, %v2764
  %v2766 = vpop.f32.mrf.mxu0
  %v2767 = vadd.f32 0.0, %v2766
  %2768 = vmatprep.mubr.f32.mxu0 %v2666
  %2769 = vmatmul.mubr.f32.gmra.mxu0 %v2639
  %v2770 = vpop.f32.mrf.mxu0
  %v2771 = vadd.f32 0.0, %v2770
  %v2772 = vpop.f32.mrf.mxu0
  %v2773 = vadd.f32 0.0, %v2772
  %2774 = vmatprep.mubr.f32.mxu0 %v2669
  %2775 = vmatmul.mubr.f32.gmra.mxu0 %v2641
  %v2776 = vpop.f32.mrf.mxu0
  %v2777 = vadd.f32 0.0, %v2776
  %v2778 = vpop.f32.mrf.mxu0
  %v2779 = vadd.f32 0.0, %v2778
  %2780 = vmatprep.mubr.f32.mxu0 %v2672
  %2781 = vmatmul.mubr.f32.gmra.mxu0 %v2643
  %v2782 = vpop.f32.mrf.mxu0
  %v2783 = vadd.f32 0.0, %v2782
  %v2784 = vpop.f32.mrf.mxu0
  %v2785 = vadd.f32 0.0, %v2784
  %2786 = vmatprep.mubr.f32.mxu0 %v2675
  %2787 = vmatmul.mubr.f32.gmra.mxu0 %v2645
  %v2788 = vpop.f32.mrf.mxu0
  %v2789 = vadd.f32 0.0, %v2788
  %v2790 = vpop.f32.mrf.mxu0
  %v2791 = vadd.f32 0.0, %v2790
  %2792 = vmatprep.mubr.f32.mxu0 %v2678
  %2793 = vmatmul.mubr.f32.gmra.mxu0 %v2647
  %v2794 = vpop.f32.mrf.mxu0
  %v2795 = vadd.f32 0.0, %v2794
  %v2796 = vpop.f32.mrf.mxu0
  %v2797 = vadd.f32 0.0, %v2796
  %2798 = vmatprep.mubr.f32.mxu0 %v2681
  %2799 = vmatmul.mubr.f32.gmra.mxu0 %v2649
  %v2800 = vpop.f32.mrf.mxu0
  %v2801 = vadd.f32 0.0, %v2800
  %v2802 = vpop.f32.mrf.mxu0
  %v2803 = vadd.f32 0.0, %v2802
  %2804 = vmatprep.mubr.f32.mxu0 %v2684
  %2805 = vmatmul.mubr.f32.gmra.mxu0 %v2651
  %v2806 = vpop.f32.mrf.mxu0
  %v2807 = vadd.f32 0.0, %v2806
  %v2808 = vpop.f32.mrf.mxu0
  %v2809 = vadd.f32 0.0, %v2808
  %2810 = vmatprep.mubr.f32.mxu0 %v2687
  %2811 = vmatmul.mubr.f32.gmra.mxu0 %v2653
  %v2812 = vpop.f32.mrf.mxu0
  %v2813 = vadd.f32 0.0, %v2812
  %v2814 = vpop.f32.mrf.mxu0
  %v2815 = vadd.f32 0.0, %v2814
  %2816 = vmatprep.mubr.f32.mxu0 %v2690
  %2817 = vmatmul.mubr.f32.gmra.mxu0 %v2655
  %v2818 = vpop.f32.mrf.mxu0
  %v2819 = vadd.f32 0.0, %v2818
  %v2820 = vpop.f32.mrf.mxu0
  %v2821 = vadd.f32 0.0, %v2820
  %2822 = vmatprep.mubr.f32.mxu0 %v2693
  %2823 = vmatmul.mubr.f32.gmra.mxu0 %v2657
  %v2824 = vpop.f32.mrf.mxu0
  %v2825 = vadd.f32 0.0, %v2824
  %v2826 = vpop.f32.mrf.mxu0
  %v2827 = vadd.f32 0.0, %v2826
  %2828 = vmatprep.mubr.f32.mxu0 %v2696
  %2829 = vmatmul.mubr.f32.gmra.mxu0 %v2659
  %v2830 = vpop.f32.mrf.mxu0
  %v2831 = vadd.f32 0.0, %v2830
  %v2832 = vpop.f32.mrf.mxu0
  %v2833 = vadd.f32 0.0, %v2832
  %2834 = vdwg.mxu0
  %2835 = vmatprep.subr.mxu0 %v2532
  %2836 = vmatpush1.msra.mxu0 %v2508
  %2837 = vmatprep.subr.mxu0 %v2531
  %2838 = vmatpush1.msra.mxu0 %v2507
  %2839 = vmatprep.subr.mxu0 %v2530
  %2840 = vmatpush1.msra.mxu0 %v2506
  %2841 = vmatprep.subr.mxu0 %v2529
  %2842 = vmatpush1.msra.mxu0 %v2505
  %2843 = vmatprep.subr.mxu0 %v2528
  %2844 = vmatpush1.msra.mxu0 %v2504
  %2845 = vmatprep.subr.mxu0 %v2527
  %2846 = vmatpush1.msra.mxu0 %v2503
  %2847 = vmatprep.subr.mxu0 %v2526
  %2848 = vmatpush1.msra.mxu0 %v2502
  %2849 = vmatprep.subr.mxu0 %v2525
  %2850 = vmatpush1.msra.mxu0 %v2501
  %2851 = vmatprep.subr.mxu0 %v2524
  %2852 = vmatpush1.msra.mxu0 %v2500
  %2853 = vmatprep.subr.mxu0 %v2523
  %2854 = vmatpush1.msra.mxu0 %v2499
  %2855 = vmatprep.subr.mxu0 %v2522
  %2856 = vmatpush1.msra.mxu0 %v2498
  %2857 = vmatprep.subr.mxu0 %v2521
  %2858 = vmatpush1.msra.mxu0 %v2497
  %2859 = vmatprep.subr.mxu0 %v2520
  %2860 = vmatpush1.msra.mxu0 %v2496
  %2861 = vmatprep.subr.mxu0 %v2519
  %2862 = vmatpush1.msra.mxu0 %v2495
  %2863 = vmatprep.subr.mxu0 %v2518
  %2864 = vmatpush1.msra.mxu0 %v2494
  %2865 = vmatprep.subr.mxu0 %v2517
  %2866 = vmatpush1.msra.mxu0 %v2493
  %2867 = vmatprep.subr.mxu0 0.0
  %2868 = vmatpush2.msra.mxu0 0.0
  %2869 = vmatprep.subr.mxu0 0.0
  %2870 = vmatpush2.msra.mxu0 0.0
  %2871 = vmatprep.subr.mxu0 0.0
  %2872 = vmatpush2.msra.mxu0 0.0
  %2873 = vmatprep.subr.mxu0 0.0
  %2874 = vmatpush2.msra.mxu0 0.0
  %2875 = vmatprep.subr.mxu0 0.0
  %2876 = vmatpush2.msra.mxu0 0.0
  %2877 = vmatprep.subr.mxu0 0.0
  %2878 = vmatpush2.msra.mxu0 0.0
  %2879 = vmatprep.subr.mxu0 0.0
  %2880 = vmatpush2.msra.mxu0 0.0
  %2881 = vmatprep.subr.mxu0 0.0
  %2882 = vmatpush2.msra.mxu0 0.0
  %2883 = vmatprep.subr.mxu0 %v2540
  %2884 = vmatpush2.msra.mxu0 %v2516
  %2885 = vmatprep.subr.mxu0 %v2539
  %2886 = vmatpush2.msra.mxu0 %v2515
  %2887 = vmatprep.subr.mxu0 %v2538
  %2888 = vmatpush2.msra.mxu0 %v2514
  %2889 = vmatprep.subr.mxu0 %v2537
  %2890 = vmatpush2.msra.mxu0 %v2513
  %2891 = vmatprep.subr.mxu0 %v2536
  %2892 = vmatpush2.msra.mxu0 %v2512
  %2893 = vmatprep.subr.mxu0 %v2535
  %2894 = vmatpush2.msra.mxu0 %v2511
  %2895 = vmatprep.subr.mxu0 %v2534
  %2896 = vmatpush2.msra.mxu0 %v2510
  %2897 = vmatprep.subr.mxu0 %v2533
  %2898 = vmatpush2.msra.mxu0 %v2509
  %2899 = vmatprep.mubr.f32.mxu0 %v2663
  %2900 = vmatmul.mubr.f32.gmra.mxu0 %v2637
  %v2901 = vpop.f32.mrf.mxu0
  %v2902 = vadd.f32 0.0, %v2901
  %v2903 = vpop.f32.mrf.mxu0
  %v2904 = vadd.f32 0.0, %v2903
  %2905 = vmatprep.mubr.f32.mxu0 %v2666
  %2906 = vmatmul.mubr.f32.gmra.mxu0 %v2639
  %v2907 = vpop.f32.mrf.mxu0
  %v2908 = vadd.f32 0.0, %v2907
  %v2909 = vpop.f32.mrf.mxu0
  %v2910 = vadd.f32 0.0, %v2909
  %2911 = vmatprep.mubr.f32.mxu0 %v2669
  %2912 = vmatmul.mubr.f32.gmra.mxu0 %v2641
  %v2913 = vpop.f32.mrf.mxu0
  %v2914 = vadd.f32 0.0, %v2913
  %v2915 = vpop.f32.mrf.mxu0
  %v2916 = vadd.f32 0.0, %v2915
  %2917 = vmatprep.mubr.f32.mxu0 %v2672
  %2918 = vmatmul.mubr.f32.gmra.mxu0 %v2643
  %v2919 = vpop.f32.mrf.mxu0
  %v2920 = vadd.f32 0.0, %v2919
  %v2921 = vpop.f32.mrf.mxu0
  %v2922 = vadd.f32 0.0, %v2921
  %2923 = vmatprep.mubr.f32.mxu0 %v2675
  %2924 = vmatmul.mubr.f32.gmra.mxu0 %v2645
  %v2925 = vpop.f32.mrf.mxu0
  %v2926 = vadd.f32 0.0, %v2925
  %v2927 = vpop.f32.mrf.mxu0
  %v2928 = vadd.f32 0.0, %v2927
  %2929 = vmatprep.mubr.f32.mxu0 %v2678
  %2930 = vmatmul.mubr.f32.gmra.mxu0 %v2647
  %v2931 = vpop.f32.mrf.mxu0
  %v2932 = vadd.f32 0.0, %v2931
  %v2933 = vpop.f32.mrf.mxu0
  %v2934 = vadd.f32 0.0, %v2933
  %2935 = vmatprep.mubr.f32.mxu0 %v2681
  %2936 = vmatmul.mubr.f32.gmra.mxu0 %v2649
  %v2937 = vpop.f32.mrf.mxu0
  %v2938 = vadd.f32 0.0, %v2937
  %v2939 = vpop.f32.mrf.mxu0
  %v2940 = vadd.f32 0.0, %v2939
  %2941 = vmatprep.mubr.f32.mxu0 %v2684
  %2942 = vmatmul.mubr.f32.gmra.mxu0 %v2651
  %v2943 = vpop.f32.mrf.mxu0
  %v2944 = vadd.f32 0.0, %v2943
  %v2945 = vpop.f32.mrf.mxu0
  %v2946 = vadd.f32 0.0, %v2945
  %2947 = vmatprep.mubr.f32.mxu0 %v2687
  %2948 = vmatmul.mubr.f32.gmra.mxu0 %v2653
  %v2949 = vpop.f32.mrf.mxu0
  %v2950 = vadd.f32 0.0, %v2949
  %v2951 = vpop.f32.mrf.mxu0
  %v2952 = vadd.f32 0.0, %v2951
  %2953 = vmatprep.mubr.f32.mxu0 %v2690
  %2954 = vmatmul.mubr.f32.gmra.mxu0 %v2655
  %v2955 = vpop.f32.mrf.mxu0
  %v2956 = vadd.f32 0.0, %v2955
  %v2957 = vpop.f32.mrf.mxu0
  %v2958 = vadd.f32 0.0, %v2957
  %2959 = vmatprep.mubr.f32.mxu0 %v2693
  %2960 = vmatmul.mubr.f32.gmra.mxu0 %v2657
  %v2961 = vpop.f32.mrf.mxu0
  %v2962 = vadd.f32 0.0, %v2961
  %v2963 = vpop.f32.mrf.mxu0
  %v2964 = vadd.f32 0.0, %v2963
  %2965 = vmatprep.mubr.f32.mxu0 %v2696
  %2966 = vmatmul.mubr.f32.gmra.mxu0 %v2659
  %v2967 = vpop.f32.mrf.mxu0
  %v2968 = vadd.f32 0.0, %v2967
  %v2969 = vpop.f32.mrf.mxu0
  %v2970 = vadd.f32 0.0, %v2969
  %2971 = vdwg.mxu0
  %2972 = vmatprep.subr.mxu0 %v2580
  %2973 = vmatpush1.msra.mxu0 %v2556
  %2974 = vmatprep.subr.mxu0 %v2579
  %2975 = vmatpush1.msra.mxu0 %v2555
  %2976 = vmatprep.subr.mxu0 %v2578
  %2977 = vmatpush1.msra.mxu0 %v2554
  %2978 = vmatprep.subr.mxu0 %v2577
  %2979 = vmatpush1.msra.mxu0 %v2553
  %2980 = vmatprep.subr.mxu0 %v2576
  %2981 = vmatpush1.msra.mxu0 %v2552
  %2982 = vmatprep.subr.mxu0 %v2575
  %2983 = vmatpush1.msra.mxu0 %v2551
  %2984 = vmatprep.subr.mxu0 %v2574
  %2985 = vmatpush1.msra.mxu0 %v2550
  %2986 = vmatprep.subr.mxu0 %v2573
  %2987 = vmatpush1.msra.mxu0 %v2549
  %2988 = vmatprep.subr.mxu0 %v2572
  %2989 = vmatpush1.msra.mxu0 %v2548
  %2990 = vmatprep.subr.mxu0 %v2571
  %2991 = vmatpush1.msra.mxu0 %v2547
  %2992 = vmatprep.subr.mxu0 %v2570
  %2993 = vmatpush1.msra.mxu0 %v2546
  %2994 = vmatprep.subr.mxu0 %v2569
  %2995 = vmatpush1.msra.mxu0 %v2545
  %2996 = vmatprep.subr.mxu0 %v2568
  %2997 = vmatpush1.msra.mxu0 %v2544
  %2998 = vmatprep.subr.mxu0 %v2567
  %2999 = vmatpush1.msra.mxu0 %v2543
  %3000 = vmatprep.subr.mxu0 %v2566
  %3001 = vmatpush1.msra.mxu0 %v2542
  %3002 = vmatprep.subr.mxu0 %v2565
  %3003 = vmatpush1.msra.mxu0 %v2541
  %3004 = vmatprep.subr.mxu0 0.0
  %3005 = vmatpush2.msra.mxu0 0.0
  %3006 = vmatprep.subr.mxu0 0.0
  %3007 = vmatpush2.msra.mxu0 0.0
  %3008 = vmatprep.subr.mxu0 0.0
  %3009 = vmatpush2.msra.mxu0 0.0
  %3010 = vmatprep.subr.mxu0 0.0
  %3011 = vmatpush2.msra.mxu0 0.0
  %3012 = vmatprep.subr.mxu0 0.0
  %3013 = vmatpush2.msra.mxu0 0.0
  %3014 = vmatprep.subr.mxu0 0.0
  %3015 = vmatpush2.msra.mxu0 0.0
  %3016 = vmatprep.subr.mxu0 0.0
  %3017 = vmatpush2.msra.mxu0 0.0
  %3018 = vmatprep.subr.mxu0 0.0
  %3019 = vmatpush2.msra.mxu0 0.0
  %3020 = vmatprep.subr.mxu0 %v2588
  %3021 = vmatpush2.msra.mxu0 %v2564
  %3022 = vmatprep.subr.mxu0 %v2587
  %3023 = vmatpush2.msra.mxu0 %v2563
  %3024 = vmatprep.subr.mxu0 %v2586
  %3025 = vmatpush2.msra.mxu0 %v2562
  %3026 = vmatprep.subr.mxu0 %v2585
  %3027 = vmatpush2.msra.mxu0 %v2561
  %3028 = vmatprep.subr.mxu0 %v2584
  %3029 = vmatpush2.msra.mxu0 %v2560
  %3030 = vmatprep.subr.mxu0 %v2583
  %3031 = vmatpush2.msra.mxu0 %v2559
  %3032 = vmatprep.subr.mxu0 %v2582
  %3033 = vmatpush2.msra.mxu0 %v2558
  %3034 = vmatprep.subr.mxu0 %v2581
  %3035 = vmatpush2.msra.mxu0 %v2557
  %3036 = vmatprep.mubr.f32.mxu0 %v2663
  %3037 = vmatmul.mubr.f32.gmra.mxu0 %v2637
  %v3038 = vpop.f32.mrf.mxu0
  %v3039 = vadd.f32 0.0, %v3038
  %v3040 = vpop.f32.mrf.mxu0
  %v3041 = vadd.f32 0.0, %v3040
  %3042 = vmatprep.mubr.f32.mxu0 %v2666
  %3043 = vmatmul.mubr.f32.gmra.mxu0 %v2639
  %v3044 = vpop.f32.mrf.mxu0
  %v3045 = vadd.f32 0.0, %v3044
  %v3046 = vpop.f32.mrf.mxu0
  %v3047 = vadd.f32 0.0, %v3046
  %3048 = vmatprep.mubr.f32.mxu0 %v2669
  %3049 = vmatmul.mubr.f32.gmra.mxu0 %v2641
  %v3050 = vpop.f32.mrf.mxu0
  %v3051 = vadd.f32 0.0, %v3050
  %v3052 = vpop.f32.mrf.mxu0
  %v3053 = vadd.f32 0.0, %v3052
  %3054 = vmatprep.mubr.f32.mxu0 %v2672
  %3055 = vmatmul.mubr.f32.gmra.mxu0 %v2643
  %v3056 = vpop.f32.mrf.mxu0
  %v3057 = vadd.f32 0.0, %v3056
  %v3058 = vpop.f32.mrf.mxu0
  %v3059 = vadd.f32 0.0, %v3058
  %3060 = vmatprep.mubr.f32.mxu0 %v2675
  %3061 = vmatmul.mubr.f32.gmra.mxu0 %v2645
  %v3062 = vpop.f32.mrf.mxu0
  %v3063 = vadd.f32 0.0, %v3062
  %v3064 = vpop.f32.mrf.mxu0
  %v3065 = vadd.f32 0.0, %v3064
  %3066 = vmatprep.mubr.f32.mxu0 %v2678
  %3067 = vmatmul.mubr.f32.gmra.mxu0 %v2647
  %v3068 = vpop.f32.mrf.mxu0
  %v3069 = vadd.f32 0.0, %v3068
  %v3070 = vpop.f32.mrf.mxu0
  %v3071 = vadd.f32 0.0, %v3070
  %3072 = vmatprep.mubr.f32.mxu0 %v2681
  %3073 = vmatmul.mubr.f32.gmra.mxu0 %v2649
  %v3074 = vpop.f32.mrf.mxu0
  %v3075 = vadd.f32 0.0, %v3074
  %v3076 = vpop.f32.mrf.mxu0
  %v3077 = vadd.f32 0.0, %v3076
  %3078 = vmatprep.mubr.f32.mxu0 %v2684
  %3079 = vmatmul.mubr.f32.gmra.mxu0 %v2651
  %v3080 = vpop.f32.mrf.mxu0
  %v3081 = vadd.f32 0.0, %v3080
  %v3082 = vpop.f32.mrf.mxu0
  %v3083 = vadd.f32 0.0, %v3082
  %3084 = vmatprep.mubr.f32.mxu0 %v2687
  %3085 = vmatmul.mubr.f32.gmra.mxu0 %v2653
  %v3086 = vpop.f32.mrf.mxu0
  %v3087 = vadd.f32 0.0, %v3086
  %v3088 = vpop.f32.mrf.mxu0
  %v3089 = vadd.f32 0.0, %v3088
  %3090 = vmatprep.mubr.f32.mxu0 %v2690
  %3091 = vmatmul.mubr.f32.gmra.mxu0 %v2655
  %v3092 = vpop.f32.mrf.mxu0
  %v3093 = vadd.f32 0.0, %v3092
  %v3094 = vpop.f32.mrf.mxu0
  %v3095 = vadd.f32 0.0, %v3094
  %3096 = vmatprep.mubr.f32.mxu0 %v2693
  %3097 = vmatmul.mubr.f32.gmra.mxu0 %v2657
  %v3098 = vpop.f32.mrf.mxu0
  %v3099 = vadd.f32 0.0, %v3098
  %v3100 = vpop.f32.mrf.mxu0
  %v3101 = vadd.f32 0.0, %v3100
  %3102 = vmatprep.mubr.f32.mxu0 %v2696
  %3103 = vmatmul.mubr.f32.gmra.mxu0 %v2659
  %v3104 = vpop.f32.mrf.mxu0
  %v3105 = vadd.f32 0.0, %v3104
  %v3106 = vpop.f32.mrf.mxu0
  %v3107 = vadd.f32 0.0, %v3106
  %3108 = vdwg.mxu0
  %3109 = vmatprep.subr.mxu0 %v2628
  %3110 = vmatpush1.msra.mxu0 %v2604
  %3111 = vmatprep.subr.mxu0 %v2627
  %3112 = vmatpush1.msra.mxu0 %v2603
  %3113 = vmatprep.subr.mxu0 %v2626
  %3114 = vmatpush1.msra.mxu0 %v2602
  %3115 = vmatprep.subr.mxu0 %v2625
  %3116 = vmatpush1.msra.mxu0 %v2601
  %3117 = vmatprep.subr.mxu0 %v2624
  %3118 = vmatpush1.msra.mxu0 %v2600
  %3119 = vmatprep.subr.mxu0 %v2623
  %3120 = vmatpush1.msra.mxu0 %v2599
  %3121 = vmatprep.subr.mxu0 %v2622
  %3122 = vmatpush1.msra.mxu0 %v2598
  %3123 = vmatprep.subr.mxu0 %v2621
  %3124 = vmatpush1.msra.mxu0 %v2597
  %3125 = vmatprep.subr.mxu0 %v2620
  %3126 = vmatpush1.msra.mxu0 %v2596
  %3127 = vmatprep.subr.mxu0 %v2619
  %3128 = vmatpush1.msra.mxu0 %v2595
  %3129 = vmatprep.subr.mxu0 %v2618
  %3130 = vmatpush1.msra.mxu0 %v2594
  %3131 = vmatprep.subr.mxu0 %v2617
  %3132 = vmatpush1.msra.mxu0 %v2593
  %3133 = vmatprep.subr.mxu0 %v2616
  %3134 = vmatpush1.msra.mxu0 %v2592
  %3135 = vmatprep.subr.mxu0 %v2615
  %3136 = vmatpush1.msra.mxu0 %v2591
  %3137 = vmatprep.subr.mxu0 %v2614
  %3138 = vmatpush1.msra.mxu0 %v2590
  %3139 = vmatprep.subr.mxu0 %v2613
  %3140 = vmatpush1.msra.mxu0 %v2589
  %3141 = vmatprep.subr.mxu0 0.0
  %3142 = vmatpush2.msra.mxu0 0.0
  %3143 = vmatprep.subr.mxu0 0.0
  %3144 = vmatpush2.msra.mxu0 0.0
  %3145 = vmatprep.subr.mxu0 0.0
  %3146 = vmatpush2.msra.mxu0 0.0
  %3147 = vmatprep.subr.mxu0 0.0
  %3148 = vmatpush2.msra.mxu0 0.0
  %3149 = vmatprep.subr.mxu0 0.0
  %3150 = vmatpush2.msra.mxu0 0.0
  %3151 = vmatprep.subr.mxu0 0.0
  %3152 = vmatpush2.msra.mxu0 0.0
  %3153 = vmatprep.subr.mxu0 0.0
  %3154 = vmatpush2.msra.mxu0 0.0
  %3155 = vmatprep.subr.mxu0 0.0
  %3156 = vmatpush2.msra.mxu0 0.0
  %3157 = vmatprep.subr.mxu0 %v2636
  %3158 = vmatpush2.msra.mxu0 %v2612
  %3159 = vmatprep.subr.mxu0 %v2635
  %3160 = vmatpush2.msra.mxu0 %v2611
  %3161 = vmatprep.subr.mxu0 %v2634
  %3162 = vmatpush2.msra.mxu0 %v2610
  %3163 = vmatprep.subr.mxu0 %v2633
  %3164 = vmatpush2.msra.mxu0 %v2609
  %3165 = vmatprep.subr.mxu0 %v2632
  %3166 = vmatpush2.msra.mxu0 %v2608
  %3167 = vmatprep.subr.mxu0 %v2631
  %3168 = vmatpush2.msra.mxu0 %v2607
  %3169 = vmatprep.subr.mxu0 %v2630
  %3170 = vmatpush2.msra.mxu0 %v2606
  %3171 = vmatprep.subr.mxu0 %v2629
  %3172 = vmatpush2.msra.mxu0 %v2605
  %3173 = vmatprep.mubr.f32.mxu0 %v2663
  %3174 = vmatmul.mubr.f32.gmra.mxu0 %v2637
  %v3175 = vpop.f32.mrf.mxu0
  %v3176 = vadd.f32 0.0, %v3175
  %v3177 = vpop.f32.mrf.mxu0
  %v3178 = vadd.f32 0.0, %v3177
  %3179 = vmatprep.mubr.f32.mxu0 %v2666
  %3180 = vmatmul.mubr.f32.gmra.mxu0 %v2639
  %v3181 = vpop.f32.mrf.mxu0
  %v3182 = vadd.f32 0.0, %v3181
  %v3183 = vpop.f32.mrf.mxu0
  %v3184 = vadd.f32 0.0, %v3183
  %3185 = vmatprep.mubr.f32.mxu0 %v2669
  %3186 = vmatmul.mubr.f32.gmra.mxu0 %v2641
  %v3187 = vpop.f32.mrf.mxu0
  %v3188 = vadd.f32 0.0, %v3187
  %v3189 = vpop.f32.mrf.mxu0
  %v3190 = vadd.f32 0.0, %v3189
  %3191 = vmatprep.mubr.f32.mxu0 %v2672
  %3192 = vmatmul.mubr.f32.gmra.mxu0 %v2643
  %v3193 = vpop.f32.mrf.mxu0
  %v3194 = vadd.f32 0.0, %v3193
  %v3195 = vpop.f32.mrf.mxu0
  %v3196 = vadd.f32 0.0, %v3195
  %3197 = vmatprep.mubr.f32.mxu0 %v2675
  %3198 = vmatmul.mubr.f32.gmra.mxu0 %v2645
  %v3199 = vpop.f32.mrf.mxu0
  %v3200 = vadd.f32 0.0, %v3199
  %v3201 = vpop.f32.mrf.mxu0
  %v3202 = vadd.f32 0.0, %v3201
  %3203 = vmatprep.mubr.f32.mxu0 %v2678
  %3204 = vmatmul.mubr.f32.gmra.mxu0 %v2647
  %v3205 = vpop.f32.mrf.mxu0
  %v3206 = vadd.f32 0.0, %v3205
  %v3207 = vpop.f32.mrf.mxu0
  %v3208 = vadd.f32 0.0, %v3207
  %3209 = vmatprep.mubr.f32.mxu0 %v2681
  %3210 = vmatmul.mubr.f32.gmra.mxu0 %v2649
  %v3211 = vpop.f32.mrf.mxu0
  %v3212 = vadd.f32 0.0, %v3211
  %v3213 = vpop.f32.mrf.mxu0
  %v3214 = vadd.f32 0.0, %v3213
  %3215 = vmatprep.mubr.f32.mxu0 %v2684
  %3216 = vmatmul.mubr.f32.gmra.mxu0 %v2651
  %v3217 = vpop.f32.mrf.mxu0
  %v3218 = vadd.f32 0.0, %v3217
  %v3219 = vpop.f32.mrf.mxu0
  %v3220 = vadd.f32 0.0, %v3219
  %3221 = vmatprep.mubr.f32.mxu0 %v2687
  %3222 = vmatmul.mubr.f32.gmra.mxu0 %v2653
  %v3223 = vpop.f32.mrf.mxu0
  %v3224 = vadd.f32 0.0, %v3223
  %v3225 = vpop.f32.mrf.mxu0
  %v3226 = vadd.f32 0.0, %v3225
  %3227 = vmatprep.mubr.f32.mxu0 %v2690
  %3228 = vmatmul.mubr.f32.gmra.mxu0 %v2655
  %v3229 = vpop.f32.mrf.mxu0
  %v3230 = vadd.f32 0.0, %v3229
  %v3231 = vpop.f32.mrf.mxu0
  %v3232 = vadd.f32 0.0, %v3231
  %3233 = vmatprep.mubr.f32.mxu0 %v2693
  %3234 = vmatmul.mubr.f32.gmra.mxu0 %v2657
  %v3235 = vpop.f32.mrf.mxu0
  %v3236 = vadd.f32 0.0, %v3235
  %v3237 = vpop.f32.mrf.mxu0
  %v3238 = vadd.f32 0.0, %v3237
  %3239 = vmatprep.mubr.f32.mxu0 %v2696
  %3240 = vmatmul.mubr.f32.gmra.mxu0 %v2659
  %v3241 = vpop.f32.mrf.mxu0
  %v3242 = vadd.f32 0.0, %v3241
  %v3243 = vpop.f32.mrf.mxu0
  %v3244 = vadd.f32 0.0, %v3243
  %3245 = vdwg.mxu0
  %s3246 = scalar_lea.vmem %s3, 192
  %v3247 = vld [vmem:[%s3246] sm:$0xff]
  %v3248 = vld [vmem:[%s3246 + $0x8] sm:$0xff]
  %v3249 = vld [vmem:[%s3246 + $0x10] sm:$0xff]
  %v3250 = vld [vmem:[%s3246 + $0x18] sm:$0xff]
  %v3251 = vld [vmem:[%s3246 + $0x20] sm:$0xff]
  %v3252 = vld [vmem:[%s3246 + $0x28] sm:$0xff]
  %v3253 = vld [vmem:[%s3246 + $0x30] sm:$0xff]
  %v3254 = vld [vmem:[%s3246 + $0x38] sm:$0xff]
  %v3255 = vld [vmem:[%s3246 + $0x40] sm:$0xff]
  %v3256 = vld [vmem:[%s3246 + $0x48] sm:$0xff]
  %v3257 = vld [vmem:[%s3246 + $0x50] sm:$0xff]
  %v3258 = vld [vmem:[%s3246 + $0x58] sm:$0xff]
  %v3259 = vld [vmem:[%s3246 + $0x60] sm:$0xff]
  %v3260 = vld [vmem:[%s3246 + $0x68] sm:$0xff]
  %v3261 = vld [vmem:[%s3246 + $0x70] sm:$0xff]
  %v3262 = vld [vmem:[%s3246 + $0x78] sm:$0xff]
  %v3263 = vld [vmem:[%s3246 + $0x80] sm:$0xff]
  %v3264 = vld [vmem:[%s3246 + $0x88] sm:$0xff]
  %v3265 = vld [vmem:[%s3246 + $0x90] sm:$0xff]
  %v3266 = vld [vmem:[%s3246 + $0x98] sm:$0xff]
  %v3267 = vld [vmem:[%s3246 + $0xa0] sm:$0xff]
  %v3268 = vld [vmem:[%s3246 + $0xa8] sm:$0xff]
  %v3269 = vld [vmem:[%s3246 + $0xb0] sm:$0xff]
  %v3270 = vld [vmem:[%s3246 + $0xb8] sm:$0xff]
  %v3272 = vsel %vm2661, %v3248, 0
  %v3275 = vsel %vm2661, %v3250, 0
  %v3278 = vsel %vm2661, %v3252, 0
  %v3281 = vsel %vm2661, %v3254, 0
  %v3284 = vsel %vm2661, %v3256, 0
  %v3287 = vsel %vm2661, %v3258, 0
  %v3290 = vsel %vm2661, %v3260, 0
  %v3293 = vsel %vm2661, %v3262, 0
  %v3296 = vsel %vm2661, %v3264, 0
  %v3299 = vsel %vm2661, %v3266, 0
  %v3302 = vsel %vm2661, %v3268, 0
  %v3305 = vsel %vm2661, %v3270, 0
  %3307 = vmatprep.subr.mxu0 %v2484
  %3308 = vmatpush1.msra.mxu0 %v2460
  %3309 = vmatprep.subr.mxu0 %v2483
  %3310 = vmatpush1.msra.mxu0 %v2459
  %3311 = vmatprep.subr.mxu0 %v2482
  %3312 = vmatpush1.msra.mxu0 %v2458
  %3313 = vmatprep.subr.mxu0 %v2481
  %3314 = vmatpush1.msra.mxu0 %v2457
  %3315 = vmatprep.subr.mxu0 %v2480
  %3316 = vmatpush1.msra.mxu0 %v2456
  %3317 = vmatprep.subr.mxu0 %v2479
  %3318 = vmatpush1.msra.mxu0 %v2455
  %3319 = vmatprep.subr.mxu0 %v2478
  %3320 = vmatpush1.msra.mxu0 %v2454
  %3321 = vmatprep.subr.mxu0 %v2477
  %3322 = vmatpush1.msra.mxu0 %v2453
  %3323 = vmatprep.subr.mxu0 %v2476
  %3324 = vmatpush1.msra.mxu0 %v2452
  %3325 = vmatprep.subr.mxu0 %v2475
  %3326 = vmatpush1.msra.mxu0 %v2451
  %3327 = vmatprep.subr.mxu0 %v2474
  %3328 = vmatpush1.msra.mxu0 %v2450
  %3329 = vmatprep.subr.mxu0 %v2473
  %3330 = vmatpush1.msra.mxu0 %v2449
  %3331 = vmatprep.subr.mxu0 %v2472
  %3332 = vmatpush1.msra.mxu0 %v2448
  %3333 = vmatprep.subr.mxu0 %v2471
  %3334 = vmatpush1.msra.mxu0 %v2447
  %3335 = vmatprep.subr.mxu0 %v2470
  %3336 = vmatpush1.msra.mxu0 %v2446
  %3337 = vmatprep.subr.mxu0 %v2469
  %3338 = vmatpush1.msra.mxu0 %v2445
  %3339 = vmatprep.subr.mxu0 0.0
  %3340 = vmatpush2.msra.mxu0 0.0
  %3341 = vmatprep.subr.mxu0 0.0
  %3342 = vmatpush2.msra.mxu0 0.0
  %3343 = vmatprep.subr.mxu0 0.0
  %3344 = vmatpush2.msra.mxu0 0.0
  %3345 = vmatprep.subr.mxu0 0.0
  %3346 = vmatpush2.msra.mxu0 0.0
  %3347 = vmatprep.subr.mxu0 0.0
  %3348 = vmatpush2.msra.mxu0 0.0
  %3349 = vmatprep.subr.mxu0 0.0
  %3350 = vmatpush2.msra.mxu0 0.0
  %3351 = vmatprep.subr.mxu0 0.0
  %3352 = vmatpush2.msra.mxu0 0.0
  %3353 = vmatprep.subr.mxu0 0.0
  %3354 = vmatpush2.msra.mxu0 0.0
  %3355 = vmatprep.subr.mxu0 %v2492
  %3356 = vmatpush2.msra.mxu0 %v2468
  %3357 = vmatprep.subr.mxu0 %v2491
  %3358 = vmatpush2.msra.mxu0 %v2467
  %3359 = vmatprep.subr.mxu0 %v2490
  %3360 = vmatpush2.msra.mxu0 %v2466
  %3361 = vmatprep.subr.mxu0 %v2489
  %3362 = vmatpush2.msra.mxu0 %v2465
  %3363 = vmatprep.subr.mxu0 %v2488
  %3364 = vmatpush2.msra.mxu0 %v2464
  %3365 = vmatprep.subr.mxu0 %v2487
  %3366 = vmatpush2.msra.mxu0 %v2463
  %3367 = vmatprep.subr.mxu0 %v2486
  %3368 = vmatpush2.msra.mxu0 %v2462
  %3369 = vmatprep.subr.mxu0 %v2485
  %3370 = vmatpush2.msra.mxu0 %v2461
  %3371 = vmatprep.mubr.f32.mxu0 %v3272
  %3372 = vmatmul.mubr.f32.gmra.mxu0 %v3247
  %v3373 = vpop.f32.mrf.mxu0
  %v3374 = vadd.f32 0.0, %v3373
  %v3375 = vpop.f32.mrf.mxu0
  %v3376 = vadd.f32 0.0, %v3375
  %3377 = vmatprep.mubr.f32.mxu0 %v3275
  %3378 = vmatmul.mubr.f32.gmra.mxu0 %v3249
  %v3379 = vpop.f32.mrf.mxu0
  %v3380 = vadd.f32 0.0, %v3379
  %v3381 = vpop.f32.mrf.mxu0
  %v3382 = vadd.f32 0.0, %v3381
  %3383 = vmatprep.mubr.f32.mxu0 %v3278
  %3384 = vmatmul.mubr.f32.gmra.mxu0 %v3251
  %v3385 = vpop.f32.mrf.mxu0
  %v3386 = vadd.f32 0.0, %v3385
  %v3387 = vpop.f32.mrf.mxu0
  %v3388 = vadd.f32 0.0, %v3387
  %3389 = vmatprep.mubr.f32.mxu0 %v3281
  %3390 = vmatmul.mubr.f32.gmra.mxu0 %v3253
  %v3391 = vpop.f32.mrf.mxu0
  %v3392 = vadd.f32 0.0, %v3391
  %v3393 = vpop.f32.mrf.mxu0
  %v3394 = vadd.f32 0.0, %v3393
  %3395 = vmatprep.mubr.f32.mxu0 %v3284
  %3396 = vmatmul.mubr.f32.gmra.mxu0 %v3255
  %v3397 = vpop.f32.mrf.mxu0
  %v3398 = vadd.f32 0.0, %v3397
  %v3399 = vpop.f32.mrf.mxu0
  %v3400 = vadd.f32 0.0, %v3399
  %3401 = vmatprep.mubr.f32.mxu0 %v3287
  %3402 = vmatmul.mubr.f32.gmra.mxu0 %v3257
  %v3403 = vpop.f32.mrf.mxu0
  %v3404 = vadd.f32 0.0, %v3403
  %v3405 = vpop.f32.mrf.mxu0
  %v3406 = vadd.f32 0.0, %v3405
  %3407 = vmatprep.mubr.f32.mxu0 %v3290
  %3408 = vmatmul.mubr.f32.gmra.mxu0 %v3259
  %v3409 = vpop.f32.mrf.mxu0
  %v3410 = vadd.f32 0.0, %v3409
  %v3411 = vpop.f32.mrf.mxu0
  %v3412 = vadd.f32 0.0, %v3411
  %3413 = vmatprep.mubr.f32.mxu0 %v3293
  %3414 = vmatmul.mubr.f32.gmra.mxu0 %v3261
  %v3415 = vpop.f32.mrf.mxu0
  %v3416 = vadd.f32 0.0, %v3415
  %v3417 = vpop.f32.mrf.mxu0
  %v3418 = vadd.f32 0.0, %v3417
  %3419 = vmatprep.mubr.f32.mxu0 %v3296
  %3420 = vmatmul.mubr.f32.gmra.mxu0 %v3263
  %v3421 = vpop.f32.mrf.mxu0
  %v3422 = vadd.f32 0.0, %v3421
  %v3423 = vpop.f32.mrf.mxu0
  %v3424 = vadd.f32 0.0, %v3423
  %3425 = vmatprep.mubr.f32.mxu0 %v3299
  %3426 = vmatmul.mubr.f32.gmra.mxu0 %v3265
  %v3427 = vpop.f32.mrf.mxu0
  %v3428 = vadd.f32 0.0, %v3427
  %v3429 = vpop.f32.mrf.mxu0
  %v3430 = vadd.f32 0.0, %v3429
  %3431 = vmatprep.mubr.f32.mxu0 %v3302
  %3432 = vmatmul.mubr.f32.gmra.mxu0 %v3267
  %v3433 = vpop.f32.mrf.mxu0
  %v3434 = vadd.f32 0.0, %v3433
  %v3435 = vpop.f32.mrf.mxu0
  %v3436 = vadd.f32 0.0, %v3435
  %3437 = vmatprep.mubr.f32.mxu0 %v3305
  %3438 = vmatmul.mubr.f32.gmra.mxu0 %v3269
  %v3439 = vpop.f32.mrf.mxu0
  %v3440 = vadd.f32 0.0, %v3439
  %v3441 = vpop.f32.mrf.mxu0
  %v3442 = vadd.f32 0.0, %v3441
  %3443 = vdwg.mxu0
  %3444 = vmatprep.subr.mxu0 %v2532
  %3445 = vmatpush1.msra.mxu0 %v2508
  %3446 = vmatprep.subr.mxu0 %v2531
  %3447 = vmatpush1.msra.mxu0 %v2507
  %3448 = vmatprep.subr.mxu0 %v2530
  %3449 = vmatpush1.msra.mxu0 %v2506
  %3450 = vmatprep.subr.mxu0 %v2529
  %3451 = vmatpush1.msra.mxu0 %v2505
  %3452 = vmatprep.subr.mxu0 %v2528
  %3453 = vmatpush1.msra.mxu0 %v2504
  %3454 = vmatprep.subr.mxu0 %v2527
  %3455 = vmatpush1.msra.mxu0 %v2503
  %3456 = vmatprep.subr.mxu0 %v2526
  %3457 = vmatpush1.msra.mxu0 %v2502
  %3458 = vmatprep.subr.mxu0 %v2525
  %3459 = vmatpush1.msra.mxu0 %v2501
  %3460 = vmatprep.subr.mxu0 %v2524
  %3461 = vmatpush1.msra.mxu0 %v2500
  %3462 = vmatprep.subr.mxu0 %v2523
  %3463 = vmatpush1.msra.mxu0 %v2499
  %3464 = vmatprep.subr.mxu0 %v2522
  %3465 = vmatpush1.msra.mxu0 %v2498
  %3466 = vmatprep.subr.mxu0 %v2521
  %3467 = vmatpush1.msra.mxu0 %v2497
  %3468 = vmatprep.subr.mxu0 %v2520
  %3469 = vmatpush1.msra.mxu0 %v2496
  %3470 = vmatprep.subr.mxu0 %v2519
  %3471 = vmatpush1.msra.mxu0 %v2495
  %3472 = vmatprep.subr.mxu0 %v2518
  %3473 = vmatpush1.msra.mxu0 %v2494
  %3474 = vmatprep.subr.mxu0 %v2517
  %3475 = vmatpush1.msra.mxu0 %v2493
  %3476 = vmatprep.subr.mxu0 0.0
  %3477 = vmatpush2.msra.mxu0 0.0
  %3478 = vmatprep.subr.mxu0 0.0
  %3479 = vmatpush2.msra.mxu0 0.0
  %3480 = vmatprep.subr.mxu0 0.0
  %3481 = vmatpush2.msra.mxu0 0.0
  %3482 = vmatprep.subr.mxu0 0.0
  %3483 = vmatpush2.msra.mxu0 0.0
  %3484 = vmatprep.subr.mxu0 0.0
  %3485 = vmatpush2.msra.mxu0 0.0
  %3486 = vmatprep.subr.mxu0 0.0
  %3487 = vmatpush2.msra.mxu0 0.0
  %3488 = vmatprep.subr.mxu0 0.0
  %3489 = vmatpush2.msra.mxu0 0.0
  %3490 = vmatprep.subr.mxu0 0.0
  %3491 = vmatpush2.msra.mxu0 0.0
  %3492 = vmatprep.subr.mxu0 %v2540
  %3493 = vmatpush2.msra.mxu0 %v2516
  %3494 = vmatprep.subr.mxu0 %v2539
  %3495 = vmatpush2.msra.mxu0 %v2515
  %3496 = vmatprep.subr.mxu0 %v2538
  %3497 = vmatpush2.msra.mxu0 %v2514
  %3498 = vmatprep.subr.mxu0 %v2537
  %3499 = vmatpush2.msra.mxu0 %v2513
  %3500 = vmatprep.subr.mxu0 %v2536
  %3501 = vmatpush2.msra.mxu0 %v2512
  %3502 = vmatprep.subr.mxu0 %v2535
  %3503 = vmatpush2.msra.mxu0 %v2511
  %3504 = vmatprep.subr.mxu0 %v2534
  %3505 = vmatpush2.msra.mxu0 %v2510
  %3506 = vmatprep.subr.mxu0 %v2533
  %3507 = vmatpush2.msra.mxu0 %v2509
  %3508 = vmatprep.mubr.f32.mxu0 %v3272
  %3509 = vmatmul.mubr.f32.gmra.mxu0 %v3247
  %v3510 = vpop.f32.mrf.mxu0
  %v3511 = vadd.f32 0.0, %v3510
  %v3512 = vpop.f32.mrf.mxu0
  %v3513 = vadd.f32 0.0, %v3512
  %3514 = vmatprep.mubr.f32.mxu0 %v3275
  %3515 = vmatmul.mubr.f32.gmra.mxu0 %v3249
  %v3516 = vpop.f32.mrf.mxu0
  %v3517 = vadd.f32 0.0, %v3516
  %v3518 = vpop.f32.mrf.mxu0
  %v3519 = vadd.f32 0.0, %v3518
  %3520 = vmatprep.mubr.f32.mxu0 %v3278
  %3521 = vmatmul.mubr.f32.gmra.mxu0 %v3251
  %v3522 = vpop.f32.mrf.mxu0
  %v3523 = vadd.f32 0.0, %v3522
  %v3524 = vpop.f32.mrf.mxu0
  %v3525 = vadd.f32 0.0, %v3524
  %3526 = vmatprep.mubr.f32.mxu0 %v3281
  %3527 = vmatmul.mubr.f32.gmra.mxu0 %v3253
  %v3528 = vpop.f32.mrf.mxu0
  %v3529 = vadd.f32 0.0, %v3528
  %v3530 = vpop.f32.mrf.mxu0
  %v3531 = vadd.f32 0.0, %v3530
  %3532 = vmatprep.mubr.f32.mxu0 %v3284
  %3533 = vmatmul.mubr.f32.gmra.mxu0 %v3255
  %v3534 = vpop.f32.mrf.mxu0
  %v3535 = vadd.f32 0.0, %v3534
  %v3536 = vpop.f32.mrf.mxu0
  %v3537 = vadd.f32 0.0, %v3536
  %3538 = vmatprep.mubr.f32.mxu0 %v3287
  %3539 = vmatmul.mubr.f32.gmra.mxu0 %v3257
  %v3540 = vpop.f32.mrf.mxu0
  %v3541 = vadd.f32 0.0, %v3540
  %v3542 = vpop.f32.mrf.mxu0
  %v3543 = vadd.f32 0.0, %v3542
  %3544 = vmatprep.mubr.f32.mxu0 %v3290
  %3545 = vmatmul.mubr.f32.gmra.mxu0 %v3259
  %v3546 = vpop.f32.mrf.mxu0
  %v3547 = vadd.f32 0.0, %v3546
  %v3548 = vpop.f32.mrf.mxu0
  %v3549 = vadd.f32 0.0, %v3548
  %3550 = vmatprep.mubr.f32.mxu0 %v3293
  %3551 = vmatmul.mubr.f32.gmra.mxu0 %v3261
  %v3552 = vpop.f32.mrf.mxu0
  %v3553 = vadd.f32 0.0, %v3552
  %v3554 = vpop.f32.mrf.mxu0
  %v3555 = vadd.f32 0.0, %v3554
  %3556 = vmatprep.mubr.f32.mxu0 %v3296
  %3557 = vmatmul.mubr.f32.gmra.mxu0 %v3263
  %v3558 = vpop.f32.mrf.mxu0
  %v3559 = vadd.f32 0.0, %v3558
  %v3560 = vpop.f32.mrf.mxu0
  %v3561 = vadd.f32 0.0, %v3560
  %3562 = vmatprep.mubr.f32.mxu0 %v3299
  %3563 = vmatmul.mubr.f32.gmra.mxu0 %v3265
  %v3564 = vpop.f32.mrf.mxu0
  %v3565 = vadd.f32 0.0, %v3564
  %v3566 = vpop.f32.mrf.mxu0
  %v3567 = vadd.f32 0.0, %v3566
  %3568 = vmatprep.mubr.f32.mxu0 %v3302
  %3569 = vmatmul.mubr.f32.gmra.mxu0 %v3267
  %v3570 = vpop.f32.mrf.mxu0
  %v3571 = vadd.f32 0.0, %v3570
  %v3572 = vpop.f32.mrf.mxu0
  %v3573 = vadd.f32 0.0, %v3572
  %3574 = vmatprep.mubr.f32.mxu0 %v3305
  %3575 = vmatmul.mubr.f32.gmra.mxu0 %v3269
  %v3576 = vpop.f32.mrf.mxu0
  %v3577 = vadd.f32 0.0, %v3576
  %v3578 = vpop.f32.mrf.mxu0
  %v3579 = vadd.f32 0.0, %v3578
  %3580 = vdwg.mxu0
  %3581 = vmatprep.subr.mxu0 %v2580
  %3582 = vmatpush1.msra.mxu0 %v2556
  %3583 = vmatprep.subr.mxu0 %v2579
  %3584 = vmatpush1.msra.mxu0 %v2555
  %3585 = vmatprep.subr.mxu0 %v2578
  %3586 = vmatpush1.msra.mxu0 %v2554
  %3587 = vmatprep.subr.mxu0 %v2577
  %3588 = vmatpush1.msra.mxu0 %v2553
  %3589 = vmatprep.subr.mxu0 %v2576
  %3590 = vmatpush1.msra.mxu0 %v2552
  %3591 = vmatprep.subr.mxu0 %v2575
  %3592 = vmatpush1.msra.mxu0 %v2551
  %3593 = vmatprep.subr.mxu0 %v2574
  %3594 = vmatpush1.msra.mxu0 %v2550
  %3595 = vmatprep.subr.mxu0 %v2573
  %3596 = vmatpush1.msra.mxu0 %v2549
  %3597 = vmatprep.subr.mxu0 %v2572
  %3598 = vmatpush1.msra.mxu0 %v2548
  %3599 = vmatprep.subr.mxu0 %v2571
  %3600 = vmatpush1.msra.mxu0 %v2547
  %3601 = vmatprep.subr.mxu0 %v2570
  %3602 = vmatpush1.msra.mxu0 %v2546
  %3603 = vmatprep.subr.mxu0 %v2569
  %3604 = vmatpush1.msra.mxu0 %v2545
  %3605 = vmatprep.subr.mxu0 %v2568
  %3606 = vmatpush1.msra.mxu0 %v2544
  %3607 = vmatprep.subr.mxu0 %v2567
  %3608 = vmatpush1.msra.mxu0 %v2543
  %3609 = vmatprep.subr.mxu0 %v2566
  %3610 = vmatpush1.msra.mxu0 %v2542
  %3611 = vmatprep.subr.mxu0 %v2565
  %3612 = vmatpush1.msra.mxu0 %v2541
  %3613 = vmatprep.subr.mxu0 0.0
  %3614 = vmatpush2.msra.mxu0 0.0
  %3615 = vmatprep.subr.mxu0 0.0
  %3616 = vmatpush2.msra.mxu0 0.0
  %3617 = vmatprep.subr.mxu0 0.0
  %3618 = vmatpush2.msra.mxu0 0.0
  %3619 = vmatprep.subr.mxu0 0.0
  %3620 = vmatpush2.msra.mxu0 0.0
  %3621 = vmatprep.subr.mxu0 0.0
  %3622 = vmatpush2.msra.mxu0 0.0
  %3623 = vmatprep.subr.mxu0 0.0
  %3624 = vmatpush2.msra.mxu0 0.0
  %3625 = vmatprep.subr.mxu0 0.0
  %3626 = vmatpush2.msra.mxu0 0.0
  %3627 = vmatprep.subr.mxu0 0.0
  %3628 = vmatpush2.msra.mxu0 0.0
  %3629 = vmatprep.subr.mxu0 %v2588
  %3630 = vmatpush2.msra.mxu0 %v2564
  %3631 = vmatprep.subr.mxu0 %v2587
  %3632 = vmatpush2.msra.mxu0 %v2563
  %3633 = vmatprep.subr.mxu0 %v2586
  %3634 = vmatpush2.msra.mxu0 %v2562
  %3635 = vmatprep.subr.mxu0 %v2585
  %3636 = vmatpush2.msra.mxu0 %v2561
  %3637 = vmatprep.subr.mxu0 %v2584
  %3638 = vmatpush2.msra.mxu0 %v2560
  %3639 = vmatprep.subr.mxu0 %v2583
  %3640 = vmatpush2.msra.mxu0 %v2559
  %3641 = vmatprep.subr.mxu0 %v2582
  %3642 = vmatpush2.msra.mxu0 %v2558
  %3643 = vmatprep.subr.mxu0 %v2581
  %3644 = vmatpush2.msra.mxu0 %v2557
  %3645 = vmatprep.mubr.f32.mxu0 %v3272
  %3646 = vmatmul.mubr.f32.gmra.mxu0 %v3247
  %v3647 = vpop.f32.mrf.mxu0
  %v3648 = vadd.f32 0.0, %v3647
  %v3649 = vpop.f32.mrf.mxu0
  %v3650 = vadd.f32 0.0, %v3649
  %3651 = vmatprep.mubr.f32.mxu0 %v3275
  %3652 = vmatmul.mubr.f32.gmra.mxu0 %v3249
  %v3653 = vpop.f32.mrf.mxu0
  %v3654 = vadd.f32 0.0, %v3653
  %v3655 = vpop.f32.mrf.mxu0
  %v3656 = vadd.f32 0.0, %v3655
  %3657 = vmatprep.mubr.f32.mxu0 %v3278
  %3658 = vmatmul.mubr.f32.gmra.mxu0 %v3251
  %v3659 = vpop.f32.mrf.mxu0
  %v3660 = vadd.f32 0.0, %v3659
  %v3661 = vpop.f32.mrf.mxu0
  %v3662 = vadd.f32 0.0, %v3661
  %3663 = vmatprep.mubr.f32.mxu0 %v3281
  %3664 = vmatmul.mubr.f32.gmra.mxu0 %v3253
  %v3665 = vpop.f32.mrf.mxu0
  %v3666 = vadd.f32 0.0, %v3665
  %v3667 = vpop.f32.mrf.mxu0
  %v3668 = vadd.f32 0.0, %v3667
  %3669 = vmatprep.mubr.f32.mxu0 %v3284
  %3670 = vmatmul.mubr.f32.gmra.mxu0 %v3255
  %v3671 = vpop.f32.mrf.mxu0
  %v3672 = vadd.f32 0.0, %v3671
  %v3673 = vpop.f32.mrf.mxu0
  %v3674 = vadd.f32 0.0, %v3673
  %3675 = vmatprep.mubr.f32.mxu0 %v3287
  %3676 = vmatmul.mubr.f32.gmra.mxu0 %v3257
  %v3677 = vpop.f32.mrf.mxu0
  %v3678 = vadd.f32 0.0, %v3677
  %v3679 = vpop.f32.mrf.mxu0
  %v3680 = vadd.f32 0.0, %v3679
  %3681 = vmatprep.mubr.f32.mxu0 %v3290
  %3682 = vmatmul.mubr.f32.gmra.mxu0 %v3259
  %v3683 = vpop.f32.mrf.mxu0
  %v3684 = vadd.f32 0.0, %v3683
  %v3685 = vpop.f32.mrf.mxu0
  %v3686 = vadd.f32 0.0, %v3685
  %3687 = vmatprep.mubr.f32.mxu0 %v3293
  %3688 = vmatmul.mubr.f32.gmra.mxu0 %v3261
  %v3689 = vpop.f32.mrf.mxu0
  %v3690 = vadd.f32 0.0, %v3689
  %v3691 = vpop.f32.mrf.mxu0
  %v3692 = vadd.f32 0.0, %v3691
  %3693 = vmatprep.mubr.f32.mxu0 %v3296
  %3694 = vmatmul.mubr.f32.gmra.mxu0 %v3263
  %v3695 = vpop.f32.mrf.mxu0
  %v3696 = vadd.f32 0.0, %v3695
  %v3697 = vpop.f32.mrf.mxu0
  %v3698 = vadd.f32 0.0, %v3697
  %3699 = vmatprep.mubr.f32.mxu0 %v3299
  %3700 = vmatmul.mubr.f32.gmra.mxu0 %v3265
  %v3701 = vpop.f32.mrf.mxu0
  %v3702 = vadd.f32 0.0, %v3701
  %v3703 = vpop.f32.mrf.mxu0
  %v3704 = vadd.f32 0.0, %v3703
  %3705 = vmatprep.mubr.f32.mxu0 %v3302
  %3706 = vmatmul.mubr.f32.gmra.mxu0 %v3267
  %v3707 = vpop.f32.mrf.mxu0
  %v3708 = vadd.f32 0.0, %v3707
  %v3709 = vpop.f32.mrf.mxu0
  %v3710 = vadd.f32 0.0, %v3709
  %3711 = vmatprep.mubr.f32.mxu0 %v3305
  %3712 = vmatmul.mubr.f32.gmra.mxu0 %v3269
  %v3713 = vpop.f32.mrf.mxu0
  %v3714 = vadd.f32 0.0, %v3713
  %v3715 = vpop.f32.mrf.mxu0
  %v3716 = vadd.f32 0.0, %v3715
  %3717 = vdwg.mxu0
  %3718 = vmatprep.subr.mxu0 %v2628
  %3719 = vmatpush1.msra.mxu0 %v2604
  %3720 = vmatprep.subr.mxu0 %v2627
  %3721 = vmatpush1.msra.mxu0 %v2603
  %3722 = vmatprep.subr.mxu0 %v2626
  %3723 = vmatpush1.msra.mxu0 %v2602
  %3724 = vmatprep.subr.mxu0 %v2625
  %3725 = vmatpush1.msra.mxu0 %v2601
  %3726 = vmatprep.subr.mxu0 %v2624
  %3727 = vmatpush1.msra.mxu0 %v2600
  %3728 = vmatprep.subr.mxu0 %v2623
  %3729 = vmatpush1.msra.mxu0 %v2599
  %3730 = vmatprep.subr.mxu0 %v2622
  %3731 = vmatpush1.msra.mxu0 %v2598
  %3732 = vmatprep.subr.mxu0 %v2621
  %3733 = vmatpush1.msra.mxu0 %v2597
  %3734 = vmatprep.subr.mxu0 %v2620
  %3735 = vmatpush1.msra.mxu0 %v2596
  %3736 = vmatprep.subr.mxu0 %v2619
  %3737 = vmatpush1.msra.mxu0 %v2595
  %3738 = vmatprep.subr.mxu0 %v2618
  %3739 = vmatpush1.msra.mxu0 %v2594
  %3740 = vmatprep.subr.mxu0 %v2617
  %3741 = vmatpush1.msra.mxu0 %v2593
  %3742 = vmatprep.subr.mxu0 %v2616
  %3743 = vmatpush1.msra.mxu0 %v2592
  %3744 = vmatprep.subr.mxu0 %v2615
  %3745 = vmatpush1.msra.mxu0 %v2591
  %3746 = vmatprep.subr.mxu0 %v2614
  %3747 = vmatpush1.msra.mxu0 %v2590
  %3748 = vmatprep.subr.mxu0 %v2613
  %3749 = vmatpush1.msra.mxu0 %v2589
  %3750 = vmatprep.subr.mxu0 0.0
  %3751 = vmatpush2.msra.mxu0 0.0
  %3752 = vmatprep.subr.mxu0 0.0
  %3753 = vmatpush2.msra.mxu0 0.0
  %3754 = vmatprep.subr.mxu0 0.0
  %3755 = vmatpush2.msra.mxu0 0.0
  %3756 = vmatprep.subr.mxu0 0.0
  %3757 = vmatpush2.msra.mxu0 0.0
  %3758 = vmatprep.subr.mxu0 0.0
  %3759 = vmatpush2.msra.mxu0 0.0
  %3760 = vmatprep.subr.mxu0 0.0
  %3761 = vmatpush2.msra.mxu0 0.0
  %3762 = vmatprep.subr.mxu0 0.0
  %3763 = vmatpush2.msra.mxu0 0.0
  %3764 = vmatprep.subr.mxu0 0.0
  %3765 = vmatpush2.msra.mxu0 0.0
  %3766 = vmatprep.subr.mxu0 %v2636
  %3767 = vmatpush2.msra.mxu0 %v2612
  %3768 = vmatprep.subr.mxu0 %v2635
  %3769 = vmatpush2.msra.mxu0 %v2611
  %3770 = vmatprep.subr.mxu0 %v2634
  %3771 = vmatpush2.msra.mxu0 %v2610
  %3772 = vmatprep.subr.mxu0 %v2633
  %3773 = vmatpush2.msra.mxu0 %v2609
  %3774 = vmatprep.subr.mxu0 %v2632
  %3775 = vmatpush2.msra.mxu0 %v2608
  %3776 = vmatprep.subr.mxu0 %v2631
  %3777 = vmatpush2.msra.mxu0 %v2607
  %3778 = vmatprep.subr.mxu0 %v2630
  %3779 = vmatpush2.msra.mxu0 %v2606
  %3780 = vmatprep.subr.mxu0 %v2629
  %3781 = vmatpush2.msra.mxu0 %v2605
  %3782 = vmatprep.mubr.f32.mxu0 %v3272
  %3783 = vmatmul.mubr.f32.gmra.mxu0 %v3247
  %v3784 = vpop.f32.mrf.mxu0
  %v3785 = vadd.f32 0.0, %v3784
  %v3786 = vpop.f32.mrf.mxu0
  %v3787 = vadd.f32 0.0, %v3786
  %3788 = vmatprep.mubr.f32.mxu0 %v3275
  %3789 = vmatmul.mubr.f32.gmra.mxu0 %v3249
  %v3790 = vpop.f32.mrf.mxu0
  %v3791 = vadd.f32 0.0, %v3790
  %v3792 = vpop.f32.mrf.mxu0
  %v3793 = vadd.f32 0.0, %v3792
  %3794 = vmatprep.mubr.f32.mxu0 %v3278
  %3795 = vmatmul.mubr.f32.gmra.mxu0 %v3251
  %v3796 = vpop.f32.mrf.mxu0
  %v3797 = vadd.f32 0.0, %v3796
  %v3798 = vpop.f32.mrf.mxu0
  %v3799 = vadd.f32 0.0, %v3798
  %3800 = vmatprep.mubr.f32.mxu0 %v3281
  %3801 = vmatmul.mubr.f32.gmra.mxu0 %v3253
  %v3802 = vpop.f32.mrf.mxu0
  %v3803 = vadd.f32 0.0, %v3802
  %v3804 = vpop.f32.mrf.mxu0
  %v3805 = vadd.f32 0.0, %v3804
  %3806 = vmatprep.mubr.f32.mxu0 %v3284
  %3807 = vmatmul.mubr.f32.gmra.mxu0 %v3255
  %v3808 = vpop.f32.mrf.mxu0
  %v3809 = vadd.f32 0.0, %v3808
  %v3810 = vpop.f32.mrf.mxu0
  %v3811 = vadd.f32 0.0, %v3810
  %3812 = vmatprep.mubr.f32.mxu0 %v3287
  %3813 = vmatmul.mubr.f32.gmra.mxu0 %v3257
  %v3814 = vpop.f32.mrf.mxu0
  %v3815 = vadd.f32 0.0, %v3814
  %v3816 = vpop.f32.mrf.mxu0
  %v3817 = vadd.f32 0.0, %v3816
  %3818 = vmatprep.mubr.f32.mxu0 %v3290
  %3819 = vmatmul.mubr.f32.gmra.mxu0 %v3259
  %v3820 = vpop.f32.mrf.mxu0
  %v3821 = vadd.f32 0.0, %v3820
  %v3822 = vpop.f32.mrf.mxu0
  %v3823 = vadd.f32 0.0, %v3822
  %3824 = vmatprep.mubr.f32.mxu0 %v3293
  %3825 = vmatmul.mubr.f32.gmra.mxu0 %v3261
  %v3826 = vpop.f32.mrf.mxu0
  %v3827 = vadd.f32 0.0, %v3826
  %v3828 = vpop.f32.mrf.mxu0
  %v3829 = vadd.f32 0.0, %v3828
  %3830 = vmatprep.mubr.f32.mxu0 %v3296
  %3831 = vmatmul.mubr.f32.gmra.mxu0 %v3263
  %v3832 = vpop.f32.mrf.mxu0
  %v3833 = vadd.f32 0.0, %v3832
  %v3834 = vpop.f32.mrf.mxu0
  %v3835 = vadd.f32 0.0, %v3834
  %3836 = vmatprep.mubr.f32.mxu0 %v3299
  %3837 = vmatmul.mubr.f32.gmra.mxu0 %v3265
  %v3838 = vpop.f32.mrf.mxu0
  %v3839 = vadd.f32 0.0, %v3838
  %v3840 = vpop.f32.mrf.mxu0
  %v3841 = vadd.f32 0.0, %v3840
  %3842 = vmatprep.mubr.f32.mxu0 %v3302
  %3843 = vmatmul.mubr.f32.gmra.mxu0 %v3267
  %v3844 = vpop.f32.mrf.mxu0
  %v3845 = vadd.f32 0.0, %v3844
  %v3846 = vpop.f32.mrf.mxu0
  %v3847 = vadd.f32 0.0, %v3846
  %3848 = vmatprep.mubr.f32.mxu0 %v3305
  %3849 = vmatmul.mubr.f32.gmra.mxu0 %v3269
  %v3850 = vpop.f32.mrf.mxu0
  %v3851 = vadd.f32 0.0, %v3850
  %v3852 = vpop.f32.mrf.mxu0
  %v3853 = vadd.f32 0.0, %v3852
  %3854 = vdwg.mxu0
  %v3855 = vmax.f32 %v2765, %v3374
  %v3856 = vmax.f32 %v2767, %v3376
  %v3857 = vmax.f32 %v2902, %v3511
  %v3858 = vmax.f32 %v2904, %v3513
  %v3859 = vmax.f32 %v3039, %v3648
  %v3860 = vmax.f32 %v3041, %v3650
  %v3861 = vmax.f32 %v3176, %v3785
  %v3862 = vmax.f32 %v3178, %v3787
  %v3863 = vmax.f32 %v2771, %v3380
  %v3864 = vmax.f32 %v2773, %v3382
  %v3865 = vmax.f32 %v2908, %v3517
  %v3866 = vmax.f32 %v2910, %v3519
  %v3867 = vmax.f32 %v3045, %v3654
  %v3868 = vmax.f32 %v3047, %v3656
  %v3869 = vmax.f32 %v3182, %v3791
  %v3870 = vmax.f32 %v3184, %v3793
  %v3871 = vmax.f32 %v2777, %v3386
  %v3872 = vmax.f32 %v2779, %v3388
  %v3873 = vmax.f32 %v2914, %v3523
  %v3874 = vmax.f32 %v2916, %v3525
  %v3875 = vmax.f32 %v3051, %v3660
  %v3876 = vmax.f32 %v3053, %v3662
  %v3877 = vmax.f32 %v3188, %v3797
  %v3878 = vmax.f32 %v3190, %v3799
  %v3879 = vmax.f32 %v2783, %v3392
  %v3880 = vmax.f32 %v2785, %v3394
  %v3881 = vmax.f32 %v2920, %v3529
  %v3882 = vmax.f32 %v2922, %v3531
  %v3883 = vmax.f32 %v3057, %v3666
  %v3884 = vmax.f32 %v3059, %v3668
  %v3885 = vmax.f32 %v3194, %v3803
  %v3886 = vmax.f32 %v3196, %v3805
  %v3887 = vmax.f32 %v2789, %v3398
  %v3888 = vmax.f32 %v2791, %v3400
  %v3889 = vmax.f32 %v2926, %v3535
  %v3890 = vmax.f32 %v2928, %v3537
  %v3891 = vmax.f32 %v3063, %v3672
  %v3892 = vmax.f32 %v3065, %v3674
  %v3893 = vmax.f32 %v3200, %v3809
  %v3894 = vmax.f32 %v3202, %v3811
  %v3895 = vmax.f32 %v2795, %v3404
  %v3896 = vmax.f32 %v2797, %v3406
  %v3897 = vmax.f32 %v2932, %v3541
  %v3898 = vmax.f32 %v2934, %v3543
  %v3899 = vmax.f32 %v3069, %v3678
  %v3900 = vmax.f32 %v3071, %v3680
  %v3901 = vmax.f32 %v3206, %v3815
  %v3902 = vmax.f32 %v3208, %v3817
  %v3903 = vmax.f32 %v2801, %v3410
  %v3904 = vmax.f32 %v2803, %v3412
  %v3905 = vmax.f32 %v2938, %v3547
  %v3906 = vmax.f32 %v2940, %v3549
  %v3907 = vmax.f32 %v3075, %v3684
  %v3908 = vmax.f32 %v3077, %v3686
  %v3909 = vmax.f32 %v3212, %v3821
  %v3910 = vmax.f32 %v3214, %v3823
  %v3911 = vmax.f32 %v2807, %v3416
  %v3912 = vmax.f32 %v2809, %v3418
  %v3913 = vmax.f32 %v2944, %v3553
  %v3914 = vmax.f32 %v2946, %v3555
  %v3915 = vmax.f32 %v3081, %v3690
  %v3916 = vmax.f32 %v3083, %v3692
  %v3917 = vmax.f32 %v3218, %v3827
  %v3918 = vmax.f32 %v3220, %v3829
  %v3919 = vmax.f32 %v2813, %v3422
  %v3920 = vmax.f32 %v2815, %v3424
  %v3921 = vmax.f32 %v2950, %v3559
  %v3922 = vmax.f32 %v2952, %v3561
  %v3923 = vmax.f32 %v3087, %v3696
  %v3924 = vmax.f32 %v3089, %v3698
  %v3925 = vmax.f32 %v3224, %v3833
  %v3926 = vmax.f32 %v3226, %v3835
  %v3927 = vmax.f32 %v2819, %v3428
  %v3928 = vmax.f32 %v2821, %v3430
  %v3929 = vmax.f32 %v2956, %v3565
  %v3930 = vmax.f32 %v2958, %v3567
  %v3931 = vmax.f32 %v3093, %v3702
  %v3932 = vmax.f32 %v3095, %v3704
  %v3933 = vmax.f32 %v3230, %v3839
  %v3934 = vmax.f32 %v3232, %v3841
  %v3935 = vmax.f32 %v2825, %v3434
  %v3936 = vmax.f32 %v2827, %v3436
  %v3937 = vmax.f32 %v2962, %v3571
  %v3938 = vmax.f32 %v2964, %v3573
  %v3939 = vmax.f32 %v3099, %v3708
  %v3940 = vmax.f32 %v3101, %v3710
  %v3941 = vmax.f32 %v3236, %v3845
  %v3942 = vmax.f32 %v3238, %v3847
  %v3943 = vmax.f32 %v2831, %v3440
  %v3944 = vmax.f32 %v2833, %v3442
  %v3945 = vmax.f32 %v2968, %v3577
  %v3946 = vmax.f32 %v2970, %v3579
  %v3947 = vmax.f32 %v3105, %v3714
  %v3948 = vmax.f32 %v3107, %v3716
  %v3949 = vmax.f32 %v3242, %v3851
  %v3950 = vmax.f32 %v3244, %v3853
  %v3951 = vld [vmem:[%s4] sm:$0xff]
  %v3952 = vld [vmem:[%s4 + $0x8] sm:$0xff]
  %v3953 = vld [vmem:[%s4 + $0x10] sm:$0xff]
  %v3954 = vld [vmem:[%s4 + $0x18] sm:$0xff]
  %v3955 = vld [vmem:[%s4 + $0x20] sm:$0xff]
  %v3956 = vld [vmem:[%s4 + $0x28] sm:$0xff]
  %v3957 = vld [vmem:[%s4 + $0x30] sm:$0xff]
  %v3958 = vld [vmem:[%s4 + $0x38] sm:$0xff]
  %v3959 = vld [vmem:[%s4 + $0x40] sm:$0xff]
  %v3960 = vld [vmem:[%s4 + $0x48] sm:$0xff]
  %v3961 = vld [vmem:[%s4 + $0x50] sm:$0xff]
  %v3962 = vld [vmem:[%s4 + $0x58] sm:$0xff]
  %v3963 = vld [vmem:[%s4 + $0x60] sm:$0xff]
  %v3964 = vld [vmem:[%s4 + $0x68] sm:$0xff]
  %v3965 = vld [vmem:[%s4 + $0x70] sm:$0xff]
  %v3966 = vld [vmem:[%s4 + $0x78] sm:$0xff]
  %v3967 = vld [vmem:[%s4 + $0x80] sm:$0xff]
  %v3968 = vld [vmem:[%s4 + $0x88] sm:$0xff]
  %v3969 = vld [vmem:[%s4 + $0x90] sm:$0xff]
  %v3970 = vld [vmem:[%s4 + $0x98] sm:$0xff]
  %v3971 = vld [vmem:[%s4 + $0xa0] sm:$0xff]
  %v3972 = vld [vmem:[%s4 + $0xa8] sm:$0xff]
  %v3973 = vld [vmem:[%s4 + $0xb0] sm:$0xff]
  %v3974 = vld [vmem:[%s4 + $0xb8] sm:$0xff]
  %v3975 = vld [vmem:[%s4 + $0xc0] sm:$0xff]
  %v3976 = vld [vmem:[%s4 + $0xc8] sm:$0xff]
  %v3977 = vld [vmem:[%s4 + $0xd0] sm:$0xff]
  %v3978 = vld [vmem:[%s4 + $0xd8] sm:$0xff]
  %v3979 = vld [vmem:[%s4 + $0xe0] sm:$0xff]
  %v3980 = vld [vmem:[%s4 + $0xe8] sm:$0xff]
  %v3981 = vld [vmem:[%s4 + $0xf0] sm:$0xff]
  %v3982 = vld [vmem:[%s4 + $0xf8] sm:$0xff]
  %v3983 = vld [vmem:[%s4 + $0x100] sm:$0xff]
  %v3984 = vld [vmem:[%s4 + $0x108] sm:$0xff]
  %v3985 = vld [vmem:[%s4 + $0x110] sm:$0xff]
  %v3986 = vld [vmem:[%s4 + $0x118] sm:$0xff]
  %v3987 = vld [vmem:[%s4 + $0x120] sm:$0xff]
  %v3988 = vld [vmem:[%s4 + $0x128] sm:$0xff]
  %v3989 = vld [vmem:[%s4 + $0x130] sm:$0xff]
  %v3990 = vld [vmem:[%s4 + $0x138] sm:$0xff]
  %v3991 = vld [vmem:[%s4 + $0x140] sm:$0xff]
  %v3992 = vld [vmem:[%s4 + $0x148] sm:$0xff]
  %v3993 = vld [vmem:[%s4 + $0x150] sm:$0xff]
  %v3994 = vld [vmem:[%s4 + $0x158] sm:$0xff]
  %v3995 = vld [vmem:[%s4 + $0x160] sm:$0xff]
  %v3996 = vld [vmem:[%s4 + $0x168] sm:$0xff]
  %v3997 = vld [vmem:[%s4 + $0x170] sm:$0xff]
  %v3998 = vld [vmem:[%s4 + $0x178] sm:$0xff]
  %v3999 = vld [vmem:[%s4 + $0x180] sm:$0xff]
  %v4000 = vld [vmem:[%s4 + $0x188] sm:$0xff]
  %v4001 = vld [vmem:[%s4 + $0x190] sm:$0xff]
  %v4002 = vld [vmem:[%s4 + $0x198] sm:$0xff]
  %v4003 = vld [vmem:[%s4 + $0x1a0] sm:$0xff]
  %v4004 = vld [vmem:[%s4 + $0x1a8] sm:$0xff]
  %v4005 = vld [vmem:[%s4 + $0x1b0] sm:$0xff]
  %v4006 = vld [vmem:[%s4 + $0x1b8] sm:$0xff]
  %v4007 = vld [vmem:[%s4 + $0x1c0] sm:$0xff]
  %v4008 = vld [vmem:[%s4 + $0x1c8] sm:$0xff]
  %v4009 = vld [vmem:[%s4 + $0x1d0] sm:$0xff]
  %v4010 = vld [vmem:[%s4 + $0x1d8] sm:$0xff]
  %v4011 = vld [vmem:[%s4 + $0x1e0] sm:$0xff]
  %v4012 = vld [vmem:[%s4 + $0x1e8] sm:$0xff]
  %v4013 = vld [vmem:[%s4 + $0x1f0] sm:$0xff]
  %v4014 = vld [vmem:[%s4 + $0x1f8] sm:$0xff]
  %v4015 = vld [vmem:[%s4 + $0x200] sm:$0xff]
  %v4016 = vld [vmem:[%s4 + $0x208] sm:$0xff]
  %v4017 = vld [vmem:[%s4 + $0x210] sm:$0xff]
  %v4018 = vld [vmem:[%s4 + $0x218] sm:$0xff]
  %v4019 = vld [vmem:[%s4 + $0x220] sm:$0xff]
  %v4020 = vld [vmem:[%s4 + $0x228] sm:$0xff]
  %v4021 = vld [vmem:[%s4 + $0x230] sm:$0xff]
  %v4022 = vld [vmem:[%s4 + $0x238] sm:$0xff]
  %v4023 = vld [vmem:[%s4 + $0x240] sm:$0xff]
  %v4024 = vld [vmem:[%s4 + $0x248] sm:$0xff]
  %v4025 = vld [vmem:[%s4 + $0x250] sm:$0xff]
  %v4026 = vld [vmem:[%s4 + $0x258] sm:$0xff]
  %v4027 = vld [vmem:[%s4 + $0x260] sm:$0xff]
  %v4028 = vld [vmem:[%s4 + $0x268] sm:$0xff]
  %v4029 = vld [vmem:[%s4 + $0x270] sm:$0xff]
  %v4030 = vld [vmem:[%s4 + $0x278] sm:$0xff]
  %v4031 = vld [vmem:[%s4 + $0x280] sm:$0xff]
  %v4032 = vld [vmem:[%s4 + $0x288] sm:$0xff]
  %v4033 = vld [vmem:[%s4 + $0x290] sm:$0xff]
  %v4034 = vld [vmem:[%s4 + $0x298] sm:$0xff]
  %v4035 = vld [vmem:[%s4 + $0x2a0] sm:$0xff]
  %v4036 = vld [vmem:[%s4 + $0x2a8] sm:$0xff]
  %v4037 = vld [vmem:[%s4 + $0x2b0] sm:$0xff]
  %v4038 = vld [vmem:[%s4 + $0x2b8] sm:$0xff]
  %v4039 = vld [vmem:[%s4 + $0x2c0] sm:$0xff]
  %v4040 = vld [vmem:[%s4 + $0x2c8] sm:$0xff]
  %v4041 = vld [vmem:[%s4 + $0x2d0] sm:$0xff]
  %v4042 = vld [vmem:[%s4 + $0x2d8] sm:$0xff]
  %v4043 = vld [vmem:[%s4 + $0x2e0] sm:$0xff]
  %v4044 = vld [vmem:[%s4 + $0x2e8] sm:$0xff]
  %v4045 = vld [vmem:[%s4 + $0x2f0] sm:$0xff]
  %v4046 = vld [vmem:[%s4 + $0x2f8] sm:$0xff]
  %v4047 = vld [vmem:[%s5] sm:$0xff]
  %v4048 = vld [vmem:[%s5 + $0x8] sm:$0xff]
  %v4049 = vld [vmem:[%s5 + $0x10] sm:$0xff]
  %v4050 = vld [vmem:[%s5 + $0x18] sm:$0xff]
  %v4051 = vld [vmem:[%s5 + $0x20] sm:$0xff]
  %v4052 = vld [vmem:[%s5 + $0x28] sm:$0xff]
  %v4053 = vld [vmem:[%s5 + $0x30] sm:$0xff]
  %v4054 = vld [vmem:[%s5 + $0x38] sm:$0xff]
  %v4055 = vld [vmem:[%s5 + $0x40] sm:$0xff]
  %v4056 = vld [vmem:[%s5 + $0x48] sm:$0xff]
  %v4057 = vld [vmem:[%s5 + $0x50] sm:$0xff]
  %v4058 = vld [vmem:[%s5 + $0x58] sm:$0xff]
  %v4059 = vld [vmem:[%s5 + $0x60] sm:$0xff]
  %v4060 = vld [vmem:[%s5 + $0x68] sm:$0xff]
  %v4061 = vld [vmem:[%s5 + $0x70] sm:$0xff]
  %v4062 = vld [vmem:[%s5 + $0x78] sm:$0xff]
  %v4063 = vld [vmem:[%s5 + $0x80] sm:$0xff]
  %v4064 = vld [vmem:[%s5 + $0x88] sm:$0xff]
  %v4065 = vld [vmem:[%s5 + $0x90] sm:$0xff]
  %v4066 = vld [vmem:[%s5 + $0x98] sm:$0xff]
  %v4067 = vld [vmem:[%s5 + $0xa0] sm:$0xff]
  %v4068 = vld [vmem:[%s5 + $0xa8] sm:$0xff]
  %v4069 = vld [vmem:[%s5 + $0xb0] sm:$0xff]
  %v4070 = vld [vmem:[%s5 + $0xb8] sm:$0xff]
  %4072 = vset.pattern.permute.xlu0 0
  %4073 = vperm.xlu0 %4072, %v4047
  %v4074 = vpop.permute.xlu0 %4073
  %4077 = vset.pattern.permute.xlu0 0
  %4078 = vperm.xlu0 %4077, %v4048
  %v4079 = vpop.permute.xlu0 %4078
  %4082 = vset.pattern.permute.xlu0 0
  %4083 = vperm.xlu0 %4082, %v4049
  %v4084 = vpop.permute.xlu0 %4083
  %4087 = vset.pattern.permute.xlu0 0
  %4088 = vperm.xlu0 %4087, %v4050
  %v4089 = vpop.permute.xlu0 %4088
  %4092 = vset.pattern.permute.xlu0 0
  %4093 = vperm.xlu0 %4092, %v4051
  %v4094 = vpop.permute.xlu0 %4093
  %4097 = vset.pattern.permute.xlu0 0
  %4098 = vperm.xlu0 %4097, %v4052
  %v4099 = vpop.permute.xlu0 %4098
  %4102 = vset.pattern.permute.xlu0 0
  %4103 = vperm.xlu0 %4102, %v4053
  %v4104 = vpop.permute.xlu0 %4103
  %4107 = vset.pattern.permute.xlu0 0
  %4108 = vperm.xlu0 %4107, %v4054
  %v4109 = vpop.permute.xlu0 %4108
  %4112 = vset.pattern.permute.xlu0 0
  %4113 = vperm.xlu0 %4112, %v4055
  %v4114 = vpop.permute.xlu0 %4113
  %4117 = vset.pattern.permute.xlu0 0
  %4118 = vperm.xlu0 %4117, %v4056
  %v4119 = vpop.permute.xlu0 %4118
  %4122 = vset.pattern.permute.xlu0 0
  %4123 = vperm.xlu0 %4122, %v4057
  %v4124 = vpop.permute.xlu0 %4123
  %4127 = vset.pattern.permute.xlu0 0
  %4128 = vperm.xlu0 %4127, %v4058
  %v4129 = vpop.permute.xlu0 %4128
  %4132 = vset.pattern.permute.xlu0 0
  %4133 = vperm.xlu0 %4132, %v4059
  %v4134 = vpop.permute.xlu0 %4133
  %4137 = vset.pattern.permute.xlu0 0
  %4138 = vperm.xlu0 %4137, %v4060
  %v4139 = vpop.permute.xlu0 %4138
  %4142 = vset.pattern.permute.xlu0 0
  %4143 = vperm.xlu0 %4142, %v4061
  %v4144 = vpop.permute.xlu0 %4143
  %4147 = vset.pattern.permute.xlu0 0
  %4148 = vperm.xlu0 %4147, %v4062
  %v4149 = vpop.permute.xlu0 %4148
  %4152 = vset.pattern.permute.xlu0 0
  %4153 = vperm.xlu0 %4152, %v4063
  %v4154 = vpop.permute.xlu0 %4153
  %4157 = vset.pattern.permute.xlu0 0
  %4158 = vperm.xlu0 %4157, %v4064
  %v4159 = vpop.permute.xlu0 %4158
  %4162 = vset.pattern.permute.xlu0 0
  %4163 = vperm.xlu0 %4162, %v4065
  %v4164 = vpop.permute.xlu0 %4163
  %4167 = vset.pattern.permute.xlu0 0
  %4168 = vperm.xlu0 %4167, %v4066
  %v4169 = vpop.permute.xlu0 %4168
  %4172 = vset.pattern.permute.xlu0 0
  %4173 = vperm.xlu0 %4172, %v4067
  %v4174 = vpop.permute.xlu0 %4173
  %4177 = vset.pattern.permute.xlu0 0
  %4178 = vperm.xlu0 %4177, %v4068
  %v4179 = vpop.permute.xlu0 %4178
  %4182 = vset.pattern.permute.xlu0 0
  %4183 = vperm.xlu0 %4182, %v4069
  %v4184 = vpop.permute.xlu0 %4183
  %4187 = vset.pattern.permute.xlu0 0
  %4188 = vperm.xlu0 %4187, %v4070
  %v4189 = vpop.permute.xlu0 %4188
  %vm4191 = vcmask 785408
  %v4193 = vsel %vm4191, %v3954, 0
  %v4196 = vsel %vm4191, %v3958, 0
  %v4199 = vsel %vm4191, %v3962, 0
  %v4202 = vsel %vm4191, %v3966, 0
  %v4205 = vsel %vm4191, %v3970, 0
  %v4208 = vsel %vm4191, %v3974, 0
  %v4211 = vsel %vm4191, %v3978, 0
  %v4214 = vsel %vm4191, %v3982, 0
  %v4217 = vsel %vm4191, %v3986, 0
  %v4220 = vsel %vm4191, %v3990, 0
  %v4223 = vsel %vm4191, %v3994, 0
  %v4226 = vsel %vm4191, %v3998, 0
  %v4229 = vsel %vm4191, %v4002, 0
  %v4232 = vsel %vm4191, %v4006, 0
  %v4235 = vsel %vm4191, %v4010, 0
  %v4238 = vsel %vm4191, %v4014, 0
  %v4241 = vsel %vm4191, %v4018, 0
  %v4244 = vsel %vm4191, %v4022, 0
  %v4247 = vsel %vm4191, %v4026, 0
  %v4250 = vsel %vm4191, %v4030, 0
  %v4253 = vsel %vm4191, %v4034, 0
  %v4256 = vsel %vm4191, %v4038, 0
  %v4259 = vsel %vm4191, %v4042, 0
  %v4262 = vsel %vm4191, %v4046, 0
  %4264 = vmatprep.subr.mxu0 %v3881
  %4265 = vmatpush1.msra.mxu0 %v3880
  %4266 = vmatprep.subr.mxu0 %v3873
  %4267 = vmatpush1.msra.mxu0 %v3872
  %4268 = vmatprep.subr.mxu0 %v3865
  %4269 = vmatpush1.msra.mxu0 %v3864
  %4270 = vmatprep.subr.mxu0 %v3857
  %4271 = vmatpush1.msra.mxu0 %v3856
  %4272 = vmatprep.subr.mxu0 %v3944
  %4273 = vmatpush1.msra.mxu0 %v3943
  %4274 = vmatprep.subr.mxu0 %v3936
  %4275 = vmatpush1.msra.mxu0 %v3935
  %4276 = vmatprep.subr.mxu0 %v3928
  %4277 = vmatpush1.msra.mxu0 %v3927
  %4278 = vmatprep.subr.mxu0 %v3920
  %4279 = vmatpush1.msra.mxu0 %v3919
  %4280 = vmatprep.subr.mxu0 %v3912
  %4281 = vmatpush1.msra.mxu0 %v3911
  %4282 = vmatprep.subr.mxu0 %v3904
  %4283 = vmatpush1.msra.mxu0 %v3903
  %4284 = vmatprep.subr.mxu0 %v3896
  %4285 = vmatpush1.msra.mxu0 %v3895
  %4286 = vmatprep.subr.mxu0 %v3888
  %4287 = vmatpush1.msra.mxu0 %v3887
  %4288 = vmatprep.subr.mxu0 %v3880
  %4289 = vmatpush1.msra.mxu0 %v3879
  %4290 = vmatprep.subr.mxu0 %v3872
  %4291 = vmatpush1.msra.mxu0 %v3871
  %4292 = vmatprep.subr.mxu0 %v3864
  %4293 = vmatpush1.msra.mxu0 %v3863
  %4294 = vmatprep.subr.mxu0 %v3856
  %4295 = vmatpush1.msra.mxu0 %v3855
  %4296 = vmatprep.subr.mxu0 %v3914
  %4297 = vmatpush2.msra.mxu0 %v3913
  %4298 = vmatprep.subr.mxu0 %v3906
  %4299 = vmatpush2.msra.mxu0 %v3905
  %4300 = vmatprep.subr.mxu0 %v3898
  %4301 = vmatpush2.msra.mxu0 %v3897
  %4302 = vmatprep.subr.mxu0 %v3890
  %4303 = vmatpush2.msra.mxu0 %v3889
  %4304 = vmatprep.subr.mxu0 %v3882
  %4305 = vmatpush2.msra.mxu0 %v3881
  %4306 = vmatprep.subr.mxu0 %v3874
  %4307 = vmatpush2.msra.mxu0 %v3873
  %4308 = vmatprep.subr.mxu0 %v3866
  %4309 = vmatpush2.msra.mxu0 %v3865
  %4310 = vmatprep.subr.mxu0 %v3858
  %4311 = vmatpush2.msra.mxu0 %v3857
  %4312 = vmatprep.subr.mxu0 %v3945
  %4313 = vmatpush2.msra.mxu0 %v3944
  %4314 = vmatprep.subr.mxu0 %v3937
  %4315 = vmatpush2.msra.mxu0 %v3936
  %4316 = vmatprep.subr.mxu0 %v3929
  %4317 = vmatpush2.msra.mxu0 %v3928
  %4318 = vmatprep.subr.mxu0 %v3921
  %4319 = vmatpush2.msra.mxu0 %v3920
  %4320 = vmatprep.subr.mxu0 %v3913
  %4321 = vmatpush2.msra.mxu0 %v3912
  %4322 = vmatprep.subr.mxu0 %v3905
  %4323 = vmatpush2.msra.mxu0 %v3904
  %4324 = vmatprep.subr.mxu0 %v3897
  %4325 = vmatpush2.msra.mxu0 %v3896
  %4326 = vmatprep.subr.mxu0 %v3889
  %4327 = vmatpush2.msra.mxu0 %v3888
  %4328 = vmatprep.mubr.f32.mxu0 %v3952
  %4329 = vmatmul.mubr.f32.gmra.mxu0 %v3951
  %v4330 = vpop.f32.mrf.mxu0
  %v4331 = vadd.f32 %v4074, %v4330
  %v4332 = vpop.f32.mrf.mxu0
  %v4333 = vadd.f32 %v4074, %v4332
  %4334 = vmatprep.mubr.f32.mxu0 %v3956
  %4335 = vmatmul.mubr.f32.gmra.mxu0 %v3955
  %v4336 = vpop.f32.mrf.mxu0
  %v4337 = vadd.f32 %v4079, %v4336
  %v4338 = vpop.f32.mrf.mxu0
  %v4339 = vadd.f32 %v4079, %v4338
  %4340 = vmatprep.mubr.f32.mxu0 %v3960
  %4341 = vmatmul.mubr.f32.gmra.mxu0 %v3959
  %v4342 = vpop.f32.mrf.mxu0
  %v4343 = vadd.f32 %v4084, %v4342
  %v4344 = vpop.f32.mrf.mxu0
  %v4345 = vadd.f32 %v4084, %v4344
  %4346 = vmatprep.mubr.f32.mxu0 %v3964
  %4347 = vmatmul.mubr.f32.gmra.mxu0 %v3963
  %v4348 = vpop.f32.mrf.mxu0
  %v4349 = vadd.f32 %v4089, %v4348
  %v4350 = vpop.f32.mrf.mxu0
  %v4351 = vadd.f32 %v4089, %v4350
  %4352 = vmatprep.mubr.f32.mxu0 %v3968
  %4353 = vmatmul.mubr.f32.gmra.mxu0 %v3967
  %v4354 = vpop.f32.mrf.mxu0
  %v4355 = vadd.f32 %v4094, %v4354
  %v4356 = vpop.f32.mrf.mxu0
  %v4357 = vadd.f32 %v4094, %v4356
  %4358 = vmatprep.mubr.f32.mxu0 %v3972
  %4359 = vmatmul.mubr.f32.gmra.mxu0 %v3971
  %v4360 = vpop.f32.mrf.mxu0
  %v4361 = vadd.f32 %v4099, %v4360
  %v4362 = vpop.f32.mrf.mxu0
  %v4363 = vadd.f32 %v4099, %v4362
  %4364 = vmatprep.mubr.f32.mxu0 %v3976
  %4365 = vmatmul.mubr.f32.gmra.mxu0 %v3975
  %v4366 = vpop.f32.mrf.mxu0
  %v4367 = vadd.f32 %v4104, %v4366
  %v4368 = vpop.f32.mrf.mxu0
  %v4369 = vadd.f32 %v4104, %v4368
  %4370 = vmatprep.mubr.f32.mxu0 %v3980
  %4371 = vmatmul.mubr.f32.gmra.mxu0 %v3979
  %v4372 = vpop.f32.mrf.mxu0
  %v4373 = vadd.f32 %v4109, %v4372
  %v4374 = vpop.f32.mrf.mxu0
  %v4375 = vadd.f32 %v4109, %v4374
  %4376 = vmatprep.mubr.f32.mxu0 %v3984
  %4377 = vmatmul.mubr.f32.gmra.mxu0 %v3983
  %v4378 = vpop.f32.mrf.mxu0
  %v4379 = vadd.f32 %v4114, %v4378
  %v4380 = vpop.f32.mrf.mxu0
  %v4381 = vadd.f32 %v4114, %v4380
  %4382 = vmatprep.mubr.f32.mxu0 %v3988
  %4383 = vmatmul.mubr.f32.gmra.mxu0 %v3987
  %v4384 = vpop.f32.mrf.mxu0
  %v4385 = vadd.f32 %v4119, %v4384
  %v4386 = vpop.f32.mrf.mxu0
  %v4387 = vadd.f32 %v4119, %v4386
  %4388 = vmatprep.mubr.f32.mxu0 %v3992
  %4389 = vmatmul.mubr.f32.gmra.mxu0 %v3991
  %v4390 = vpop.f32.mrf.mxu0
  %v4391 = vadd.f32 %v4124, %v4390
  %v4392 = vpop.f32.mrf.mxu0
  %v4393 = vadd.f32 %v4124, %v4392
  %4394 = vmatprep.mubr.f32.mxu0 %v3996
  %4395 = vmatmul.mubr.f32.gmra.mxu0 %v3995
  %v4396 = vpop.f32.mrf.mxu0
  %v4397 = vadd.f32 %v4129, %v4396
  %v4398 = vpop.f32.mrf.mxu0
  %v4399 = vadd.f32 %v4129, %v4398
  %4400 = vmatprep.mubr.f32.mxu0 %v4000
  %4401 = vmatmul.mubr.f32.gmra.mxu0 %v3999
  %v4402 = vpop.f32.mrf.mxu0
  %v4403 = vadd.f32 %v4134, %v4402
  %v4404 = vpop.f32.mrf.mxu0
  %v4405 = vadd.f32 %v4134, %v4404
  %4406 = vmatprep.mubr.f32.mxu0 %v4004
  %4407 = vmatmul.mubr.f32.gmra.mxu0 %v4003
  %v4408 = vpop.f32.mrf.mxu0
  %v4409 = vadd.f32 %v4139, %v4408
  %v4410 = vpop.f32.mrf.mxu0
  %v4411 = vadd.f32 %v4139, %v4410
  %4412 = vmatprep.mubr.f32.mxu0 %v4008
  %4413 = vmatmul.mubr.f32.gmra.mxu0 %v4007
  %v4414 = vpop.f32.mrf.mxu0
  %v4415 = vadd.f32 %v4144, %v4414
  %v4416 = vpop.f32.mrf.mxu0
  %v4417 = vadd.f32 %v4144, %v4416
  %4418 = vmatprep.mubr.f32.mxu0 %v4012
  %4419 = vmatmul.mubr.f32.gmra.mxu0 %v4011
  %v4420 = vpop.f32.mrf.mxu0
  %v4421 = vadd.f32 %v4149, %v4420
  %v4422 = vpop.f32.mrf.mxu0
  %v4423 = vadd.f32 %v4149, %v4422
  %4424 = vmatprep.mubr.f32.mxu0 %v4016
  %4425 = vmatmul.mubr.f32.gmra.mxu0 %v4015
  %v4426 = vpop.f32.mrf.mxu0
  %v4427 = vadd.f32 %v4154, %v4426
  %v4428 = vpop.f32.mrf.mxu0
  %v4429 = vadd.f32 %v4154, %v4428
  %4430 = vmatprep.mubr.f32.mxu0 %v4020
  %4431 = vmatmul.mubr.f32.gmra.mxu0 %v4019
  %v4432 = vpop.f32.mrf.mxu0
  %v4433 = vadd.f32 %v4159, %v4432
  %v4434 = vpop.f32.mrf.mxu0
  %v4435 = vadd.f32 %v4159, %v4434
  %4436 = vmatprep.mubr.f32.mxu0 %v4024
  %4437 = vmatmul.mubr.f32.gmra.mxu0 %v4023
  %v4438 = vpop.f32.mrf.mxu0
  %v4439 = vadd.f32 %v4164, %v4438
  %v4440 = vpop.f32.mrf.mxu0
  %v4441 = vadd.f32 %v4164, %v4440
  %4442 = vmatprep.mubr.f32.mxu0 %v4028
  %4443 = vmatmul.mubr.f32.gmra.mxu0 %v4027
  %v4444 = vpop.f32.mrf.mxu0
  %v4445 = vadd.f32 %v4169, %v4444
  %v4446 = vpop.f32.mrf.mxu0
  %v4447 = vadd.f32 %v4169, %v4446
  %4448 = vmatprep.mubr.f32.mxu0 %v4032
  %4449 = vmatmul.mubr.f32.gmra.mxu0 %v4031
  %v4450 = vpop.f32.mrf.mxu0
  %v4451 = vadd.f32 %v4174, %v4450
  %v4452 = vpop.f32.mrf.mxu0
  %v4453 = vadd.f32 %v4174, %v4452
  %4454 = vmatprep.mubr.f32.mxu0 %v4036
  %4455 = vmatmul.mubr.f32.gmra.mxu0 %v4035
  %v4456 = vpop.f32.mrf.mxu0
  %v4457 = vadd.f32 %v4179, %v4456
  %v4458 = vpop.f32.mrf.mxu0
  %v4459 = vadd.f32 %v4179, %v4458
  %4460 = vmatprep.mubr.f32.mxu0 %v4040
  %4461 = vmatmul.mubr.f32.gmra.mxu0 %v4039
  %v4462 = vpop.f32.mrf.mxu0
  %v4463 = vadd.f32 %v4184, %v4462
  %v4464 = vpop.f32.mrf.mxu0
  %v4465 = vadd.f32 %v4184, %v4464
  %4466 = vmatprep.mubr.f32.mxu0 %v4044
  %4467 = vmatmul.mubr.f32.gmra.mxu0 %v4043
  %v4468 = vpop.f32.mrf.mxu0
  %v4469 = vadd.f32 %v4189, %v4468
  %v4470 = vpop.f32.mrf.mxu0
  %v4471 = vadd.f32 %v4189, %v4470
  %4472 = vdwg.mxu0
  %4473 = vmatprep.subr.mxu0 %v3947
  %4474 = vmatpush1.msra.mxu0 %v3946
  %4475 = vmatprep.subr.mxu0 %v3939
  %4476 = vmatpush1.msra.mxu0 %v3938
  %4477 = vmatprep.subr.mxu0 %v3931
  %4478 = vmatpush1.msra.mxu0 %v3930
  %4479 = vmatprep.subr.mxu0 %v3923
  %4480 = vmatpush1.msra.mxu0 %v3922
  %4481 = vmatprep.subr.mxu0 %v3915
  %4482 = vmatpush1.msra.mxu0 %v3914
  %4483 = vmatprep.subr.mxu0 %v3907
  %4484 = vmatpush1.msra.mxu0 %v3906
  %4485 = vmatprep.subr.mxu0 %v3899
  %4486 = vmatpush1.msra.mxu0 %v3898
  %4487 = vmatprep.subr.mxu0 %v3891
  %4488 = vmatpush1.msra.mxu0 %v3890
  %4489 = vmatprep.subr.mxu0 %v3883
  %4490 = vmatpush1.msra.mxu0 %v3882
  %4491 = vmatprep.subr.mxu0 %v3875
  %4492 = vmatpush1.msra.mxu0 %v3874
  %4493 = vmatprep.subr.mxu0 %v3867
  %4494 = vmatpush1.msra.mxu0 %v3866
  %4495 = vmatprep.subr.mxu0 %v3859
  %4496 = vmatpush1.msra.mxu0 %v3858
  %4497 = vmatprep.subr.mxu0 %v3946
  %4498 = vmatpush1.msra.mxu0 %v3945
  %4499 = vmatprep.subr.mxu0 %v3938
  %4500 = vmatpush1.msra.mxu0 %v3937
  %4501 = vmatprep.subr.mxu0 %v3930
  %4502 = vmatpush1.msra.mxu0 %v3929
  %4503 = vmatprep.subr.mxu0 %v3922
  %4504 = vmatpush1.msra.mxu0 %v3921
  %4505 = vmatprep.subr.mxu0 0.0
  %4506 = vmatpush2.msra.mxu0 0.0
  %4507 = vmatprep.subr.mxu0 0.0
  %4508 = vmatpush2.msra.mxu0 0.0
  %4509 = vmatprep.subr.mxu0 0.0
  %4510 = vmatpush2.msra.mxu0 0.0
  %4511 = vmatprep.subr.mxu0 0.0
  %4512 = vmatpush2.msra.mxu0 0.0
  %4513 = vmatprep.subr.mxu0 %v3948
  %4514 = vmatpush2.msra.mxu0 %v3947
  %4515 = vmatprep.subr.mxu0 %v3940
  %4516 = vmatpush2.msra.mxu0 %v3939
  %4517 = vmatprep.subr.mxu0 %v3932
  %4518 = vmatpush2.msra.mxu0 %v3931
  %4519 = vmatprep.subr.mxu0 %v3924
  %4520 = vmatpush2.msra.mxu0 %v3923
  %4521 = vmatprep.subr.mxu0 %v3916
  %4522 = vmatpush2.msra.mxu0 %v3915
  %4523 = vmatprep.subr.mxu0 %v3908
  %4524 = vmatpush2.msra.mxu0 %v3907
  %4525 = vmatprep.subr.mxu0 %v3900
  %4526 = vmatpush2.msra.mxu0 %v3899
  %4527 = vmatprep.subr.mxu0 %v3892
  %4528 = vmatpush2.msra.mxu0 %v3891
  %4529 = vmatprep.subr.mxu0 %v3884
  %4530 = vmatpush2.msra.mxu0 %v3883
  %4531 = vmatprep.subr.mxu0 %v3876
  %4532 = vmatpush2.msra.mxu0 %v3875
  %4533 = vmatprep.subr.mxu0 %v3868
  %4534 = vmatpush2.msra.mxu0 %v3867
  %4535 = vmatprep.subr.mxu0 %v3860
  %4536 = vmatpush2.msra.mxu0 %v3859
  %4537 = vmatprep.mubr.f32.mxu0 %v4193
  %4538 = vmatmul.mubr.f32.gmra.mxu0 %v3953
  %v4539 = vpop.f32.mrf.mxu0
  %v4540 = vadd.f32 %v4331, %v4539
  %v4541 = vpop.f32.mrf.mxu0
  %v4542 = vadd.f32 %v4333, %v4541
  %4543 = vmatprep.mubr.f32.mxu0 %v4196
  %4544 = vmatmul.mubr.f32.gmra.mxu0 %v3957
  %v4545 = vpop.f32.mrf.mxu0
  %v4546 = vadd.f32 %v4337, %v4545
  %v4547 = vpop.f32.mrf.mxu0
  %v4548 = vadd.f32 %v4339, %v4547
  %4549 = vmatprep.mubr.f32.mxu0 %v4199
  %4550 = vmatmul.mubr.f32.gmra.mxu0 %v3961
  %v4551 = vpop.f32.mrf.mxu0
  %v4552 = vadd.f32 %v4343, %v4551
  %v4553 = vpop.f32.mrf.mxu0
  %v4554 = vadd.f32 %v4345, %v4553
  %4555 = vmatprep.mubr.f32.mxu0 %v4202
  %4556 = vmatmul.mubr.f32.gmra.mxu0 %v3965
  %v4557 = vpop.f32.mrf.mxu0
  %v4558 = vadd.f32 %v4349, %v4557
  %v4559 = vpop.f32.mrf.mxu0
  %v4560 = vadd.f32 %v4351, %v4559
  %4561 = vmatprep.mubr.f32.mxu0 %v4205
  %4562 = vmatmul.mubr.f32.gmra.mxu0 %v3969
  %v4563 = vpop.f32.mrf.mxu0
  %v4564 = vadd.f32 %v4355, %v4563
  %v4565 = vpop.f32.mrf.mxu0
  %v4566 = vadd.f32 %v4357, %v4565
  %4567 = vmatprep.mubr.f32.mxu0 %v4208
  %4568 = vmatmul.mubr.f32.gmra.mxu0 %v3973
  %v4569 = vpop.f32.mrf.mxu0
  %v4570 = vadd.f32 %v4361, %v4569
  %v4571 = vpop.f32.mrf.mxu0
  %v4572 = vadd.f32 %v4363, %v4571
  %4573 = vmatprep.mubr.f32.mxu0 %v4211
  %4574 = vmatmul.mubr.f32.gmra.mxu0 %v3977
  %v4575 = vpop.f32.mrf.mxu0
  %v4576 = vadd.f32 %v4367, %v4575
  %v4577 = vpop.f32.mrf.mxu0
  %v4578 = vadd.f32 %v4369, %v4577
  %4579 = vmatprep.mubr.f32.mxu0 %v4214
  %4580 = vmatmul.mubr.f32.gmra.mxu0 %v3981
  %v4581 = vpop.f32.mrf.mxu0
  %v4582 = vadd.f32 %v4373, %v4581
  %v4583 = vpop.f32.mrf.mxu0
  %v4584 = vadd.f32 %v4375, %v4583
  %4585 = vmatprep.mubr.f32.mxu0 %v4217
  %4586 = vmatmul.mubr.f32.gmra.mxu0 %v3985
  %v4587 = vpop.f32.mrf.mxu0
  %v4588 = vadd.f32 %v4379, %v4587
  %v4589 = vpop.f32.mrf.mxu0
  %v4590 = vadd.f32 %v4381, %v4589
  %4591 = vmatprep.mubr.f32.mxu0 %v4220
  %4592 = vmatmul.mubr.f32.gmra.mxu0 %v3989
  %v4593 = vpop.f32.mrf.mxu0
  %v4594 = vadd.f32 %v4385, %v4593
  %v4595 = vpop.f32.mrf.mxu0
  %v4596 = vadd.f32 %v4387, %v4595
  %4597 = vmatprep.mubr.f32.mxu0 %v4223
  %4598 = vmatmul.mubr.f32.gmra.mxu0 %v3993
  %v4599 = vpop.f32.mrf.mxu0
  %v4600 = vadd.f32 %v4391, %v4599
  %v4601 = vpop.f32.mrf.mxu0
  %v4602 = vadd.f32 %v4393, %v4601
  %4603 = vmatprep.mubr.f32.mxu0 %v4226
  %4604 = vmatmul.mubr.f32.gmra.mxu0 %v3997
  %v4605 = vpop.f32.mrf.mxu0
  %v4606 = vadd.f32 %v4397, %v4605
  %v4607 = vpop.f32.mrf.mxu0
  %v4608 = vadd.f32 %v4399, %v4607
  %4609 = vmatprep.mubr.f32.mxu0 %v4229
  %4610 = vmatmul.mubr.f32.gmra.mxu0 %v4001
  %v4611 = vpop.f32.mrf.mxu0
  %v4612 = vadd.f32 %v4403, %v4611
  %v4613 = vpop.f32.mrf.mxu0
  %v4614 = vadd.f32 %v4405, %v4613
  %4615 = vmatprep.mubr.f32.mxu0 %v4232
  %4616 = vmatmul.mubr.f32.gmra.mxu0 %v4005
  %v4617 = vpop.f32.mrf.mxu0
  %v4618 = vadd.f32 %v4409, %v4617
  %v4619 = vpop.f32.mrf.mxu0
  %v4620 = vadd.f32 %v4411, %v4619
  %4621 = vmatprep.mubr.f32.mxu0 %v4235
  %4622 = vmatmul.mubr.f32.gmra.mxu0 %v4009
  %v4623 = vpop.f32.mrf.mxu0
  %v4624 = vadd.f32 %v4415, %v4623
  %v4625 = vpop.f32.mrf.mxu0
  %v4626 = vadd.f32 %v4417, %v4625
  %4627 = vmatprep.mubr.f32.mxu0 %v4238
  %4628 = vmatmul.mubr.f32.gmra.mxu0 %v4013
  %v4629 = vpop.f32.mrf.mxu0
  %v4630 = vadd.f32 %v4421, %v4629
  %v4631 = vpop.f32.mrf.mxu0
  %v4632 = vadd.f32 %v4423, %v4631
  %4633 = vmatprep.mubr.f32.mxu0 %v4241
  %4634 = vmatmul.mubr.f32.gmra.mxu0 %v4017
  %v4635 = vpop.f32.mrf.mxu0
  %v4636 = vadd.f32 %v4427, %v4635
  %v4637 = vpop.f32.mrf.mxu0
  %v4638 = vadd.f32 %v4429, %v4637
  %4639 = vmatprep.mubr.f32.mxu0 %v4244
  %4640 = vmatmul.mubr.f32.gmra.mxu0 %v4021
  %v4641 = vpop.f32.mrf.mxu0
  %v4642 = vadd.f32 %v4433, %v4641
  %v4643 = vpop.f32.mrf.mxu0
  %v4644 = vadd.f32 %v4435, %v4643
  %4645 = vmatprep.mubr.f32.mxu0 %v4247
  %4646 = vmatmul.mubr.f32.gmra.mxu0 %v4025
  %v4647 = vpop.f32.mrf.mxu0
  %v4648 = vadd.f32 %v4439, %v4647
  %v4649 = vpop.f32.mrf.mxu0
  %v4650 = vadd.f32 %v4441, %v4649
  %4651 = vmatprep.mubr.f32.mxu0 %v4250
  %4652 = vmatmul.mubr.f32.gmra.mxu0 %v4029
  %v4653 = vpop.f32.mrf.mxu0
  %v4654 = vadd.f32 %v4445, %v4653
  %v4655 = vpop.f32.mrf.mxu0
  %v4656 = vadd.f32 %v4447, %v4655
  %4657 = vmatprep.mubr.f32.mxu0 %v4253
  %4658 = vmatmul.mubr.f32.gmra.mxu0 %v4033
  %v4659 = vpop.f32.mrf.mxu0
  %v4660 = vadd.f32 %v4451, %v4659
  %v4661 = vpop.f32.mrf.mxu0
  %v4662 = vadd.f32 %v4453, %v4661
  %4663 = vmatprep.mubr.f32.mxu0 %v4256
  %4664 = vmatmul.mubr.f32.gmra.mxu0 %v4037
  %v4665 = vpop.f32.mrf.mxu0
  %v4666 = vadd.f32 %v4457, %v4665
  %v4667 = vpop.f32.mrf.mxu0
  %v4668 = vadd.f32 %v4459, %v4667
  %4669 = vmatprep.mubr.f32.mxu0 %v4259
  %4670 = vmatmul.mubr.f32.gmra.mxu0 %v4041
  %v4671 = vpop.f32.mrf.mxu0
  %v4672 = vadd.f32 %v4463, %v4671
  %v4673 = vpop.f32.mrf.mxu0
  %v4674 = vadd.f32 %v4465, %v4673
  %4675 = vmatprep.mubr.f32.mxu0 %v4262
  %4676 = vmatmul.mubr.f32.gmra.mxu0 %v4045
  %v4677 = vpop.f32.mrf.mxu0
  %v4678 = vadd.f32 %v4469, %v4677
  %v4679 = vpop.f32.mrf.mxu0
  %v4680 = vadd.f32 %v4471, %v4679
  %4681 = vdwg.mxu0
  %4682 = vmatprep.subr.mxu0 %v3883
  %4683 = vmatpush1.msra.mxu0 %v3882
  %4684 = vmatprep.subr.mxu0 %v3875
  %4685 = vmatpush1.msra.mxu0 %v3874
  %4686 = vmatprep.subr.mxu0 %v3867
  %4687 = vmatpush1.msra.mxu0 %v3866
  %4688 = vmatprep.subr.mxu0 %v3859
  %4689 = vmatpush1.msra.mxu0 %v3858
  %4690 = vmatprep.subr.mxu0 %v3946
  %4691 = vmatpush1.msra.mxu0 %v3945
  %4692 = vmatprep.subr.mxu0 %v3938
  %4693 = vmatpush1.msra.mxu0 %v3937
  %4694 = vmatprep.subr.mxu0 %v3930
  %4695 = vmatpush1.msra.mxu0 %v3929
  %4696 = vmatprep.subr.mxu0 %v3922
  %4697 = vmatpush1.msra.mxu0 %v3921
  %4698 = vmatprep.subr.mxu0 %v3914
  %4699 = vmatpush1.msra.mxu0 %v3913
  %4700 = vmatprep.subr.mxu0 %v3906
  %4701 = vmatpush1.msra.mxu0 %v3905
  %4702 = vmatprep.subr.mxu0 %v3898
  %4703 = vmatpush1.msra.mxu0 %v3897
  %4704 = vmatprep.subr.mxu0 %v3890
  %4705 = vmatpush1.msra.mxu0 %v3889
  %4706 = vmatprep.subr.mxu0 %v3882
  %4707 = vmatpush1.msra.mxu0 %v3881
  %4708 = vmatprep.subr.mxu0 %v3874
  %4709 = vmatpush1.msra.mxu0 %v3873
  %4710 = vmatprep.subr.mxu0 %v3866
  %4711 = vmatpush1.msra.mxu0 %v3865
  %4712 = vmatprep.subr.mxu0 %v3858
  %4713 = vmatpush1.msra.mxu0 %v3857
  %4714 = vmatprep.subr.mxu0 %v3916
  %4715 = vmatpush2.msra.mxu0 %v3915
  %4716 = vmatprep.subr.mxu0 %v3908
  %4717 = vmatpush2.msra.mxu0 %v3907
  %4718 = vmatprep.subr.mxu0 %v3900
  %4719 = vmatpush2.msra.mxu0 %v3899
  %4720 = vmatprep.subr.mxu0 %v3892
  %4721 = vmatpush2.msra.mxu0 %v3891
  %4722 = vmatprep.subr.mxu0 %v3884
  %4723 = vmatpush2.msra.mxu0 %v3883
  %4724 = vmatprep.subr.mxu0 %v3876
  %4725 = vmatpush2.msra.mxu0 %v3875
  %4726 = vmatprep.subr.mxu0 %v3868
  %4727 = vmatpush2.msra.mxu0 %v3867
  %4728 = vmatprep.subr.mxu0 %v3860
  %4729 = vmatpush2.msra.mxu0 %v3859
  %4730 = vmatprep.subr.mxu0 %v3947
  %4731 = vmatpush2.msra.mxu0 %v3946
  %4732 = vmatprep.subr.mxu0 %v3939
  %4733 = vmatpush2.msra.mxu0 %v3938
  %4734 = vmatprep.subr.mxu0 %v3931
  %4735 = vmatpush2.msra.mxu0 %v3930
  %4736 = vmatprep.subr.mxu0 %v3923
  %4737 = vmatpush2.msra.mxu0 %v3922
  %4738 = vmatprep.subr.mxu0 %v3915
  %4739 = vmatpush2.msra.mxu0 %v3914
  %4740 = vmatprep.subr.mxu0 %v3907
  %4741 = vmatpush2.msra.mxu0 %v3906
  %4742 = vmatprep.subr.mxu0 %v3899
  %4743 = vmatpush2.msra.mxu0 %v3898
  %4744 = vmatprep.subr.mxu0 %v3891
  %4745 = vmatpush2.msra.mxu0 %v3890
  %4746 = vmatprep.mubr.f32.mxu0 %v3952
  %4747 = vmatmul.mubr.f32.gmra.mxu0 %v3951
  %v4748 = vpop.f32.mrf.mxu0
  %v4749 = vadd.f32 %v4074, %v4748
  %v4750 = vpop.f32.mrf.mxu0
  %v4751 = vadd.f32 %v4074, %v4750
  %4752 = vmatprep.mubr.f32.mxu0 %v3956
  %4753 = vmatmul.mubr.f32.gmra.mxu0 %v3955
  %v4754 = vpop.f32.mrf.mxu0
  %v4755 = vadd.f32 %v4079, %v4754
  %v4756 = vpop.f32.mrf.mxu0
  %v4757 = vadd.f32 %v4079, %v4756
  %4758 = vmatprep.mubr.f32.mxu0 %v3960
  %4759 = vmatmul.mubr.f32.gmra.mxu0 %v3959
  %v4760 = vpop.f32.mrf.mxu0
  %v4761 = vadd.f32 %v4084, %v4760
  %v4762 = vpop.f32.mrf.mxu0
  %v4763 = vadd.f32 %v4084, %v4762
  %4764 = vmatprep.mubr.f32.mxu0 %v3964
  %4765 = vmatmul.mubr.f32.gmra.mxu0 %v3963
  %v4766 = vpop.f32.mrf.mxu0
  %v4767 = vadd.f32 %v4089, %v4766
  %v4768 = vpop.f32.mrf.mxu0
  %v4769 = vadd.f32 %v4089, %v4768
  %4770 = vmatprep.mubr.f32.mxu0 %v3968
  %4771 = vmatmul.mubr.f32.gmra.mxu0 %v3967
  %v4772 = vpop.f32.mrf.mxu0
  %v4773 = vadd.f32 %v4094, %v4772
  %v4774 = vpop.f32.mrf.mxu0
  %v4775 = vadd.f32 %v4094, %v4774
  %4776 = vmatprep.mubr.f32.mxu0 %v3972
  %4777 = vmatmul.mubr.f32.gmra.mxu0 %v3971
  %v4778 = vpop.f32.mrf.mxu0
  %v4779 = vadd.f32 %v4099, %v4778
  %v4780 = vpop.f32.mrf.mxu0
  %v4781 = vadd.f32 %v4099, %v4780
  %4782 = vmatprep.mubr.f32.mxu0 %v3976
  %4783 = vmatmul.mubr.f32.gmra.mxu0 %v3975
  %v4784 = vpop.f32.mrf.mxu0
  %v4785 = vadd.f32 %v4104, %v4784
  %v4786 = vpop.f32.mrf.mxu0
  %v4787 = vadd.f32 %v4104, %v4786
  %4788 = vmatprep.mubr.f32.mxu0 %v3980
  %4789 = vmatmul.mubr.f32.gmra.mxu0 %v3979
  %v4790 = vpop.f32.mrf.mxu0
  %v4791 = vadd.f32 %v4109, %v4790
  %v4792 = vpop.f32.mrf.mxu0
  %v4793 = vadd.f32 %v4109, %v4792
  %4794 = vmatprep.mubr.f32.mxu0 %v3984
  %4795 = vmatmul.mubr.f32.gmra.mxu0 %v3983
  %v4796 = vpop.f32.mrf.mxu0
  %v4797 = vadd.f32 %v4114, %v4796
  %v4798 = vpop.f32.mrf.mxu0
  %v4799 = vadd.f32 %v4114, %v4798
  %4800 = vmatprep.mubr.f32.mxu0 %v3988
  %4801 = vmatmul.mubr.f32.gmra.mxu0 %v3987
  %v4802 = vpop.f32.mrf.mxu0
  %v4803 = vadd.f32 %v4119, %v4802
  %v4804 = vpop.f32.mrf.mxu0
  %v4805 = vadd.f32 %v4119, %v4804
  %4806 = vmatprep.mubr.f32.mxu0 %v3992
  %4807 = vmatmul.mubr.f32.gmra.mxu0 %v3991
  %v4808 = vpop.f32.mrf.mxu0
  %v4809 = vadd.f32 %v4124, %v4808
  %v4810 = vpop.f32.mrf.mxu0
  %v4811 = vadd.f32 %v4124, %v4810
  %4812 = vmatprep.mubr.f32.mxu0 %v3996
  %4813 = vmatmul.mubr.f32.gmra.mxu0 %v3995
  %v4814 = vpop.f32.mrf.mxu0
  %v4815 = vadd.f32 %v4129, %v4814
  %v4816 = vpop.f32.mrf.mxu0
  %v4817 = vadd.f32 %v4129, %v4816
  %4818 = vmatprep.mubr.f32.mxu0 %v4000
  %4819 = vmatmul.mubr.f32.gmra.mxu0 %v3999
  %v4820 = vpop.f32.mrf.mxu0
  %v4821 = vadd.f32 %v4134, %v4820
  %v4822 = vpop.f32.mrf.mxu0
  %v4823 = vadd.f32 %v4134, %v4822
  %4824 = vmatprep.mubr.f32.mxu0 %v4004
  %4825 = vmatmul.mubr.f32.gmra.mxu0 %v4003
  %v4826 = vpop.f32.mrf.mxu0
  %v4827 = vadd.f32 %v4139, %v4826
  %v4828 = vpop.f32.mrf.mxu0
  %v4829 = vadd.f32 %v4139, %v4828
  %4830 = vmatprep.mubr.f32.mxu0 %v4008
  %4831 = vmatmul.mubr.f32.gmra.mxu0 %v4007
  %v4832 = vpop.f32.mrf.mxu0
  %v4833 = vadd.f32 %v4144, %v4832
  %v4834 = vpop.f32.mrf.mxu0
  %v4835 = vadd.f32 %v4144, %v4834
  %4836 = vmatprep.mubr.f32.mxu0 %v4012
  %4837 = vmatmul.mubr.f32.gmra.mxu0 %v4011
  %v4838 = vpop.f32.mrf.mxu0
  %v4839 = vadd.f32 %v4149, %v4838
  %v4840 = vpop.f32.mrf.mxu0
  %v4841 = vadd.f32 %v4149, %v4840
  %4842 = vmatprep.mubr.f32.mxu0 %v4016
  %4843 = vmatmul.mubr.f32.gmra.mxu0 %v4015
  %v4844 = vpop.f32.mrf.mxu0
  %v4845 = vadd.f32 %v4154, %v4844
  %v4846 = vpop.f32.mrf.mxu0
  %v4847 = vadd.f32 %v4154, %v4846
  %4848 = vmatprep.mubr.f32.mxu0 %v4020
  %4849 = vmatmul.mubr.f32.gmra.mxu0 %v4019
  %v4850 = vpop.f32.mrf.mxu0
  %v4851 = vadd.f32 %v4159, %v4850
  %v4852 = vpop.f32.mrf.mxu0
  %v4853 = vadd.f32 %v4159, %v4852
  %4854 = vmatprep.mubr.f32.mxu0 %v4024
  %4855 = vmatmul.mubr.f32.gmra.mxu0 %v4023
  %v4856 = vpop.f32.mrf.mxu0
  %v4857 = vadd.f32 %v4164, %v4856
  %v4858 = vpop.f32.mrf.mxu0
  %v4859 = vadd.f32 %v4164, %v4858
  %4860 = vmatprep.mubr.f32.mxu0 %v4028
  %4861 = vmatmul.mubr.f32.gmra.mxu0 %v4027
  %v4862 = vpop.f32.mrf.mxu0
  %v4863 = vadd.f32 %v4169, %v4862
  %v4864 = vpop.f32.mrf.mxu0
  %v4865 = vadd.f32 %v4169, %v4864
  %4866 = vmatprep.mubr.f32.mxu0 %v4032
  %4867 = vmatmul.mubr.f32.gmra.mxu0 %v4031
  %v4868 = vpop.f32.mrf.mxu0
  %v4869 = vadd.f32 %v4174, %v4868
  %v4870 = vpop.f32.mrf.mxu0
  %v4871 = vadd.f32 %v4174, %v4870
  %4872 = vmatprep.mubr.f32.mxu0 %v4036
  %4873 = vmatmul.mubr.f32.gmra.mxu0 %v4035
  %v4874 = vpop.f32.mrf.mxu0
  %v4875 = vadd.f32 %v4179, %v4874
  %v4876 = vpop.f32.mrf.mxu0
  %v4877 = vadd.f32 %v4179, %v4876
  %4878 = vmatprep.mubr.f32.mxu0 %v4040
  %4879 = vmatmul.mubr.f32.gmra.mxu0 %v4039
  %v4880 = vpop.f32.mrf.mxu0
  %v4881 = vadd.f32 %v4184, %v4880
  %v4882 = vpop.f32.mrf.mxu0
  %v4883 = vadd.f32 %v4184, %v4882
  %4884 = vmatprep.mubr.f32.mxu0 %v4044
  %4885 = vmatmul.mubr.f32.gmra.mxu0 %v4043
  %v4886 = vpop.f32.mrf.mxu0
  %v4887 = vadd.f32 %v4189, %v4886
  %v4888 = vpop.f32.mrf.mxu0
  %v4889 = vadd.f32 %v4189, %v4888
  %4890 = vdwg.mxu0
  %4891 = vmatprep.subr.mxu0 %v3949
  %4892 = vmatpush1.msra.mxu0 %v3948
  %4893 = vmatprep.subr.mxu0 %v3941
  %4894 = vmatpush1.msra.mxu0 %v3940
  %4895 = vmatprep.subr.mxu0 %v3933
  %4896 = vmatpush1.msra.mxu0 %v3932
  %4897 = vmatprep.subr.mxu0 %v3925
  %4898 = vmatpush1.msra.mxu0 %v3924
  %4899 = vmatprep.subr.mxu0 %v3917
  %4900 = vmatpush1.msra.mxu0 %v3916
  %4901 = vmatprep.subr.mxu0 %v3909
  %4902 = vmatpush1.msra.mxu0 %v3908
  %4903 = vmatprep.subr.mxu0 %v3901
  %4904 = vmatpush1.msra.mxu0 %v3900
  %4905 = vmatprep.subr.mxu0 %v3893
  %4906 = vmatpush1.msra.mxu0 %v3892
  %4907 = vmatprep.subr.mxu0 %v3885
  %4908 = vmatpush1.msra.mxu0 %v3884
  %4909 = vmatprep.subr.mxu0 %v3877
  %4910 = vmatpush1.msra.mxu0 %v3876
  %4911 = vmatprep.subr.mxu0 %v3869
  %4912 = vmatpush1.msra.mxu0 %v3868
  %4913 = vmatprep.subr.mxu0 %v3861
  %4914 = vmatpush1.msra.mxu0 %v3860
  %4915 = vmatprep.subr.mxu0 %v3948
  %4916 = vmatpush1.msra.mxu0 %v3947
  %4917 = vmatprep.subr.mxu0 %v3940
  %4918 = vmatpush1.msra.mxu0 %v3939
  %4919 = vmatprep.subr.mxu0 %v3932
  %4920 = vmatpush1.msra.mxu0 %v3931
  %4921 = vmatprep.subr.mxu0 %v3924
  %4922 = vmatpush1.msra.mxu0 %v3923
  %4923 = vmatprep.subr.mxu0 0.0
  %4924 = vmatpush2.msra.mxu0 0.0
  %4925 = vmatprep.subr.mxu0 0.0
  %4926 = vmatpush2.msra.mxu0 0.0
  %4927 = vmatprep.subr.mxu0 0.0
  %4928 = vmatpush2.msra.mxu0 0.0
  %4929 = vmatprep.subr.mxu0 0.0
  %4930 = vmatpush2.msra.mxu0 0.0
  %4931 = vmatprep.subr.mxu0 %v3950
  %4932 = vmatpush2.msra.mxu0 %v3949
  %4933 = vmatprep.subr.mxu0 %v3942
  %4934 = vmatpush2.msra.mxu0 %v3941
  %4935 = vmatprep.subr.mxu0 %v3934
  %4936 = vmatpush2.msra.mxu0 %v3933
  %4937 = vmatprep.subr.mxu0 %v3926
  %4938 = vmatpush2.msra.mxu0 %v3925
  %4939 = vmatprep.subr.mxu0 %v3918
  %4940 = vmatpush2.msra.mxu0 %v3917
  %4941 = vmatprep.subr.mxu0 %v3910
  %4942 = vmatpush2.msra.mxu0 %v3909
  %4943 = vmatprep.subr.mxu0 %v3902
  %4944 = vmatpush2.msra.mxu0 %v3901
  %4945 = vmatprep.subr.mxu0 %v3894
  %4946 = vmatpush2.msra.mxu0 %v3893
  %4947 = vmatprep.subr.mxu0 %v3886
  %4948 = vmatpush2.msra.mxu0 %v3885
  %4949 = vmatprep.subr.mxu0 %v3878
  %4950 = vmatpush2.msra.mxu0 %v3877
  %4951 = vmatprep.subr.mxu0 %v3870
  %4952 = vmatpush2.msra.mxu0 %v3869
  %4953 = vmatprep.subr.mxu0 %v3862
  %4954 = vmatpush2.msra.mxu0 %v3861
  %4955 = vmatprep.mubr.f32.mxu0 %v4193
  %4956 = vmatmul.mubr.f32.gmra.mxu0 %v3953
  %v4957 = vpop.f32.mrf.mxu0
  %v4958 = vadd.f32 %v4749, %v4957
  %v4959 = vpop.f32.mrf.mxu0
  %v4960 = vadd.f32 %v4751, %v4959
  %4961 = vmatprep.mubr.f32.mxu0 %v4196
  %4962 = vmatmul.mubr.f32.gmra.mxu0 %v3957
  %v4963 = vpop.f32.mrf.mxu0
  %v4964 = vadd.f32 %v4755, %v4963
  %v4965 = vpop.f32.mrf.mxu0
  %v4966 = vadd.f32 %v4757, %v4965
  %4967 = vmatprep.mubr.f32.mxu0 %v4199
  %4968 = vmatmul.mubr.f32.gmra.mxu0 %v3961
  %v4969 = vpop.f32.mrf.mxu0
  %v4970 = vadd.f32 %v4761, %v4969
  %v4971 = vpop.f32.mrf.mxu0
  %v4972 = vadd.f32 %v4763, %v4971
  %4973 = vmatprep.mubr.f32.mxu0 %v4202
  %4974 = vmatmul.mubr.f32.gmra.mxu0 %v3965
  %v4975 = vpop.f32.mrf.mxu0
  %v4976 = vadd.f32 %v4767, %v4975
  %v4977 = vpop.f32.mrf.mxu0
  %v4978 = vadd.f32 %v4769, %v4977
  %4979 = vmatprep.mubr.f32.mxu0 %v4205
  %4980 = vmatmul.mubr.f32.gmra.mxu0 %v3969
  %v4981 = vpop.f32.mrf.mxu0
  %v4982 = vadd.f32 %v4773, %v4981
  %v4983 = vpop.f32.mrf.mxu0
  %v4984 = vadd.f32 %v4775, %v4983
  %4985 = vmatprep.mubr.f32.mxu0 %v4208
  %4986 = vmatmul.mubr.f32.gmra.mxu0 %v3973
  %v4987 = vpop.f32.mrf.mxu0
  %v4988 = vadd.f32 %v4779, %v4987
  %v4989 = vpop.f32.mrf.mxu0
  %v4990 = vadd.f32 %v4781, %v4989
  %4991 = vmatprep.mubr.f32.mxu0 %v4211
  %4992 = vmatmul.mubr.f32.gmra.mxu0 %v3977
  %v4993 = vpop.f32.mrf.mxu0
  %v4994 = vadd.f32 %v4785, %v4993
  %v4995 = vpop.f32.mrf.mxu0
  %v4996 = vadd.f32 %v4787, %v4995
  %4997 = vmatprep.mubr.f32.mxu0 %v4214
  %4998 = vmatmul.mubr.f32.gmra.mxu0 %v3981
  %v4999 = vpop.f32.mrf.mxu0
  %v5000 = vadd.f32 %v4791, %v4999
  %v5001 = vpop.f32.mrf.mxu0
  %v5002 = vadd.f32 %v4793, %v5001
  %5003 = vmatprep.mubr.f32.mxu0 %v4217
  %5004 = vmatmul.mubr.f32.gmra.mxu0 %v3985
  %v5005 = vpop.f32.mrf.mxu0
  %v5006 = vadd.f32 %v4797, %v5005
  %v5007 = vpop.f32.mrf.mxu0
  %v5008 = vadd.f32 %v4799, %v5007
  %5009 = vmatprep.mubr.f32.mxu0 %v4220
  %5010 = vmatmul.mubr.f32.gmra.mxu0 %v3989
  %v5011 = vpop.f32.mrf.mxu0
  %v5012 = vadd.f32 %v4803, %v5011
  %v5013 = vpop.f32.mrf.mxu0
  %v5014 = vadd.f32 %v4805, %v5013
  %5015 = vmatprep.mubr.f32.mxu0 %v4223
  %5016 = vmatmul.mubr.f32.gmra.mxu0 %v3993
  %v5017 = vpop.f32.mrf.mxu0
  %v5018 = vadd.f32 %v4809, %v5017
  %v5019 = vpop.f32.mrf.mxu0
  %v5020 = vadd.f32 %v4811, %v5019
  %5021 = vmatprep.mubr.f32.mxu0 %v4226
  %5022 = vmatmul.mubr.f32.gmra.mxu0 %v3997
  %v5023 = vpop.f32.mrf.mxu0
  %v5024 = vadd.f32 %v4815, %v5023
  %v5025 = vpop.f32.mrf.mxu0
  %v5026 = vadd.f32 %v4817, %v5025
  %5027 = vmatprep.mubr.f32.mxu0 %v4229
  %5028 = vmatmul.mubr.f32.gmra.mxu0 %v4001
  %v5029 = vpop.f32.mrf.mxu0
  %v5030 = vadd.f32 %v4821, %v5029
  %v5031 = vpop.f32.mrf.mxu0
  %v5032 = vadd.f32 %v4823, %v5031
  %5033 = vmatprep.mubr.f32.mxu0 %v4232
  %5034 = vmatmul.mubr.f32.gmra.mxu0 %v4005
  %v5035 = vpop.f32.mrf.mxu0
  %v5036 = vadd.f32 %v4827, %v5035
  %v5037 = vpop.f32.mrf.mxu0
  %v5038 = vadd.f32 %v4829, %v5037
  %5039 = vmatprep.mubr.f32.mxu0 %v4235
  %5040 = vmatmul.mubr.f32.gmra.mxu0 %v4009
  %v5041 = vpop.f32.mrf.mxu0
  %v5042 = vadd.f32 %v4833, %v5041
  %v5043 = vpop.f32.mrf.mxu0
  %v5044 = vadd.f32 %v4835, %v5043
  %5045 = vmatprep.mubr.f32.mxu0 %v4238
  %5046 = vmatmul.mubr.f32.gmra.mxu0 %v4013
  %v5047 = vpop.f32.mrf.mxu0
  %v5048 = vadd.f32 %v4839, %v5047
  %v5049 = vpop.f32.mrf.mxu0
  %v5050 = vadd.f32 %v4841, %v5049
  %5051 = vmatprep.mubr.f32.mxu0 %v4241
  %5052 = vmatmul.mubr.f32.gmra.mxu0 %v4017
  %v5053 = vpop.f32.mrf.mxu0
  %v5054 = vadd.f32 %v4845, %v5053
  %v5055 = vpop.f32.mrf.mxu0
  %v5056 = vadd.f32 %v4847, %v5055
  %5057 = vmatprep.mubr.f32.mxu0 %v4244
  %5058 = vmatmul.mubr.f32.gmra.mxu0 %v4021
  %v5059 = vpop.f32.mrf.mxu0
  %v5060 = vadd.f32 %v4851, %v5059
  %v5061 = vpop.f32.mrf.mxu0
  %v5062 = vadd.f32 %v4853, %v5061
  %5063 = vmatprep.mubr.f32.mxu0 %v4247
  %5064 = vmatmul.mubr.f32.gmra.mxu0 %v4025
  %v5065 = vpop.f32.mrf.mxu0
  %v5066 = vadd.f32 %v4857, %v5065
  %v5067 = vpop.f32.mrf.mxu0
  %v5068 = vadd.f32 %v4859, %v5067
  %5069 = vmatprep.mubr.f32.mxu0 %v4250
  %5070 = vmatmul.mubr.f32.gmra.mxu0 %v4029
  %v5071 = vpop.f32.mrf.mxu0
  %v5072 = vadd.f32 %v4863, %v5071
  %v5073 = vpop.f32.mrf.mxu0
  %v5074 = vadd.f32 %v4865, %v5073
  %5075 = vmatprep.mubr.f32.mxu0 %v4253
  %5076 = vmatmul.mubr.f32.gmra.mxu0 %v4033
  %v5077 = vpop.f32.mrf.mxu0
  %v5078 = vadd.f32 %v4869, %v5077
  %v5079 = vpop.f32.mrf.mxu0
  %v5080 = vadd.f32 %v4871, %v5079
  %5081 = vmatprep.mubr.f32.mxu0 %v4256
  %5082 = vmatmul.mubr.f32.gmra.mxu0 %v4037
  %v5083 = vpop.f32.mrf.mxu0
  %v5084 = vadd.f32 %v4875, %v5083
  %v5085 = vpop.f32.mrf.mxu0
  %v5086 = vadd.f32 %v4877, %v5085
  %5087 = vmatprep.mubr.f32.mxu0 %v4259
  %5088 = vmatmul.mubr.f32.gmra.mxu0 %v4041
  %v5089 = vpop.f32.mrf.mxu0
  %v5090 = vadd.f32 %v4881, %v5089
  %v5091 = vpop.f32.mrf.mxu0
  %v5092 = vadd.f32 %v4883, %v5091
  %5093 = vmatprep.mubr.f32.mxu0 %v4262
  %5094 = vmatmul.mubr.f32.gmra.mxu0 %v4045
  %v5095 = vpop.f32.mrf.mxu0
  %v5096 = vadd.f32 %v4887, %v5095
  %v5097 = vpop.f32.mrf.mxu0
  %v5098 = vadd.f32 %v4889, %v5097
  %5099 = vdwg.mxu0
  %v5100 = vmax.f32 %v4540, 0.0
  %v5101 = vmax.f32 %v4542, 0.0
  %v5102 = vmax.f32 %v4958, 0.0
  %v5103 = vmax.f32 %v4960, 0.0
  %v5104 = vmax.f32 %v4546, 0.0
  %v5105 = vmax.f32 %v4548, 0.0
  %v5106 = vmax.f32 %v4964, 0.0
  %v5107 = vmax.f32 %v4966, 0.0
  %v5108 = vmax.f32 %v4552, 0.0
  %v5109 = vmax.f32 %v4554, 0.0
  %v5110 = vmax.f32 %v4970, 0.0
  %v5111 = vmax.f32 %v4972, 0.0
  %v5112 = vmax.f32 %v4558, 0.0
  %v5113 = vmax.f32 %v4560, 0.0
  %v5114 = vmax.f32 %v4976, 0.0
  %v5115 = vmax.f32 %v4978, 0.0
  %v5116 = vmax.f32 %v4564, 0.0
  %v5117 = vmax.f32 %v4566, 0.0
  %v5118 = vmax.f32 %v4982, 0.0
  %v5119 = vmax.f32 %v4984, 0.0
  %v5120 = vmax.f32 %v4570, 0.0
  %v5121 = vmax.f32 %v4572, 0.0
  %v5122 = vmax.f32 %v4988, 0.0
  %v5123 = vmax.f32 %v4990, 0.0
  %v5124 = vmax.f32 %v4576, 0.0
  %v5125 = vmax.f32 %v4578, 0.0
  %v5126 = vmax.f32 %v4994, 0.0
  %v5127 = vmax.f32 %v4996, 0.0
  %v5128 = vmax.f32 %v4582, 0.0
  %v5129 = vmax.f32 %v4584, 0.0
  %v5130 = vmax.f32 %v5000, 0.0
  %v5131 = vmax.f32 %v5002, 0.0
  %v5132 = vmax.f32 %v4588, 0.0
  %v5133 = vmax.f32 %v4590, 0.0
  %v5134 = vmax.f32 %v5006, 0.0
  %v5135 = vmax.f32 %v5008, 0.0
  %v5136 = vmax.f32 %v4594, 0.0
  %v5137 = vmax.f32 %v4596, 0.0
  %v5138 = vmax.f32 %v5012, 0.0
  %v5139 = vmax.f32 %v5014, 0.0
  %v5140 = vmax.f32 %v4600, 0.0
  %v5141 = vmax.f32 %v4602, 0.0
  %v5142 = vmax.f32 %v5018, 0.0
  %v5143 = vmax.f32 %v5020, 0.0
  %v5144 = vmax.f32 %v4606, 0.0
  %v5145 = vmax.f32 %v4608, 0.0
  %v5146 = vmax.f32 %v5024, 0.0
  %v5147 = vmax.f32 %v5026, 0.0
  %v5148 = vmax.f32 %v4612, 0.0
  %v5149 = vmax.f32 %v4614, 0.0
  %v5150 = vmax.f32 %v5030, 0.0
  %v5151 = vmax.f32 %v5032, 0.0
  %v5152 = vmax.f32 %v4618, 0.0
  %v5153 = vmax.f32 %v4620, 0.0
  %v5154 = vmax.f32 %v5036, 0.0
  %v5155 = vmax.f32 %v5038, 0.0
  %v5156 = vmax.f32 %v4624, 0.0
  %v5157 = vmax.f32 %v4626, 0.0
  %v5158 = vmax.f32 %v5042, 0.0
  %v5159 = vmax.f32 %v5044, 0.0
  %v5160 = vmax.f32 %v4630, 0.0
  %v5161 = vmax.f32 %v4632, 0.0
  %v5162 = vmax.f32 %v5048, 0.0
  %v5163 = vmax.f32 %v5050, 0.0
  %v5164 = vmax.f32 %v4636, 0.0
  %v5165 = vmax.f32 %v4638, 0.0
  %v5166 = vmax.f32 %v5054, 0.0
  %v5167 = vmax.f32 %v5056, 0.0
  %v5168 = vmax.f32 %v4642, 0.0
  %v5169 = vmax.f32 %v4644, 0.0
  %v5170 = vmax.f32 %v5060, 0.0
  %v5171 = vmax.f32 %v5062, 0.0
  %v5172 = vmax.f32 %v4648, 0.0
  %v5173 = vmax.f32 %v4650, 0.0
  %v5174 = vmax.f32 %v5066, 0.0
  %v5175 = vmax.f32 %v5068, 0.0
  %v5176 = vmax.f32 %v4654, 0.0
  %v5177 = vmax.f32 %v4656, 0.0
  %v5178 = vmax.f32 %v5072, 0.0
  %v5179 = vmax.f32 %v5074, 0.0
  %v5180 = vmax.f32 %v4660, 0.0
  %v5181 = vmax.f32 %v4662, 0.0
  %v5182 = vmax.f32 %v5078, 0.0
  %v5183 = vmax.f32 %v5080, 0.0
  %v5184 = vmax.f32 %v4666, 0.0
  %v5185 = vmax.f32 %v4668, 0.0
  %v5186 = vmax.f32 %v5084, 0.0
  %v5187 = vmax.f32 %v5086, 0.0
  %v5188 = vmax.f32 %v4672, 0.0
  %v5189 = vmax.f32 %v4674, 0.0
  %v5190 = vmax.f32 %v5090, 0.0
  %v5191 = vmax.f32 %v5092, 0.0
  %v5192 = vmax.f32 %v4678, 0.0
  %v5193 = vmax.f32 %v4680, 0.0
  %v5194 = vmax.f32 %v5096, 0.0
  %v5195 = vmax.f32 %v5098, 0.0
  %v5196 = vmax.f32 %v5100, %v5101
  %v5197 = vmax.f32 %v5104, %v5105
  %v5198 = vmax.f32 %v5108, %v5109
  %v5199 = vmax.f32 %v5112, %v5113
  %v5200 = vmax.f32 %v5116, %v5117
  %v5201 = vmax.f32 %v5120, %v5121
  %v5202 = vmax.f32 %v5124, %v5125
  %v5203 = vmax.f32 %v5128, %v5129
  %v5204 = vmax.f32 %v5132, %v5133
  %v5205 = vmax.f32 %v5136, %v5137
  %v5206 = vmax.f32 %v5140, %v5141
  %v5207 = vmax.f32 %v5144, %v5145
  %v5208 = vmax.f32 %v5148, %v5149
  %v5209 = vmax.f32 %v5152, %v5153
  %v5210 = vmax.f32 %v5156, %v5157
  %v5211 = vmax.f32 %v5160, %v5161
  %v5212 = vmax.f32 %v5164, %v5165
  %v5213 = vmax.f32 %v5168, %v5169
  %v5214 = vmax.f32 %v5172, %v5173
  %v5215 = vmax.f32 %v5176, %v5177
  %v5216 = vmax.f32 %v5180, %v5181
  %v5217 = vmax.f32 %v5184, %v5185
  %v5218 = vmax.f32 %v5188, %v5189
  %v5219 = vmax.f32 %v5192, %v5193
  %v5220 = vmax.f32 %v5102, %v5103
  %v5221 = vmax.f32 %v5106, %v5107
  %v5222 = vmax.f32 %v5110, %v5111
  %v5223 = vmax.f32 %v5114, %v5115
  %v5224 = vmax.f32 %v5118, %v5119
  %v5225 = vmax.f32 %v5122, %v5123
  %v5226 = vmax.f32 %v5126, %v5127
  %v5227 = vmax.f32 %v5130, %v5131
  %v5228 = vmax.f32 %v5134, %v5135
  %v5229 = vmax.f32 %v5138, %v5139
  %v5230 = vmax.f32 %v5142, %v5143
  %v5231 = vmax.f32 %v5146, %v5147
  %v5232 = vmax.f32 %v5150, %v5151
  %v5233 = vmax.f32 %v5154, %v5155
  %v5234 = vmax.f32 %v5158, %v5159
  %v5235 = vmax.f32 %v5162, %v5163
  %v5236 = vmax.f32 %v5166, %v5167
  %v5237 = vmax.f32 %v5170, %v5171
  %v5238 = vmax.f32 %v5174, %v5175
  %v5239 = vmax.f32 %v5178, %v5179
  %v5240 = vmax.f32 %v5182, %v5183
  %v5241 = vmax.f32 %v5186, %v5187
  %v5242 = vmax.f32 %v5190, %v5191
  %v5243 = vmax.f32 %v5194, %v5195
  %v5244 = vld [vmem:[%s6] sm:$0xff]
  %v5245 = vld [vmem:[%s6 + $0x8] sm:$0xff]
  %v5246 = vld [vmem:[%s6 + $0x10] sm:$0xff]
  %v5247 = vld [vmem:[%s6 + $0x18] sm:$0xff]
  %v5248 = vld [vmem:[%s6 + $0x20] sm:$0xff]
  %v5249 = vld [vmem:[%s6 + $0x28] sm:$0xff]
  %v5250 = vld [vmem:[%s6 + $0x30] sm:$0xff]
  %v5251 = vld [vmem:[%s6 + $0x38] sm:$0xff]
  %v5252 = vld [vmem:[%s6 + $0x40] sm:$0xff]
  %v5253 = vld [vmem:[%s6 + $0x48] sm:$0xff]
  %v5254 = vld [vmem:[%s6 + $0x50] sm:$0xff]
  %v5255 = vld [vmem:[%s6 + $0x58] sm:$0xff]
  %v5256 = vld [vmem:[%s6 + $0x60] sm:$0xff]
  %v5257 = vld [vmem:[%s6 + $0x68] sm:$0xff]
  %v5258 = vld [vmem:[%s6 + $0x70] sm:$0xff]
  %v5259 = vld [vmem:[%s6 + $0x78] sm:$0xff]
  %v5260 = vld [vmem:[%s6 + $0x80] sm:$0xff]
  %v5261 = vld [vmem:[%s6 + $0x88] sm:$0xff]
  %v5262 = vld [vmem:[%s6 + $0x90] sm:$0xff]
  %v5263 = vld [vmem:[%s6 + $0x98] sm:$0xff]
  %v5264 = vld [vmem:[%s6 + $0xa0] sm:$0xff]
  %v5265 = vld [vmem:[%s6 + $0xa8] sm:$0xff]
  %v5266 = vld [vmem:[%s6 + $0xb0] sm:$0xff]
  %v5267 = vld [vmem:[%s6 + $0xb8] sm:$0xff]
  %v5269 = vsel %vm2661, %v5245, 0
  %v5272 = vsel %vm2661, %v5247, 0
  %v5275 = vsel %vm2661, %v5249, 0
  %v5278 = vsel %vm2661, %v5251, 0
  %v5281 = vsel %vm2661, %v5253, 0
  %v5284 = vsel %vm2661, %v5255, 0
  %v5287 = vsel %vm2661, %v5257, 0
  %v5290 = vsel %vm2661, %v5259, 0
  %v5293 = vsel %vm2661, %v5261, 0
  %v5296 = vsel %vm2661, %v5263, 0
  %v5299 = vsel %vm2661, %v5265, 0
  %v5302 = vsel %vm2661, %v5267, 0
  %5304 = vmatprep.subr.mxu0 %v5235
  %5305 = vmatpush1.msra.mxu0 %v5211
  %5306 = vmatprep.subr.mxu0 %v5234
  %5307 = vmatpush1.msra.mxu0 %v5210
  %5308 = vmatprep.subr.mxu0 %v5233
  %5309 = vmatpush1.msra.mxu0 %v5209
  %5310 = vmatprep.subr.mxu0 %v5232
  %5311 = vmatpush1.msra.mxu0 %v5208
  %5312 = vmatprep.subr.mxu0 %v5231
  %5313 = vmatpush1.msra.mxu0 %v5207
  %5314 = vmatprep.subr.mxu0 %v5230
  %5315 = vmatpush1.msra.mxu0 %v5206
  %5316 = vmatprep.subr.mxu0 %v5229
  %5317 = vmatpush1.msra.mxu0 %v5205
  %5318 = vmatprep.subr.mxu0 %v5228
  %5319 = vmatpush1.msra.mxu0 %v5204
  %5320 = vmatprep.subr.mxu0 %v5227
  %5321 = vmatpush1.msra.mxu0 %v5203
  %5322 = vmatprep.subr.mxu0 %v5226
  %5323 = vmatpush1.msra.mxu0 %v5202
  %5324 = vmatprep.subr.mxu0 %v5225
  %5325 = vmatpush1.msra.mxu0 %v5201
  %5326 = vmatprep.subr.mxu0 %v5224
  %5327 = vmatpush1.msra.mxu0 %v5200
  %5328 = vmatprep.subr.mxu0 %v5223
  %5329 = vmatpush1.msra.mxu0 %v5199
  %5330 = vmatprep.subr.mxu0 %v5222
  %5331 = vmatpush1.msra.mxu0 %v5198
  %5332 = vmatprep.subr.mxu0 %v5221
  %5333 = vmatpush1.msra.mxu0 %v5197
  %5334 = vmatprep.subr.mxu0 %v5220
  %5335 = vmatpush1.msra.mxu0 %v5196
  %5336 = vmatprep.subr.mxu0 0.0
  %5337 = vmatpush2.msra.mxu0 0.0
  %5338 = vmatprep.subr.mxu0 0.0
  %5339 = vmatpush2.msra.mxu0 0.0
  %5340 = vmatprep.subr.mxu0 0.0
  %5341 = vmatpush2.msra.mxu0 0.0
  %5342 = vmatprep.subr.mxu0 0.0
  %5343 = vmatpush2.msra.mxu0 0.0
  %5344 = vmatprep.subr.mxu0 0.0
  %5345 = vmatpush2.msra.mxu0 0.0
  %5346 = vmatprep.subr.mxu0 0.0
  %5347 = vmatpush2.msra.mxu0 0.0
  %5348 = vmatprep.subr.mxu0 0.0
  %5349 = vmatpush2.msra.mxu0 0.0
  %5350 = vmatprep.subr.mxu0 0.0
  %5351 = vmatpush2.msra.mxu0 0.0
  %5352 = vmatprep.subr.mxu0 %v5243
  %5353 = vmatpush2.msra.mxu0 %v5219
  %5354 = vmatprep.subr.mxu0 %v5242
  %5355 = vmatpush2.msra.mxu0 %v5218
  %5356 = vmatprep.subr.mxu0 %v5241
  %5357 = vmatpush2.msra.mxu0 %v5217
  %5358 = vmatprep.subr.mxu0 %v5240
  %5359 = vmatpush2.msra.mxu0 %v5216
  %5360 = vmatprep.subr.mxu0 %v5239
  %5361 = vmatpush2.msra.mxu0 %v5215
  %5362 = vmatprep.subr.mxu0 %v5238
  %5363 = vmatpush2.msra.mxu0 %v5214
  %5364 = vmatprep.subr.mxu0 %v5237
  %5365 = vmatpush2.msra.mxu0 %v5213
  %5366 = vmatprep.subr.mxu0 %v5236
  %5367 = vmatpush2.msra.mxu0 %v5212
  %5368 = vmatprep.mubr.f32.mxu0 %v5269
  %5369 = vmatmul.mubr.f32.gmra.mxu0 %v5244
  %v5370 = vpop.f32.mrf.mxu0
  %v5371 = vadd.f32 0.0, %v5370
  %v5372 = vpop.f32.mrf.mxu0
  %v5373 = vadd.f32 0.0, %v5372
  %5374 = vmatprep.mubr.f32.mxu0 %v5272
  %5375 = vmatmul.mubr.f32.gmra.mxu0 %v5246
  %v5376 = vpop.f32.mrf.mxu0
  %v5377 = vadd.f32 0.0, %v5376
  %v5378 = vpop.f32.mrf.mxu0
  %v5379 = vadd.f32 0.0, %v5378
  %5380 = vmatprep.mubr.f32.mxu0 %v5275
  %5381 = vmatmul.mubr.f32.gmra.mxu0 %v5248
  %v5382 = vpop.f32.mrf.mxu0
  %v5383 = vadd.f32 0.0, %v5382
  %v5384 = vpop.f32.mrf.mxu0
  %v5385 = vadd.f32 0.0, %v5384
  %5386 = vmatprep.mubr.f32.mxu0 %v5278
  %5387 = vmatmul.mubr.f32.gmra.mxu0 %v5250
  %v5388 = vpop.f32.mrf.mxu0
  %v5389 = vadd.f32 0.0, %v5388
  %v5390 = vpop.f32.mrf.mxu0
  %v5391 = vadd.f32 0.0, %v5390
  %5392 = vmatprep.mubr.f32.mxu0 %v5281
  %5393 = vmatmul.mubr.f32.gmra.mxu0 %v5252
  %v5394 = vpop.f32.mrf.mxu0
  %v5395 = vadd.f32 0.0, %v5394
  %v5396 = vpop.f32.mrf.mxu0
  %v5397 = vadd.f32 0.0, %v5396
  %5398 = vmatprep.mubr.f32.mxu0 %v5284
  %5399 = vmatmul.mubr.f32.gmra.mxu0 %v5254
  %v5400 = vpop.f32.mrf.mxu0
  %v5401 = vadd.f32 0.0, %v5400
  %v5402 = vpop.f32.mrf.mxu0
  %v5403 = vadd.f32 0.0, %v5402
  %5404 = vmatprep.mubr.f32.mxu0 %v5287
  %5405 = vmatmul.mubr.f32.gmra.mxu0 %v5256
  %v5406 = vpop.f32.mrf.mxu0
  %v5407 = vadd.f32 0.0, %v5406
  %v5408 = vpop.f32.mrf.mxu0
  %v5409 = vadd.f32 0.0, %v5408
  %5410 = vmatprep.mubr.f32.mxu0 %v5290
  %5411 = vmatmul.mubr.f32.gmra.mxu0 %v5258
  %v5412 = vpop.f32.mrf.mxu0
  %v5413 = vadd.f32 0.0, %v5412
  %v5414 = vpop.f32.mrf.mxu0
  %v5415 = vadd.f32 0.0, %v5414
  %5416 = vmatprep.mubr.f32.mxu0 %v5293
  %5417 = vmatmul.mubr.f32.gmra.mxu0 %v5260
  %v5418 = vpop.f32.mrf.mxu0
  %v5419 = vadd.f32 0.0, %v5418
  %v5420 = vpop.f32.mrf.mxu0
  %v5421 = vadd.f32 0.0, %v5420
  %5422 = vmatprep.mubr.f32.mxu0 %v5296
  %5423 = vmatmul.mubr.f32.gmra.mxu0 %v5262
  %v5424 = vpop.f32.mrf.mxu0
  %v5425 = vadd.f32 0.0, %v5424
  %v5426 = vpop.f32.mrf.mxu0
  %v5427 = vadd.f32 0.0, %v5426
  %5428 = vmatprep.mubr.f32.mxu0 %v5299
  %5429 = vmatmul.mubr.f32.gmra.mxu0 %v5264
  %v5430 = vpop.f32.mrf.mxu0
  %v5431 = vadd.f32 0.0, %v5430
  %v5432 = vpop.f32.mrf.mxu0
  %v5433 = vadd.f32 0.0, %v5432
  %5434 = vmatprep.mubr.f32.mxu0 %v5302
  %5435 = vmatmul.mubr.f32.gmra.mxu0 %v5266
  %v5436 = vpop.f32.mrf.mxu0
  %v5437 = vadd.f32 0.0, %v5436
  %v5438 = vpop.f32.mrf.mxu0
  %v5439 = vadd.f32 0.0, %v5438
  %5440 = vdwg.mxu0
  %s5441 = scalar_lea.vmem %s6, 192
  %v5442 = vld [vmem:[%s5441] sm:$0xff]
  %v5443 = vld [vmem:[%s5441 + $0x8] sm:$0xff]
  %v5444 = vld [vmem:[%s5441 + $0x10] sm:$0xff]
  %v5445 = vld [vmem:[%s5441 + $0x18] sm:$0xff]
  %v5446 = vld [vmem:[%s5441 + $0x20] sm:$0xff]
  %v5447 = vld [vmem:[%s5441 + $0x28] sm:$0xff]
  %v5448 = vld [vmem:[%s5441 + $0x30] sm:$0xff]
  %v5449 = vld [vmem:[%s5441 + $0x38] sm:$0xff]
  %v5450 = vld [vmem:[%s5441 + $0x40] sm:$0xff]
  %v5451 = vld [vmem:[%s5441 + $0x48] sm:$0xff]
  %v5452 = vld [vmem:[%s5441 + $0x50] sm:$0xff]
  %v5453 = vld [vmem:[%s5441 + $0x58] sm:$0xff]
  %v5454 = vld [vmem:[%s5441 + $0x60] sm:$0xff]
  %v5455 = vld [vmem:[%s5441 + $0x68] sm:$0xff]
  %v5456 = vld [vmem:[%s5441 + $0x70] sm:$0xff]
  %v5457 = vld [vmem:[%s5441 + $0x78] sm:$0xff]
  %v5458 = vld [vmem:[%s5441 + $0x80] sm:$0xff]
  %v5459 = vld [vmem:[%s5441 + $0x88] sm:$0xff]
  %v5460 = vld [vmem:[%s5441 + $0x90] sm:$0xff]
  %v5461 = vld [vmem:[%s5441 + $0x98] sm:$0xff]
  %v5462 = vld [vmem:[%s5441 + $0xa0] sm:$0xff]
  %v5463 = vld [vmem:[%s5441 + $0xa8] sm:$0xff]
  %v5464 = vld [vmem:[%s5441 + $0xb0] sm:$0xff]
  %v5465 = vld [vmem:[%s5441 + $0xb8] sm:$0xff]
  %v5467 = vsel %vm2661, %v5443, 0
  %v5470 = vsel %vm2661, %v5445, 0
  %v5473 = vsel %vm2661, %v5447, 0
  %v5476 = vsel %vm2661, %v5449, 0
  %v5479 = vsel %vm2661, %v5451, 0
  %v5482 = vsel %vm2661, %v5453, 0
  %v5485 = vsel %vm2661, %v5455, 0
  %v5488 = vsel %vm2661, %v5457, 0
  %v5491 = vsel %vm2661, %v5459, 0
  %v5494 = vsel %vm2661, %v5461, 0
  %v5497 = vsel %vm2661, %v5463, 0
  %v5500 = vsel %vm2661, %v5465, 0
  %5502 = vmatprep.subr.mxu0 %v5235
  %5503 = vmatpush1.msra.mxu0 %v5211
  %5504 = vmatprep.subr.mxu0 %v5234
  %5505 = vmatpush1.msra.mxu0 %v5210
  %5506 = vmatprep.subr.mxu0 %v5233
  %5507 = vmatpush1.msra.mxu0 %v5209
  %5508 = vmatprep.subr.mxu0 %v5232
  %5509 = vmatpush1.msra.mxu0 %v5208
  %5510 = vmatprep.subr.mxu0 %v5231
  %5511 = vmatpush1.msra.mxu0 %v5207
  %5512 = vmatprep.subr.mxu0 %v5230
  %5513 = vmatpush1.msra.mxu0 %v5206
  %5514 = vmatprep.subr.mxu0 %v5229
  %5515 = vmatpush1.msra.mxu0 %v5205
  %5516 = vmatprep.subr.mxu0 %v5228
  %5517 = vmatpush1.msra.mxu0 %v5204
  %5518 = vmatprep.subr.mxu0 %v5227
  %5519 = vmatpush1.msra.mxu0 %v5203
  %5520 = vmatprep.subr.mxu0 %v5226
  %5521 = vmatpush1.msra.mxu0 %v5202
  %5522 = vmatprep.subr.mxu0 %v5225
  %5523 = vmatpush1.msra.mxu0 %v5201
  %5524 = vmatprep.subr.mxu0 %v5224
  %5525 = vmatpush1.msra.mxu0 %v5200
  %5526 = vmatprep.subr.mxu0 %v5223
  %5527 = vmatpush1.msra.mxu0 %v5199
  %5528 = vmatprep.subr.mxu0 %v5222
  %5529 = vmatpush1.msra.mxu0 %v5198
  %5530 = vmatprep.subr.mxu0 %v5221
  %5531 = vmatpush1.msra.mxu0 %v5197
  %5532 = vmatprep.subr.mxu0 %v5220
  %5533 = vmatpush1.msra.mxu0 %v5196
  %5534 = vmatprep.subr.mxu0 0.0
  %5535 = vmatpush2.msra.mxu0 0.0
  %5536 = vmatprep.subr.mxu0 0.0
  %5537 = vmatpush2.msra.mxu0 0.0
  %5538 = vmatprep.subr.mxu0 0.0
  %5539 = vmatpush2.msra.mxu0 0.0
  %5540 = vmatprep.subr.mxu0 0.0
  %5541 = vmatpush2.msra.mxu0 0.0
  %5542 = vmatprep.subr.mxu0 0.0
  %5543 = vmatpush2.msra.mxu0 0.0
  %5544 = vmatprep.subr.mxu0 0.0
  %5545 = vmatpush2.msra.mxu0 0.0
  %5546 = vmatprep.subr.mxu0 0.0
  %5547 = vmatpush2.msra.mxu0 0.0
  %5548 = vmatprep.subr.mxu0 0.0
  %5549 = vmatpush2.msra.mxu0 0.0
  %5550 = vmatprep.subr.mxu0 %v5243
  %5551 = vmatpush2.msra.mxu0 %v5219
  %5552 = vmatprep.subr.mxu0 %v5242
  %5553 = vmatpush2.msra.mxu0 %v5218
  %5554 = vmatprep.subr.mxu0 %v5241
  %5555 = vmatpush2.msra.mxu0 %v5217
  %5556 = vmatprep.subr.mxu0 %v5240
  %5557 = vmatpush2.msra.mxu0 %v5216
  %5558 = vmatprep.subr.mxu0 %v5239
  %5559 = vmatpush2.msra.mxu0 %v5215
  %5560 = vmatprep.subr.mxu0 %v5238
  %5561 = vmatpush2.msra.mxu0 %v5214
  %5562 = vmatprep.subr.mxu0 %v5237
  %5563 = vmatpush2.msra.mxu0 %v5213
  %5564 = vmatprep.subr.mxu0 %v5236
  %5565 = vmatpush2.msra.mxu0 %v5212
  %5566 = vmatprep.mubr.f32.mxu0 %v5467
  %5567 = vmatmul.mubr.f32.gmra.mxu0 %v5442
  %v5568 = vpop.f32.mrf.mxu0
  %v5569 = vadd.f32 0.0, %v5568
  %v5570 = vpop.f32.mrf.mxu0
  %v5571 = vadd.f32 0.0, %v5570
  %5572 = vmatprep.mubr.f32.mxu0 %v5470
  %5573 = vmatmul.mubr.f32.gmra.mxu0 %v5444
  %v5574 = vpop.f32.mrf.mxu0
  %v5575 = vadd.f32 0.0, %v5574
  %v5576 = vpop.f32.mrf.mxu0
  %v5577 = vadd.f32 0.0, %v5576
  %5578 = vmatprep.mubr.f32.mxu0 %v5473
  %5579 = vmatmul.mubr.f32.gmra.mxu0 %v5446
  %v5580 = vpop.f32.mrf.mxu0
  %v5581 = vadd.f32 0.0, %v5580
  %v5582 = vpop.f32.mrf.mxu0
  %v5583 = vadd.f32 0.0, %v5582
  %5584 = vmatprep.mubr.f32.mxu0 %v5476
  %5585 = vmatmul.mubr.f32.gmra.mxu0 %v5448
  %v5586 = vpop.f32.mrf.mxu0
  %v5587 = vadd.f32 0.0, %v5586
  %v5588 = vpop.f32.mrf.mxu0
  %v5589 = vadd.f32 0.0, %v5588
  %5590 = vmatprep.mubr.f32.mxu0 %v5479
  %5591 = vmatmul.mubr.f32.gmra.mxu0 %v5450
  %v5592 = vpop.f32.mrf.mxu0
  %v5593 = vadd.f32 0.0, %v5592
  %v5594 = vpop.f32.mrf.mxu0
  %v5595 = vadd.f32 0.0, %v5594
  %5596 = vmatprep.mubr.f32.mxu0 %v5482
  %5597 = vmatmul.mubr.f32.gmra.mxu0 %v5452
  %v5598 = vpop.f32.mrf.mxu0
  %v5599 = vadd.f32 0.0, %v5598
  %v5600 = vpop.f32.mrf.mxu0
  %v5601 = vadd.f32 0.0, %v5600
  %5602 = vmatprep.mubr.f32.mxu0 %v5485
  %5603 = vmatmul.mubr.f32.gmra.mxu0 %v5454
  %v5604 = vpop.f32.mrf.mxu0
  %v5605 = vadd.f32 0.0, %v5604
  %v5606 = vpop.f32.mrf.mxu0
  %v5607 = vadd.f32 0.0, %v5606
  %5608 = vmatprep.mubr.f32.mxu0 %v5488
  %5609 = vmatmul.mubr.f32.gmra.mxu0 %v5456
  %v5610 = vpop.f32.mrf.mxu0
  %v5611 = vadd.f32 0.0, %v5610
  %v5612 = vpop.f32.mrf.mxu0
  %v5613 = vadd.f32 0.0, %v5612
  %5614 = vmatprep.mubr.f32.mxu0 %v5491
  %5615 = vmatmul.mubr.f32.gmra.mxu0 %v5458
  %v5616 = vpop.f32.mrf.mxu0
  %v5617 = vadd.f32 0.0, %v5616
  %v5618 = vpop.f32.mrf.mxu0
  %v5619 = vadd.f32 0.0, %v5618
  %5620 = vmatprep.mubr.f32.mxu0 %v5494
  %5621 = vmatmul.mubr.f32.gmra.mxu0 %v5460
  %v5622 = vpop.f32.mrf.mxu0
  %v5623 = vadd.f32 0.0, %v5622
  %v5624 = vpop.f32.mrf.mxu0
  %v5625 = vadd.f32 0.0, %v5624
  %5626 = vmatprep.mubr.f32.mxu0 %v5497
  %5627 = vmatmul.mubr.f32.gmra.mxu0 %v5462
  %v5628 = vpop.f32.mrf.mxu0
  %v5629 = vadd.f32 0.0, %v5628
  %v5630 = vpop.f32.mrf.mxu0
  %v5631 = vadd.f32 0.0, %v5630
  %5632 = vmatprep.mubr.f32.mxu0 %v5500
  %5633 = vmatmul.mubr.f32.gmra.mxu0 %v5464
  %v5634 = vpop.f32.mrf.mxu0
  %v5635 = vadd.f32 0.0, %v5634
  %v5636 = vpop.f32.mrf.mxu0
  %v5637 = vadd.f32 0.0, %v5636
  %5638 = vdwg.mxu0
  %v5639 = vmax.f32 %v5371, %v5569
  %v5640 = vmax.f32 %v5373, %v5571
  %v5641 = vmax.f32 %v5377, %v5575
  %v5642 = vmax.f32 %v5379, %v5577
  %v5643 = vmax.f32 %v5383, %v5581
  %v5644 = vmax.f32 %v5385, %v5583
  %v5645 = vmax.f32 %v5389, %v5587
  %v5646 = vmax.f32 %v5391, %v5589
  %v5647 = vmax.f32 %v5395, %v5593
  %v5648 = vmax.f32 %v5397, %v5595
  %v5649 = vmax.f32 %v5401, %v5599
  %v5650 = vmax.f32 %v5403, %v5601
  %v5651 = vmax.f32 %v5407, %v5605
  %v5652 = vmax.f32 %v5409, %v5607
  %v5653 = vmax.f32 %v5413, %v5611
  %v5654 = vmax.f32 %v5415, %v5613
  %v5655 = vmax.f32 %v5419, %v5617
  %v5656 = vmax.f32 %v5421, %v5619
  %v5657 = vmax.f32 %v5425, %v5623
  %v5658 = vmax.f32 %v5427, %v5625
  %v5659 = vmax.f32 %v5431, %v5629
  %v5660 = vmax.f32 %v5433, %v5631
  %v5661 = vmax.f32 %v5437, %v5635
  %v5662 = vmax.f32 %v5439, %v5637
  %v5663 = vld [vmem:[%s7] sm:$0xff]
  %v5664 = vld [vmem:[%s7 + $0x8] sm:$0xff]
  %v5665 = vld [vmem:[%s7 + $0x10] sm:$0xff]
  %v5666 = vld [vmem:[%s7 + $0x18] sm:$0xff]
  %v5667 = vld [vmem:[%s7 + $0x20] sm:$0xff]
  %v5668 = vld [vmem:[%s7 + $0x28] sm:$0xff]
  %v5669 = vld [vmem:[%s7 + $0x30] sm:$0xff]
  %v5670 = vld [vmem:[%s7 + $0x38] sm:$0xff]
  %v5671 = vld [vmem:[%s7 + $0x40] sm:$0xff]
  %v5672 = vld [vmem:[%s7 + $0x48] sm:$0xff]
  %v5673 = vld [vmem:[%s7 + $0x50] sm:$0xff]
  %v5674 = vld [vmem:[%s7 + $0x58] sm:$0xff]
  %v5675 = vld [vmem:[%s7 + $0x60] sm:$0xff]
  %v5676 = vld [vmem:[%s7 + $0x68] sm:$0xff]
  %v5677 = vld [vmem:[%s7 + $0x70] sm:$0xff]
  %v5678 = vld [vmem:[%s7 + $0x78] sm:$0xff]
  %v5679 = vld [vmem:[%s7 + $0x80] sm:$0xff]
  %v5680 = vld [vmem:[%s7 + $0x88] sm:$0xff]
  %v5681 = vld [vmem:[%s7 + $0x90] sm:$0xff]
  %v5682 = vld [vmem:[%s7 + $0x98] sm:$0xff]
  %v5683 = vld [vmem:[%s7 + $0xa0] sm:$0xff]
  %v5684 = vld [vmem:[%s7 + $0xa8] sm:$0xff]
  %v5685 = vld [vmem:[%s7 + $0xb0] sm:$0xff]
  %v5686 = vld [vmem:[%s7 + $0xb8] sm:$0xff]
  %v5687 = vld [vmem:[%s7 + $0xc0] sm:$0xff]
  %v5688 = vld [vmem:[%s7 + $0xc8] sm:$0xff]
  %v5689 = vld [vmem:[%s7 + $0xd0] sm:$0xff]
  %v5690 = vld [vmem:[%s7 + $0xd8] sm:$0xff]
  %v5691 = vld [vmem:[%s7 + $0xe0] sm:$0xff]
  %v5692 = vld [vmem:[%s7 + $0xe8] sm:$0xff]
  %v5693 = vld [vmem:[%s8] sm:$0xff]
  %v5694 = vld [vmem:[%s8 + $0x8] sm:$0xff]
  %v5695 = vld [vmem:[%s8 + $0x10] sm:$0xff]
  %v5696 = vld [vmem:[%s8 + $0x18] sm:$0xff]
  %v5697 = vld [vmem:[%s8 + $0x20] sm:$0xff]
  %v5698 = vld [vmem:[%s8 + $0x28] sm:$0xff]
  %v5699 = vld [vmem:[%s8 + $0x30] sm:$0xff]
  %v5700 = vld [vmem:[%s8 + $0x38] sm:$0xff]
  %v5701 = vld [vmem:[%s8 + $0x40] sm:$0xff]
  %v5702 = vld [vmem:[%s8 + $0x48] sm:$0xff]
  %v5703 = vld [vmem:[%s8 + $0x50] sm:$0xff]
  %v5704 = vld [vmem:[%s8 + $0x58] sm:$0xff]
  %v5705 = vld [vmem:[%s8 + $0x60] sm:$0xff]
  %v5706 = vld [vmem:[%s8 + $0x68] sm:$0xff]
  %v5707 = vld [vmem:[%s8 + $0x70] sm:$0xff]
  %5709 = vset.pattern.permute.xlu0 0
  %5710 = vperm.xlu0 %5709, %v5693
  %v5711 = vpop.permute.xlu0 %5710
  %5714 = vset.pattern.permute.xlu0 0
  %5715 = vperm.xlu0 %5714, %v5694
  %v5716 = vpop.permute.xlu0 %5715
  %5719 = vset.pattern.permute.xlu0 0
  %5720 = vperm.xlu0 %5719, %v5695
  %v5721 = vpop.permute.xlu0 %5720
  %5724 = vset.pattern.permute.xlu0 0
  %5725 = vperm.xlu0 %5724, %v5696
  %v5726 = vpop.permute.xlu0 %5725
  %5729 = vset.pattern.permute.xlu0 0
  %5730 = vperm.xlu0 %5729, %v5697
  %v5731 = vpop.permute.xlu0 %5730
  %5734 = vset.pattern.permute.xlu0 0
  %5735 = vperm.xlu0 %5734, %v5698
  %v5736 = vpop.permute.xlu0 %5735
  %5739 = vset.pattern.permute.xlu0 0
  %5740 = vperm.xlu0 %5739, %v5699
  %v5741 = vpop.permute.xlu0 %5740
  %5744 = vset.pattern.permute.xlu0 0
  %5745 = vperm.xlu0 %5744, %v5700
  %v5746 = vpop.permute.xlu0 %5745
  %5749 = vset.pattern.permute.xlu0 0
  %5750 = vperm.xlu0 %5749, %v5701
  %v5751 = vpop.permute.xlu0 %5750
  %5754 = vset.pattern.permute.xlu0 0
  %5755 = vperm.xlu0 %5754, %v5702
  %v5756 = vpop.permute.xlu0 %5755
  %5759 = vset.pattern.permute.xlu0 0
  %5760 = vperm.xlu0 %5759, %v5703
  %v5761 = vpop.permute.xlu0 %5760
  %5764 = vset.pattern.permute.xlu0 0
  %5765 = vperm.xlu0 %5764, %v5704
  %v5766 = vpop.permute.xlu0 %5765
  %5769 = vset.pattern.permute.xlu0 0
  %5770 = vperm.xlu0 %5769, %v5705
  %v5771 = vpop.permute.xlu0 %5770
  %5774 = vset.pattern.permute.xlu0 0
  %5775 = vperm.xlu0 %5774, %v5706
  %v5776 = vpop.permute.xlu0 %5775
  %5779 = vset.pattern.permute.xlu0 0
  %5780 = vperm.xlu0 %5779, %v5707
  %v5781 = vpop.permute.xlu0 %5780
  %v5784 = vsel %vm2661, %v5664, 0
  %v5787 = vsel %vm2661, %v5666, 0
  %v5790 = vsel %vm2661, %v5668, 0
  %v5793 = vsel %vm2661, %v5670, 0
  %v5796 = vsel %vm2661, %v5672, 0
  %v5799 = vsel %vm2661, %v5674, 0
  %v5802 = vsel %vm2661, %v5676, 0
  %v5805 = vsel %vm2661, %v5678, 0
  %v5808 = vsel %vm2661, %v5680, 0
  %v5811 = vsel %vm2661, %v5682, 0
  %v5814 = vsel %vm2661, %v5684, 0
  %v5817 = vsel %vm2661, %v5686, 0
  %v5820 = vsel %vm2661, %v5688, 0
  %v5823 = vsel %vm2661, %v5690, 0
  %v5826 = vsel %vm2661, %v5692, 0
  %5828 = vmatprep.subr.mxu0 0.0
  %5829 = vmatpush1.msra.mxu0 %v5646
  %5830 = vmatprep.subr.mxu0 0.0
  %5831 = vmatpush1.msra.mxu0 %v5644
  %5832 = vmatprep.subr.mxu0 0.0
  %5833 = vmatpush1.msra.mxu0 %v5642
  %5834 = vmatprep.subr.mxu0 0.0
  %5835 = vmatpush1.msra.mxu0 %v5640
  %5836 = vmatprep.subr.mxu0 0.0
  %5837 = vmatpush1.msra.mxu0 %v5661
  %5838 = vmatprep.subr.mxu0 0.0
  %5839 = vmatpush1.msra.mxu0 %v5659
  %5840 = vmatprep.subr.mxu0 0.0
  %5841 = vmatpush1.msra.mxu0 %v5657
  %5842 = vmatprep.subr.mxu0 0.0
  %5843 = vmatpush1.msra.mxu0 %v5655
  %5844 = vmatprep.subr.mxu0 0.0
  %5845 = vmatpush1.msra.mxu0 %v5653
  %5846 = vmatprep.subr.mxu0 0.0
  %5847 = vmatpush1.msra.mxu0 %v5651
  %5848 = vmatprep.subr.mxu0 0.0
  %5849 = vmatpush1.msra.mxu0 %v5649
  %5850 = vmatprep.subr.mxu0 0.0
  %5851 = vmatpush1.msra.mxu0 %v5647
  %5852 = vmatprep.subr.mxu0 0.0
  %5853 = vmatpush1.msra.mxu0 %v5645
  %5854 = vmatprep.subr.mxu0 0.0
  %5855 = vmatpush1.msra.mxu0 %v5643
  %5856 = vmatprep.subr.mxu0 0.0
  %5857 = vmatpush1.msra.mxu0 %v5641
  %5858 = vmatprep.subr.mxu0 0.0
  %5859 = vmatpush1.msra.mxu0 %v5639
  %5860 = vmatprep.subr.mxu0 0.0
  %5861 = vmatpush2.msra.mxu0 0.0
  %5862 = vmatprep.subr.mxu0 0.0
  %5863 = vmatpush2.msra.mxu0 0.0
  %5864 = vmatprep.subr.mxu0 0.0
  %5865 = vmatpush2.msra.mxu0 0.0
  %5866 = vmatprep.subr.mxu0 0.0
  %5867 = vmatpush2.msra.mxu0 0.0
  %5868 = vmatprep.subr.mxu0 0.0
  %5869 = vmatpush2.msra.mxu0 0.0
  %5870 = vmatprep.subr.mxu0 0.0
  %5871 = vmatpush2.msra.mxu0 0.0
  %5872 = vmatprep.subr.mxu0 0.0
  %5873 = vmatpush2.msra.mxu0 0.0
  %5874 = vmatprep.subr.mxu0 0.0
  %5875 = vmatpush2.msra.mxu0 0.0
  %5876 = vmatprep.subr.mxu0 0.0
  %5877 = vmatpush2.msra.mxu0 %v5662
  %5878 = vmatprep.subr.mxu0 0.0
  %5879 = vmatpush2.msra.mxu0 %v5660
  %5880 = vmatprep.subr.mxu0 0.0
  %5881 = vmatpush2.msra.mxu0 %v5658
  %5882 = vmatprep.subr.mxu0 0.0
  %5883 = vmatpush2.msra.mxu0 %v5656
  %5884 = vmatprep.subr.mxu0 0.0
  %5885 = vmatpush2.msra.mxu0 %v5654
  %5886 = vmatprep.subr.mxu0 0.0
  %5887 = vmatpush2.msra.mxu0 %v5652
  %5888 = vmatprep.subr.mxu0 0.0
  %5889 = vmatpush2.msra.mxu0 %v5650
  %5890 = vmatprep.subr.mxu0 0.0
  %5891 = vmatpush2.msra.mxu0 %v5648
  %5892 = vmatprep.mubr.f32.mxu0 %v5784
  %5893 = vmatmul.mubr.f32.gmra.mxu0 %v5663
  %v5894 = vpop.f32.mrf.mxu0
  %v5895 = vadd.f32 %v5711, %v5894
  %v5896 = vpop.f32.mrf.mxu0
  %5897 = vmatprep.mubr.f32.mxu0 %v5787
  %5898 = vmatmul.mubr.f32.gmra.mxu0 %v5665
  %v5899 = vpop.f32.mrf.mxu0
  %v5900 = vadd.f32 %v5716, %v5899
  %v5901 = vpop.f32.mrf.mxu0
  %5902 = vmatprep.mubr.f32.mxu0 %v5790
  %5903 = vmatmul.mubr.f32.gmra.mxu0 %v5667
  %v5904 = vpop.f32.mrf.mxu0
  %v5905 = vadd.f32 %v5721, %v5904
  %v5906 = vpop.f32.mrf.mxu0
  %5907 = vmatprep.mubr.f32.mxu0 %v5793
  %5908 = vmatmul.mubr.f32.gmra.mxu0 %v5669
  %v5909 = vpop.f32.mrf.mxu0
  %v5910 = vadd.f32 %v5726, %v5909
  %v5911 = vpop.f32.mrf.mxu0
  %5912 = vmatprep.mubr.f32.mxu0 %v5796
  %5913 = vmatmul.mubr.f32.gmra.mxu0 %v5671
  %v5914 = vpop.f32.mrf.mxu0
  %v5915 = vadd.f32 %v5731, %v5914
  %v5916 = vpop.f32.mrf.mxu0
  %5917 = vmatprep.mubr.f32.mxu0 %v5799
  %5918 = vmatmul.mubr.f32.gmra.mxu0 %v5673
  %v5919 = vpop.f32.mrf.mxu0
  %v5920 = vadd.f32 %v5736, %v5919
  %v5921 = vpop.f32.mrf.mxu0
  %5922 = vmatprep.mubr.f32.mxu0 %v5802
  %5923 = vmatmul.mubr.f32.gmra.mxu0 %v5675
  %v5924 = vpop.f32.mrf.mxu0
  %v5925 = vadd.f32 %v5741, %v5924
  %v5926 = vpop.f32.mrf.mxu0
  %5927 = vmatprep.mubr.f32.mxu0 %v5805
  %5928 = vmatmul.mubr.f32.gmra.mxu0 %v5677
  %v5929 = vpop.f32.mrf.mxu0
  %v5930 = vadd.f32 %v5746, %v5929
  %v5931 = vpop.f32.mrf.mxu0
  %5932 = vmatprep.mubr.f32.mxu0 %v5808
  %5933 = vmatmul.mubr.f32.gmra.mxu0 %v5679
  %v5934 = vpop.f32.mrf.mxu0
  %v5935 = vadd.f32 %v5751, %v5934
  %v5936 = vpop.f32.mrf.mxu0
  %5937 = vmatprep.mubr.f32.mxu0 %v5811
  %5938 = vmatmul.mubr.f32.gmra.mxu0 %v5681
  %v5939 = vpop.f32.mrf.mxu0
  %v5940 = vadd.f32 %v5756, %v5939
  %v5941 = vpop.f32.mrf.mxu0
  %5942 = vmatprep.mubr.f32.mxu0 %v5814
  %5943 = vmatmul.mubr.f32.gmra.mxu0 %v5683
  %v5944 = vpop.f32.mrf.mxu0
  %v5945 = vadd.f32 %v5761, %v5944
  %v5946 = vpop.f32.mrf.mxu0
  %5947 = vmatprep.mubr.f32.mxu0 %v5817
  %5948 = vmatmul.mubr.f32.gmra.mxu0 %v5685
  %v5949 = vpop.f32.mrf.mxu0
  %v5950 = vadd.f32 %v5766, %v5949
  %v5951 = vpop.f32.mrf.mxu0
  %5952 = vmatprep.mubr.f32.mxu0 %v5820
  %5953 = vmatmul.mubr.f32.gmra.mxu0 %v5687
  %v5954 = vpop.f32.mrf.mxu0
  %v5955 = vadd.f32 %v5771, %v5954
  %v5956 = vpop.f32.mrf.mxu0
  %5957 = vmatprep.mubr.f32.mxu0 %v5823
  %5958 = vmatmul.mubr.f32.gmra.mxu0 %v5689
  %v5959 = vpop.f32.mrf.mxu0
  %v5960 = vadd.f32 %v5776, %v5959
  %v5961 = vpop.f32.mrf.mxu0
  %5962 = vmatprep.mubr.f32.mxu0 %v5826
  %5963 = vmatmul.mubr.f32.gmra.mxu0 %v5691
  %v5964 = vpop.f32.mrf.mxu0
  %v5965 = vadd.f32 %v5781, %v5964
  %v5966 = vpop.f32.mrf.mxu0
  %5967 = vdwg.mxu0
  %v5968 = vmax.f32 %v5895, 0.0
  %v5969 = vmax.f32 %v5900, 0.0
  %v5970 = vmax.f32 %v5905, 0.0
  %v5971 = vmax.f32 %v5910, 0.0
  %v5972 = vmax.f32 %v5915, 0.0
  %v5973 = vmax.f32 %v5920, 0.0
  %v5974 = vmax.f32 %v5925, 0.0
  %v5975 = vmax.f32 %v5930, 0.0
  %v5976 = vmax.f32 %v5935, 0.0
  %v5977 = vmax.f32 %v5940, 0.0
  %v5978 = vmax.f32 %v5945, 0.0
  %v5979 = vmax.f32 %v5950, 0.0
  %v5980 = vmax.f32 %v5955, 0.0
  %v5981 = vmax.f32 %v5960, 0.0
  %v5982 = vmax.f32 %v5965, 0.0
  %v5983 = vld [vmem:[%s9] sm:$0xff]
  %v5984 = vld [vmem:[%s9 + $0x8] sm:$0xff]
  %v5985 = vld [vmem:[%s9 + $0x10] sm:$0xff]
  %v5986 = vld [vmem:[%s9 + $0x18] sm:$0xff]
  %v5987 = vld [vmem:[%s9 + $0x20] sm:$0xff]
  %v5988 = vld [vmem:[%s9 + $0x28] sm:$0xff]
  %v5989 = vld [vmem:[%s9 + $0x30] sm:$0xff]
  %v5990 = vld [vmem:[%s9 + $0x38] sm:$0xff]
  %v5991 = vld [vmem:[%s9 + $0x40] sm:$0xff]
  %v5992 = vld [vmem:[%s9 + $0x48] sm:$0xff]
  %v5993 = vld [vmem:[%s9 + $0x50] sm:$0xf]
  %v5994 = vld [vmem:[%s10] sm:$0xff]
  %v5995 = vld [vmem:[%s10 + $0x8] sm:$0xff]
  %v5996 = vld [vmem:[%s10 + $0x10] sm:$0xff]
  %v5997 = vld [vmem:[%s10 + $0x18] sm:$0xff]
  %v5998 = vld [vmem:[%s10 + $0x20] sm:$0xff]
  %v5999 = vld [vmem:[%s10 + $0x28] sm:$0xff]
  %v6000 = vld [vmem:[%s10 + $0x30] sm:$0xff]
  %v6001 = vld [vmem:[%s10 + $0x38] sm:$0xff]
  %v6002 = vld [vmem:[%s10 + $0x40] sm:$0xff]
  %v6003 = vld [vmem:[%s10 + $0x48] sm:$0xff]
  %v6004 = vld [vmem:[%s10 + $0x50] sm:$0xf]
  %6006 = vset.pattern.permute.xlu0 0
  %6007 = vperm.xlu0 %6006, %v5994
  %v6008 = vpop.permute.xlu0 %6007
  %6011 = vset.pattern.permute.xlu0 0
  %6012 = vperm.xlu0 %6011, %v5995
  %v6013 = vpop.permute.xlu0 %6012
  %6016 = vset.pattern.permute.xlu0 0
  %6017 = vperm.xlu0 %6016, %v5996
  %v6018 = vpop.permute.xlu0 %6017
  %6021 = vset.pattern.permute.xlu0 0
  %6022 = vperm.xlu0 %6021, %v5997
  %v6023 = vpop.permute.xlu0 %6022
  %6026 = vset.pattern.permute.xlu0 0
  %6027 = vperm.xlu0 %6026, %v5998
  %v6028 = vpop.permute.xlu0 %6027
  %6031 = vset.pattern.permute.xlu0 0
  %6032 = vperm.xlu0 %6031, %v5999
  %v6033 = vpop.permute.xlu0 %6032
  %6036 = vset.pattern.permute.xlu0 0
  %6037 = vperm.xlu0 %6036, %v6000
  %v6038 = vpop.permute.xlu0 %6037
  %6041 = vset.pattern.permute.xlu0 0
  %6042 = vperm.xlu0 %6041, %v6001
  %v6043 = vpop.permute.xlu0 %6042
  %6046 = vset.pattern.permute.xlu0 0
  %6047 = vperm.xlu0 %6046, %v6002
  %v6048 = vpop.permute.xlu0 %6047
  %6051 = vset.pattern.permute.xlu0 0
  %6052 = vperm.xlu0 %6051, %v6003
  %v6053 = vpop.permute.xlu0 %6052
  %6056 = vset.pattern.permute.xlu0 0
  %6057 = vperm.xlu0 %6056, %v6004
  %v6058 = vpop.permute.xlu0 %6057
  %vm6060 = vcmask 982016
  %v6062 = vsel %vm6060, %v5983, 0
  %v6065 = vsel %vm6060, %v5984, 0
  %v6068 = vsel %vm6060, %v5985, 0
  %v6071 = vsel %vm6060, %v5986, 0
  %v6074 = vsel %vm6060, %v5987, 0
  %v6077 = vsel %vm6060, %v5988, 0
  %v6080 = vsel %vm6060, %v5989, 0
  %v6083 = vsel %vm6060, %v5990, 0
  %v6086 = vsel %vm6060, %v5991, 0
  %v6089 = vsel %vm6060, %v5992, 0
  %v6092 = vsel %vm6060, %v5993, 0
  %6094 = vmatprep.subr.mxu0 0.0
  %6095 = vmatpush1.msra.mxu0 0.0
  %6096 = vmatprep.subr.mxu0 0.0
  %6097 = vmatpush1.msra.mxu0 %v5982
  %6098 = vmatprep.subr.mxu0 0.0
  %6099 = vmatpush1.msra.mxu0 %v5981
  %6100 = vmatprep.subr.mxu0 0.0
  %6101 = vmatpush1.msra.mxu0 %v5980
  %6102 = vmatprep.subr.mxu0 0.0
  %6103 = vmatpush1.msra.mxu0 %v5979
  %6104 = vmatprep.subr.mxu0 0.0
  %6105 = vmatpush1.msra.mxu0 %v5978
  %6106 = vmatprep.subr.mxu0 0.0
  %6107 = vmatpush1.msra.mxu0 %v5977
  %6108 = vmatprep.subr.mxu0 0.0
  %6109 = vmatpush1.msra.mxu0 %v5976
  %6110 = vmatprep.subr.mxu0 0.0
  %6111 = vmatpush1.msra.mxu0 %v5975
  %6112 = vmatprep.subr.mxu0 0.0
  %6113 = vmatpush1.msra.mxu0 %v5974
  %6114 = vmatprep.subr.mxu0 0.0
  %6115 = vmatpush1.msra.mxu0 %v5973
  %6116 = vmatprep.subr.mxu0 0.0
  %6117 = vmatpush1.msra.mxu0 %v5972
  %6118 = vmatprep.subr.mxu0 0.0
  %6119 = vmatpush1.msra.mxu0 %v5971
  %6120 = vmatprep.subr.mxu0 0.0
  %6121 = vmatpush1.msra.mxu0 %v5970
  %6122 = vmatprep.subr.mxu0 0.0
  %6123 = vmatpush1.msra.mxu0 %v5969
  %6124 = vmatprep.subr.mxu0 0.0
  %6125 = vmatpush1.msra.mxu0 %v5968
  %6126 = vmatprep.subr.mxu0 0.0
  %6127 = vmatpush2.msra.mxu0 0.0
  %6128 = vmatprep.subr.mxu0 0.0
  %6129 = vmatpush2.msra.mxu0 0.0
  %6130 = vmatprep.subr.mxu0 0.0
  %6131 = vmatpush2.msra.mxu0 0.0
  %6132 = vmatprep.subr.mxu0 0.0
  %6133 = vmatpush2.msra.mxu0 0.0
  %6134 = vmatprep.subr.mxu0 0.0
  %6135 = vmatpush2.msra.mxu0 0.0
  %6136 = vmatprep.subr.mxu0 0.0
  %6137 = vmatpush2.msra.mxu0 0.0
  %6138 = vmatprep.subr.mxu0 0.0
  %6139 = vmatpush2.msra.mxu0 0.0
  %6140 = vmatprep.subr.mxu0 0.0
  %6141 = vmatpush2.msra.mxu0 0.0
  %6142 = vmatprep.subr.mxu0 0.0
  %6143 = vmatpush2.msra.mxu0 0.0
  %6144 = vmatprep.subr.mxu0 0.0
  %6145 = vmatpush2.msra.mxu0 0.0
  %6146 = vmatprep.subr.mxu0 0.0
  %6147 = vmatpush2.msra.mxu0 0.0
  %6148 = vmatprep.subr.mxu0 0.0
  %6149 = vmatpush2.msra.mxu0 0.0
  %6150 = vmatprep.subr.mxu0 0.0
  %6151 = vmatpush2.msra.mxu0 0.0
  %6152 = vmatprep.subr.mxu0 0.0
  %6153 = vmatpush2.msra.mxu0 0.0
  %6154 = vmatprep.subr.mxu0 0.0
  %6155 = vmatpush2.msra.mxu0 0.0
  %6156 = vmatprep.subr.mxu0 0.0
  %6157 = vmatpush2.msra.mxu0 0.0
  %6158 = vmatprep.mubr.f32.mxu0 0.0
  %6159 = vmatmul.mubr.f32.gmra.mxu0 %v6062
  %v6160 = vpop.f32.mrf.mxu0
  %v6161 = vadd.f32 %v6008, %v6160
  %v6162 = vpop.f32.mrf.mxu0
  %6163 = vmatprep.mubr.f32.mxu0 0.0
  %6164 = vmatmul.mubr.f32.gmra.mxu0 %v6065
  %v6165 = vpop.f32.mrf.mxu0
  %v6166 = vadd.f32 %v6013, %v6165
  %v6167 = vpop.f32.mrf.mxu0
  %6168 = vmatprep.mubr.f32.mxu0 0.0
  %6169 = vmatmul.mubr.f32.gmra.mxu0 %v6068
  %v6170 = vpop.f32.mrf.mxu0
  %v6171 = vadd.f32 %v6018, %v6170
  %v6172 = vpop.f32.mrf.mxu0
  %6173 = vmatprep.mubr.f32.mxu0 0.0
  %6174 = vmatmul.mubr.f32.gmra.mxu0 %v6071
  %v6175 = vpop.f32.mrf.mxu0
  %v6176 = vadd.f32 %v6023, %v6175
  %v6177 = vpop.f32.mrf.mxu0
  %6178 = vmatprep.mubr.f32.mxu0 0.0
  %6179 = vmatmul.mubr.f32.gmra.mxu0 %v6074
  %v6180 = vpop.f32.mrf.mxu0
  %v6181 = vadd.f32 %v6028, %v6180
  %v6182 = vpop.f32.mrf.mxu0
  %6183 = vmatprep.mubr.f32.mxu0 0.0
  %6184 = vmatmul.mubr.f32.gmra.mxu0 %v6077
  %v6185 = vpop.f32.mrf.mxu0
  %v6186 = vadd.f32 %v6033, %v6185
  %v6187 = vpop.f32.mrf.mxu0
  %6188 = vmatprep.mubr.f32.mxu0 0.0
  %6189 = vmatmul.mubr.f32.gmra.mxu0 %v6080
  %v6190 = vpop.f32.mrf.mxu0
  %v6191 = vadd.f32 %v6038, %v6190
  %v6192 = vpop.f32.mrf.mxu0
  %6193 = vmatprep.mubr.f32.mxu0 0.0
  %6194 = vmatmul.mubr.f32.gmra.mxu0 %v6083
  %v6195 = vpop.f32.mrf.mxu0
  %v6196 = vadd.f32 %v6043, %v6195
  %v6197 = vpop.f32.mrf.mxu0
  %6198 = vmatprep.mubr.f32.mxu0 0.0
  %6199 = vmatmul.mubr.f32.gmra.mxu0 %v6086
  %v6200 = vpop.f32.mrf.mxu0
  %v6201 = vadd.f32 %v6048, %v6200
  %v6202 = vpop.f32.mrf.mxu0
  %6203 = vmatprep.mubr.f32.mxu0 0.0
  %6204 = vmatmul.mubr.f32.gmra.mxu0 %v6089
  %v6205 = vpop.f32.mrf.mxu0
  %v6206 = vadd.f32 %v6053, %v6205
  %v6207 = vpop.f32.mrf.mxu0
  %6208 = vmatprep.mubr.f32.mxu0 0.0
  %6209 = vmatmul.mubr.f32.gmra.mxu0 %v6092
  %v6210 = vpop.f32.mrf.mxu0
  %v6211 = vadd.f32 %v6058, %v6210
  %v6212 = vpop.f32.mrf.mxu0
  %6213 = vdwg.mxu0
  %v6214 = vmax.f32 %v6161, 0.0
  %v6215 = vmax.f32 %v6166, 0.0
  %v6216 = vmax.f32 %v6171, 0.0
  %v6217 = vmax.f32 %v6176, 0.0
  %v6218 = vmax.f32 %v6181, 0.0
  %v6219 = vmax.f32 %v6186, 0.0
  %v6220 = vmax.f32 %v6191, 0.0
  %v6221 = vmax.f32 %v6196, 0.0
  %v6222 = vmax.f32 %v6201, 0.0
  %v6223 = vmax.f32 %v6206, 0.0
  %v6224 = vmax.f32 %v6211, 0.0
  %v6225 = vld [vmem:[%s11] sm:$0xff]
  %v6226 = vld [vmem:[%s11 + $0x8] sm:$0x3]
  %v6227 = vld [vmem:[%s12] sm:$0xff]
  %v6228 = vld [vmem:[%s12 + $0x8] sm:$0x3]
  %6230 = vset.pattern.permute.xlu0 0
  %6231 = vperm.xlu0 %6230, %v6227
  %v6232 = vpop.permute.xlu0 %6231
  %6235 = vset.pattern.permute.xlu0 0
  %6236 = vperm.xlu0 %6235, %v6228
  %v6237 = vpop.permute.xlu0 %6236
  %vm6239 = vcmask 687104
  %v6241 = vsel %vm6239, %v6225, 0
  %v6244 = vsel %vm6239, %v6226, 0
  %vm6246 = vcmask 1043456
  %v6248 = vsel %vm6246, %v6224, 0
  %6250 = vmatprep.subr.mxu0 0.0
  %6251 = vmatpush1.msra.mxu0 0.0
  %6252 = vmatprep.subr.mxu0 0.0
  %6253 = vmatpush1.msra.mxu0 0.0
  %6254 = vmatprep.subr.mxu0 0.0
  %6255 = vmatpush1.msra.mxu0 0.0
  %6256 = vmatprep.subr.mxu0 0.0
  %6257 = vmatpush1.msra.mxu0 0.0
  %6258 = vmatprep.subr.mxu0 0.0
  %6259 = vmatpush1.msra.mxu0 0.0
  %6260 = vmatprep.subr.mxu0 0.0
  %6261 = vmatpush1.msra.mxu0 %v6248
  %6262 = vmatprep.subr.mxu0 0.0
  %6263 = vmatpush1.msra.mxu0 %v6223
  %6264 = vmatprep.subr.mxu0 0.0
  %6265 = vmatpush1.msra.mxu0 %v6222
  %6266 = vmatprep.subr.mxu0 0.0
  %6267 = vmatpush1.msra.mxu0 %v6221
  %6268 = vmatprep.subr.mxu0 0.0
  %6269 = vmatpush1.msra.mxu0 %v6220
  %6270 = vmatprep.subr.mxu0 0.0
  %6271 = vmatpush1.msra.mxu0 %v6219
  %6272 = vmatprep.subr.mxu0 0.0
  %6273 = vmatpush1.msra.mxu0 %v6218
  %6274 = vmatprep.subr.mxu0 0.0
  %6275 = vmatpush1.msra.mxu0 %v6217
  %6276 = vmatprep.subr.mxu0 0.0
  %6277 = vmatpush1.msra.mxu0 %v6216
  %6278 = vmatprep.subr.mxu0 0.0
  %6279 = vmatpush1.msra.mxu0 %v6215
  %6280 = vmatprep.subr.mxu0 0.0
  %6281 = vmatpush1.msra.mxu0 %v6214
  %6282 = vmatprep.subr.mxu0 0.0
  %6283 = vmatpush2.msra.mxu0 0.0
  %6284 = vmatprep.subr.mxu0 0.0
  %6285 = vmatpush2.msra.mxu0 0.0
  %6286 = vmatprep.subr.mxu0 0.0
  %6287 = vmatpush2.msra.mxu0 0.0
  %6288 = vmatprep.subr.mxu0 0.0
  %6289 = vmatpush2.msra.mxu0 0.0
  %6290 = vmatprep.subr.mxu0 0.0
  %6291 = vmatpush2.msra.mxu0 0.0
  %6292 = vmatprep.subr.mxu0 0.0
  %6293 = vmatpush2.msra.mxu0 0.0
  %6294 = vmatprep.subr.mxu0 0.0
  %6295 = vmatpush2.msra.mxu0 0.0
  %6296 = vmatprep.subr.mxu0 0.0
  %6297 = vmatpush2.msra.mxu0 0.0
  %6298 = vmatprep.subr.mxu0 0.0
  %6299 = vmatpush2.msra.mxu0 0.0
  %6300 = vmatprep.subr.mxu0 0.0
  %6301 = vmatpush2.msra.mxu0 0.0
  %6302 = vmatprep.subr.mxu0 0.0
  %6303 = vmatpush2.msra.mxu0 0.0
  %6304 = vmatprep.subr.mxu0 0.0
  %6305 = vmatpush2.msra.mxu0 0.0
  %6306 = vmatprep.subr.mxu0 0.0
  %6307 = vmatpush2.msra.mxu0 0.0
  %6308 = vmatprep.subr.mxu0 0.0
  %6309 = vmatpush2.msra.mxu0 0.0
  %6310 = vmatprep.subr.mxu0 0.0
  %6311 = vmatpush2.msra.mxu0 0.0
  %6312 = vmatprep.subr.mxu0 0.0
  %6313 = vmatpush2.msra.mxu0 0.0
  %6314 = vmatprep.mubr.f32.mxu0 0.0
  %6315 = vmatmul.mubr.f32.gmra.mxu0 %v6241
  %v6316 = vpop.f32.mrf.mxu0
  %v6317 = vadd.f32 %v6232, %v6316
  %v6318 = vpop.f32.mrf.mxu0
  %6319 = vmatprep.mubr.f32.mxu0 0.0
  %6320 = vmatmul.mubr.f32.gmra.mxu0 %v6244
  %v6321 = vpop.f32.mrf.mxu0
  %v6322 = vadd.f32 %v6237, %v6321
  %v6323 = vpop.f32.mrf.mxu0
  %6324 = vdwg.mxu0
  %6325 = vst [vmem:[%s13] sm:$0xff] %v6317
  %6326 = vst [vmem:[%s13 + $0x8] sm:$0x3] %v6322
  // Predicated region
  $region54: #{lenet5_forward.1} parent=0 // pred_check
    _
  $region55: #{lenet5_forward.1} parent=0 // pred_check_branch
    %6328 = sbr.rel (0) target = $region57
  $region56: #{lenet5_forward.1} parent=0 // pred_region
    _
  $region57: #{lenet5_forward.1} parent=0 // pred_fallthru
    _
  // Predicated region
  $region58: #{lenet5_forward.1} parent=0 // pred_check
    _
  $region59: #{lenet5_forward.1} parent=0 // pred_check_branch
    %6330 = sbr.rel (0) target = $region61
  $region60: #{lenet5_forward.1} parent=0 // pred_region
    _
  $region61: #{lenet5_forward.1} parent=0 // pred_fallthru
    _

</llo_original>
